<compile_context>
chip_gen: v6e
topology: v6e:2x2x1
jax: 0.10.0
libtpu: 0.0.40
codegen_flags: <defaults>
</compile_context>

<pallas_src>
import functools

import jax
import jax.numpy as jnp
from jax import lax
from jax.experimental import pallas as pl
from jax.experimental.pallas import tpu as pltpu

INPUT_SIZE = 2
HIDDEN = 31
LANES = 128          # one lane width; states/inputs are packed into (1, 128) rows
G4 = 4 * LANES       # packed gate width (i|f|g|o), each gate block lane-aligned


# ----------------------------- Pallas kernel -------------------------------
def _lstm_forward_kernel(x_ref, w0_ref, b0_ref, w1_ref, b1_ref,
                         wlin_ref, blin_ref,
                         out_ref,
                         h0_ref, c0_ref, h1_ref, c1_ref,
                         *, seq_len, future):
    # zero initial hidden / cell states (torch: h0 = c0 = zeros)
    h0_ref[...] = jnp.zeros_like(h0_ref)
    c0_ref[...] = jnp.zeros_like(c0_ref)
    h1_ref[...] = jnp.zeros_like(h1_ref)
    c1_ref[...] = jnp.zeros_like(c1_ref)

    def fused_cell(z, c, w_ref, b_ref):
        # z: (1, 128) packed [hidden | input] row, c: (1, 128)
        # w_ref: (128, 512) bf16 fused [Whh ; Wih] with 128-lane-aligned gates.
        gates = (jnp.dot(z.astype(jnp.bfloat16), w_ref[...],
                         preferred_element_type=jnp.float32)
                 + b_ref[...])
        i_g = jax.nn.sigmoid(gates[:, 0 * LANES:1 * LANES])
        f_g = jax.nn.sigmoid(gates[:, 1 * LANES:2 * LANES])
        g_g = jnp.tanh(gates[:, 2 * LANES:3 * LANES])
        o_g = jax.nn.sigmoid(gates[:, 3 * LANES:4 * LANES])
        c_new = f_g * c + i_g * g_g
        h_new = o_g * jnp.tanh(c_new)
        return h_new, c_new

    def step(x_emb):
        # x_emb: (1, 128) with the 2 real inputs at lanes 32:34, zeros elsewhere.
        h0n, c0n = fused_cell(h0_ref[...] + x_emb, c0_ref[...], w0_ref, b0_ref)
        h0_ref[...] = h0n                       # real values on lanes 0:31
        c0_ref[...] = c0n
        h1n, c1n = fused_cell(h0n + h1_ref[...], c1_ref[...], w1_ref, b1_ref)
        h1_ref[...] = h1n                       # real values on lanes 32:63
        c1_ref[...] = c1n
        # Folded Linear(31->2): output lands on lanes 32:34 (= next-step x lanes).
        y = (jnp.dot(h1n.astype(jnp.bfloat16), wlin_ref[...],
                     preferred_element_type=jnp.float32)
             + blin_ref[...])
        return y                                # (1, 128), lane-dense store

    # encoder pass over the provided sequence (fully unrolled, tiny trip count)
    def enc_body(t, carry):
        y = step(x_ref[t])
        out_ref[t] = y
        return carry
    lax.fori_loop(0, seq_len, enc_body, 0, unroll=True)

    # autoregressive future steps, seeded with the last input sample; the head
    # output is already in the layer-0 input lanes, so it feeds back unchanged.
    def fut_body(t, x_emb):
        y = step(x_emb)
        out_ref[seq_len + t] = y
        return y
    lax.fori_loop(0, future, fut_body, x_ref[seq_len - 1], unroll=True)


# --------------------------- parameter plumbing -----------------------------
def init_params(key):
    """Deterministic parameters with PyTorch nn.LSTM/nn.Linear shapes."""
    k = 1.0 / float(jnp.sqrt(jnp.float32(HIDDEN)))
    keys = jax.random.split(key, 10)

    def u(kk, shape):
        return jax.random.uniform(kk, shape, jnp.float32, -k, k)

    return dict(
        w_ih_l0=u(keys[0], (4 * HIDDEN, INPUT_SIZE)),
        w_hh_l0=u(keys[1], (4 * HIDDEN, HIDDEN)),
        b_ih_l0=u(keys[2], (4 * HIDDEN,)),
        b_hh_l0=u(keys[3], (4 * HIDDEN,)),
        w_ih_l1=u(keys[4], (4 * HIDDEN, HIDDEN)),
        w_hh_l1=u(keys[5], (4 * HIDDEN, HIDDEN)),
        b_ih_l1=u(keys[6], (4 * HIDDEN,)),
        b_hh_l1=u(keys[7], (4 * HIDDEN,)),
        w_lin=u(keys[8], (INPUT_SIZE, HIDDEN)),
        b_lin=u(keys[9], (INPUT_SIZE,)),
    )


def _pack_params(p):
    """Pack PyTorch-shaped params into fused, lane-aligned TPU layouts.

    Layer 0 fused weight (128, 512):
        rows 0:31  <- Whh0^T   (h0 lives on lanes 0:31 of z0)
        rows 32:34 <- Wih0^T   (x  lives on lanes 32:34 of z0)
        gate g output columns: g*128 + [0:31]
    Layer 1 fused weight (128, 512):
        rows 0:31  <- Wih1^T   (layer-1 input h0, lanes 0:31 of z1)
        rows 32:63 <- Whh1^T   (h1 state, lanes 32:63 of z1)
        gate g output columns: g*128 + 32 + [0:31]
    Head (128, 128): rows 32:63 <- Wlin^T, output columns 32:34.
    All padded rows/cols/bias lanes are exactly zero (required invariant).
    """
    f32 = jnp.float32
    H = HIDDEN

    w0 = jnp.zeros((LANES, G4), f32)
    b0 = jnp.zeros((1, G4), f32)
    whh0_t = p["w_hh_l0"].T                     # (H, 4H)
    wih0_t = p["w_ih_l0"].T                     # (IN, 4H)
    b0_sum = p["b_ih_l0"] + p["b_hh_l0"]        # (4H,)
    for g in range(4):
        c = g * LANES
        w0 = w0.at[0:H, c:c + H].set(whh0_t[:, g * H:(g + 1) * H])
        w0 = w0.at[32:32 + INPUT_SIZE, c:c + H].set(wih0_t[:, g * H:(g + 1) * H])
        b0 = b0.at[0, c:c + H].set(b0_sum[g * H:(g + 1) * H])

    w1 = jnp.zeros((LANES, G4), f32)
    b1 = jnp.zeros((1, G4), f32)
    wih1_t = p["w_ih_l1"].T                     # (H, 4H)
    whh1_t = p["w_hh_l1"].T                     # (H, 4H)
    b1_sum = p["b_ih_l1"] + p["b_hh_l1"]
    for g in range(4):
        c = g * LANES + 32
        w1 = w1.at[0:H, c:c + H].set(wih1_t[:, g * H:(g + 1) * H])
        w1 = w1.at[32:32 + H, c:c + H].set(whh1_t[:, g * H:(g + 1) * H])
        b1 = b1.at[0, c:c + H].set(b1_sum[g * H:(g + 1) * H])

    wlin = jnp.zeros((LANES, LANES), f32)
    wlin = wlin.at[32:32 + H, 32:32 + INPUT_SIZE].set(p["w_lin"].T)
    blin = jnp.zeros((1, LANES), f32).at[0, 32:32 + INPUT_SIZE].set(p["b_lin"])

    # bf16 weights -> single-pass MXU; biases stay f32 (added after f32 accumulate).
    return (w0.astype(jnp.bfloat16), b0,
            w1.astype(jnp.bfloat16), b1,
            wlin.astype(jnp.bfloat16), blin)


# -------------------------------- wrapper -----------------------------------
def lstm_model_forward(x, params, future=0):
    """x: (T, 2) float32  ->  (T + future, 2) float32."""
    T = x.shape[0]
    w0, b0, w1, b1, wlin, blin = _pack_params(params)

    # Pre-embed the input into the layer-0 input lanes (32:34) of a dense
    # (T, 1, 128) slab so the kernel never repacks inputs.
    x_emb = jnp.zeros((T, 1, LANES), jnp.float32)
    x_emb = x_emb.at[:, 0, 32:32 + INPUT_SIZE].set(x.astype(jnp.float32))

    kernel = functools.partial(_lstm_forward_kernel, seq_len=T, future=future)
    vmem = pl.BlockSpec(memory_space=pltpu.MemorySpace.VMEM)

    out3 = pl.pallas_call(
        kernel,
        out_shape=jax.ShapeDtypeStruct((T + future, 1, LANES), jnp.float32),
        in_specs=[vmem] * 7,
        out_specs=vmem,
        scratch_shapes=[
            pltpu.VMEM((1, LANES), jnp.float32),   # h layer 0 (lanes 0:31)
            pltpu.VMEM((1, LANES), jnp.float32),   # c layer 0
            pltpu.VMEM((1, LANES), jnp.float32),   # h layer 1 (lanes 32:63)
            pltpu.VMEM((1, LANES), jnp.float32),   # c layer 1
        ],
    )(x_emb, w0, b0, w1, b1, wlin, blin)

    return out3[:, 0, 32:32 + INPUT_SIZE]


# ----------------------------- pure-JAX reference ---------------------------
def ref_forward(x, p, future):
    H = HIDDEN
    hi = lax.Precision.HIGHEST

    def cell(xt, h, c, wih, whh, bih, bhh):
        gates = (jnp.dot(xt, wih.T, precision=hi)
                 + jnp.dot(h, whh.T, precision=hi) + bih + bhh)
        i = jax.nn.sigmoid(gates[0:H])
        f = jax.nn.sigmoid(gates[H:2 * H])
        g = jnp.tanh(gates[2 * H:3 * H])
        o = jax.nn.sigmoid(gates[3 * H:4 * H])
        cn = f * c + i * g
        hn = o * jnp.tanh(cn)
        return hn, cn

    def step(xt, h0, c0, h1, c1):
        h0, c0 = cell(xt, h0, c0, p["w_ih_l0"], p["w_hh_l0"],
                      p["b_ih_l0"], p["b_hh_l0"])
        h1, c1 = cell(h0, h1, c1, p["w_ih_l1"], p["w_hh_l1"],
                      p["b_ih_l1"], p["b_hh_l1"])
        y = jnp.dot(p["w_lin"], h1, precision=hi) + p["b_lin"]
        return y, h0, c0, h1, c1

    h0 = c0 = h1 = c1 = jnp.zeros((H,), jnp.float32)
    outs = []
    for t in range(x.shape[0]):
        y, h0, c0, h1, c1 = step(x[t], h0, c0, h1, c1)
        outs.append(y)
    xcur = x[-1]
    for _ in range(future):
        y, h0, c0, h1, c1 = step(xcur, h0, c0, h1, c1)
        xcur = y
        outs.append(y)
    return jnp.stack(outs, axis=0)


# ---------------------------------- main -------------------------------------
if __name__ == "__main__":
    key = jax.random.PRNGKey(0)
    pkey, xkey = jax.random.split(key)
    params = init_params(pkey)

    T, FUTURE = 8, 4
    x = jax.random.normal(xkey, (T, INPUT_SIZE), jnp.float32)

    out = lstm_model_forward(x, params, future=FUTURE)
    out = jax.block_until_ready(out)
    assert out.shape == (T + FUTURE, INPUT_SIZE), out.shape

    # Kernel feeds the MXU with bf16 operands (f32 accumulate) per the perf
    # review, so compare against the f32 reference at a bf16-appropriate tol.
    ref = ref_forward(x, params, FUTURE)
    assert jnp.allclose(out, ref, atol=2e-2, rtol=2e-2), (
        "mismatch vs reference:\n%s\n%s" % (out, ref))

    print("KERNEL_OK")
</pallas_src>

<mosaic_0001>
module attributes {stable_mosaic.version = 11 : i64} {
  func.func @_lstm_forward_kernel(%arg0: memref<8x1x128xf32, #tpu.memory_space<vmem>>, %arg1: memref<128x512xbf16, #tpu.memory_space<vmem>>, %arg2: memref<1x512xf32, #tpu.memory_space<vmem>>, %arg3: memref<128x512xbf16, #tpu.memory_space<vmem>>, %arg4: memref<1x512xf32, #tpu.memory_space<vmem>>, %arg5: memref<128x128xbf16, #tpu.memory_space<vmem>>, %arg6: memref<1x128xf32, #tpu.memory_space<vmem>>, %arg7: memref<12x1x128xf32, #tpu.memory_space<vmem>>, %arg8: memref<1x128xf32, #tpu.memory_space<vmem>>, %arg9: memref<1x128xf32, #tpu.memory_space<vmem>>, %arg10: memref<1x128xf32, #tpu.memory_space<vmem>>, %arg11: memref<1x128xf32, #tpu.memory_space<vmem>>) attributes {dimension_semantics = [], scalar_prefetch = 0 : i64, scratch_operands = 4 : i64, tpu.core_type = #tpu.core_type<tc>} {
    %cst = arith.constant 0.000000e+00 : f32
    %0 = vector.broadcast %cst : f32 to vector<1x128xf32>
    %c0 = arith.constant 0 : index
    %c0_0 = arith.constant 0 : index
    %1 = vector.load %arg8[%c0, %c0_0] : memref<1x128xf32, #tpu.memory_space<vmem>>, vector<1x128xf32>
    tpu.vector_store %arg8[%c0, %c0_0], %0 {strides = array<i32>} : memref<1x128xf32, #tpu.memory_space<vmem>>, vector<1x128xf32>,
    %cst_1 = arith.constant 0.000000e+00 : f32
    %2 = vector.broadcast %cst_1 : f32 to vector<1x128xf32>
    %c0_2 = arith.constant 0 : index
    %c0_3 = arith.constant 0 : index
    %3 = vector.load %arg9[%c0_2, %c0_3] : memref<1x128xf32, #tpu.memory_space<vmem>>, vector<1x128xf32>
    tpu.vector_store %arg9[%c0_2, %c0_3], %2 {strides = array<i32>} : memref<1x128xf32, #tpu.memory_space<vmem>>, vector<1x128xf32>,
    %cst_4 = arith.constant 0.000000e+00 : f32
    %4 = vector.broadcast %cst_4 : f32 to vector<1x128xf32>
    %c0_5 = arith.constant 0 : index
    %c0_6 = arith.constant 0 : index
    %5 = vector.load %arg10[%c0_5, %c0_6] : memref<1x128xf32, #tpu.memory_space<vmem>>, vector<1x128xf32>
    tpu.vector_store %arg10[%c0_5, %c0_6], %4 {strides = array<i32>} : memref<1x128xf32, #tpu.memory_space<vmem>>, vector<1x128xf32>,
    %cst_7 = arith.constant 0.000000e+00 : f32
    %6 = vector.broadcast %cst_7 : f32 to vector<1x128xf32>
    %c0_8 = arith.constant 0 : index
    %c0_9 = arith.constant 0 : index
    %7 = vector.load %arg11[%c0_8, %c0_9] : memref<1x128xf32, #tpu.memory_space<vmem>>, vector<1x128xf32>
    tpu.vector_store %arg11[%c0_8, %c0_9], %6 {strides = array<i32>} : memref<1x128xf32, #tpu.memory_space<vmem>>, vector<1x128xf32>,
    %c0_i32 = arith.constant 0 : i32
    %8 = arith.index_cast %c0_i32 : i32 to index
    %c0_10 = arith.constant 0 : index
    %c0_11 = arith.constant 0 : index
    %9 = vector.load %arg0[%8, %c0_10, %c0_11] : memref<8x1x128xf32, #tpu.memory_space<vmem>>, vector<1x1x128xf32>
    %10 = vector.shape_cast %9 : vector<1x1x128xf32> to vector<1x128xf32>
    %c0_12 = arith.constant 0 : index
    %c0_13 = arith.constant 0 : index
    %11 = vector.load %arg8[%c0_12, %c0_13] : memref<1x128xf32, #tpu.memory_space<vmem>>, vector<1x128xf32>
    %12 = arith.addf %11, %10 : vector<1x128xf32>
    %c0_14 = arith.constant 0 : index
    %c0_15 = arith.constant 0 : index
    %13 = vector.load %arg9[%c0_14, %c0_15] : memref<1x128xf32, #tpu.memory_space<vmem>>, vector<1x128xf32>
    %14 = arith.truncf %12 : vector<1x128xf32> to vector<1x128xbf16>
    %c0_16 = arith.constant 0 : index
    %c0_17 = arith.constant 0 : index
    %15 = vector.load %arg1[%c0_16, %c0_17] : memref<128x512xbf16, #tpu.memory_space<vmem>>, vector<128x512xbf16>
    %cst_18 = arith.constant dense<0.000000e+00> : vector<1x512xf32>
    %16 = tpu.matmul %14, %15, %cst_18 {dimension_numbers = #tpu.dot_dimension_numbers<[1], [0], [0], [1], [0, 0, 1, 1], [], []>} : vector<1x128xbf16>, vector<128x512xbf16>, vector<1x512xf32> -> vector<1x512xf32>
    %c0_19 = arith.constant 0 : index
    %c0_20 = arith.constant 0 : index
    %17 = vector.load %arg2[%c0_19, %c0_20] : memref<1x512xf32, #tpu.memory_space<vmem>>, vector<1x512xf32>
    %18 = arith.addf %16, %17 : vector<1x512xf32>
    %19 = vector.extract_strided_slice %18 {offsets = [0, 0], sizes = [1, 128], strides = [1, 1]} : vector<1x512xf32> to vector<1x128xf32>
    %20 = arith.negf %19 : vector<1x128xf32>
    %21 = math.exp %20 : vector<1x128xf32>
    %cst_21 = arith.constant 1.000000e+00 : f32
    %22 = vector.broadcast %cst_21 : f32 to vector<1x128xf32>
    %23 = arith.addf %22, %21 : vector<1x128xf32>
    %24 = arith.divf %22, %23 : vector<1x128xf32>
    %25 = vector.extract_strided_slice %18 {offsets = [0, 128], sizes = [1, 128], strides = [1, 1]} : vector<1x512xf32> to vector<1x128xf32>
    %26 = arith.negf %25 : vector<1x128xf32>
    %27 = math.exp %26 : vector<1x128xf32>
    %cst_22 = arith.constant 1.000000e+00 : f32
    %28 = vector.broadcast %cst_22 : f32 to vector<1x128xf32>
    %29 = arith.addf %28, %27 : vector<1x128xf32>
    %30 = arith.divf %28, %29 : vector<1x128xf32>
    %31 = vector.extract_strided_slice %18 {offsets = [0, 256], sizes = [1, 128], strides = [1, 1]} : vector<1x512xf32> to vector<1x128xf32>
    %32 = math.tanh %31 : vector<1x128xf32>
    %33 = vector.extract_strided_slice %18 {offsets = [0, 384], sizes = [1, 128], strides = [1, 1]} : vector<1x512xf32> to vector<1x128xf32>
    %34 = arith.negf %33 : vector<1x128xf32>
    %35 = math.exp %34 : vector<1x128xf32>
    %cst_23 = arith.constant 1.000000e+00 : f32
    %36 = vector.broadcast %cst_23 : f32 to vector<1x128xf32>
    %37 = arith.addf %36, %35 : vector<1x128xf32>
    %38 = arith.divf %36, %37 : vector<1x128xf32>
    %39 = arith.mulf %30, %13 : vector<1x128xf32>
    %40 = arith.mulf %24, %32 : vector<1x128xf32>
    %41 = arith.addf %39, %40 : vector<1x128xf32>
    %42 = math.tanh %41 : vector<1x128xf32>
    %43 = arith.mulf %38, %42 : vector<1x128xf32>
    %c0_24 = arith.constant 0 : index
    %c0_25 = arith.constant 0 : index
    %44 = vector.load %arg8[%c0_24, %c0_25] : memref<1x128xf32, #tpu.memory_space<vmem>>, vector<1x128xf32>
    tpu.vector_store %arg8[%c0_24, %c0_25], %43 {strides = array<i32>} : memref<1x128xf32, #tpu.memory_space<vmem>>, vector<1x128xf32>,
    %c0_26 = arith.constant 0 : index
    %c0_27 = arith.constant 0 : index
    %45 = vector.load %arg9[%c0_26, %c0_27] : memref<1x128xf32, #tpu.memory_space<vmem>>, vector<1x128xf32>
    tpu.vector_store %arg9[%c0_26, %c0_27], %41 {strides = array<i32>} : memref<1x128xf32, #tpu.memory_space<vmem>>, vector<1x128xf32>,
    %c0_28 = arith.constant 0 : index
    %c0_29 = arith.constant 0 : index
    %46 = vector.load %arg10[%c0_28, %c0_29] : memref<1x128xf32, #tpu.memory_space<vmem>>, vector<1x128xf32>
    %47 = arith.addf %43, %46 : vector<1x128xf32>
    %c0_30 = arith.constant 0 : index
    %c0_31 = arith.constant 0 : index
    %48 = vector.load %arg11[%c0_30, %c0_31] : memref<1x128xf32, #tpu.memory_space<vmem>>, vector<1x128xf32>
    %49 = arith.truncf %47 : vector<1x128xf32> to vector<1x128xbf16>
    %c0_32 = arith.constant 0 : index
    %c0_33 = arith.constant 0 : index
    %50 = vector.load %arg3[%c0_32, %c0_33] : memref<128x512xbf16, #tpu.memory_space<vmem>>, vector<128x512xbf16>
    %cst_34 = arith.constant dense<0.000000e+00> : vector<1x512xf32>
    %51 = tpu.matmul %49, %50, %cst_34 {dimension_numbers = #tpu.dot_dimension_numbers<[1], [0], [0], [1], [0, 0, 1, 1], [], []>} : vector<1x128xbf16>, vector<128x512xbf16>, vector<1x512xf32> -> vector<1x512xf32>
    %c0_35 = arith.constant 0 : index
    %c0_36 = arith.constant 0 : index
    %52 = vector.load %arg4[%c0_35, %c0_36] : memref<1x512xf32, #tpu.memory_space<vmem>>, vector<1x512xf32>
    %53 = arith.addf %51, %52 : vector<1x512xf32>
    %54 = vector.extract_strided_slice %53 {offsets = [0, 0], sizes = [1, 128], strides = [1, 1]} : vector<1x512xf32> to vector<1x128xf32>
    %55 = arith.negf %54 : vector<1x128xf32>
    %56 = math.exp %55 : vector<1x128xf32>
    %cst_37 = arith.constant 1.000000e+00 : f32
    %57 = vector.broadcast %cst_37 : f32 to vector<1x128xf32>
    %58 = arith.addf %57, %56 : vector<1x128xf32>
    %59 = arith.divf %57, %58 : vector<1x128xf32>
    %60 = vector.extract_strided_slice %53 {offsets = [0, 128], sizes = [1, 128], strides = [1, 1]} : vector<1x512xf32> to vector<1x128xf32>
    %61 = arith.negf %60 : vector<1x128xf32>
    %62 = math.exp %61 : vector<1x128xf32>
    %cst_38 = arith.constant 1.000000e+00 : f32
    %63 = vector.broadcast %cst_38 : f32 to vector<1x128xf32>
    %64 = arith.addf %63, %62 : vector<1x128xf32>
    %65 = arith.divf %63, %64 : vector<1x128xf32>
    %66 = vector.extract_strided_slice %53 {offsets = [0, 256], sizes = [1, 128], strides = [1, 1]} : vector<1x512xf32> to vector<1x128xf32>
    %67 = math.tanh %66 : vector<1x128xf32>
    %68 = vector.extract_strided_slice %53 {offsets = [0, 384], sizes = [1, 128], strides = [1, 1]} : vector<1x512xf32> to vector<1x128xf32>
    %69 = arith.negf %68 : vector<1x128xf32>
    %70 = math.exp %69 : vector<1x128xf32>
    %cst_39 = arith.constant 1.000000e+00 : f32
    %71 = vector.broadcast %cst_39 : f32 to vector<1x128xf32>
    %72 = arith.addf %71, %70 : vector<1x128xf32>
    %73 = arith.divf %71, %72 : vector<1x128xf32>
    %74 = arith.mulf %65, %48 : vector<1x128xf32>
    %75 = arith.mulf %59, %67 : vector<1x128xf32>
    %76 = arith.addf %74, %75 : vector<1x128xf32>
    %77 = math.tanh %76 : vector<1x128xf32>
    %78 = arith.mulf %73, %77 : vector<1x128xf32>
    %c0_40 = arith.constant 0 : index
    %c0_41 = arith.constant 0 : index
    %79 = vector.load %arg10[%c0_40, %c0_41] : memref<1x128xf32, #tpu.memory_space<vmem>>, vector<1x128xf32>
    tpu.vector_store %arg10[%c0_40, %c0_41], %78 {strides = array<i32>} : memref<1x128xf32, #tpu.memory_space<vmem>>, vector<1x128xf32>,
    %c0_42 = arith.constant 0 : index
    %c0_43 = arith.constant 0 : index
    %80 = vector.load %arg11[%c0_42, %c0_43] : memref<1x128xf32, #tpu.memory_space<vmem>>, vector<1x128xf32>
    tpu.vector_store %arg11[%c0_42, %c0_43], %76 {strides = array<i32>} : memref<1x128xf32, #tpu.memory_space<vmem>>, vector<1x128xf32>,
    %81 = arith.truncf %78 : vector<1x128xf32> to vector<1x128xbf16>
    %c0_44 = arith.constant 0 : index
    %c0_45 = arith.constant 0 : index
    %82 = vector.load %arg5[%c0_44, %c0_45] : memref<128x128xbf16, #tpu.memory_space<vmem>>, vector<128x128xbf16>
    %cst_46 = arith.constant dense<0.000000e+00> : vector<1x128xf32>
    %83 = tpu.matmul %81, %82, %cst_46 {dimension_numbers = #tpu.dot_dimension_numbers<[1], [0], [0], [1], [0, 0, 1, 1], [], []>} : vector<1x128xbf16>, vector<128x128xbf16>, vector<1x128xf32> -> vector<1x128xf32>
    %c0_47 = arith.constant 0 : index
    %c0_48 = arith.constant 0 : index
    %84 = vector.load %arg6[%c0_47, %c0_48] : memref<1x128xf32, #tpu.memory_space<vmem>>, vector<1x128xf32>
    %85 = arith.addf %83, %84 : vector<1x128xf32>
    %86 = arith.index_cast %c0_i32 : i32 to index
    %c0_49 = arith.constant 0 : index
    %c0_50 = arith.constant 0 : index
    %87 = vector.load %arg7[%86, %c0_49, %c0_50] : memref<12x1x128xf32, #tpu.memory_space<vmem>>, vector<1x1x128xf32>
    %88 = vector.shape_cast %87 : vector<1x1x128xf32> to vector<1x128xf32>
    %89 = vector.shape_cast %85 : vector<1x128xf32> to vector<1x1x128xf32>
    tpu.vector_store %arg7[%86, %c0_49, %c0_50], %89 {strides = array<i32>} : memref<12x1x128xf32, #tpu.memory_space<vmem>>, vector<1x1x128xf32>,
    %c1_i32 = arith.constant 1 : i32
    %90 = arith.index_cast %c1_i32 : i32 to index
    %c0_51 = arith.constant 0 : index
    %c0_52 = arith.constant 0 : index
    %91 = vector.load %arg0[%90, %c0_51, %c0_52] : memref<8x1x128xf32, #tpu.memory_space<vmem>>, vector<1x1x128xf32>
    %92 = vector.shape_cast %91 : vector<1x1x128xf32> to vector<1x128xf32>
    %c0_53 = arith.constant 0 : index
    %c0_54 = arith.constant 0 : index
    %93 = vector.load %arg8[%c0_53, %c0_54] : memref<1x128xf32, #tpu.memory_space<vmem>>, vector<1x128xf32>
    %94 = arith.addf %93, %92 : vector<1x128xf32>
    %c0_55 = arith.constant 0 : index
    %c0_56 = arith.constant 0 : index
    %95 = vector.load %arg9[%c0_55, %c0_56] : memref<1x128xf32, #tpu.memory_space<vmem>>, vector<1x128xf32>
    %96 = arith.truncf %94 : vector<1x128xf32> to vector<1x128xbf16>
    %c0_57 = arith.constant 0 : index
    %c0_58 = arith.constant 0 : index
    %97 = vector.load %arg1[%c0_57, %c0_58] : memref<128x512xbf16, #tpu.memory_space<vmem>>, vector<128x512xbf16>
    %cst_59 = arith.constant dense<0.000000e+00> : vector<1x512xf32>
    %98 = tpu.matmul %96, %97, %cst_59 {dimension_numbers = #tpu.dot_dimension_numbers<[1], [0], [0], [1], [0, 0, 1, 1], [], []>} : vector<1x128xbf16>, vector<128x512xbf16>, vector<1x512xf32> -> vector<1x512xf32>
    %c0_60 = arith.constant 0 : index
    %c0_61 = arith.constant 0 : index
    %99 = vector.load %arg2[%c0_60, %c0_61] : memref<1x512xf32, #tpu.memory_space<vmem>>, vector<1x512xf32>
    %100 = arith.addf %98, %99 : vector<1x512xf32>
    %101 = vector.extract_strided_slice %100 {offsets = [0, 0], sizes = [1, 128], strides = [1, 1]} : vector<1x512xf32> to vector<1x128xf32>
    %102 = arith.negf %101 : vector<1x128xf32>
    %103 = math.exp %102 : vector<1x128xf32>
    %cst_62 = arith.constant 1.000000e+00 : f32
    %104 = vector.broadcast %cst_62 : f32 to vector<1x128xf32>
    %105 = arith.addf %104, %103 : vector<1x128xf32>
    %106 = arith.divf %104, %105 : vector<1x128xf32>
    %107 = vector.extract_strided_slice %100 {offsets = [0, 128], sizes = [1, 128], strides = [1, 1]} : vector<1x512xf32> to vector<1x128xf32>
    %108 = arith.negf %107 : vector<1x128xf32>
    %109 = math.exp %108 : vector<1x128xf32>
    %cst_63 = arith.constant 1.000000e+00 : f32
    %110 = vector.broadcast %cst_63 : f32 to vector<1x128xf32>
    %111 = arith.addf %110, %109 : vector<1x128xf32>
    %112 = arith.divf %110, %111 : vector<1x128xf32>
    %113 = vector.extract_strided_slice %100 {offsets = [0, 256], sizes = [1, 128], strides = [1, 1]} : vector<1x512xf32> to vector<1x128xf32>
    %114 = math.tanh %113 : vector<1x128xf32>
    %115 = vector.extract_strided_slice %100 {offsets = [0, 384], sizes = [1, 128], strides = [1, 1]} : vector<1x512xf32> to vector<1x128xf32>
    %116 = arith.negf %115 : vector<1x128xf32>
    %117 = math.exp %116 : vector<1x128xf32>
    %cst_64 = arith.constant 1.000000e+00 : f32
    %118 = vector.broadcast %cst_64 : f32 to vector<1x128xf32>
    %119 = arith.addf %118, %117 : vector<1x128xf32>
    %120 = arith.divf %118, %119 : vector<1x128xf32>
    %121 = arith.mulf %112, %95 : vector<1x128xf32>
    %122 = arith.mulf %106, %114 : vector<1x128xf32>
    %123 = arith.addf %121, %122 : vector<1x128xf32>
    %124 = math.tanh %123 : vector<1x128xf32>
    %125 = arith.mulf %120, %124 : vector<1x128xf32>
    %c0_65 = arith.constant 0 : index
    %c0_66 = arith.constant 0 : index
    %126 = vector.load %arg8[%c0_65, %c0_66] : memref<1x128xf32, #tpu.memory_space<vmem>>, vector<1x128xf32>
    tpu.vector_store %arg8[%c0_65, %c0_66], %125 {strides = array<i32>} : memref<1x128xf32, #tpu.memory_space<vmem>>, vector<1x128xf32>,
    %c0_67 = arith.constant 0 : index
    %c0_68 = arith.constant 0 : index
    %127 = vector.load %arg9[%c0_67, %c0_68] : memref<1x128xf32, #tpu.memory_space<vmem>>, vector<1x128xf32>
    tpu.vector_store %arg9[%c0_67, %c0_68], %123 {strides = array<i32>} : memref<1x128xf32, #tpu.memory_space<vmem>>, vector<1x128xf32>,
    %c0_69 = arith.constant 0 : index
    %c0_70 = arith.constant 0 : index
    %128 = vector.load %arg10[%c0_69, %c0_70] : memref<1x128xf32, #tpu.memory_space<vmem>>, vector<1x128xf32>
    %129 = arith.addf %125, %128 : vector<1x128xf32>
    %c0_71 = arith.constant 0 : index
    %c0_72 = arith.constant 0 : index
    %130 = vector.load %arg11[%c0_71, %c0_72] : memref<1x128xf32, #tpu.memory_space<vmem>>, vector<1x128xf32>
    %131 = arith.truncf %129 : vector<1x128xf32> to vector<1x128xbf16>
    %c0_73 = arith.constant 0 : index
    %c0_74 = arith.constant 0 : index
    %132 = vector.load %arg3[%c0_73, %c0_74] : memref<128x512xbf16, #tpu.memory_space<vmem>>, vector<128x512xbf16>
    %cst_75 = arith.constant dense<0.000000e+00> : vector<1x512xf32>
    %133 = tpu.matmul %131, %132, %cst_75 {dimension_numbers = #tpu.dot_dimension_numbers<[1], [0], [0], [1], [0, 0, 1, 1], [], []>} : vector<1x128xbf16>, vector<128x512xbf16>, vector<1x512xf32> -> vector<1x512xf32>
    %c0_76 = arith.constant 0 : index
    %c0_77 = arith.constant 0 : index
    %134 = vector.load %arg4[%c0_76, %c0_77] : memref<1x512xf32, #tpu.memory_space<vmem>>, vector<1x512xf32>
    %135 = arith.addf %133, %134 : vector<1x512xf32>
    %136 = vector.extract_strided_slice %135 {offsets = [0, 0], sizes = [1, 128], strides = [1, 1]} : vector<1x512xf32> to vector<1x128xf32>
    %137 = arith.negf %136 : vector<1x128xf32>
    %138 = math.exp %137 : vector<1x128xf32>
    %cst_78 = arith.constant 1.000000e+00 : f32
    %139 = vector.broadcast %cst_78 : f32 to vector<1x128xf32>
    %140 = arith.addf %139, %138 : vector<1x128xf32>
    %141 = arith.divf %139, %140 : vector<1x128xf32>
    %142 = vector.extract_strided_slice %135 {offsets = [0, 128], sizes = [1, 128], strides = [1, 1]} : vector<1x512xf32> to vector<1x128xf32>
    %143 = arith.negf %142 : vector<1x128xf32>
    %144 = math.exp %143 : vector<1x128xf32>
    %cst_79 = arith.constant 1.000000e+00 : f32
    %145 = vector.broadcast %cst_79 : f32 to vector<1x128xf32>
    %146 = arith.addf %145, %144 : vector<1x128xf32>
    %147 = arith.divf %145, %146 : vector<1x128xf32>
    %148 = vector.extract_strided_slice %135 {offsets = [0, 256], sizes = [1, 128], strides = [1, 1]} : vector<1x512xf32> to vector<1x128xf32>
    %149 = math.tanh %148 : vector<1x128xf32>
    %150 = vector.extract_strided_slice %135 {offsets = [0, 384], sizes = [1, 128], strides = [1, 1]} : vector<1x512xf32> to vector<1x128xf32>
    %151 = arith.negf %150 : vector<1x128xf32>
    %152 = math.exp %151 : vector<1x128xf32>
    %cst_80 = arith.constant 1.000000e+00 : f32
    %153 = vector.broadcast %cst_80 : f32 to vector<1x128xf32>
    %154 = arith.addf %153, %152 : vector<1x128xf32>
    %155 = arith.divf %153, %154 : vector<1x128xf32>
    %156 = arith.mulf %147, %130 : vector<1x128xf32>
    %157 = arith.mulf %141, %149 : vector<1x128xf32>
    %158 = arith.addf %156, %157 : vector<1x128xf32>
    %159 = math.tanh %158 : vector<1x128xf32>
    %160 = arith.mulf %155, %159 : vector<1x128xf32>
    %c0_81 = arith.constant 0 : index
    %c0_82 = arith.constant 0 : index
    %161 = vector.load %arg10[%c0_81, %c0_82] : memref<1x128xf32, #tpu.memory_space<vmem>>, vector<1x128xf32>
    tpu.vector_store %arg10[%c0_81, %c0_82], %160 {strides = array<i32>} : memref<1x128xf32, #tpu.memory_space<vmem>>, vector<1x128xf32>,
    %c0_83 = arith.constant 0 : index
    %c0_84 = arith.constant 0 : index
    %162 = vector.load %arg11[%c0_83, %c0_84] : memref<1x128xf32, #tpu.memory_space<vmem>>, vector<1x128xf32>
    tpu.vector_store %arg11[%c0_83, %c0_84], %158 {strides = array<i32>} : memref<1x128xf32, #tpu.memory_space<vmem>>, vector<1x128xf32>,
    %163 = arith.truncf %160 : vector<1x128xf32> to vector<1x128xbf16>
    %c0_85 = arith.constant 0 : index
    %c0_86 = arith.constant 0 : index
    %164 = vector.load %arg5[%c0_85, %c0_86] : memref<128x128xbf16, #tpu.memory_space<vmem>>, vector<128x128xbf16>
    %cst_87 = arith.constant dense<0.000000e+00> : vector<1x128xf32>
    %165 = tpu.matmul %163, %164, %cst_87 {dimension_numbers = #tpu.dot_dimension_numbers<[1], [0], [0], [1], [0, 0, 1, 1], [], []>} : vector<1x128xbf16>, vector<128x128xbf16>, vector<1x128xf32> -> vector<1x128xf32>
    %c0_88 = arith.constant 0 : index
    %c0_89 = arith.constant 0 : index
    %166 = vector.load %arg6[%c0_88, %c0_89] : memref<1x128xf32, #tpu.memory_space<vmem>>, vector<1x128xf32>
    %167 = arith.addf %165, %166 : vector<1x128xf32>
    %168 = arith.index_cast %c1_i32 : i32 to index
    %c0_90 = arith.constant 0 : index
    %c0_91 = arith.constant 0 : index
    %169 = vector.load %arg7[%168, %c0_90, %c0_91] : memref<12x1x128xf32, #tpu.memory_space<vmem>>, vector<1x1x128xf32>
    %170 = vector.shape_cast %169 : vector<1x1x128xf32> to vector<1x128xf32>
    %171 = vector.shape_cast %167 : vector<1x128xf32> to vector<1x1x128xf32>
    tpu.vector_store %arg7[%168, %c0_90, %c0_91], %171 {strides = array<i32>} : memref<12x1x128xf32, #tpu.memory_space<vmem>>, vector<1x1x128xf32>,
    %c2_i32 = arith.constant 2 : i32
    %172 = arith.index_cast %c2_i32 : i32 to index
    %c0_92 = arith.constant 0 : index
    %c0_93 = arith.constant 0 : index
    %173 = vector.load %arg0[%172, %c0_92, %c0_93] : memref<8x1x128xf32, #tpu.memory_space<vmem>>, vector<1x1x128xf32>
    %174 = vector.shape_cast %173 : vector<1x1x128xf32> to vector<1x128xf32>
    %c0_94 = arith.constant 0 : index
    %c0_95 = arith.constant 0 : index
    %175 = vector.load %arg8[%c0_94, %c0_95] : memref<1x128xf32, #tpu.memory_space<vmem>>, vector<1x128xf32>
    %176 = arith.addf %175, %174 : vector<1x128xf32>
    %c0_96 = arith.constant 0 : index
    %c0_97 = arith.constant 0 : index
    %177 = vector.load %arg9[%c0_96, %c0_97] : memref<1x128xf32, #tpu.memory_space<vmem>>, vector<1x128xf32>
    %178 = arith.truncf %176 : vector<1x128xf32> to vector<1x128xbf16>
    %c0_98 = arith.constant 0 : index
    %c0_99 = arith.constant 0 : index
    %179 = vector.load %arg1[%c0_98, %c0_99] : memref<128x512xbf16, #tpu.memory_space<vmem>>, vector<128x512xbf16>
    %cst_100 = arith.constant dense<0.000000e+00> : vector<1x512xf32>
    %180 = tpu.matmul %178, %179, %cst_100 {dimension_numbers = #tpu.dot_dimension_numbers<[1], [0], [0], [1], [0, 0, 1, 1], [], []>} : vector<1x128xbf16>, vector<128x512xbf16>, vector<1x512xf32> -> vector<1x512xf32>
    %c0_101 = arith.constant 0 : index
    %c0_102 = arith.constant 0 : index
    %181 = vector.load %arg2[%c0_101, %c0_102] : memref<1x512xf32, #tpu.memory_space<vmem>>, vector<1x512xf32>
    %182 = arith.addf %180, %181 : vector<1x512xf32>
    %183 = vector.extract_strided_slice %182 {offsets = [0, 0], sizes = [1, 128], strides = [1, 1]} : vector<1x512xf32> to vector<1x128xf32>
    %184 = arith.negf %183 : vector<1x128xf32>
    %185 = math.exp %184 : vector<1x128xf32>
    %cst_103 = arith.constant 1.000000e+00 : f32
    %186 = vector.broadcast %cst_103 : f32 to vector<1x128xf32>
    %187 = arith.addf %186, %185 : vector<1x128xf32>
    %188 = arith.divf %186, %187 : vector<1x128xf32>
    %189 = vector.extract_strided_slice %182 {offsets = [0, 128], sizes = [1, 128], strides = [1, 1]} : vector<1x512xf32> to vector<1x128xf32>
    %190 = arith.negf %189 : vector<1x128xf32>
    %191 = math.exp %190 : vector<1x128xf32>
    %cst_104 = arith.constant 1.000000e+00 : f32
    %192 = vector.broadcast %cst_104 : f32 to vector<1x128xf32>
    %193 = arith.addf %192, %191 : vector<1x128xf32>
    %194 = arith.divf %192, %193 : vector<1x128xf32>
    %195 = vector.extract_strided_slice %182 {offsets = [0, 256], sizes = [1, 128], strides = [1, 1]} : vector<1x512xf32> to vector<1x128xf32>
    %196 = math.tanh %195 : vector<1x128xf32>
    %197 = vector.extract_strided_slice %182 {offsets = [0, 384], sizes = [1, 128], strides = [1, 1]} : vector<1x512xf32> to vector<1x128xf32>
    %198 = arith.negf %197 : vector<1x128xf32>
    %199 = math.exp %198 : vector<1x128xf32>
    %cst_105 = arith.constant 1.000000e+00 : f32
    %200 = vector.broadcast %cst_105 : f32 to vector<1x128xf32>
    %201 = arith.addf %200, %199 : vector<1x128xf32>
    %202 = arith.divf %200, %201 : vector<1x128xf32>
    %203 = arith.mulf %194, %177 : vector<1x128xf32>
    %204 = arith.mulf %188, %196 : vector<1x128xf32>
    %205 = arith.addf %203, %204 : vector<1x128xf32>
    %206 = math.tanh %205 : vector<1x128xf32>
    %207 = arith.mulf %202, %206 : vector<1x128xf32>
    %c0_106 = arith.constant 0 : index
    %c0_107 = arith.constant 0 : index
    %208 = vector.load %arg8[%c0_106, %c0_107] : memref<1x128xf32, #tpu.memory_space<vmem>>, vector<1x128xf32>
    tpu.vector_store %arg8[%c0_106, %c0_107], %207 {strides = array<i32>} : memref<1x128xf32, #tpu.memory_space<vmem>>, vector<1x128xf32>,
    %c0_108 = arith.constant 0 : index
    %c0_109 = arith.constant 0 : index
    %209 = vector.load %arg9[%c0_108, %c0_109] : memref<1x128xf32, #tpu.memory_space<vmem>>, vector<1x128xf32>
    tpu.vector_store %arg9[%c0_108, %c0_109], %205 {strides = array<i32>} : memref<1x128xf32, #tpu.memory_space<vmem>>, vector<1x128xf32>,
    %c0_110 = arith.constant 0 : index
    %c0_111 = arith.constant 0 : index
    %210 = vector.load %arg10[%c0_110, %c0_111] : memref<1x128xf32, #tpu.memory_space<vmem>>, vector<1x128xf32>
    %211 = arith.addf %207, %210 : vector<1x128xf32>
    %c0_112 = arith.constant 0 : index
    %c0_113 = arith.constant 0 : index
    %212 = vector.load %arg11[%c0_112, %c0_113] : memref<1x128xf32, #tpu.memory_space<vmem>>, vector<1x128xf32>
    %213 = arith.truncf %211 : vector<1x128xf32> to vector<1x128xbf16>
    %c0_114 = arith.constant 0 : index
    %c0_115 = arith.constant 0 : index
    %214 = vector.load %arg3[%c0_114, %c0_115] : memref<128x512xbf16, #tpu.memory_space<vmem>>, vector<128x512xbf16>
    %cst_116 = arith.constant dense<0.000000e+00> : vector<1x512xf32>
    %215 = tpu.matmul %213, %214, %cst_116 {dimension_numbers = #tpu.dot_dimension_numbers<[1], [0], [0], [1], [0, 0, 1, 1], [], []>} : vector<1x128xbf16>, vector<128x512xbf16>, vector<1x512xf32> -> vector<1x512xf32>
    %c0_117 = arith.constant 0 : index
    %c0_118 = arith.constant 0 : index
    %216 = vector.load %arg4[%c0_117, %c0_118] : memref<1x512xf32, #tpu.memory_space<vmem>>, vector<1x512xf32>
    %217 = arith.addf %215, %216 : vector<1x512xf32>
    %218 = vector.extract_strided_slice %217 {offsets = [0, 0], sizes = [1, 128], strides = [1, 1]} : vector<1x512xf32> to vector<1x128xf32>
    %219 = arith.negf %218 : vector<1x128xf32>
    %220 = math.exp %219 : vector<1x128xf32>
    %cst_119 = arith.constant 1.000000e+00 : f32
    %221 = vector.broadcast %cst_119 : f32 to vector<1x128xf32>
    %222 = arith.addf %221, %220 : vector<1x128xf32>
    %223 = arith.divf %221, %222 : vector<1x128xf32>
    %224 = vector.extract_strided_slice %217 {offsets = [0, 128], sizes = [1, 128], strides = [1, 1]} : vector<1x512xf32> to vector<1x128xf32>
    %225 = arith.negf %224 : vector<1x128xf32>
    %226 = math.exp %225 : vector<1x128xf32>
    %cst_120 = arith.constant 1.000000e+00 : f32
    %227 = vector.broadcast %cst_120 : f32 to vector<1x128xf32>
    %228 = arith.addf %227, %226 : vector<1x128xf32>
    %229 = arith.divf %227, %228 : vector<1x128xf32>
    %230 = vector.extract_strided_slice %217 {offsets = [0, 256], sizes = [1, 128], strides = [1, 1]} : vector<1x512xf32> to vector<1x128xf32>
    %231 = math.tanh %230 : vector<1x128xf32>
    %232 = vector.extract_strided_slice %217 {offsets = [0, 384], sizes = [1, 128], strides = [1, 1]} : vector<1x512xf32> to vector<1x128xf32>
    %233 = arith.negf %232 : vector<1x128xf32>
    %234 = math.exp %233 : vector<1x128xf32>
    %cst_121 = arith.constant 1.000000e+00 : f32
    %235 = vector.broadcast %cst_121 : f32 to vector<1x128xf32>
    %236 = arith.addf %235, %234 : vector<1x128xf32>
    %237 = arith.divf %235, %236 : vector<1x128xf32>
    %238 = arith.mulf %229, %212 : vector<1x128xf32>
    %239 = arith.mulf %223, %231 : vector<1x128xf32>
    %240 = arith.addf %238, %239 : vector<1x128xf32>
    %241 = math.tanh %240 : vector<1x128xf32>
    %242 = arith.mulf %237, %241 : vector<1x128xf32>
    %c0_122 = arith.constant 0 : index
    %c0_123 = arith.constant 0 : index
    %243 = vector.load %arg10[%c0_122, %c0_123] : memref<1x128xf32, #tpu.memory_space<vmem>>, vector<1x128xf32>
    tpu.vector_store %arg10[%c0_122, %c0_123], %242 {strides = array<i32>} : memref<1x128xf32, #tpu.memory_space<vmem>>, vector<1x128xf32>,
    %c0_124 = arith.constant 0 : index
    %c0_125 = arith.constant 0 : index
    %244 = vector.load %arg11[%c0_124, %c0_125] : memref<1x128xf32, #tpu.memory_space<vmem>>, vector<1x128xf32>
    tpu.vector_store %arg11[%c0_124, %c0_125], %240 {strides = array<i32>} : memref<1x128xf32, #tpu.memory_space<vmem>>, vector<1x128xf32>,
    %245 = arith.truncf %242 : vector<1x128xf32> to vector<1x128xbf16>
    %c0_126 = arith.constant 0 : index
    %c0_127 = arith.constant 0 : index
    %246 = vector.load %arg5[%c0_126, %c0_127] : memref<128x128xbf16, #tpu.memory_space<vmem>>, vector<128x128xbf16>
    %cst_128 = arith.constant dense<0.000000e+00> : vector<1x128xf32>
    %247 = tpu.matmul %245, %246, %cst_128 {dimension_numbers = #tpu.dot_dimension_numbers<[1], [0], [0], [1], [0, 0, 1, 1], [], []>} : vector<1x128xbf16>, vector<128x128xbf16>, vector<1x128xf32> -> vector<1x128xf32>
    %c0_129 = arith.constant 0 : index
    %c0_130 = arith.constant 0 : index
    %248 = vector.load %arg6[%c0_129, %c0_130] : memref<1x128xf32, #tpu.memory_space<vmem>>, vector<1x128xf32>
    %249 = arith.addf %247, %248 : vector<1x128xf32>
    %250 = arith.index_cast %c2_i32 : i32 to index
    %c0_131 = arith.constant 0 : index
    %c0_132 = arith.constant 0 : index
    %251 = vector.load %arg7[%250, %c0_131, %c0_132] : memref<12x1x128xf32, #tpu.memory_space<vmem>>, vector<1x1x128xf32>
    %252 = vector.shape_cast %251 : vector<1x1x128xf32> to vector<1x128xf32>
    %253 = vector.shape_cast %249 : vector<1x128xf32> to vector<1x1x128xf32>
    tpu.vector_store %arg7[%250, %c0_131, %c0_132], %253 {strides = array<i32>} : memref<12x1x128xf32, #tpu.memory_space<vmem>>, vector<1x1x128xf32>,
    %c3_i32 = arith.constant 3 : i32
    %254 = arith.index_cast %c3_i32 : i32 to index
    %c0_133 = arith.constant 0 : index
    %c0_134 = arith.constant 0 : index
    %255 = vector.load %arg0[%254, %c0_133, %c0_134] : memref<8x1x128xf32, #tpu.memory_space<vmem>>, vector<1x1x128xf32>
    %256 = vector.shape_cast %255 : vector<1x1x128xf32> to vector<1x128xf32>
    %c0_135 = arith.constant 0 : index
    %c0_136 = arith.constant 0 : index
    %257 = vector.load %arg8[%c0_135, %c0_136] : memref<1x128xf32, #tpu.memory_space<vmem>>, vector<1x128xf32>
    %258 = arith.addf %257, %256 : vector<1x128xf32>
    %c0_137 = arith.constant 0 : index
    %c0_138 = arith.constant 0 : index
    %259 = vector.load %arg9[%c0_137, %c0_138] : memref<1x128xf32, #tpu.memory_space<vmem>>, vector<1x128xf32>
    %260 = arith.truncf %258 : vector<1x128xf32> to vector<1x128xbf16>
    %c0_139 = arith.constant 0 : index
    %c0_140 = arith.constant 0 : index
    %261 = vector.load %arg1[%c0_139, %c0_140] : memref<128x512xbf16, #tpu.memory_space<vmem>>, vector<128x512xbf16>
    %cst_141 = arith.constant dense<0.000000e+00> : vector<1x512xf32>
    %262 = tpu.matmul %260, %261, %cst_141 {dimension_numbers = #tpu.dot_dimension_numbers<[1], [0], [0], [1], [0, 0, 1, 1], [], []>} : vector<1x128xbf16>, vector<128x512xbf16>, vector<1x512xf32> -> vector<1x512xf32>
    %c0_142 = arith.constant 0 : index
    %c0_143 = arith.constant 0 : index
    %263 = vector.load %arg2[%c0_142, %c0_143] : memref<1x512xf32, #tpu.memory_space<vmem>>, vector<1x512xf32>
    %264 = arith.addf %262, %263 : vector<1x512xf32>
    %265 = vector.extract_strided_slice %264 {offsets = [0, 0], sizes = [1, 128], strides = [1, 1]} : vector<1x512xf32> to vector<1x128xf32>
    %266 = arith.negf %265 : vector<1x128xf32>
    %267 = math.exp %266 : vector<1x128xf32>
    %cst_144 = arith.constant 1.000000e+00 : f32
    %268 = vector.broadcast %cst_144 : f32 to vector<1x128xf32>
    %269 = arith.addf %268, %267 : vector<1x128xf32>
    %270 = arith.divf %268, %269 : vector<1x128xf32>
    %271 = vector.extract_strided_slice %264 {offsets = [0, 128], sizes = [1, 128], strides = [1, 1]} : vector<1x512xf32> to vector<1x128xf32>
    %272 = arith.negf %271 : vector<1x128xf32>
    %273 = math.exp %272 : vector<1x128xf32>
    %cst_145 = arith.constant 1.000000e+00 : f32
    %274 = vector.broadcast %cst_145 : f32 to vector<1x128xf32>
    %275 = arith.addf %274, %273 : vector<1x128xf32>
    %276 = arith.divf %274, %275 : vector<1x128xf32>
    %277 = vector.extract_strided_slice %264 {offsets = [0, 256], sizes = [1, 128], strides = [1, 1]} : vector<1x512xf32> to vector<1x128xf32>
    %278 = math.tanh %277 : vector<1x128xf32>
    %279 = vector.extract_strided_slice %264 {offsets = [0, 384], sizes = [1, 128], strides = [1, 1]} : vector<1x512xf32> to vector<1x128xf32>
    %280 = arith.negf %279 : vector<1x128xf32>
    %281 = math.exp %280 : vector<1x128xf32>
    %cst_146 = arith.constant 1.000000e+00 : f32
    %282 = vector.broadcast %cst_146 : f32 to vector<1x128xf32>
    %283 = arith.addf %282, %281 : vector<1x128xf32>
    %284 = arith.divf %282, %283 : vector<1x128xf32>
    %285 = arith.mulf %276, %259 : vector<1x128xf32>
    %286 = arith.mulf %270, %278 : vector<1x128xf32>
    %287 = arith.addf %285, %286 : vector<1x128xf32>
    %288 = math.tanh %287 : vector<1x128xf32>
    %289 = arith.mulf %284, %288 : vector<1x128xf32>
    %c0_147 = arith.constant 0 : index
    %c0_148 = arith.constant 0 : index
    %290 = vector.load %arg8[%c0_147, %c0_148] : memref<1x128xf32, #tpu.memory_space<vmem>>, vector<1x128xf32>
    tpu.vector_store %arg8[%c0_147, %c0_148], %289 {strides = array<i32>} : memref<1x128xf32, #tpu.memory_space<vmem>>, vector<1x128xf32>,
    %c0_149 = arith.constant 0 : index
    %c0_150 = arith.constant 0 : index
    %291 = vector.load %arg9[%c0_149, %c0_150] : memref<1x128xf32, #tpu.memory_space<vmem>>, vector<1x128xf32>
    tpu.vector_store %arg9[%c0_149, %c0_150], %287 {strides = array<i32>} : memref<1x128xf32, #tpu.memory_space<vmem>>, vector<1x128xf32>,
    %c0_151 = arith.constant 0 : index
    %c0_152 = arith.constant 0 : index
    %292 = vector.load %arg10[%c0_151, %c0_152] : memref<1x128xf32, #tpu.memory_space<vmem>>, vector<1x128xf32>
    %293 = arith.addf %289, %292 : vector<1x128xf32>
    %c0_153 = arith.constant 0 : index
    %c0_154 = arith.constant 0 : index
    %294 = vector.load %arg11[%c0_153, %c0_154] : memref<1x128xf32, #tpu.memory_space<vmem>>, vector<1x128xf32>
    %295 = arith.truncf %293 : vector<1x128xf32> to vector<1x128xbf16>
    %c0_155 = arith.constant 0 : index
    %c0_156 = arith.constant 0 : index
    %296 = vector.load %arg3[%c0_155, %c0_156] : memref<128x512xbf16, #tpu.memory_space<vmem>>, vector<128x512xbf16>
    %cst_157 = arith.constant dense<0.000000e+00> : vector<1x512xf32>
    %297 = tpu.matmul %295, %296, %cst_157 {dimension_numbers = #tpu.dot_dimension_numbers<[1], [0], [0], [1], [0, 0, 1, 1], [], []>} : vector<1x128xbf16>, vector<128x512xbf16>, vector<1x512xf32> -> vector<1x512xf32>
    %c0_158 = arith.constant 0 : index
    %c0_159 = arith.constant 0 : index
    %298 = vector.load %arg4[%c0_158, %c0_159] : memref<1x512xf32, #tpu.memory_space<vmem>>, vector<1x512xf32>
    %299 = arith.addf %297, %298 : vector<1x512xf32>
    %300 = vector.extract_strided_slice %299 {offsets = [0, 0], sizes = [1, 128], strides = [1, 1]} : vector<1x512xf32> to vector<1x128xf32>
    %301 = arith.negf %300 : vector<1x128xf32>
    %302 = math.exp %301 : vector<1x128xf32>
    %cst_160 = arith.constant 1.000000e+00 : f32
    %303 = vector.broadcast %cst_160 : f32 to vector<1x128xf32>
    %304 = arith.addf %303, %302 : vector<1x128xf32>
    %305 = arith.divf %303, %304 : vector<1x128xf32>
    %306 = vector.extract_strided_slice %299 {offsets = [0, 128], sizes = [1, 128], strides = [1, 1]} : vector<1x512xf32> to vector<1x128xf32>
    %307 = arith.negf %306 : vector<1x128xf32>
    %308 = math.exp %307 : vector<1x128xf32>
    %cst_161 = arith.constant 1.000000e+00 : f32
    %309 = vector.broadcast %cst_161 : f32 to vector<1x128xf32>
    %310 = arith.addf %309, %308 : vector<1x128xf32>
    %311 = arith.divf %309, %310 : vector<1x128xf32>
    %312 = vector.extract_strided_slice %299 {offsets = [0, 256], sizes = [1, 128], strides = [1, 1]} : vector<1x512xf32> to vector<1x128xf32>
    %313 = math.tanh %312 : vector<1x128xf32>
    %314 = vector.extract_strided_slice %299 {offsets = [0, 384], sizes = [1, 128], strides = [1, 1]} : vector<1x512xf32> to vector<1x128xf32>
    %315 = arith.negf %314 : vector<1x128xf32>
    %316 = math.exp %315 : vector<1x128xf32>
    %cst_162 = arith.constant 1.000000e+00 : f32
    %317 = vector.broadcast %cst_162 : f32 to vector<1x128xf32>
    %318 = arith.addf %317, %316 : vector<1x128xf32>
    %319 = arith.divf %317, %318 : vector<1x128xf32>
    %320 = arith.mulf %311, %294 : vector<1x128xf32>
    %321 = arith.mulf %305, %313 : vector<1x128xf32>
    %322 = arith.addf %320, %321 : vector<1x128xf32>
    %323 = math.tanh %322 : vector<1x128xf32>
    %324 = arith.mulf %319, %323 : vector<1x128xf32>
    %c0_163 = arith.constant 0 : index
    %c0_164 = arith.constant 0 : index
    %325 = vector.load %arg10[%c0_163, %c0_164] : memref<1x128xf32, #tpu.memory_space<vmem>>, vector<1x128xf32>
    tpu.vector_store %arg10[%c0_163, %c0_164], %324 {strides = array<i32>} : memref<1x128xf32, #tpu.memory_space<vmem>>, vector<1x128xf32>,
    %c0_165 = arith.constant 0 : index
    %c0_166 = arith.constant 0 : index
    %326 = vector.load %arg11[%c0_165, %c0_166] : memref<1x128xf32, #tpu.memory_space<vmem>>, vector<1x128xf32>
    tpu.vector_store %arg11[%c0_165, %c0_166], %322 {strides = array<i32>} : memref<1x128xf32, #tpu.memory_space<vmem>>, vector<1x128xf32>,
    %327 = arith.truncf %324 : vector<1x128xf32> to vector<1x128xbf16>
    %c0_167 = arith.constant 0 : index
    %c0_168 = arith.constant 0 : index
    %328 = vector.load %arg5[%c0_167, %c0_168] : memref<128x128xbf16, #tpu.memory_space<vmem>>, vector<128x128xbf16>
    %cst_169 = arith.constant dense<0.000000e+00> : vector<1x128xf32>
    %329 = tpu.matmul %327, %328, %cst_169 {dimension_numbers = #tpu.dot_dimension_numbers<[1], [0], [0], [1], [0, 0, 1, 1], [], []>} : vector<1x128xbf16>, vector<128x128xbf16>, vector<1x128xf32> -> vector<1x128xf32>
    %c0_170 = arith.constant 0 : index
    %c0_171 = arith.constant 0 : index
    %330 = vector.load %arg6[%c0_170, %c0_171] : memref<1x128xf32, #tpu.memory_space<vmem>>, vector<1x128xf32>
    %331 = arith.addf %329, %330 : vector<1x128xf32>
    %332 = arith.index_cast %c3_i32 : i32 to index
    %c0_172 = arith.constant 0 : index
    %c0_173 = arith.constant 0 : index
    %333 = vector.load %arg7[%332, %c0_172, %c0_173] : memref<12x1x128xf32, #tpu.memory_space<vmem>>, vector<1x1x128xf32>
    %334 = vector.shape_cast %333 : vector<1x1x128xf32> to vector<1x128xf32>
    %335 = vector.shape_cast %331 : vector<1x128xf32> to vector<1x1x128xf32>
    tpu.vector_store %arg7[%332, %c0_172, %c0_173], %335 {strides = array<i32>} : memref<12x1x128xf32, #tpu.memory_space<vmem>>, vector<1x1x128xf32>,
    %c4_i32 = arith.constant 4 : i32
    %336 = arith.index_cast %c4_i32 : i32 to index
    %c0_174 = arith.constant 0 : index
    %c0_175 = arith.constant 0 : index
    %337 = vector.load %arg0[%336, %c0_174, %c0_175] : memref<8x1x128xf32, #tpu.memory_space<vmem>>, vector<1x1x128xf32>
    %338 = vector.shape_cast %337 : vector<1x1x128xf32> to vector<1x128xf32>
    %c0_176 = arith.constant 0 : index
    %c0_177 = arith.constant 0 : index
    %339 = vector.load %arg8[%c0_176, %c0_177] : memref<1x128xf32, #tpu.memory_space<vmem>>, vector<1x128xf32>
    %340 = arith.addf %339, %338 : vector<1x128xf32>
    %c0_178 = arith.constant 0 : index
    %c0_179 = arith.constant 0 : index
    %341 = vector.load %arg9[%c0_178, %c0_179] : memref<1x128xf32, #tpu.memory_space<vmem>>, vector<1x128xf32>
    %342 = arith.truncf %340 : vector<1x128xf32> to vector<1x128xbf16>
    %c0_180 = arith.constant 0 : index
    %c0_181 = arith.constant 0 : index
    %343 = vector.load %arg1[%c0_180, %c0_181] : memref<128x512xbf16, #tpu.memory_space<vmem>>, vector<128x512xbf16>
    %cst_182 = arith.constant dense<0.000000e+00> : vector<1x512xf32>
    %344 = tpu.matmul %342, %343, %cst_182 {dimension_numbers = #tpu.dot_dimension_numbers<[1], [0], [0], [1], [0, 0, 1, 1], [], []>} : vector<1x128xbf16>, vector<128x512xbf16>, vector<1x512xf32> -> vector<1x512xf32>
    %c0_183 = arith.constant 0 : index
    %c0_184 = arith.constant 0 : index
    %345 = vector.load %arg2[%c0_183, %c0_184] : memref<1x512xf32, #tpu.memory_space<vmem>>, vector<1x512xf32>
    %346 = arith.addf %344, %345 : vector<1x512xf32>
    %347 = vector.extract_strided_slice %346 {offsets = [0, 0], sizes = [1, 128], strides = [1, 1]} : vector<1x512xf32> to vector<1x128xf32>
    %348 = arith.negf %347 : vector<1x128xf32>
    %349 = math.exp %348 : vector<1x128xf32>
    %cst_185 = arith.constant 1.000000e+00 : f32
    %350 = vector.broadcast %cst_185 : f32 to vector<1x128xf32>
    %351 = arith.addf %350, %349 : vector<1x128xf32>
    %352 = arith.divf %350, %351 : vector<1x128xf32>
    %353 = vector.extract_strided_slice %346 {offsets = [0, 128], sizes = [1, 128], strides = [1, 1]} : vector<1x512xf32> to vector<1x128xf32>
    %354 = arith.negf %353 : vector<1x128xf32>
    %355 = math.exp %354 : vector<1x128xf32>
    %cst_186 = arith.constant 1.000000e+00 : f32
    %356 = vector.broadcast %cst_186 : f32 to vector<1x128xf32>
    %357 = arith.addf %356, %355 : vector<1x128xf32>
    %358 = arith.divf %356, %357 : vector<1x128xf32>
    %359 = vector.extract_strided_slice %346 {offsets = [0, 256], sizes = [1, 128], strides = [1, 1]} : vector<1x512xf32> to vector<1x128xf32>
    %360 = math.tanh %359 : vector<1x128xf32>
    %361 = vector.extract_strided_slice %346 {offsets = [0, 384], sizes = [1, 128], strides = [1, 1]} : vector<1x512xf32> to vector<1x128xf32>
    %362 = arith.negf %361 : vector<1x128xf32>
    %363 = math.exp %362 : vector<1x128xf32>
    %cst_187 = arith.constant 1.000000e+00 : f32
    %364 = vector.broadcast %cst_187 : f32 to vector<1x128xf32>
    %365 = arith.addf %364, %363 : vector<1x128xf32>
    %366 = arith.divf %364, %365 : vector<1x128xf32>
    %367 = arith.mulf %358, %341 : vector<1x128xf32>
    %368 = arith.mulf %352, %360 : vector<1x128xf32>
    %369 = arith.addf %367, %368 : vector<1x128xf32>
    %370 = math.tanh %369 : vector<1x128xf32>
    %371 = arith.mulf %366, %370 : vector<1x128xf32>
    %c0_188 = arith.constant 0 : index
    %c0_189 = arith.constant 0 : index
    %372 = vector.load %arg8[%c0_188, %c0_189] : memref<1x128xf32, #tpu.memory_space<vmem>>, vector<1x128xf32>
    tpu.vector_store %arg8[%c0_188, %c0_189], %371 {strides = array<i32>} : memref<1x128xf32, #tpu.memory_space<vmem>>, vector<1x128xf32>,
    %c0_190 = arith.constant 0 : index
    %c0_191 = arith.constant 0 : index
    %373 = vector.load %arg9[%c0_190, %c0_191] : memref<1x128xf32, #tpu.memory_space<vmem>>, vector<1x128xf32>
    tpu.vector_store %arg9[%c0_190, %c0_191], %369 {strides = array<i32>} : memref<1x128xf32, #tpu.memory_space<vmem>>, vector<1x128xf32>,
    %c0_192 = arith.constant 0 : index
    %c0_193 = arith.constant 0 : index
    %374 = vector.load %arg10[%c0_192, %c0_193] : memref<1x128xf32, #tpu.memory_space<vmem>>, vector<1x128xf32>
    %375 = arith.addf %371, %374 : vector<1x128xf32>
    %c0_194 = arith.constant 0 : index
    %c0_195 = arith.constant 0 : index
    %376 = vector.load %arg11[%c0_194, %c0_195] : memref<1x128xf32, #tpu.memory_space<vmem>>, vector<1x128xf32>
    %377 = arith.truncf %375 : vector<1x128xf32> to vector<1x128xbf16>
    %c0_196 = arith.constant 0 : index
    %c0_197 = arith.constant 0 : index
    %378 = vector.load %arg3[%c0_196, %c0_197] : memref<128x512xbf16, #tpu.memory_space<vmem>>, vector<128x512xbf16>
    %cst_198 = arith.constant dense<0.000000e+00> : vector<1x512xf32>
    %379 = tpu.matmul %377, %378, %cst_198 {dimension_numbers = #tpu.dot_dimension_numbers<[1], [0], [0], [1], [0, 0, 1, 1], [], []>} : vector<1x128xbf16>, vector<128x512xbf16>, vector<1x512xf32> -> vector<1x512xf32>
    %c0_199 = arith.constant 0 : index
    %c0_200 = arith.constant 0 : index
    %380 = vector.load %arg4[%c0_199, %c0_200] : memref<1x512xf32, #tpu.memory_space<vmem>>, vector<1x512xf32>
    %381 = arith.addf %379, %380 : vector<1x512xf32>
    %382 = vector.extract_strided_slice %381 {offsets = [0, 0], sizes = [1, 128], strides = [1, 1]} : vector<1x512xf32> to vector<1x128xf32>
    %383 = arith.negf %382 : vector<1x128xf32>
    %384 = math.exp %383 : vector<1x128xf32>
    %cst_201 = arith.constant 1.000000e+00 : f32
    %385 = vector.broadcast %cst_201 : f32 to vector<1x128xf32>
    %386 = arith.addf %385, %384 : vector<1x128xf32>
    %387 = arith.divf %385, %386 : vector<1x128xf32>
    %388 = vector.extract_strided_slice %381 {offsets = [0, 128], sizes = [1, 128], strides = [1, 1]} : vector<1x512xf32> to vector<1x128xf32>
    %389 = arith.negf %388 : vector<1x128xf32>
    %390 = math.exp %389 : vector<1x128xf32>
    %cst_202 = arith.constant 1.000000e+00 : f32
    %391 = vector.broadcast %cst_202 : f32 to vector<1x128xf32>
    %392 = arith.addf %391, %390 : vector<1x128xf32>
    %393 = arith.divf %391, %392 : vector<1x128xf32>
    %394 = vector.extract_strided_slice %381 {offsets = [0, 256], sizes = [1, 128], strides = [1, 1]} : vector<1x512xf32> to vector<1x128xf32>
    %395 = math.tanh %394 : vector<1x128xf32>
    %396 = vector.extract_strided_slice %381 {offsets = [0, 384], sizes = [1, 128], strides = [1, 1]} : vector<1x512xf32> to vector<1x128xf32>
    %397 = arith.negf %396 : vector<1x128xf32>
    %398 = math.exp %397 : vector<1x128xf32>
    %cst_203 = arith.constant 1.000000e+00 : f32
    %399 = vector.broadcast %cst_203 : f32 to vector<1x128xf32>
    %400 = arith.addf %399, %398 : vector<1x128xf32>
    %401 = arith.divf %399, %400 : vector<1x128xf32>
    %402 = arith.mulf %393, %376 : vector<1x128xf32>
    %403 = arith.mulf %387, %395 : vector<1x128xf32>
    %404 = arith.addf %402, %403 : vector<1x128xf32>
    %405 = math.tanh %404 : vector<1x128xf32>
    %406 = arith.mulf %401, %405 : vector<1x128xf32>
    %c0_204 = arith.constant 0 : index
    %c0_205 = arith.constant 0 : index
    %407 = vector.load %arg10[%c0_204, %c0_205] : memref<1x128xf32, #tpu.memory_space<vmem>>, vector<1x128xf32>
    tpu.vector_store %arg10[%c0_204, %c0_205], %406 {strides = array<i32>} : memref<1x128xf32, #tpu.memory_space<vmem>>, vector<1x128xf32>,
    %c0_206 = arith.constant 0 : index
    %c0_207 = arith.constant 0 : index
    %408 = vector.load %arg11[%c0_206, %c0_207] : memref<1x128xf32, #tpu.memory_space<vmem>>, vector<1x128xf32>
    tpu.vector_store %arg11[%c0_206, %c0_207], %404 {strides = array<i32>} : memref<1x128xf32, #tpu.memory_space<vmem>>, vector<1x128xf32>,
    %409 = arith.truncf %406 : vector<1x128xf32> to vector<1x128xbf16>
    %c0_208 = arith.constant 0 : index
    %c0_209 = arith.constant 0 : index
    %410 = vector.load %arg5[%c0_208, %c0_209] : memref<128x128xbf16, #tpu.memory_space<vmem>>, vector<128x128xbf16>
    %cst_210 = arith.constant dense<0.000000e+00> : vector<1x128xf32>
    %411 = tpu.matmul %409, %410, %cst_210 {dimension_numbers = #tpu.dot_dimension_numbers<[1], [0], [0], [1], [0, 0, 1, 1], [], []>} : vector<1x128xbf16>, vector<128x128xbf16>, vector<1x128xf32> -> vector<1x128xf32>
    %c0_211 = arith.constant 0 : index
    %c0_212 = arith.constant 0 : index
    %412 = vector.load %arg6[%c0_211, %c0_212] : memref<1x128xf32, #tpu.memory_space<vmem>>, vector<1x128xf32>
    %413 = arith.addf %411, %412 : vector<1x128xf32>
    %414 = arith.index_cast %c4_i32 : i32 to index
    %c0_213 = arith.constant 0 : index
    %c0_214 = arith.constant 0 : index
    %415 = vector.load %arg7[%414, %c0_213, %c0_214] : memref<12x1x128xf32, #tpu.memory_space<vmem>>, vector<1x1x128xf32>
    %416 = vector.shape_cast %415 : vector<1x1x128xf32> to vector<1x128xf32>
    %417 = vector.shape_cast %413 : vector<1x128xf32> to vector<1x1x128xf32>
    tpu.vector_store %arg7[%414, %c0_213, %c0_214], %417 {strides = array<i32>} : memref<12x1x128xf32, #tpu.memory_space<vmem>>, vector<1x1x128xf32>,
    %c5_i32 = arith.constant 5 : i32
    %418 = arith.index_cast %c5_i32 : i32 to index
    %c0_215 = arith.constant 0 : index
    %c0_216 = arith.constant 0 : index
    %419 = vector.load %arg0[%418, %c0_215, %c0_216] : memref<8x1x128xf32, #tpu.memory_space<vmem>>, vector<1x1x128xf32>
    %420 = vector.shape_cast %419 : vector<1x1x128xf32> to vector<1x128xf32>
    %c0_217 = arith.constant 0 : index
    %c0_218 = arith.constant 0 : index
    %421 = vector.load %arg8[%c0_217, %c0_218] : memref<1x128xf32, #tpu.memory_space<vmem>>, vector<1x128xf32>
    %422 = arith.addf %421, %420 : vector<1x128xf32>
    %c0_219 = arith.constant 0 : index
    %c0_220 = arith.constant 0 : index
    %423 = vector.load %arg9[%c0_219, %c0_220] : memref<1x128xf32, #tpu.memory_space<vmem>>, vector<1x128xf32>
    %424 = arith.truncf %422 : vector<1x128xf32> to vector<1x128xbf16>
    %c0_221 = arith.constant 0 : index
    %c0_222 = arith.constant 0 : index
    %425 = vector.load %arg1[%c0_221, %c0_222] : memref<128x512xbf16, #tpu.memory_space<vmem>>, vector<128x512xbf16>
    %cst_223 = arith.constant dense<0.000000e+00> : vector<1x512xf32>
    %426 = tpu.matmul %424, %425, %cst_223 {dimension_numbers = #tpu.dot_dimension_numbers<[1], [0], [0], [1], [0, 0, 1, 1], [], []>} : vector<1x128xbf16>, vector<128x512xbf16>, vector<1x512xf32> -> vector<1x512xf32>
    %c0_224 = arith.constant 0 : index
    %c0_225 = arith.constant 0 : index
    %427 = vector.load %arg2[%c0_224, %c0_225] : memref<1x512xf32, #tpu.memory_space<vmem>>, vector<1x512xf32>
    %428 = arith.addf %426, %427 : vector<1x512xf32>
    %429 = vector.extract_strided_slice %428 {offsets = [0, 0], sizes = [1, 128], strides = [1, 1]} : vector<1x512xf32> to vector<1x128xf32>
    %430 = arith.negf %429 : vector<1x128xf32>
    %431 = math.exp %430 : vector<1x128xf32>
    %cst_226 = arith.constant 1.000000e+00 : f32
    %432 = vector.broadcast %cst_226 : f32 to vector<1x128xf32>
    %433 = arith.addf %432, %431 : vector<1x128xf32>
    %434 = arith.divf %432, %433 : vector<1x128xf32>
    %435 = vector.extract_strided_slice %428 {offsets = [0, 128], sizes = [1, 128], strides = [1, 1]} : vector<1x512xf32> to vector<1x128xf32>
    %436 = arith.negf %435 : vector<1x128xf32>
    %437 = math.exp %436 : vector<1x128xf32>
    %cst_227 = arith.constant 1.000000e+00 : f32
    %438 = vector.broadcast %cst_227 : f32 to vector<1x128xf32>
    %439 = arith.addf %438, %437 : vector<1x128xf32>
    %440 = arith.divf %438, %439 : vector<1x128xf32>
    %441 = vector.extract_strided_slice %428 {offsets = [0, 256], sizes = [1, 128], strides = [1, 1]} : vector<1x512xf32> to vector<1x128xf32>
    %442 = math.tanh %441 : vector<1x128xf32>
    %443 = vector.extract_strided_slice %428 {offsets = [0, 384], sizes = [1, 128], strides = [1, 1]} : vector<1x512xf32> to vector<1x128xf32>
    %444 = arith.negf %443 : vector<1x128xf32>
    %445 = math.exp %444 : vector<1x128xf32>
    %cst_228 = arith.constant 1.000000e+00 : f32
    %446 = vector.broadcast %cst_228 : f32 to vector<1x128xf32>
    %447 = arith.addf %446, %445 : vector<1x128xf32>
    %448 = arith.divf %446, %447 : vector<1x128xf32>
    %449 = arith.mulf %440, %423 : vector<1x128xf32>
    %450 = arith.mulf %434, %442 : vector<1x128xf32>
    %451 = arith.addf %449, %450 : vector<1x128xf32>
    %452 = math.tanh %451 : vector<1x128xf32>
    %453 = arith.mulf %448, %452 : vector<1x128xf32>
    %c0_229 = arith.constant 0 : index
    %c0_230 = arith.constant 0 : index
    %454 = vector.load %arg8[%c0_229, %c0_230] : memref<1x128xf32, #tpu.memory_space<vmem>>, vector<1x128xf32>
    tpu.vector_store %arg8[%c0_229, %c0_230], %453 {strides = array<i32>} : memref<1x128xf32, #tpu.memory_space<vmem>>, vector<1x128xf32>,
    %c0_231 = arith.constant 0 : index
    %c0_232 = arith.constant 0 : index
    %455 = vector.load %arg9[%c0_231, %c0_232] : memref<1x128xf32, #tpu.memory_space<vmem>>, vector<1x128xf32>
    tpu.vector_store %arg9[%c0_231, %c0_232], %451 {strides = array<i32>} : memref<1x128xf32, #tpu.memory_space<vmem>>, vector<1x128xf32>,
    %c0_233 = arith.constant 0 : index
    %c0_234 = arith.constant 0 : index
    %456 = vector.load %arg10[%c0_233, %c0_234] : memref<1x128xf32, #tpu.memory_space<vmem>>, vector<1x128xf32>
    %457 = arith.addf %453, %456 : vector<1x128xf32>
    %c0_235 = arith.constant 0 : index
    %c0_236 = arith.constant 0 : index
    %458 = vector.load %arg11[%c0_235, %c0_236] : memref<1x128xf32, #tpu.memory_space<vmem>>, vector<1x128xf32>
    %459 = arith.truncf %457 : vector<1x128xf32> to vector<1x128xbf16>
    %c0_237 = arith.constant 0 : index
    %c0_238 = arith.constant 0 : index
    %460 = vector.load %arg3[%c0_237, %c0_238] : memref<128x512xbf16, #tpu.memory_space<vmem>>, vector<128x512xbf16>
    %cst_239 = arith.constant dense<0.000000e+00> : vector<1x512xf32>
    %461 = tpu.matmul %459, %460, %cst_239 {dimension_numbers = #tpu.dot_dimension_numbers<[1], [0], [0], [1], [0, 0, 1, 1], [], []>} : vector<1x128xbf16>, vector<128x512xbf16>, vector<1x512xf32> -> vector<1x512xf32>
    %c0_240 = arith.constant 0 : index
    %c0_241 = arith.constant 0 : index
    %462 = vector.load %arg4[%c0_240, %c0_241] : memref<1x512xf32, #tpu.memory_space<vmem>>, vector<1x512xf32>
    %463 = arith.addf %461, %462 : vector<1x512xf32>
    %464 = vector.extract_strided_slice %463 {offsets = [0, 0], sizes = [1, 128], strides = [1, 1]} : vector<1x512xf32> to vector<1x128xf32>
    %465 = arith.negf %464 : vector<1x128xf32>
    %466 = math.exp %465 : vector<1x128xf32>
    %cst_242 = arith.constant 1.000000e+00 : f32
    %467 = vector.broadcast %cst_242 : f32 to vector<1x128xf32>
    %468 = arith.addf %467, %466 : vector<1x128xf32>
    %469 = arith.divf %467, %468 : vector<1x128xf32>
    %470 = vector.extract_strided_slice %463 {offsets = [0, 128], sizes = [1, 128], strides = [1, 1]} : vector<1x512xf32> to vector<1x128xf32>
    %471 = arith.negf %470 : vector<1x128xf32>
    %472 = math.exp %471 : vector<1x128xf32>
    %cst_243 = arith.constant 1.000000e+00 : f32
    %473 = vector.broadcast %cst_243 : f32 to vector<1x128xf32>
    %474 = arith.addf %473, %472 : vector<1x128xf32>
    %475 = arith.divf %473, %474 : vector<1x128xf32>
    %476 = vector.extract_strided_slice %463 {offsets = [0, 256], sizes = [1, 128], strides = [1, 1]} : vector<1x512xf32> to vector<1x128xf32>
    %477 = math.tanh %476 : vector<1x128xf32>
    %478 = vector.extract_strided_slice %463 {offsets = [0, 384], sizes = [1, 128], strides = [1, 1]} : vector<1x512xf32> to vector<1x128xf32>
    %479 = arith.negf %478 : vector<1x128xf32>
    %480 = math.exp %479 : vector<1x128xf32>
    %cst_244 = arith.constant 1.000000e+00 : f32
    %481 = vector.broadcast %cst_244 : f32 to vector<1x128xf32>
    %482 = arith.addf %481, %480 : vector<1x128xf32>
    %483 = arith.divf %481, %482 : vector<1x128xf32>
    %484 = arith.mulf %475, %458 : vector<1x128xf32>
    %485 = arith.mulf %469, %477 : vector<1x128xf32>
    %486 = arith.addf %484, %485 : vector<1x128xf32>
    %487 = math.tanh %486 : vector<1x128xf32>
    %488 = arith.mulf %483, %487 : vector<1x128xf32>
    %c0_245 = arith.constant 0 : index
    %c0_246 = arith.constant 0 : index
    %489 = vector.load %arg10[%c0_245, %c0_246] : memref<1x128xf32, #tpu.memory_space<vmem>>, vector<1x128xf32>
    tpu.vector_store %arg10[%c0_245, %c0_246], %488 {strides = array<i32>} : memref<1x128xf32, #tpu.memory_space<vmem>>, vector<1x128xf32>,
    %c0_247 = arith.constant 0 : index
    %c0_248 = arith.constant 0 : index
    %490 = vector.load %arg11[%c0_247, %c0_248] : memref<1x128xf32, #tpu.memory_space<vmem>>, vector<1x128xf32>
    tpu.vector_store %arg11[%c0_247, %c0_248], %486 {strides = array<i32>} : memref<1x128xf32, #tpu.memory_space<vmem>>, vector<1x128xf32>,
    %491 = arith.truncf %488 : vector<1x128xf32> to vector<1x128xbf16>
    %c0_249 = arith.constant 0 : index
    %c0_250 = arith.constant 0 : index
    %492 = vector.load %arg5[%c0_249, %c0_250] : memref<128x128xbf16, #tpu.memory_space<vmem>>, vector<128x128xbf16>
    %cst_251 = arith.constant dense<0.000000e+00> : vector<1x128xf32>
    %493 = tpu.matmul %491, %492, %cst_251 {dimension_numbers = #tpu.dot_dimension_numbers<[1], [0], [0], [1], [0, 0, 1, 1], [], []>} : vector<1x128xbf16>, vector<128x128xbf16>, vector<1x128xf32> -> vector<1x128xf32>
    %c0_252 = arith.constant 0 : index
    %c0_253 = arith.constant 0 : index
    %494 = vector.load %arg6[%c0_252, %c0_253] : memref<1x128xf32, #tpu.memory_space<vmem>>, vector<1x128xf32>
    %495 = arith.addf %493, %494 : vector<1x128xf32>
    %496 = arith.index_cast %c5_i32 : i32 to index
    %c0_254 = arith.constant 0 : index
    %c0_255 = arith.constant 0 : index
    %497 = vector.load %arg7[%496, %c0_254, %c0_255] : memref<12x1x128xf32, #tpu.memory_space<vmem>>, vector<1x1x128xf32>
    %498 = vector.shape_cast %497 : vector<1x1x128xf32> to vector<1x128xf32>
    %499 = vector.shape_cast %495 : vector<1x128xf32> to vector<1x1x128xf32>
    tpu.vector_store %arg7[%496, %c0_254, %c0_255], %499 {strides = array<i32>} : memref<12x1x128xf32, #tpu.memory_space<vmem>>, vector<1x1x128xf32>,
    %c6_i32 = arith.constant 6 : i32
    %500 = arith.index_cast %c6_i32 : i32 to index
    %c0_256 = arith.constant 0 : index
    %c0_257 = arith.constant 0 : index
    %501 = vector.load %arg0[%500, %c0_256, %c0_257] : memref<8x1x128xf32, #tpu.memory_space<vmem>>, vector<1x1x128xf32>
    %502 = vector.shape_cast %501 : vector<1x1x128xf32> to vector<1x128xf32>
    %c0_258 = arith.constant 0 : index
    %c0_259 = arith.constant 0 : index
    %503 = vector.load %arg8[%c0_258, %c0_259] : memref<1x128xf32, #tpu.memory_space<vmem>>, vector<1x128xf32>
    %504 = arith.addf %503, %502 : vector<1x128xf32>
    %c0_260 = arith.constant 0 : index
    %c0_261 = arith.constant 0 : index
    %505 = vector.load %arg9[%c0_260, %c0_261] : memref<1x128xf32, #tpu.memory_space<vmem>>, vector<1x128xf32>
    %506 = arith.truncf %504 : vector<1x128xf32> to vector<1x128xbf16>
    %c0_262 = arith.constant 0 : index
    %c0_263 = arith.constant 0 : index
    %507 = vector.load %arg1[%c0_262, %c0_263] : memref<128x512xbf16, #tpu.memory_space<vmem>>, vector<128x512xbf16>
    %cst_264 = arith.constant dense<0.000000e+00> : vector<1x512xf32>
    %508 = tpu.matmul %506, %507, %cst_264 {dimension_numbers = #tpu.dot_dimension_numbers<[1], [0], [0], [1], [0, 0, 1, 1], [], []>} : vector<1x128xbf16>, vector<128x512xbf16>, vector<1x512xf32> -> vector<1x512xf32>
    %c0_265 = arith.constant 0 : index
    %c0_266 = arith.constant 0 : index
    %509 = vector.load %arg2[%c0_265, %c0_266] : memref<1x512xf32, #tpu.memory_space<vmem>>, vector<1x512xf32>
    %510 = arith.addf %508, %509 : vector<1x512xf32>
    %511 = vector.extract_strided_slice %510 {offsets = [0, 0], sizes = [1, 128], strides = [1, 1]} : vector<1x512xf32> to vector<1x128xf32>
    %512 = arith.negf %511 : vector<1x128xf32>
    %513 = math.exp %512 : vector<1x128xf32>
    %cst_267 = arith.constant 1.000000e+00 : f32
    %514 = vector.broadcast %cst_267 : f32 to vector<1x128xf32>
    %515 = arith.addf %514, %513 : vector<1x128xf32>
    %516 = arith.divf %514, %515 : vector<1x128xf32>
    %517 = vector.extract_strided_slice %510 {offsets = [0, 128], sizes = [1, 128], strides = [1, 1]} : vector<1x512xf32> to vector<1x128xf32>
    %518 = arith.negf %517 : vector<1x128xf32>
    %519 = math.exp %518 : vector<1x128xf32>
    %cst_268 = arith.constant 1.000000e+00 : f32
    %520 = vector.broadcast %cst_268 : f32 to vector<1x128xf32>
    %521 = arith.addf %520, %519 : vector<1x128xf32>
    %522 = arith.divf %520, %521 : vector<1x128xf32>
    %523 = vector.extract_strided_slice %510 {offsets = [0, 256], sizes = [1, 128], strides = [1, 1]} : vector<1x512xf32> to vector<1x128xf32>
    %524 = math.tanh %523 : vector<1x128xf32>
    %525 = vector.extract_strided_slice %510 {offsets = [0, 384], sizes = [1, 128], strides = [1, 1]} : vector<1x512xf32> to vector<1x128xf32>
    %526 = arith.negf %525 : vector<1x128xf32>
    %527 = math.exp %526 : vector<1x128xf32>
    %cst_269 = arith.constant 1.000000e+00 : f32
    %528 = vector.broadcast %cst_269 : f32 to vector<1x128xf32>
    %529 = arith.addf %528, %527 : vector<1x128xf32>
    %530 = arith.divf %528, %529 : vector<1x128xf32>
    %531 = arith.mulf %522, %505 : vector<1x128xf32>
    %532 = arith.mulf %516, %524 : vector<1x128xf32>
    %533 = arith.addf %531, %532 : vector<1x128xf32>
    %534 = math.tanh %533 : vector<1x128xf32>
    %535 = arith.mulf %530, %534 : vector<1x128xf32>
    %c0_270 = arith.constant 0 : index
    %c0_271 = arith.constant 0 : index
    %536 = vector.load %arg8[%c0_270, %c0_271] : memref<1x128xf32, #tpu.memory_space<vmem>>, vector<1x128xf32>
    tpu.vector_store %arg8[%c0_270, %c0_271], %535 {strides = array<i32>} : memref<1x128xf32, #tpu.memory_space<vmem>>, vector<1x128xf32>,
    %c0_272 = arith.constant 0 : index
    %c0_273 = arith.constant 0 : index
    %537 = vector.load %arg9[%c0_272, %c0_273] : memref<1x128xf32, #tpu.memory_space<vmem>>, vector<1x128xf32>
    tpu.vector_store %arg9[%c0_272, %c0_273], %533 {strides = array<i32>} : memref<1x128xf32, #tpu.memory_space<vmem>>, vector<1x128xf32>,
    %c0_274 = arith.constant 0 : index
    %c0_275 = arith.constant 0 : index
    %538 = vector.load %arg10[%c0_274, %c0_275] : memref<1x128xf32, #tpu.memory_space<vmem>>, vector<1x128xf32>
    %539 = arith.addf %535, %538 : vector<1x128xf32>
    %c0_276 = arith.constant 0 : index
    %c0_277 = arith.constant 0 : index
    %540 = vector.load %arg11[%c0_276, %c0_277] : memref<1x128xf32, #tpu.memory_space<vmem>>, vector<1x128xf32>
    %541 = arith.truncf %539 : vector<1x128xf32> to vector<1x128xbf16>
    %c0_278 = arith.constant 0 : index
    %c0_279 = arith.constant 0 : index
    %542 = vector.load %arg3[%c0_278, %c0_279] : memref<128x512xbf16, #tpu.memory_space<vmem>>, vector<128x512xbf16>
    %cst_280 = arith.constant dense<0.000000e+00> : vector<1x512xf32>
    %543 = tpu.matmul %541, %542, %cst_280 {dimension_numbers = #tpu.dot_dimension_numbers<[1], [0], [0], [1], [0, 0, 1, 1], [], []>} : vector<1x128xbf16>, vector<128x512xbf16>, vector<1x512xf32> -> vector<1x512xf32>
    %c0_281 = arith.constant 0 : index
    %c0_282 = arith.constant 0 : index
    %544 = vector.load %arg4[%c0_281, %c0_282] : memref<1x512xf32, #tpu.memory_space<vmem>>, vector<1x512xf32>
    %545 = arith.addf %543, %544 : vector<1x512xf32>
    %546 = vector.extract_strided_slice %545 {offsets = [0, 0], sizes = [1, 128], strides = [1, 1]} : vector<1x512xf32> to vector<1x128xf32>
    %547 = arith.negf %546 : vector<1x128xf32>
    %548 = math.exp %547 : vector<1x128xf32>
    %cst_283 = arith.constant 1.000000e+00 : f32
    %549 = vector.broadcast %cst_283 : f32 to vector<1x128xf32>
    %550 = arith.addf %549, %548 : vector<1x128xf32>
    %551 = arith.divf %549, %550 : vector<1x128xf32>
    %552 = vector.extract_strided_slice %545 {offsets = [0, 128], sizes = [1, 128], strides = [1, 1]} : vector<1x512xf32> to vector<1x128xf32>
    %553 = arith.negf %552 : vector<1x128xf32>
    %554 = math.exp %553 : vector<1x128xf32>
    %cst_284 = arith.constant 1.000000e+00 : f32
    %555 = vector.broadcast %cst_284 : f32 to vector<1x128xf32>
    %556 = arith.addf %555, %554 : vector<1x128xf32>
    %557 = arith.divf %555, %556 : vector<1x128xf32>
    %558 = vector.extract_strided_slice %545 {offsets = [0, 256], sizes = [1, 128], strides = [1, 1]} : vector<1x512xf32> to vector<1x128xf32>
    %559 = math.tanh %558 : vector<1x128xf32>
    %560 = vector.extract_strided_slice %545 {offsets = [0, 384], sizes = [1, 128], strides = [1, 1]} : vector<1x512xf32> to vector<1x128xf32>
    %561 = arith.negf %560 : vector<1x128xf32>
    %562 = math.exp %561 : vector<1x128xf32>
    %cst_285 = arith.constant 1.000000e+00 : f32
    %563 = vector.broadcast %cst_285 : f32 to vector<1x128xf32>
    %564 = arith.addf %563, %562 : vector<1x128xf32>
    %565 = arith.divf %563, %564 : vector<1x128xf32>
    %566 = arith.mulf %557, %540 : vector<1x128xf32>
    %567 = arith.mulf %551, %559 : vector<1x128xf32>
    %568 = arith.addf %566, %567 : vector<1x128xf32>
    %569 = math.tanh %568 : vector<1x128xf32>
    %570 = arith.mulf %565, %569 : vector<1x128xf32>
    %c0_286 = arith.constant 0 : index
    %c0_287 = arith.constant 0 : index
    %571 = vector.load %arg10[%c0_286, %c0_287] : memref<1x128xf32, #tpu.memory_space<vmem>>, vector<1x128xf32>
    tpu.vector_store %arg10[%c0_286, %c0_287], %570 {strides = array<i32>} : memref<1x128xf32, #tpu.memory_space<vmem>>, vector<1x128xf32>,
    %c0_288 = arith.constant 0 : index
    %c0_289 = arith.constant 0 : index
    %572 = vector.load %arg11[%c0_288, %c0_289] : memref<1x128xf32, #tpu.memory_space<vmem>>, vector<1x128xf32>
    tpu.vector_store %arg11[%c0_288, %c0_289], %568 {strides = array<i32>} : memref<1x128xf32, #tpu.memory_space<vmem>>, vector<1x128xf32>,
    %573 = arith.truncf %570 : vector<1x128xf32> to vector<1x128xbf16>
    %c0_290 = arith.constant 0 : index
    %c0_291 = arith.constant 0 : index
    %574 = vector.load %arg5[%c0_290, %c0_291] : memref<128x128xbf16, #tpu.memory_space<vmem>>, vector<128x128xbf16>
    %cst_292 = arith.constant dense<0.000000e+00> : vector<1x128xf32>
    %575 = tpu.matmul %573, %574, %cst_292 {dimension_numbers = #tpu.dot_dimension_numbers<[1], [0], [0], [1], [0, 0, 1, 1], [], []>} : vector<1x128xbf16>, vector<128x128xbf16>, vector<1x128xf32> -> vector<1x128xf32>
    %c0_293 = arith.constant 0 : index
    %c0_294 = arith.constant 0 : index
    %576 = vector.load %arg6[%c0_293, %c0_294] : memref<1x128xf32, #tpu.memory_space<vmem>>, vector<1x128xf32>
    %577 = arith.addf %575, %576 : vector<1x128xf32>
    %578 = arith.index_cast %c6_i32 : i32 to index
    %c0_295 = arith.constant 0 : index
    %c0_296 = arith.constant 0 : index
    %579 = vector.load %arg7[%578, %c0_295, %c0_296] : memref<12x1x128xf32, #tpu.memory_space<vmem>>, vector<1x1x128xf32>
    %580 = vector.shape_cast %579 : vector<1x1x128xf32> to vector<1x128xf32>
    %581 = vector.shape_cast %577 : vector<1x128xf32> to vector<1x1x128xf32>
    tpu.vector_store %arg7[%578, %c0_295, %c0_296], %581 {strides = array<i32>} : memref<12x1x128xf32, #tpu.memory_space<vmem>>, vector<1x1x128xf32>,
    %c7_i32 = arith.constant 7 : i32
    %582 = arith.index_cast %c7_i32 : i32 to index
    %c0_297 = arith.constant 0 : index
    %c0_298 = arith.constant 0 : index
    %583 = vector.load %arg0[%582, %c0_297, %c0_298] : memref<8x1x128xf32, #tpu.memory_space<vmem>>, vector<1x1x128xf32>
    %584 = vector.shape_cast %583 : vector<1x1x128xf32> to vector<1x128xf32>
    %c0_299 = arith.constant 0 : index
    %c0_300 = arith.constant 0 : index
    %585 = vector.load %arg8[%c0_299, %c0_300] : memref<1x128xf32, #tpu.memory_space<vmem>>, vector<1x128xf32>
    %586 = arith.addf %585, %584 : vector<1x128xf32>
    %c0_301 = arith.constant 0 : index
    %c0_302 = arith.constant 0 : index
    %587 = vector.load %arg9[%c0_301, %c0_302] : memref<1x128xf32, #tpu.memory_space<vmem>>, vector<1x128xf32>
    %588 = arith.truncf %586 : vector<1x128xf32> to vector<1x128xbf16>
    %c0_303 = arith.constant 0 : index
    %c0_304 = arith.constant 0 : index
    %589 = vector.load %arg1[%c0_303, %c0_304] : memref<128x512xbf16, #tpu.memory_space<vmem>>, vector<128x512xbf16>
    %cst_305 = arith.constant dense<0.000000e+00> : vector<1x512xf32>
    %590 = tpu.matmul %588, %589, %cst_305 {dimension_numbers = #tpu.dot_dimension_numbers<[1], [0], [0], [1], [0, 0, 1, 1], [], []>} : vector<1x128xbf16>, vector<128x512xbf16>, vector<1x512xf32> -> vector<1x512xf32>
    %c0_306 = arith.constant 0 : index
    %c0_307 = arith.constant 0 : index
    %591 = vector.load %arg2[%c0_306, %c0_307] : memref<1x512xf32, #tpu.memory_space<vmem>>, vector<1x512xf32>
    %592 = arith.addf %590, %591 : vector<1x512xf32>
    %593 = vector.extract_strided_slice %592 {offsets = [0, 0], sizes = [1, 128], strides = [1, 1]} : vector<1x512xf32> to vector<1x128xf32>
    %594 = arith.negf %593 : vector<1x128xf32>
    %595 = math.exp %594 : vector<1x128xf32>
    %cst_308 = arith.constant 1.000000e+00 : f32
    %596 = vector.broadcast %cst_308 : f32 to vector<1x128xf32>
    %597 = arith.addf %596, %595 : vector<1x128xf32>
    %598 = arith.divf %596, %597 : vector<1x128xf32>
    %599 = vector.extract_strided_slice %592 {offsets = [0, 128], sizes = [1, 128], strides = [1, 1]} : vector<1x512xf32> to vector<1x128xf32>
    %600 = arith.negf %599 : vector<1x128xf32>
    %601 = math.exp %600 : vector<1x128xf32>
    %cst_309 = arith.constant 1.000000e+00 : f32
    %602 = vector.broadcast %cst_309 : f32 to vector<1x128xf32>
    %603 = arith.addf %602, %601 : vector<1x128xf32>
    %604 = arith.divf %602, %603 : vector<1x128xf32>
    %605 = vector.extract_strided_slice %592 {offsets = [0, 256], sizes = [1, 128], strides = [1, 1]} : vector<1x512xf32> to vector<1x128xf32>
    %606 = math.tanh %605 : vector<1x128xf32>
    %607 = vector.extract_strided_slice %592 {offsets = [0, 384], sizes = [1, 128], strides = [1, 1]} : vector<1x512xf32> to vector<1x128xf32>
    %608 = arith.negf %607 : vector<1x128xf32>
    %609 = math.exp %608 : vector<1x128xf32>
    %cst_310 = arith.constant 1.000000e+00 : f32
    %610 = vector.broadcast %cst_310 : f32 to vector<1x128xf32>
    %611 = arith.addf %610, %609 : vector<1x128xf32>
    %612 = arith.divf %610, %611 : vector<1x128xf32>
    %613 = arith.mulf %604, %587 : vector<1x128xf32>
    %614 = arith.mulf %598, %606 : vector<1x128xf32>
    %615 = arith.addf %613, %614 : vector<1x128xf32>
    %616 = math.tanh %615 : vector<1x128xf32>
    %617 = arith.mulf %612, %616 : vector<1x128xf32>
    %c0_311 = arith.constant 0 : index
    %c0_312 = arith.constant 0 : index
    %618 = vector.load %arg8[%c0_311, %c0_312] : memref<1x128xf32, #tpu.memory_space<vmem>>, vector<1x128xf32>
    tpu.vector_store %arg8[%c0_311, %c0_312], %617 {strides = array<i32>} : memref<1x128xf32, #tpu.memory_space<vmem>>, vector<1x128xf32>,
    %c0_313 = arith.constant 0 : index
    %c0_314 = arith.constant 0 : index
    %619 = vector.load %arg9[%c0_313, %c0_314] : memref<1x128xf32, #tpu.memory_space<vmem>>, vector<1x128xf32>
    tpu.vector_store %arg9[%c0_313, %c0_314], %615 {strides = array<i32>} : memref<1x128xf32, #tpu.memory_space<vmem>>, vector<1x128xf32>,
    %c0_315 = arith.constant 0 : index
    %c0_316 = arith.constant 0 : index
    %620 = vector.load %arg10[%c0_315, %c0_316] : memref<1x128xf32, #tpu.memory_space<vmem>>, vector<1x128xf32>
    %621 = arith.addf %617, %620 : vector<1x128xf32>
    %c0_317 = arith.constant 0 : index
    %c0_318 = arith.constant 0 : index
    %622 = vector.load %arg11[%c0_317, %c0_318] : memref<1x128xf32, #tpu.memory_space<vmem>>, vector<1x128xf32>
    %623 = arith.truncf %621 : vector<1x128xf32> to vector<1x128xbf16>
    %c0_319 = arith.constant 0 : index
    %c0_320 = arith.constant 0 : index
    %624 = vector.load %arg3[%c0_319, %c0_320] : memref<128x512xbf16, #tpu.memory_space<vmem>>, vector<128x512xbf16>
    %cst_321 = arith.constant dense<0.000000e+00> : vector<1x512xf32>
    %625 = tpu.matmul %623, %624, %cst_321 {dimension_numbers = #tpu.dot_dimension_numbers<[1], [0], [0], [1], [0, 0, 1, 1], [], []>} : vector<1x128xbf16>, vector<128x512xbf16>, vector<1x512xf32> -> vector<1x512xf32>
    %c0_322 = arith.constant 0 : index
    %c0_323 = arith.constant 0 : index
    %626 = vector.load %arg4[%c0_322, %c0_323] : memref<1x512xf32, #tpu.memory_space<vmem>>, vector<1x512xf32>
    %627 = arith.addf %625, %626 : vector<1x512xf32>
    %628 = vector.extract_strided_slice %627 {offsets = [0, 0], sizes = [1, 128], strides = [1, 1]} : vector<1x512xf32> to vector<1x128xf32>
    %629 = arith.negf %628 : vector<1x128xf32>
    %630 = math.exp %629 : vector<1x128xf32>
    %cst_324 = arith.constant 1.000000e+00 : f32
    %631 = vector.broadcast %cst_324 : f32 to vector<1x128xf32>
    %632 = arith.addf %631, %630 : vector<1x128xf32>
    %633 = arith.divf %631, %632 : vector<1x128xf32>
    %634 = vector.extract_strided_slice %627 {offsets = [0, 128], sizes = [1, 128], strides = [1, 1]} : vector<1x512xf32> to vector<1x128xf32>
    %635 = arith.negf %634 : vector<1x128xf32>
    %636 = math.exp %635 : vector<1x128xf32>
    %cst_325 = arith.constant 1.000000e+00 : f32
    %637 = vector.broadcast %cst_325 : f32 to vector<1x128xf32>
    %638 = arith.addf %637, %636 : vector<1x128xf32>
    %639 = arith.divf %637, %638 : vector<1x128xf32>
    %640 = vector.extract_strided_slice %627 {offsets = [0, 256], sizes = [1, 128], strides = [1, 1]} : vector<1x512xf32> to vector<1x128xf32>
    %641 = math.tanh %640 : vector<1x128xf32>
    %642 = vector.extract_strided_slice %627 {offsets = [0, 384], sizes = [1, 128], strides = [1, 1]} : vector<1x512xf32> to vector<1x128xf32>
    %643 = arith.negf %642 : vector<1x128xf32>
    %644 = math.exp %643 : vector<1x128xf32>
    %cst_326 = arith.constant 1.000000e+00 : f32
    %645 = vector.broadcast %cst_326 : f32 to vector<1x128xf32>
    %646 = arith.addf %645, %644 : vector<1x128xf32>
    %647 = arith.divf %645, %646 : vector<1x128xf32>
    %648 = arith.mulf %639, %622 : vector<1x128xf32>
    %649 = arith.mulf %633, %641 : vector<1x128xf32>
    %650 = arith.addf %648, %649 : vector<1x128xf32>
    %651 = math.tanh %650 : vector<1x128xf32>
    %652 = arith.mulf %647, %651 : vector<1x128xf32>
    %c0_327 = arith.constant 0 : index
    %c0_328 = arith.constant 0 : index
    %653 = vector.load %arg10[%c0_327, %c0_328] : memref<1x128xf32, #tpu.memory_space<vmem>>, vector<1x128xf32>
    tpu.vector_store %arg10[%c0_327, %c0_328], %652 {strides = array<i32>} : memref<1x128xf32, #tpu.memory_space<vmem>>, vector<1x128xf32>,
    %c0_329 = arith.constant 0 : index
    %c0_330 = arith.constant 0 : index
    %654 = vector.load %arg11[%c0_329, %c0_330] : memref<1x128xf32, #tpu.memory_space<vmem>>, vector<1x128xf32>
    tpu.vector_store %arg11[%c0_329, %c0_330], %650 {strides = array<i32>} : memref<1x128xf32, #tpu.memory_space<vmem>>, vector<1x128xf32>,
    %655 = arith.truncf %652 : vector<1x128xf32> to vector<1x128xbf16>
    %c0_331 = arith.constant 0 : index
    %c0_332 = arith.constant 0 : index
    %656 = vector.load %arg5[%c0_331, %c0_332] : memref<128x128xbf16, #tpu.memory_space<vmem>>, vector<128x128xbf16>
    %cst_333 = arith.constant dense<0.000000e+00> : vector<1x128xf32>
    %657 = tpu.matmul %655, %656, %cst_333 {dimension_numbers = #tpu.dot_dimension_numbers<[1], [0], [0], [1], [0, 0, 1, 1], [], []>} : vector<1x128xbf16>, vector<128x128xbf16>, vector<1x128xf32> -> vector<1x128xf32>
    %c0_334 = arith.constant 0 : index
    %c0_335 = arith.constant 0 : index
    %658 = vector.load %arg6[%c0_334, %c0_335] : memref<1x128xf32, #tpu.memory_space<vmem>>, vector<1x128xf32>
    %659 = arith.addf %657, %658 : vector<1x128xf32>
    %660 = arith.index_cast %c7_i32 : i32 to index
    %c0_336 = arith.constant 0 : index
    %c0_337 = arith.constant 0 : index
    %661 = vector.load %arg7[%660, %c0_336, %c0_337] : memref<12x1x128xf32, #tpu.memory_space<vmem>>, vector<1x1x128xf32>
    %662 = vector.shape_cast %661 : vector<1x1x128xf32> to vector<1x128xf32>
    %663 = vector.shape_cast %659 : vector<1x128xf32> to vector<1x1x128xf32>
    tpu.vector_store %arg7[%660, %c0_336, %c0_337], %663 {strides = array<i32>} : memref<12x1x128xf32, #tpu.memory_space<vmem>>, vector<1x1x128xf32>,
    %c8_i32 = arith.constant 8 : i32
    %c7 = arith.constant 7 : index
    %c0_338 = arith.constant 0 : index
    %c0_339 = arith.constant 0 : index
    %664 = vector.load %arg0[%c7, %c0_338, %c0_339] : memref<8x1x128xf32, #tpu.memory_space<vmem>>, vector<1x1x128xf32>
    %665 = vector.shape_cast %664 : vector<1x1x128xf32> to vector<1x128xf32>
    %c0_i32_340 = arith.constant 0 : i32
    %c0_341 = arith.constant 0 : index
    %c0_342 = arith.constant 0 : index
    %666 = vector.load %arg8[%c0_341, %c0_342] : memref<1x128xf32, #tpu.memory_space<vmem>>, vector<1x128xf32>
    %667 = arith.addf %666, %665 : vector<1x128xf32>
    %c0_343 = arith.constant 0 : index
    %c0_344 = arith.constant 0 : index
    %668 = vector.load %arg9[%c0_343, %c0_344] : memref<1x128xf32, #tpu.memory_space<vmem>>, vector<1x128xf32>
    %669 = arith.truncf %667 : vector<1x128xf32> to vector<1x128xbf16>
    %c0_345 = arith.constant 0 : index
    %c0_346 = arith.constant 0 : index
    %670 = vector.load %arg1[%c0_345, %c0_346] : memref<128x512xbf16, #tpu.memory_space<vmem>>, vector<128x512xbf16>
    %cst_347 = arith.constant dense<0.000000e+00> : vector<1x512xf32>
    %671 = tpu.matmul %669, %670, %cst_347 {dimension_numbers = #tpu.dot_dimension_numbers<[1], [0], [0], [1], [0, 0, 1, 1], [], []>} : vector<1x128xbf16>, vector<128x512xbf16>, vector<1x512xf32> -> vector<1x512xf32>
    %c0_348 = arith.constant 0 : index
    %c0_349 = arith.constant 0 : index
    %672 = vector.load %arg2[%c0_348, %c0_349] : memref<1x512xf32, #tpu.memory_space<vmem>>, vector<1x512xf32>
    %673 = arith.addf %671, %672 : vector<1x512xf32>
    %674 = vector.extract_strided_slice %673 {offsets = [0, 0], sizes = [1, 128], strides = [1, 1]} : vector<1x512xf32> to vector<1x128xf32>
    %675 = arith.negf %674 : vector<1x128xf32>
    %676 = math.exp %675 : vector<1x128xf32>
    %cst_350 = arith.constant 1.000000e+00 : f32
    %677 = vector.broadcast %cst_350 : f32 to vector<1x128xf32>
    %678 = arith.addf %677, %676 : vector<1x128xf32>
    %679 = arith.divf %677, %678 : vector<1x128xf32>
    %680 = vector.extract_strided_slice %673 {offsets = [0, 128], sizes = [1, 128], strides = [1, 1]} : vector<1x512xf32> to vector<1x128xf32>
    %681 = arith.negf %680 : vector<1x128xf32>
    %682 = math.exp %681 : vector<1x128xf32>
    %cst_351 = arith.constant 1.000000e+00 : f32
    %683 = vector.broadcast %cst_351 : f32 to vector<1x128xf32>
    %684 = arith.addf %683, %682 : vector<1x128xf32>
    %685 = arith.divf %683, %684 : vector<1x128xf32>
    %686 = vector.extract_strided_slice %673 {offsets = [0, 256], sizes = [1, 128], strides = [1, 1]} : vector<1x512xf32> to vector<1x128xf32>
    %687 = math.tanh %686 : vector<1x128xf32>
    %688 = vector.extract_strided_slice %673 {offsets = [0, 384], sizes = [1, 128], strides = [1, 1]} : vector<1x512xf32> to vector<1x128xf32>
    %689 = arith.negf %688 : vector<1x128xf32>
    %690 = math.exp %689 : vector<1x128xf32>
    %cst_352 = arith.constant 1.000000e+00 : f32
    %691 = vector.broadcast %cst_352 : f32 to vector<1x128xf32>
    %692 = arith.addf %691, %690 : vector<1x128xf32>
    %693 = arith.divf %691, %692 : vector<1x128xf32>
    %694 = arith.mulf %685, %668 : vector<1x128xf32>
    %695 = arith.mulf %679, %687 : vector<1x128xf32>
    %696 = arith.addf %694, %695 : vector<1x128xf32>
    %697 = math.tanh %696 : vector<1x128xf32>
    %698 = arith.mulf %693, %697 : vector<1x128xf32>
    %c0_353 = arith.constant 0 : index
    %c0_354 = arith.constant 0 : index
    %699 = vector.load %arg8[%c0_353, %c0_354] : memref<1x128xf32, #tpu.memory_space<vmem>>, vector<1x128xf32>
    tpu.vector_store %arg8[%c0_353, %c0_354], %698 {strides = array<i32>} : memref<1x128xf32, #tpu.memory_space<vmem>>, vector<1x128xf32>,
    %c0_355 = arith.constant 0 : index
    %c0_356 = arith.constant 0 : index
    %700 = vector.load %arg9[%c0_355, %c0_356] : memref<1x128xf32, #tpu.memory_space<vmem>>, vector<1x128xf32>
    tpu.vector_store %arg9[%c0_355, %c0_356], %696 {strides = array<i32>} : memref<1x128xf32, #tpu.memory_space<vmem>>, vector<1x128xf32>,
    %c0_357 = arith.constant 0 : index
    %c0_358 = arith.constant 0 : index
    %701 = vector.load %arg10[%c0_357, %c0_358] : memref<1x128xf32, #tpu.memory_space<vmem>>, vector<1x128xf32>
    %702 = arith.addf %698, %701 : vector<1x128xf32>
    %c0_359 = arith.constant 0 : index
    %c0_360 = arith.constant 0 : index
    %703 = vector.load %arg11[%c0_359, %c0_360] : memref<1x128xf32, #tpu.memory_space<vmem>>, vector<1x128xf32>
    %704 = arith.truncf %702 : vector<1x128xf32> to vector<1x128xbf16>
    %c0_361 = arith.constant 0 : index
    %c0_362 = arith.constant 0 : index
    %705 = vector.load %arg3[%c0_361, %c0_362] : memref<128x512xbf16, #tpu.memory_space<vmem>>, vector<128x512xbf16>
    %cst_363 = arith.constant dense<0.000000e+00> : vector<1x512xf32>
    %706 = tpu.matmul %704, %705, %cst_363 {dimension_numbers = #tpu.dot_dimension_numbers<[1], [0], [0], [1], [0, 0, 1, 1], [], []>} : vector<1x128xbf16>, vector<128x512xbf16>, vector<1x512xf32> -> vector<1x512xf32>
    %c0_364 = arith.constant 0 : index
    %c0_365 = arith.constant 0 : index
    %707 = vector.load %arg4[%c0_364, %c0_365] : memref<1x512xf32, #tpu.memory_space<vmem>>, vector<1x512xf32>
    %708 = arith.addf %706, %707 : vector<1x512xf32>
    %709 = vector.extract_strided_slice %708 {offsets = [0, 0], sizes = [1, 128], strides = [1, 1]} : vector<1x512xf32> to vector<1x128xf32>
    %710 = arith.negf %709 : vector<1x128xf32>
    %711 = math.exp %710 : vector<1x128xf32>
    %cst_366 = arith.constant 1.000000e+00 : f32
    %712 = vector.broadcast %cst_366 : f32 to vector<1x128xf32>
    %713 = arith.addf %712, %711 : vector<1x128xf32>
    %714 = arith.divf %712, %713 : vector<1x128xf32>
    %715 = vector.extract_strided_slice %708 {offsets = [0, 128], sizes = [1, 128], strides = [1, 1]} : vector<1x512xf32> to vector<1x128xf32>
    %716 = arith.negf %715 : vector<1x128xf32>
    %717 = math.exp %716 : vector<1x128xf32>
    %cst_367 = arith.constant 1.000000e+00 : f32
    %718 = vector.broadcast %cst_367 : f32 to vector<1x128xf32>
    %719 = arith.addf %718, %717 : vector<1x128xf32>
    %720 = arith.divf %718, %719 : vector<1x128xf32>
    %721 = vector.extract_strided_slice %708 {offsets = [0, 256], sizes = [1, 128], strides = [1, 1]} : vector<1x512xf32> to vector<1x128xf32>
    %722 = math.tanh %721 : vector<1x128xf32>
    %723 = vector.extract_strided_slice %708 {offsets = [0, 384], sizes = [1, 128], strides = [1, 1]} : vector<1x512xf32> to vector<1x128xf32>
    %724 = arith.negf %723 : vector<1x128xf32>
    %725 = math.exp %724 : vector<1x128xf32>
    %cst_368 = arith.constant 1.000000e+00 : f32
    %726 = vector.broadcast %cst_368 : f32 to vector<1x128xf32>
    %727 = arith.addf %726, %725 : vector<1x128xf32>
    %728 = arith.divf %726, %727 : vector<1x128xf32>
    %729 = arith.mulf %720, %703 : vector<1x128xf32>
    %730 = arith.mulf %714, %722 : vector<1x128xf32>
    %731 = arith.addf %729, %730 : vector<1x128xf32>
    %732 = math.tanh %731 : vector<1x128xf32>
    %733 = arith.mulf %728, %732 : vector<1x128xf32>
    %c0_369 = arith.constant 0 : index
    %c0_370 = arith.constant 0 : index
    %734 = vector.load %arg10[%c0_369, %c0_370] : memref<1x128xf32, #tpu.memory_space<vmem>>, vector<1x128xf32>
    tpu.vector_store %arg10[%c0_369, %c0_370], %733 {strides = array<i32>} : memref<1x128xf32, #tpu.memory_space<vmem>>, vector<1x128xf32>,
    %c0_371 = arith.constant 0 : index
    %c0_372 = arith.constant 0 : index
    %735 = vector.load %arg11[%c0_371, %c0_372] : memref<1x128xf32, #tpu.memory_space<vmem>>, vector<1x128xf32>
    tpu.vector_store %arg11[%c0_371, %c0_372], %731 {strides = array<i32>} : memref<1x128xf32, #tpu.memory_space<vmem>>, vector<1x128xf32>,
    %736 = arith.truncf %733 : vector<1x128xf32> to vector<1x128xbf16>
    %c0_373 = arith.constant 0 : index
    %c0_374 = arith.constant 0 : index
    %737 = vector.load %arg5[%c0_373, %c0_374] : memref<128x128xbf16, #tpu.memory_space<vmem>>, vector<128x128xbf16>
    %cst_375 = arith.constant dense<0.000000e+00> : vector<1x128xf32>
    %738 = tpu.matmul %736, %737, %cst_375 {dimension_numbers = #tpu.dot_dimension_numbers<[1], [0], [0], [1], [0, 0, 1, 1], [], []>} : vector<1x128xbf16>, vector<128x128xbf16>, vector<1x128xf32> -> vector<1x128xf32>
    %c0_376 = arith.constant 0 : index
    %c0_377 = arith.constant 0 : index
    %739 = vector.load %arg6[%c0_376, %c0_377] : memref<1x128xf32, #tpu.memory_space<vmem>>, vector<1x128xf32>
    %740 = arith.addf %738, %739 : vector<1x128xf32>
    %c8_i32_378 = arith.constant 8 : i32
    %741 = arith.addi %c8_i32_378, %c0_i32_340 : i32
    %742 = arith.index_cast %741 : i32 to index
    %c0_379 = arith.constant 0 : index
    %c0_380 = arith.constant 0 : index
    %743 = vector.load %arg7[%742, %c0_379, %c0_380] : memref<12x1x128xf32, #tpu.memory_space<vmem>>, vector<1x1x128xf32>
    %744 = vector.shape_cast %743 : vector<1x1x128xf32> to vector<1x128xf32>
    %745 = vector.shape_cast %740 : vector<1x128xf32> to vector<1x1x128xf32>
    tpu.vector_store %arg7[%742, %c0_379, %c0_380], %745 {strides = array<i32>} : memref<12x1x128xf32, #tpu.memory_space<vmem>>, vector<1x1x128xf32>,
    %c1_i32_381 = arith.constant 1 : i32
    %c0_382 = arith.constant 0 : index
    %c0_383 = arith.constant 0 : index
    %746 = vector.load %arg8[%c0_382, %c0_383] : memref<1x128xf32, #tpu.memory_space<vmem>>, vector<1x128xf32>
    %747 = arith.addf %746, %740 : vector<1x128xf32>
    %c0_384 = arith.constant 0 : index
    %c0_385 = arith.constant 0 : index
    %748 = vector.load %arg9[%c0_384, %c0_385] : memref<1x128xf32, #tpu.memory_space<vmem>>, vector<1x128xf32>
    %749 = arith.truncf %747 : vector<1x128xf32> to vector<1x128xbf16>
    %c0_386 = arith.constant 0 : index
    %c0_387 = arith.constant 0 : index
    %750 = vector.load %arg1[%c0_386, %c0_387] : memref<128x512xbf16, #tpu.memory_space<vmem>>, vector<128x512xbf16>
    %cst_388 = arith.constant dense<0.000000e+00> : vector<1x512xf32>
    %751 = tpu.matmul %749, %750, %cst_388 {dimension_numbers = #tpu.dot_dimension_numbers<[1], [0], [0], [1], [0, 0, 1, 1], [], []>} : vector<1x128xbf16>, vector<128x512xbf16>, vector<1x512xf32> -> vector<1x512xf32>
    %c0_389 = arith.constant 0 : index
    %c0_390 = arith.constant 0 : index
    %752 = vector.load %arg2[%c0_389, %c0_390] : memref<1x512xf32, #tpu.memory_space<vmem>>, vector<1x512xf32>
    %753 = arith.addf %751, %752 : vector<1x512xf32>
    %754 = vector.extract_strided_slice %753 {offsets = [0, 0], sizes = [1, 128], strides = [1, 1]} : vector<1x512xf32> to vector<1x128xf32>
    %755 = arith.negf %754 : vector<1x128xf32>
    %756 = math.exp %755 : vector<1x128xf32>
    %cst_391 = arith.constant 1.000000e+00 : f32
    %757 = vector.broadcast %cst_391 : f32 to vector<1x128xf32>
    %758 = arith.addf %757, %756 : vector<1x128xf32>
    %759 = arith.divf %757, %758 : vector<1x128xf32>
    %760 = vector.extract_strided_slice %753 {offsets = [0, 128], sizes = [1, 128], strides = [1, 1]} : vector<1x512xf32> to vector<1x128xf32>
    %761 = arith.negf %760 : vector<1x128xf32>
    %762 = math.exp %761 : vector<1x128xf32>
    %cst_392 = arith.constant 1.000000e+00 : f32
    %763 = vector.broadcast %cst_392 : f32 to vector<1x128xf32>
    %764 = arith.addf %763, %762 : vector<1x128xf32>
    %765 = arith.divf %763, %764 : vector<1x128xf32>
    %766 = vector.extract_strided_slice %753 {offsets = [0, 256], sizes = [1, 128], strides = [1, 1]} : vector<1x512xf32> to vector<1x128xf32>
    %767 = math.tanh %766 : vector<1x128xf32>
    %768 = vector.extract_strided_slice %753 {offsets = [0, 384], sizes = [1, 128], strides = [1, 1]} : vector<1x512xf32> to vector<1x128xf32>
    %769 = arith.negf %768 : vector<1x128xf32>
    %770 = math.exp %769 : vector<1x128xf32>
    %cst_393 = arith.constant 1.000000e+00 : f32
    %771 = vector.broadcast %cst_393 : f32 to vector<1x128xf32>
    %772 = arith.addf %771, %770 : vector<1x128xf32>
    %773 = arith.divf %771, %772 : vector<1x128xf32>
    %774 = arith.mulf %765, %748 : vector<1x128xf32>
    %775 = arith.mulf %759, %767 : vector<1x128xf32>
    %776 = arith.addf %774, %775 : vector<1x128xf32>
    %777 = math.tanh %776 : vector<1x128xf32>
    %778 = arith.mulf %773, %777 : vector<1x128xf32>
    %c0_394 = arith.constant 0 : index
    %c0_395 = arith.constant 0 : index
    %779 = vector.load %arg8[%c0_394, %c0_395] : memref<1x128xf32, #tpu.memory_space<vmem>>, vector<1x128xf32>
    tpu.vector_store %arg8[%c0_394, %c0_395], %778 {strides = array<i32>} : memref<1x128xf32, #tpu.memory_space<vmem>>, vector<1x128xf32>,
    %c0_396 = arith.constant 0 : index
    %c0_397 = arith.constant 0 : index
    %780 = vector.load %arg9[%c0_396, %c0_397] : memref<1x128xf32, #tpu.memory_space<vmem>>, vector<1x128xf32>
    tpu.vector_store %arg9[%c0_396, %c0_397], %776 {strides = array<i32>} : memref<1x128xf32, #tpu.memory_space<vmem>>, vector<1x128xf32>,
    %c0_398 = arith.constant 0 : index
    %c0_399 = arith.constant 0 : index
    %781 = vector.load %arg10[%c0_398, %c0_399] : memref<1x128xf32, #tpu.memory_space<vmem>>, vector<1x128xf32>
    %782 = arith.addf %778, %781 : vector<1x128xf32>
    %c0_400 = arith.constant 0 : index
    %c0_401 = arith.constant 0 : index
    %783 = vector.load %arg11[%c0_400, %c0_401] : memref<1x128xf32, #tpu.memory_space<vmem>>, vector<1x128xf32>
    %784 = arith.truncf %782 : vector<1x128xf32> to vector<1x128xbf16>
    %c0_402 = arith.constant 0 : index
    %c0_403 = arith.constant 0 : index
    %785 = vector.load %arg3[%c0_402, %c0_403] : memref<128x512xbf16, #tpu.memory_space<vmem>>, vector<128x512xbf16>
    %cst_404 = arith.constant dense<0.000000e+00> : vector<1x512xf32>
    %786 = tpu.matmul %784, %785, %cst_404 {dimension_numbers = #tpu.dot_dimension_numbers<[1], [0], [0], [1], [0, 0, 1, 1], [], []>} : vector<1x128xbf16>, vector<128x512xbf16>, vector<1x512xf32> -> vector<1x512xf32>
    %c0_405 = arith.constant 0 : index
    %c0_406 = arith.constant 0 : index
    %787 = vector.load %arg4[%c0_405, %c0_406] : memref<1x512xf32, #tpu.memory_space<vmem>>, vector<1x512xf32>
    %788 = arith.addf %786, %787 : vector<1x512xf32>
    %789 = vector.extract_strided_slice %788 {offsets = [0, 0], sizes = [1, 128], strides = [1, 1]} : vector<1x512xf32> to vector<1x128xf32>
    %790 = arith.negf %789 : vector<1x128xf32>
    %791 = math.exp %790 : vector<1x128xf32>
    %cst_407 = arith.constant 1.000000e+00 : f32
    %792 = vector.broadcast %cst_407 : f32 to vector<1x128xf32>
    %793 = arith.addf %792, %791 : vector<1x128xf32>
    %794 = arith.divf %792, %793 : vector<1x128xf32>
    %795 = vector.extract_strided_slice %788 {offsets = [0, 128], sizes = [1, 128], strides = [1, 1]} : vector<1x512xf32> to vector<1x128xf32>
    %796 = arith.negf %795 : vector<1x128xf32>
    %797 = math.exp %796 : vector<1x128xf32>
    %cst_408 = arith.constant 1.000000e+00 : f32
    %798 = vector.broadcast %cst_408 : f32 to vector<1x128xf32>
    %799 = arith.addf %798, %797 : vector<1x128xf32>
    %800 = arith.divf %798, %799 : vector<1x128xf32>
    %801 = vector.extract_strided_slice %788 {offsets = [0, 256], sizes = [1, 128], strides = [1, 1]} : vector<1x512xf32> to vector<1x128xf32>
    %802 = math.tanh %801 : vector<1x128xf32>
    %803 = vector.extract_strided_slice %788 {offsets = [0, 384], sizes = [1, 128], strides = [1, 1]} : vector<1x512xf32> to vector<1x128xf32>
    %804 = arith.negf %803 : vector<1x128xf32>
    %805 = math.exp %804 : vector<1x128xf32>
    %cst_409 = arith.constant 1.000000e+00 : f32
    %806 = vector.broadcast %cst_409 : f32 to vector<1x128xf32>
    %807 = arith.addf %806, %805 : vector<1x128xf32>
    %808 = arith.divf %806, %807 : vector<1x128xf32>
    %809 = arith.mulf %800, %783 : vector<1x128xf32>
    %810 = arith.mulf %794, %802 : vector<1x128xf32>
    %811 = arith.addf %809, %810 : vector<1x128xf32>
    %812 = math.tanh %811 : vector<1x128xf32>
    %813 = arith.mulf %808, %812 : vector<1x128xf32>
    %c0_410 = arith.constant 0 : index
    %c0_411 = arith.constant 0 : index
    %814 = vector.load %arg10[%c0_410, %c0_411] : memref<1x128xf32, #tpu.memory_space<vmem>>, vector<1x128xf32>
    tpu.vector_store %arg10[%c0_410, %c0_411], %813 {strides = array<i32>} : memref<1x128xf32, #tpu.memory_space<vmem>>, vector<1x128xf32>,
    %c0_412 = arith.constant 0 : index
    %c0_413 = arith.constant 0 : index
    %815 = vector.load %arg11[%c0_412, %c0_413] : memref<1x128xf32, #tpu.memory_space<vmem>>, vector<1x128xf32>
    tpu.vector_store %arg11[%c0_412, %c0_413], %811 {strides = array<i32>} : memref<1x128xf32, #tpu.memory_space<vmem>>, vector<1x128xf32>,
    %816 = arith.truncf %813 : vector<1x128xf32> to vector<1x128xbf16>
    %c0_414 = arith.constant 0 : index
    %c0_415 = arith.constant 0 : index
    %817 = vector.load %arg5[%c0_414, %c0_415] : memref<128x128xbf16, #tpu.memory_space<vmem>>, vector<128x128xbf16>
    %cst_416 = arith.constant dense<0.000000e+00> : vector<1x128xf32>
    %818 = tpu.matmul %816, %817, %cst_416 {dimension_numbers = #tpu.dot_dimension_numbers<[1], [0], [0], [1], [0, 0, 1, 1], [], []>} : vector<1x128xbf16>, vector<128x128xbf16>, vector<1x128xf32> -> vector<1x128xf32>
    %c0_417 = arith.constant 0 : index
    %c0_418 = arith.constant 0 : index
    %819 = vector.load %arg6[%c0_417, %c0_418] : memref<1x128xf32, #tpu.memory_space<vmem>>, vector<1x128xf32>
    %820 = arith.addf %818, %819 : vector<1x128xf32>
    %c8_i32_419 = arith.constant 8 : i32
    %821 = arith.addi %c8_i32_419, %c1_i32_381 : i32
    %822 = arith.index_cast %821 : i32 to index
    %c0_420 = arith.constant 0 : index
    %c0_421 = arith.constant 0 : index
    %823 = vector.load %arg7[%822, %c0_420, %c0_421] : memref<12x1x128xf32, #tpu.memory_space<vmem>>, vector<1x1x128xf32>
    %824 = vector.shape_cast %823 : vector<1x1x128xf32> to vector<1x128xf32>
    %825 = vector.shape_cast %820 : vector<1x128xf32> to vector<1x1x128xf32>
    tpu.vector_store %arg7[%822, %c0_420, %c0_421], %825 {strides = array<i32>} : memref<12x1x128xf32, #tpu.memory_space<vmem>>, vector<1x1x128xf32>,
    %c2_i32_422 = arith.constant 2 : i32
    %c0_423 = arith.constant 0 : index
    %c0_424 = arith.constant 0 : index
    %826 = vector.load %arg8[%c0_423, %c0_424] : memref<1x128xf32, #tpu.memory_space<vmem>>, vector<1x128xf32>
    %827 = arith.addf %826, %820 : vector<1x128xf32>
    %c0_425 = arith.constant 0 : index
    %c0_426 = arith.constant 0 : index
    %828 = vector.load %arg9[%c0_425, %c0_426] : memref<1x128xf32, #tpu.memory_space<vmem>>, vector<1x128xf32>
    %829 = arith.truncf %827 : vector<1x128xf32> to vector<1x128xbf16>
    %c0_427 = arith.constant 0 : index
    %c0_428 = arith.constant 0 : index
    %830 = vector.load %arg1[%c0_427, %c0_428] : memref<128x512xbf16, #tpu.memory_space<vmem>>, vector<128x512xbf16>
    %cst_429 = arith.constant dense<0.000000e+00> : vector<1x512xf32>
    %831 = tpu.matmul %829, %830, %cst_429 {dimension_numbers = #tpu.dot_dimension_numbers<[1], [0], [0], [1], [0, 0, 1, 1], [], []>} : vector<1x128xbf16>, vector<128x512xbf16>, vector<1x512xf32> -> vector<1x512xf32>
    %c0_430 = arith.constant 0 : index
    %c0_431 = arith.constant 0 : index
    %832 = vector.load %arg2[%c0_430, %c0_431] : memref<1x512xf32, #tpu.memory_space<vmem>>, vector<1x512xf32>
    %833 = arith.addf %831, %832 : vector<1x512xf32>
    %834 = vector.extract_strided_slice %833 {offsets = [0, 0], sizes = [1, 128], strides = [1, 1]} : vector<1x512xf32> to vector<1x128xf32>
    %835 = arith.negf %834 : vector<1x128xf32>
    %836 = math.exp %835 : vector<1x128xf32>
    %cst_432 = arith.constant 1.000000e+00 : f32
    %837 = vector.broadcast %cst_432 : f32 to vector<1x128xf32>
    %838 = arith.addf %837, %836 : vector<1x128xf32>
    %839 = arith.divf %837, %838 : vector<1x128xf32>
    %840 = vector.extract_strided_slice %833 {offsets = [0, 128], sizes = [1, 128], strides = [1, 1]} : vector<1x512xf32> to vector<1x128xf32>
    %841 = arith.negf %840 : vector<1x128xf32>
    %842 = math.exp %841 : vector<1x128xf32>
    %cst_433 = arith.constant 1.000000e+00 : f32
    %843 = vector.broadcast %cst_433 : f32 to vector<1x128xf32>
    %844 = arith.addf %843, %842 : vector<1x128xf32>
    %845 = arith.divf %843, %844 : vector<1x128xf32>
    %846 = vector.extract_strided_slice %833 {offsets = [0, 256], sizes = [1, 128], strides = [1, 1]} : vector<1x512xf32> to vector<1x128xf32>
    %847 = math.tanh %846 : vector<1x128xf32>
    %848 = vector.extract_strided_slice %833 {offsets = [0, 384], sizes = [1, 128], strides = [1, 1]} : vector<1x512xf32> to vector<1x128xf32>
    %849 = arith.negf %848 : vector<1x128xf32>
    %850 = math.exp %849 : vector<1x128xf32>
    %cst_434 = arith.constant 1.000000e+00 : f32
    %851 = vector.broadcast %cst_434 : f32 to vector<1x128xf32>
    %852 = arith.addf %851, %850 : vector<1x128xf32>
    %853 = arith.divf %851, %852 : vector<1x128xf32>
    %854 = arith.mulf %845, %828 : vector<1x128xf32>
    %855 = arith.mulf %839, %847 : vector<1x128xf32>
    %856 = arith.addf %854, %855 : vector<1x128xf32>
    %857 = math.tanh %856 : vector<1x128xf32>
    %858 = arith.mulf %853, %857 : vector<1x128xf32>
    %c0_435 = arith.constant 0 : index
    %c0_436 = arith.constant 0 : index
    %859 = vector.load %arg8[%c0_435, %c0_436] : memref<1x128xf32, #tpu.memory_space<vmem>>, vector<1x128xf32>
    tpu.vector_store %arg8[%c0_435, %c0_436], %858 {strides = array<i32>} : memref<1x128xf32, #tpu.memory_space<vmem>>, vector<1x128xf32>,
    %c0_437 = arith.constant 0 : index
    %c0_438 = arith.constant 0 : index
    %860 = vector.load %arg9[%c0_437, %c0_438] : memref<1x128xf32, #tpu.memory_space<vmem>>, vector<1x128xf32>
    tpu.vector_store %arg9[%c0_437, %c0_438], %856 {strides = array<i32>} : memref<1x128xf32, #tpu.memory_space<vmem>>, vector<1x128xf32>,
    %c0_439 = arith.constant 0 : index
    %c0_440 = arith.constant 0 : index
    %861 = vector.load %arg10[%c0_439, %c0_440] : memref<1x128xf32, #tpu.memory_space<vmem>>, vector<1x128xf32>
    %862 = arith.addf %858, %861 : vector<1x128xf32>
    %c0_441 = arith.constant 0 : index
    %c0_442 = arith.constant 0 : index
    %863 = vector.load %arg11[%c0_441, %c0_442] : memref<1x128xf32, #tpu.memory_space<vmem>>, vector<1x128xf32>
    %864 = arith.truncf %862 : vector<1x128xf32> to vector<1x128xbf16>
    %c0_443 = arith.constant 0 : index
    %c0_444 = arith.constant 0 : index
    %865 = vector.load %arg3[%c0_443, %c0_444] : memref<128x512xbf16, #tpu.memory_space<vmem>>, vector<128x512xbf16>
    %cst_445 = arith.constant dense<0.000000e+00> : vector<1x512xf32>
    %866 = tpu.matmul %864, %865, %cst_445 {dimension_numbers = #tpu.dot_dimension_numbers<[1], [0], [0], [1], [0, 0, 1, 1], [], []>} : vector<1x128xbf16>, vector<128x512xbf16>, vector<1x512xf32> -> vector<1x512xf32>
    %c0_446 = arith.constant 0 : index
    %c0_447 = arith.constant 0 : index
    %867 = vector.load %arg4[%c0_446, %c0_447] : memref<1x512xf32, #tpu.memory_space<vmem>>, vector<1x512xf32>
    %868 = arith.addf %866, %867 : vector<1x512xf32>
    %869 = vector.extract_strided_slice %868 {offsets = [0, 0], sizes = [1, 128], strides = [1, 1]} : vector<1x512xf32> to vector<1x128xf32>
    %870 = arith.negf %869 : vector<1x128xf32>
    %871 = math.exp %870 : vector<1x128xf32>
    %cst_448 = arith.constant 1.000000e+00 : f32
    %872 = vector.broadcast %cst_448 : f32 to vector<1x128xf32>
    %873 = arith.addf %872, %871 : vector<1x128xf32>
    %874 = arith.divf %872, %873 : vector<1x128xf32>
    %875 = vector.extract_strided_slice %868 {offsets = [0, 128], sizes = [1, 128], strides = [1, 1]} : vector<1x512xf32> to vector<1x128xf32>
    %876 = arith.negf %875 : vector<1x128xf32>
    %877 = math.exp %876 : vector<1x128xf32>
    %cst_449 = arith.constant 1.000000e+00 : f32
    %878 = vector.broadcast %cst_449 : f32 to vector<1x128xf32>
    %879 = arith.addf %878, %877 : vector<1x128xf32>
    %880 = arith.divf %878, %879 : vector<1x128xf32>
    %881 = vector.extract_strided_slice %868 {offsets = [0, 256], sizes = [1, 128], strides = [1, 1]} : vector<1x512xf32> to vector<1x128xf32>
    %882 = math.tanh %881 : vector<1x128xf32>
    %883 = vector.extract_strided_slice %868 {offsets = [0, 384], sizes = [1, 128], strides = [1, 1]} : vector<1x512xf32> to vector<1x128xf32>
    %884 = arith.negf %883 : vector<1x128xf32>
    %885 = math.exp %884 : vector<1x128xf32>
    %cst_450 = arith.constant 1.000000e+00 : f32
    %886 = vector.broadcast %cst_450 : f32 to vector<1x128xf32>
    %887 = arith.addf %886, %885 : vector<1x128xf32>
    %888 = arith.divf %886, %887 : vector<1x128xf32>
    %889 = arith.mulf %880, %863 : vector<1x128xf32>
    %890 = arith.mulf %874, %882 : vector<1x128xf32>
    %891 = arith.addf %889, %890 : vector<1x128xf32>
    %892 = math.tanh %891 : vector<1x128xf32>
    %893 = arith.mulf %888, %892 : vector<1x128xf32>
    %c0_451 = arith.constant 0 : index
    %c0_452 = arith.constant 0 : index
    %894 = vector.load %arg10[%c0_451, %c0_452] : memref<1x128xf32, #tpu.memory_space<vmem>>, vector<1x128xf32>
    tpu.vector_store %arg10[%c0_451, %c0_452], %893 {strides = array<i32>} : memref<1x128xf32, #tpu.memory_space<vmem>>, vector<1x128xf32>,
    %c0_453 = arith.constant 0 : index
    %c0_454 = arith.constant 0 : index
    %895 = vector.load %arg11[%c0_453, %c0_454] : memref<1x128xf32, #tpu.memory_space<vmem>>, vector<1x128xf32>
    tpu.vector_store %arg11[%c0_453, %c0_454], %891 {strides = array<i32>} : memref<1x128xf32, #tpu.memory_space<vmem>>, vector<1x128xf32>,
    %896 = arith.truncf %893 : vector<1x128xf32> to vector<1x128xbf16>
    %c0_455 = arith.constant 0 : index
    %c0_456 = arith.constant 0 : index
    %897 = vector.load %arg5[%c0_455, %c0_456] : memref<128x128xbf16, #tpu.memory_space<vmem>>, vector<128x128xbf16>
    %cst_457 = arith.constant dense<0.000000e+00> : vector<1x128xf32>
    %898 = tpu.matmul %896, %897, %cst_457 {dimension_numbers = #tpu.dot_dimension_numbers<[1], [0], [0], [1], [0, 0, 1, 1], [], []>} : vector<1x128xbf16>, vector<128x128xbf16>, vector<1x128xf32> -> vector<1x128xf32>
    %c0_458 = arith.constant 0 : index
    %c0_459 = arith.constant 0 : index
    %899 = vector.load %arg6[%c0_458, %c0_459] : memref<1x128xf32, #tpu.memory_space<vmem>>, vector<1x128xf32>
    %900 = arith.addf %898, %899 : vector<1x128xf32>
    %c8_i32_460 = arith.constant 8 : i32
    %901 = arith.addi %c8_i32_460, %c2_i32_422 : i32
    %902 = arith.index_cast %901 : i32 to index
    %c0_461 = arith.constant 0 : index
    %c0_462 = arith.constant 0 : index
    %903 = vector.load %arg7[%902, %c0_461, %c0_462] : memref<12x1x128xf32, #tpu.memory_space<vmem>>, vector<1x1x128xf32>
    %904 = vector.shape_cast %903 : vector<1x1x128xf32> to vector<1x128xf32>
    %905 = vector.shape_cast %900 : vector<1x128xf32> to vector<1x1x128xf32>
    tpu.vector_store %arg7[%902, %c0_461, %c0_462], %905 {strides = array<i32>} : memref<12x1x128xf32, #tpu.memory_space<vmem>>, vector<1x1x128xf32>,
    %c3_i32_463 = arith.constant 3 : i32
    %c0_464 = arith.constant 0 : index
    %c0_465 = arith.constant 0 : index
    %906 = vector.load %arg8[%c0_464, %c0_465] : memref<1x128xf32, #tpu.memory_space<vmem>>, vector<1x128xf32>
    %907 = arith.addf %906, %900 : vector<1x128xf32>
    %c0_466 = arith.constant 0 : index
    %c0_467 = arith.constant 0 : index
    %908 = vector.load %arg9[%c0_466, %c0_467] : memref<1x128xf32, #tpu.memory_space<vmem>>, vector<1x128xf32>
    %909 = arith.truncf %907 : vector<1x128xf32> to vector<1x128xbf16>
    %c0_468 = arith.constant 0 : index
    %c0_469 = arith.constant 0 : index
    %910 = vector.load %arg1[%c0_468, %c0_469] : memref<128x512xbf16, #tpu.memory_space<vmem>>, vector<128x512xbf16>
    %cst_470 = arith.constant dense<0.000000e+00> : vector<1x512xf32>
    %911 = tpu.matmul %909, %910, %cst_470 {dimension_numbers = #tpu.dot_dimension_numbers<[1], [0], [0], [1], [0, 0, 1, 1], [], []>} : vector<1x128xbf16>, vector<128x512xbf16>, vector<1x512xf32> -> vector<1x512xf32>
    %c0_471 = arith.constant 0 : index
    %c0_472 = arith.constant 0 : index
    %912 = vector.load %arg2[%c0_471, %c0_472] : memref<1x512xf32, #tpu.memory_space<vmem>>, vector<1x512xf32>
    %913 = arith.addf %911, %912 : vector<1x512xf32>
    %914 = vector.extract_strided_slice %913 {offsets = [0, 0], sizes = [1, 128], strides = [1, 1]} : vector<1x512xf32> to vector<1x128xf32>
    %915 = arith.negf %914 : vector<1x128xf32>
    %916 = math.exp %915 : vector<1x128xf32>
    %cst_473 = arith.constant 1.000000e+00 : f32
    %917 = vector.broadcast %cst_473 : f32 to vector<1x128xf32>
    %918 = arith.addf %917, %916 : vector<1x128xf32>
    %919 = arith.divf %917, %918 : vector<1x128xf32>
    %920 = vector.extract_strided_slice %913 {offsets = [0, 128], sizes = [1, 128], strides = [1, 1]} : vector<1x512xf32> to vector<1x128xf32>
    %921 = arith.negf %920 : vector<1x128xf32>
    %922 = math.exp %921 : vector<1x128xf32>
    %cst_474 = arith.constant 1.000000e+00 : f32
    %923 = vector.broadcast %cst_474 : f32 to vector<1x128xf32>
    %924 = arith.addf %923, %922 : vector<1x128xf32>
    %925 = arith.divf %923, %924 : vector<1x128xf32>
    %926 = vector.extract_strided_slice %913 {offsets = [0, 256], sizes = [1, 128], strides = [1, 1]} : vector<1x512xf32> to vector<1x128xf32>
    %927 = math.tanh %926 : vector<1x128xf32>
    %928 = vector.extract_strided_slice %913 {offsets = [0, 384], sizes = [1, 128], strides = [1, 1]} : vector<1x512xf32> to vector<1x128xf32>
    %929 = arith.negf %928 : vector<1x128xf32>
    %930 = math.exp %929 : vector<1x128xf32>
    %cst_475 = arith.constant 1.000000e+00 : f32
    %931 = vector.broadcast %cst_475 : f32 to vector<1x128xf32>
    %932 = arith.addf %931, %930 : vector<1x128xf32>
    %933 = arith.divf %931, %932 : vector<1x128xf32>
    %934 = arith.mulf %925, %908 : vector<1x128xf32>
    %935 = arith.mulf %919, %927 : vector<1x128xf32>
    %936 = arith.addf %934, %935 : vector<1x128xf32>
    %937 = math.tanh %936 : vector<1x128xf32>
    %938 = arith.mulf %933, %937 : vector<1x128xf32>
    %c0_476 = arith.constant 0 : index
    %c0_477 = arith.constant 0 : index
    %939 = vector.load %arg8[%c0_476, %c0_477] : memref<1x128xf32, #tpu.memory_space<vmem>>, vector<1x128xf32>
    tpu.vector_store %arg8[%c0_476, %c0_477], %938 {strides = array<i32>} : memref<1x128xf32, #tpu.memory_space<vmem>>, vector<1x128xf32>,
    %c0_478 = arith.constant 0 : index
    %c0_479 = arith.constant 0 : index
    %940 = vector.load %arg9[%c0_478, %c0_479] : memref<1x128xf32, #tpu.memory_space<vmem>>, vector<1x128xf32>
    tpu.vector_store %arg9[%c0_478, %c0_479], %936 {strides = array<i32>} : memref<1x128xf32, #tpu.memory_space<vmem>>, vector<1x128xf32>,
    %c0_480 = arith.constant 0 : index
    %c0_481 = arith.constant 0 : index
    %941 = vector.load %arg10[%c0_480, %c0_481] : memref<1x128xf32, #tpu.memory_space<vmem>>, vector<1x128xf32>
    %942 = arith.addf %938, %941 : vector<1x128xf32>
    %c0_482 = arith.constant 0 : index
    %c0_483 = arith.constant 0 : index
    %943 = vector.load %arg11[%c0_482, %c0_483] : memref<1x128xf32, #tpu.memory_space<vmem>>, vector<1x128xf32>
    %944 = arith.truncf %942 : vector<1x128xf32> to vector<1x128xbf16>
    %c0_484 = arith.constant 0 : index
    %c0_485 = arith.constant 0 : index
    %945 = vector.load %arg3[%c0_484, %c0_485] : memref<128x512xbf16, #tpu.memory_space<vmem>>, vector<128x512xbf16>
    %cst_486 = arith.constant dense<0.000000e+00> : vector<1x512xf32>
    %946 = tpu.matmul %944, %945, %cst_486 {dimension_numbers = #tpu.dot_dimension_numbers<[1], [0], [0], [1], [0, 0, 1, 1], [], []>} : vector<1x128xbf16>, vector<128x512xbf16>, vector<1x512xf32> -> vector<1x512xf32>
    %c0_487 = arith.constant 0 : index
    %c0_488 = arith.constant 0 : index
    %947 = vector.load %arg4[%c0_487, %c0_488] : memref<1x512xf32, #tpu.memory_space<vmem>>, vector<1x512xf32>
    %948 = arith.addf %946, %947 : vector<1x512xf32>
    %949 = vector.extract_strided_slice %948 {offsets = [0, 0], sizes = [1, 128], strides = [1, 1]} : vector<1x512xf32> to vector<1x128xf32>
    %950 = arith.negf %949 : vector<1x128xf32>
    %951 = math.exp %950 : vector<1x128xf32>
    %cst_489 = arith.constant 1.000000e+00 : f32
    %952 = vector.broadcast %cst_489 : f32 to vector<1x128xf32>
    %953 = arith.addf %952, %951 : vector<1x128xf32>
    %954 = arith.divf %952, %953 : vector<1x128xf32>
    %955 = vector.extract_strided_slice %948 {offsets = [0, 128], sizes = [1, 128], strides = [1, 1]} : vector<1x512xf32> to vector<1x128xf32>
    %956 = arith.negf %955 : vector<1x128xf32>
    %957 = math.exp %956 : vector<1x128xf32>
    %cst_490 = arith.constant 1.000000e+00 : f32
    %958 = vector.broadcast %cst_490 : f32 to vector<1x128xf32>
    %959 = arith.addf %958, %957 : vector<1x128xf32>
    %960 = arith.divf %958, %959 : vector<1x128xf32>
    %961 = vector.extract_strided_slice %948 {offsets = [0, 256], sizes = [1, 128], strides = [1, 1]} : vector<1x512xf32> to vector<1x128xf32>
    %962 = math.tanh %961 : vector<1x128xf32>
    %963 = vector.extract_strided_slice %948 {offsets = [0, 384], sizes = [1, 128], strides = [1, 1]} : vector<1x512xf32> to vector<1x128xf32>
    %964 = arith.negf %963 : vector<1x128xf32>
    %965 = math.exp %964 : vector<1x128xf32>
    %cst_491 = arith.constant 1.000000e+00 : f32
    %966 = vector.broadcast %cst_491 : f32 to vector<1x128xf32>
    %967 = arith.addf %966, %965 : vector<1x128xf32>
    %968 = arith.divf %966, %967 : vector<1x128xf32>
    %969 = arith.mulf %960, %943 : vector<1x128xf32>
    %970 = arith.mulf %954, %962 : vector<1x128xf32>
    %971 = arith.addf %969, %970 : vector<1x128xf32>
    %972 = math.tanh %971 : vector<1x128xf32>
    %973 = arith.mulf %968, %972 : vector<1x128xf32>
    %c0_492 = arith.constant 0 : index
    %c0_493 = arith.constant 0 : index
    %974 = vector.load %arg10[%c0_492, %c0_493] : memref<1x128xf32, #tpu.memory_space<vmem>>, vector<1x128xf32>
    tpu.vector_store %arg10[%c0_492, %c0_493], %973 {strides = array<i32>} : memref<1x128xf32, #tpu.memory_space<vmem>>, vector<1x128xf32>,
    %c0_494 = arith.constant 0 : index
    %c0_495 = arith.constant 0 : index
    %975 = vector.load %arg11[%c0_494, %c0_495] : memref<1x128xf32, #tpu.memory_space<vmem>>, vector<1x128xf32>
    tpu.vector_store %arg11[%c0_494, %c0_495], %971 {strides = array<i32>} : memref<1x128xf32, #tpu.memory_space<vmem>>, vector<1x128xf32>,
    %976 = arith.truncf %973 : vector<1x128xf32> to vector<1x128xbf16>
    %c0_496 = arith.constant 0 : index
    %c0_497 = arith.constant 0 : index
    %977 = vector.load %arg5[%c0_496, %c0_497] : memref<128x128xbf16, #tpu.memory_space<vmem>>, vector<128x128xbf16>
    %cst_498 = arith.constant dense<0.000000e+00> : vector<1x128xf32>
    %978 = tpu.matmul %976, %977, %cst_498 {dimension_numbers = #tpu.dot_dimension_numbers<[1], [0], [0], [1], [0, 0, 1, 1], [], []>} : vector<1x128xbf16>, vector<128x128xbf16>, vector<1x128xf32> -> vector<1x128xf32>
    %c0_499 = arith.constant 0 : index
    %c0_500 = arith.constant 0 : index
    %979 = vector.load %arg6[%c0_499, %c0_500] : memref<1x128xf32, #tpu.memory_space<vmem>>, vector<1x128xf32>
    %980 = arith.addf %978, %979 : vector<1x128xf32>
    %c8_i32_501 = arith.constant 8 : i32
    %981 = arith.addi %c8_i32_501, %c3_i32_463 : i32
    %982 = arith.index_cast %981 : i32 to index
    %c0_502 = arith.constant 0 : index
    %c0_503 = arith.constant 0 : index
    %983 = vector.load %arg7[%982, %c0_502, %c0_503] : memref<12x1x128xf32, #tpu.memory_space<vmem>>, vector<1x1x128xf32>
    %984 = vector.shape_cast %983 : vector<1x1x128xf32> to vector<1x128xf32>
    %985 = vector.shape_cast %980 : vector<1x128xf32> to vector<1x1x128xf32>
    tpu.vector_store %arg7[%982, %c0_502, %c0_503], %985 {strides = array<i32>} : memref<12x1x128xf32, #tpu.memory_space<vmem>>, vector<1x1x128xf32>,
    %c4_i32_504 = arith.constant 4 : i32
    return
  }
}

</mosaic_0001>

<llo_original>
// kernel: tpu_custom_call.1
$region0: #{tpu_custom_call.1}
  #allocation0 [shape = 'u32[]', space=smem, size = 0x4, offset = 0x4, fixed_abs, tag = 'smem constant byte address 0x4 - core index']
  #allocation1 [shape = 'u32[144,128]{1,0:T(1,128)}', space=vmem, size = 0x12000, scoped, tag = 'internal scratch']
  #allocation2 [shape = 'f32[1,128]{1,0:T(1,128)}', space=vmem, size = 0x200, scoped, tag = 'scratch operand']
  #allocation3 [shape = 'f32[1,128]{1,0:T(1,128)}', space=vmem, size = 0x200, scoped, tag = 'scratch operand']
  #allocation4 [shape = 'f32[1,128]{1,0:T(1,128)}', space=vmem, size = 0x200, scoped, tag = 'scratch operand']
  #allocation5 [shape = 'f32[1,128]{1,0:T(1,128)}', space=vmem, size = 0x200, scoped, tag = 'scratch operand']
  %s0 = inlined_call_operand.hbm [shape: f32[8,1,128], index: 0, kind: input, shape index: {}]
  %s1 = inlined_call_operand.hbm [shape: bf16[128,512], index: 1, kind: input, shape index: {}]
  %s2 = inlined_call_operand.hbm [shape: f32[1,512], index: 2, kind: input, shape index: {}]
  %s3 = inlined_call_operand.hbm [shape: bf16[128,512], index: 3, kind: input, shape index: {}]
  %s4 = inlined_call_operand.vmem [shape: f32[1,512], index: 4, kind: input, shape index: {}]
  %s5 = inlined_call_operand.hbm [shape: bf16[128,128], index: 5, kind: input, shape index: {}]
  %s6 = inlined_call_operand.vmem [shape: f32[1,128], index: 6, kind: input, shape index: {}]
  %s7 = inlined_call_operand.hbm [shape: f32[12,1,128], index: 7, kind: output, shape index: {}]
  %s8 = sld [smem:[#allocation0]]
  $region58: #{tpu_custom_call.1} parent=0
    _
  %s10 = ssub.s32 1, %s8
  %s11 = scalar_select 0, %s10, %s8
  $region1: #{tpu_custom_call.1} parent=0
    #allocation6 [shape = 'u8[4096]{0}', space=vmem, size = 0x1000, scoped, tag = 'input window, operand 0, single buffered']
    #allocation7 [shape = 's32[1]{0}', space=sflag, size = 0x4, scoped, tag = 'scoped memory for tpu_custom_call.1']
    #allocation8 [shape = 's32[1]{0}', space=sflag, size = 0x4, scoped, tag = 'scoped memory for tpu_custom_call.1']
    #allocation9 [shape = 'u8[131072]{0}', space=vmem, size = 0x20000, scoped, tag = 'input window, operand 1, single buffered']
    #allocation10 [shape = 's32[1]{0}', space=sflag, size = 0x4, scoped, tag = 'scoped memory for tpu_custom_call.1']
    #allocation11 [shape = 'u8[2048]{0}', space=vmem, size = 0x800, scoped, tag = 'input window, operand 2, single buffered']
    #allocation12 [shape = 'u8[131072]{0}', space=vmem, size = 0x20000, scoped, tag = 'input window, operand 3, single buffered']
    #allocation13 [shape = 's32[1]{0}', space=sflag, size = 0x4, scoped, tag = 'scoped memory for tpu_custom_call.1']
    #allocation14 [shape = 'u8[32768]{0}', space=vmem, size = 0x8000, scoped, tag = 'input window, operand 5, single buffered']
    #allocation15 [shape = 'u8[6144]{0}', space=vmem, size = 0x1800, scoped, tag = 'output window, operand 0, single buffered']
    %12 = vsyncpa [#allocation7], 0
    %13 = vsyncpa [#allocation10], 0
    %14 = vsyncpa [#allocation13], 0
    %15 = vsyncpa [#allocation8], 0
    // Predicated region
    $region2: #{tpu_custom_call.1} parent=1 // pred_check
      _
    $region3: #{tpu_custom_call.1} parent=1 // pred_check_branch
      %17 = sbr.rel (0) target = $region5
    $region4: #{tpu_custom_call.1} parent=1 // pred_region
      %s19 = ssub.s32 128, 128
      %20 = vsyncadd [#allocation7], %s19
      %s21 = sshll.u32 [#allocation6], 4
      %s22 = int_to_ptr.vmem [resolvable:$true] %s21
      %27 = dma.hbm_to_vmem [thread:$0]  %s0, 128, %s22, [#allocation7], 16, 16, 1
    $region5: #{tpu_custom_call.1} parent=1 // pred_fallthru
      _
    // Predicated region
    $region6: #{tpu_custom_call.1} parent=1 // pred_check
      _
    $region7: #{tpu_custom_call.1} parent=1 // pred_check_branch
      %29 = sbr.rel (0) target = $region9
    $region8: #{tpu_custom_call.1} parent=1 // pred_region
      %s31 = ssub.s32 4096, 4096
      %32 = vsyncadd [#allocation10], %s31
      %s33 = sshll.u32 [#allocation9], 4
      %s34 = int_to_ptr.vmem [resolvable:$true] %s33
      %39 = dma.hbm_to_vmem [thread:$0]  %s1, 4096, %s34, [#allocation10], 256, 256, 16
    $region9: #{tpu_custom_call.1} parent=1 // pred_fallthru
      _
    // Predicated region
    $region10: #{tpu_custom_call.1} parent=1 // pred_check
      _
    $region11: #{tpu_custom_call.1} parent=1 // pred_check_branch
      %41 = sbr.rel (0) target = $region13
    $region12: #{tpu_custom_call.1} parent=1 // pred_region
      %s43 = ssub.s32 64, 64
      %44 = vsyncadd [#allocation10], %s43
      %s46 = sshll.u32 [#allocation11], 4
      %s47 = int_to_ptr.vmem [resolvable:$true] %s46
      %49 = dma.hbm_to_vmem [thread:$0]  %s2, 64, %s47, [#allocation10]
    $region13: #{tpu_custom_call.1} parent=1 // pred_fallthru
      _
    // Predicated region
    $region14: #{tpu_custom_call.1} parent=1 // pred_check
      _
    $region15: #{tpu_custom_call.1} parent=1 // pred_check_branch
      %51 = sbr.rel (0) target = $region17
    $region16: #{tpu_custom_call.1} parent=1 // pred_region
      %s53 = ssub.s32 4096, 4096
      %54 = vsyncadd [#allocation13], %s53
      %s55 = sshll.u32 [#allocation12], 4
      %s56 = int_to_ptr.vmem [resolvable:$true] %s55
      %61 = dma.hbm_to_vmem [thread:$0]  %s3, 4096, %s56, [#allocation13], 256, 256, 16
    $region17: #{tpu_custom_call.1} parent=1 // pred_fallthru
      _
    // Predicated region
    $region18: #{tpu_custom_call.1} parent=1 // pred_check
      _
    $region19: #{tpu_custom_call.1} parent=1 // pred_check_branch
      %63 = sbr.rel (0) target = $region21
    $region20: #{tpu_custom_call.1} parent=1 // pred_region
      _
    $region21: #{tpu_custom_call.1} parent=1 // pred_fallthru
      _
    // Predicated region
    $region22: #{tpu_custom_call.1} parent=1 // pred_check
      _
    $region23: #{tpu_custom_call.1} parent=1 // pred_check_branch
      %65 = sbr.rel (0) target = $region25
    $region24: #{tpu_custom_call.1} parent=1 // pred_region
      %s67 = ssub.s32 1024, 1024
      %68 = vsyncadd [#allocation13], %s67
      %s69 = sshll.u32 [#allocation14], 4
      %s70 = int_to_ptr.vmem [resolvable:$true] %s69
      %75 = dma.hbm_to_vmem [thread:$0]  %s5, 1024, %s70, [#allocation13], 64, 64, 4
    $region25: #{tpu_custom_call.1} parent=1 // pred_fallthru
      _
    // Predicated region
    $region26: #{tpu_custom_call.1} parent=1 // pred_check
      _
    $region27: #{tpu_custom_call.1} parent=1 // pred_check_branch
      %77 = sbr.rel (0) target = $region29
    $region28: #{tpu_custom_call.1} parent=1 // pred_region
      _
    $region29: #{tpu_custom_call.1} parent=1 // pred_fallthru
      _
    // Predicated region
    $region30: #{tpu_custom_call.1} parent=1 // pred_check
      _
    $region31: #{tpu_custom_call.1} parent=1 // pred_check_branch
      %79 = sbr.rel (0) target = $region33
    $region32: #{tpu_custom_call.1} parent=1 // pred_region
      %80 = dma.done [#allocation7], 128
    $region33: #{tpu_custom_call.1} parent=1 // pred_fallthru
      _
    // Predicated region
    $region34: #{tpu_custom_call.1} parent=1 // pred_check
      _
    $region35: #{tpu_custom_call.1} parent=1 // pred_check_branch
      %82 = sbr.rel (0) target = $region37
    $region36: #{tpu_custom_call.1} parent=1 // pred_region
      %83 = dma.done [#allocation10], 4096
    $region37: #{tpu_custom_call.1} parent=1 // pred_fallthru
      _
    // Predicated region
    $region38: #{tpu_custom_call.1} parent=1 // pred_check
      _
    $region39: #{tpu_custom_call.1} parent=1 // pred_check_branch
      %85 = sbr.rel (0) target = $region41
    $region40: #{tpu_custom_call.1} parent=1 // pred_region
      %86 = dma.done [#allocation10], 64
    $region41: #{tpu_custom_call.1} parent=1 // pred_fallthru
      _
    // Predicated region
    $region42: #{tpu_custom_call.1} parent=1 // pred_check
      _
    $region43: #{tpu_custom_call.1} parent=1 // pred_check_branch
      %88 = sbr.rel (0) target = $region45
    $region44: #{tpu_custom_call.1} parent=1 // pred_region
      %89 = dma.done [#allocation13], 4096
    $region45: #{tpu_custom_call.1} parent=1 // pred_fallthru
      _
    // Predicated region
    $region46: #{tpu_custom_call.1} parent=1 // pred_check
      _
    $region47: #{tpu_custom_call.1} parent=1 // pred_check_branch
      %91 = sbr.rel (0) target = $region49
    $region48: #{tpu_custom_call.1} parent=1 // pred_region
      %92 = dma.done [#allocation13], 1024
    $region49: #{tpu_custom_call.1} parent=1 // pred_fallthru
      _
    %94 = vst [vmem:[#allocation2] sm:$0x1] 0.0
    %95 = vst [vmem:[#allocation3] sm:$0x1] 0.0
    %96 = vst [vmem:[#allocation4] sm:$0x1] 0.0
    %97 = vst [vmem:[#allocation5] sm:$0x1] 0.0
    %v98 = vld [vmem:[#allocation6] sm:$0x1]
    %v99 = vld [vmem:[#allocation2] sm:$0x1]
    %v100 = vadd.f32 %v99, %v98
    %v101 = vld [vmem:[#allocation3] sm:$0x1]
    %v102 = vpack.c.bf16 %v100, %v100
    %v103 = vld [vmem:[#allocation9] sm:$0xff]
    %v104 = vld [vmem:[#allocation9 + $0x8] sm:$0xff]
    %v105 = vld [vmem:[#allocation9 + $0x10] sm:$0xff]
    %v106 = vld [vmem:[#allocation9 + $0x18] sm:$0xff]
    %v107 = vld [vmem:[#allocation9 + $0x20] sm:$0xff]
    %v108 = vld [vmem:[#allocation9 + $0x28] sm:$0xff]
    %v109 = vld [vmem:[#allocation9 + $0x30] sm:$0xff]
    %v110 = vld [vmem:[#allocation9 + $0x38] sm:$0xff]
    %v111 = vld [vmem:[#allocation9 + $0x40] sm:$0xff]
    %v112 = vld [vmem:[#allocation9 + $0x48] sm:$0xff]
    %v113 = vld [vmem:[#allocation9 + $0x50] sm:$0xff]
    %v114 = vld [vmem:[#allocation9 + $0x58] sm:$0xff]
    %v115 = vld [vmem:[#allocation9 + $0x60] sm:$0xff]
    %v116 = vld [vmem:[#allocation9 + $0x68] sm:$0xff]
    %v117 = vld [vmem:[#allocation9 + $0x70] sm:$0xff]
    %v118 = vld [vmem:[#allocation9 + $0x78] sm:$0xff]
    %v119 = vld [vmem:[#allocation9 + $0x80] sm:$0xff]
    %v120 = vld [vmem:[#allocation9 + $0x88] sm:$0xff]
    %v121 = vld [vmem:[#allocation9 + $0x90] sm:$0xff]
    %v122 = vld [vmem:[#allocation9 + $0x98] sm:$0xff]
    %v123 = vld [vmem:[#allocation9 + $0xa0] sm:$0xff]
    %v124 = vld [vmem:[#allocation9 + $0xa8] sm:$0xff]
    %v125 = vld [vmem:[#allocation9 + $0xb0] sm:$0xff]
    %v126 = vld [vmem:[#allocation9 + $0xb8] sm:$0xff]
    %v127 = vld [vmem:[#allocation9 + $0xc0] sm:$0xff]
    %v128 = vld [vmem:[#allocation9 + $0xc8] sm:$0xff]
    %v129 = vld [vmem:[#allocation9 + $0xd0] sm:$0xff]
    %v130 = vld [vmem:[#allocation9 + $0xd8] sm:$0xff]
    %v131 = vld [vmem:[#allocation9 + $0xe0] sm:$0xff]
    %v132 = vld [vmem:[#allocation9 + $0xe8] sm:$0xff]
    %v133 = vld [vmem:[#allocation9 + $0xf0] sm:$0xff]
    %v134 = vld [vmem:[#allocation9 + $0xf8] sm:$0xff]
    %v135 = vld [vmem:[#allocation11] sm:$0xf]
    %v168 = vunpack.c.l.b16 %v103
    %v169 = vunpack.c.h.b16 %v103
    %v170 = vunpack.c.l.b16 %v104
    %v171 = vunpack.c.h.b16 %v104
    %v172 = vunpack.c.l.b16 %v105
    %v173 = vunpack.c.h.b16 %v105
    %v174 = vunpack.c.l.b16 %v106
    %v175 = vunpack.c.h.b16 %v106
    %v176 = vunpack.c.l.b16 %v107
    %v177 = vunpack.c.h.b16 %v107
    %v178 = vunpack.c.l.b16 %v108
    %v179 = vunpack.c.h.b16 %v108
    %v180 = vunpack.c.l.b16 %v109
    %v181 = vunpack.c.h.b16 %v109
    %v182 = vunpack.c.l.b16 %v110
    %v183 = vunpack.c.h.b16 %v110
    %v184 = vunpack.c.l.b16 %v111
    %v185 = vunpack.c.h.b16 %v111
    %v186 = vunpack.c.l.b16 %v112
    %v187 = vunpack.c.h.b16 %v112
    %v188 = vunpack.c.l.b16 %v113
    %v189 = vunpack.c.h.b16 %v113
    %v190 = vunpack.c.l.b16 %v114
    %v191 = vunpack.c.h.b16 %v114
    %v192 = vunpack.c.l.b16 %v115
    %v193 = vunpack.c.h.b16 %v115
    %v194 = vunpack.c.l.b16 %v116
    %v195 = vunpack.c.h.b16 %v116
    %v196 = vunpack.c.l.b16 %v117
    %v197 = vunpack.c.h.b16 %v117
    %v198 = vunpack.c.l.b16 %v118
    %v199 = vunpack.c.h.b16 %v118
    %v200 = vunpack.c.l.b16 %v119
    %v201 = vunpack.c.h.b16 %v119
    %v202 = vunpack.c.l.b16 %v120
    %v203 = vunpack.c.h.b16 %v120
    %v204 = vunpack.c.l.b16 %v121
    %v205 = vunpack.c.h.b16 %v121
    %v206 = vunpack.c.l.b16 %v122
    %v207 = vunpack.c.h.b16 %v122
    %v208 = vunpack.c.l.b16 %v123
    %v209 = vunpack.c.h.b16 %v123
    %v210 = vunpack.c.l.b16 %v124
    %v211 = vunpack.c.h.b16 %v124
    %v212 = vunpack.c.l.b16 %v125
    %v213 = vunpack.c.h.b16 %v125
    %v214 = vunpack.c.l.b16 %v126
    %v215 = vunpack.c.h.b16 %v126
    %v216 = vunpack.c.l.b16 %v127
    %v217 = vunpack.c.h.b16 %v127
    %v218 = vunpack.c.l.b16 %v128
    %v219 = vunpack.c.h.b16 %v128
    %v220 = vunpack.c.l.b16 %v129
    %v221 = vunpack.c.h.b16 %v129
    %v222 = vunpack.c.l.b16 %v130
    %v223 = vunpack.c.h.b16 %v130
    %v224 = vunpack.c.l.b16 %v131
    %v225 = vunpack.c.h.b16 %v131
    %v226 = vunpack.c.l.b16 %v132
    %v227 = vunpack.c.h.b16 %v132
    %v228 = vunpack.c.l.b16 %v133
    %v229 = vunpack.c.h.b16 %v133
    %v230 = vunpack.c.l.b16 %v134
    %v231 = vunpack.c.h.b16 %v134
    %v232 = vpack.c.b16 %v172, %v168
    %v233 = vpack.c.b16 %v173, %v169
    %v234 = vpack.c.b16 %v174, %v170
    %v235 = vpack.c.b16 %v175, %v171
    %v236 = vpack.c.b16 %v180, %v176
    %v237 = vpack.c.b16 %v181, %v177
    %v238 = vpack.c.b16 %v182, %v178
    %v239 = vpack.c.b16 %v183, %v179
    %v240 = vpack.c.b16 %v188, %v184
    %v241 = vpack.c.b16 %v189, %v185
    %v242 = vpack.c.b16 %v190, %v186
    %v243 = vpack.c.b16 %v191, %v187
    %v244 = vpack.c.b16 %v196, %v192
    %v245 = vpack.c.b16 %v197, %v193
    %v246 = vpack.c.b16 %v198, %v194
    %v247 = vpack.c.b16 %v199, %v195
    %v248 = vpack.c.b16 %v204, %v200
    %v249 = vpack.c.b16 %v205, %v201
    %v250 = vpack.c.b16 %v206, %v202
    %v251 = vpack.c.b16 %v207, %v203
    %v252 = vpack.c.b16 %v212, %v208
    %v253 = vpack.c.b16 %v213, %v209
    %v254 = vpack.c.b16 %v214, %v210
    %v255 = vpack.c.b16 %v215, %v211
    %v256 = vpack.c.b16 %v220, %v216
    %v257 = vpack.c.b16 %v221, %v217
    %v258 = vpack.c.b16 %v222, %v218
    %v259 = vpack.c.b16 %v223, %v219
    %v260 = vpack.c.b16 %v228, %v224
    %v261 = vpack.c.b16 %v229, %v225
    %v262 = vpack.c.b16 %v230, %v226
    %v263 = vpack.c.b16 %v231, %v227
    %v297 = vlaneseq
    %v298 = vshrl.u32 %v297, 7
    %v299 = vsub.s32 0, %v298
    %v300 = vrot.slane %v135, %v299
    %v301 = vlaneseq
    %v302 = vshrl.u32 %v301, 7
    %v303 = vsub.s32 1, %v302
    %v304 = vrot.slane %v135, %v303
    %v305 = vlaneseq
    %v306 = vshrl.u32 %v305, 7
    %v307 = vsub.s32 2, %v306
    %v308 = vrot.slane %v135, %v307
    %v309 = vlaneseq
    %v310 = vshrl.u32 %v309, 7
    %v311 = vsub.s32 3, %v310
    %v312 = vrot.slane %v135, %v311
    %317 = vmatprep.subr.bf16.mxu0 %v261
    %318 = vmatpush1.bf16.msra.mxu0 %v260
    %319 = vmatprep.subr.bf16.mxu0 %v257
    %320 = vmatpush1.bf16.msra.mxu0 %v256
    %321 = vmatprep.subr.bf16.mxu0 %v253
    %322 = vmatpush1.bf16.msra.mxu0 %v252
    %323 = vmatprep.subr.bf16.mxu0 %v249
    %324 = vmatpush1.bf16.msra.mxu0 %v248
    %325 = vmatprep.subr.bf16.mxu0 %v245
    %326 = vmatpush1.bf16.msra.mxu0 %v244
    %327 = vmatprep.subr.bf16.mxu0 %v241
    %328 = vmatpush1.bf16.msra.mxu0 %v240
    %329 = vmatprep.subr.bf16.mxu0 %v237
    %330 = vmatpush1.bf16.msra.mxu0 %v236
    %331 = vmatprep.subr.bf16.mxu0 %v233
    %332 = vmatpush1.bf16.msra.mxu0 %v232
    %333 = vmatprep.subr.bf16.mxu0 0
    %334 = vmatpush2.bf16.msra.mxu0 0
    %335 = vmatprep.subr.bf16.mxu0 0
    %336 = vmatpush2.bf16.msra.mxu0 0
    %337 = vmatprep.subr.bf16.mxu0 0
    %338 = vmatpush2.bf16.msra.mxu0 0
    %339 = vmatprep.subr.bf16.mxu0 0
    %340 = vmatpush2.bf16.msra.mxu0 0
    %341 = vmatprep.subr.bf16.mxu0 0
    %342 = vmatpush2.bf16.msra.mxu0 0
    %343 = vmatprep.subr.bf16.mxu0 0
    %344 = vmatpush2.bf16.msra.mxu0 0
    %345 = vmatprep.subr.bf16.mxu0 0
    %346 = vmatpush2.bf16.msra.mxu0 0
    %347 = vmatprep.subr.bf16.mxu0 0
    %348 = vmatpush2.bf16.msra.mxu0 0
    %349 = vmatprep.mubr.bf16.mxu0 0
    %350 = vmatmul.mubr.bf16.gmra.mxu0 %v102
    %v351 = vpop.f32.mrf.mxu0
    %v352 = vadd.f32 %v300, %v351
    %v353 = vpop.f32.mrf.mxu0
    %v354 = vadd.f32 %v304, %v353
    %v355 = vpop.f32.mrf.mxu0
    %v356 = vpop.f32.mrf.mxu0
    %357 = vdwg.mxu0
    %358 = vmatprep.subr.bf16.mxu0 %v263
    %359 = vmatpush1.bf16.msra.mxu0 %v262
    %360 = vmatprep.subr.bf16.mxu0 %v259
    %361 = vmatpush1.bf16.msra.mxu0 %v258
    %362 = vmatprep.subr.bf16.mxu0 %v255
    %363 = vmatpush1.bf16.msra.mxu0 %v254
    %364 = vmatprep.subr.bf16.mxu0 %v251
    %365 = vmatpush1.bf16.msra.mxu0 %v250
    %366 = vmatprep.subr.bf16.mxu0 %v247
    %367 = vmatpush1.bf16.msra.mxu0 %v246
    %368 = vmatprep.subr.bf16.mxu0 %v243
    %369 = vmatpush1.bf16.msra.mxu0 %v242
    %370 = vmatprep.subr.bf16.mxu0 %v239
    %371 = vmatpush1.bf16.msra.mxu0 %v238
    %372 = vmatprep.subr.bf16.mxu0 %v235
    %373 = vmatpush1.bf16.msra.mxu0 %v234
    %374 = vmatprep.subr.bf16.mxu0 0
    %375 = vmatpush2.bf16.msra.mxu0 0
    %376 = vmatprep.subr.bf16.mxu0 0
    %377 = vmatpush2.bf16.msra.mxu0 0
    %378 = vmatprep.subr.bf16.mxu0 0
    %379 = vmatpush2.bf16.msra.mxu0 0
    %380 = vmatprep.subr.bf16.mxu0 0
    %381 = vmatpush2.bf16.msra.mxu0 0
    %382 = vmatprep.subr.bf16.mxu0 0
    %383 = vmatpush2.bf16.msra.mxu0 0
    %384 = vmatprep.subr.bf16.mxu0 0
    %385 = vmatpush2.bf16.msra.mxu0 0
    %386 = vmatprep.subr.bf16.mxu0 0
    %387 = vmatpush2.bf16.msra.mxu0 0
    %388 = vmatprep.subr.bf16.mxu0 0
    %389 = vmatpush2.bf16.msra.mxu0 0
    %390 = vmatprep.mubr.bf16.mxu0 0
    %391 = vmatmul.mubr.bf16.gmra.mxu0 %v102
    %v392 = vpop.f32.mrf.mxu0
    %v393 = vadd.f32 %v308, %v392
    %v394 = vpop.f32.mrf.mxu0
    %v395 = vadd.f32 %v312, %v394
    %v396 = vpop.f32.mrf.mxu0
    %v397 = vpop.f32.mrf.mxu0
    %398 = vdwg.mxu0
    %v399 = vxor.u32 %v352, 2147483648
    %v400 = vmul.f32 %v399, 1.442695
    %v401 = vpow.pop %v400
    %v402 = vadd.f32 %v401, 1.0
    %v403 = vrcp.pop %v402
    %v404 = vmul.f32 1.0, %v403
    %v405 = vxor.u32 %v354, 2147483648
    %v406 = vmul.f32 %v405, 1.442695
    %v407 = vpow.pop %v406
    %v408 = vadd.f32 %v407, 1.0
    %v409 = vrcp.pop %v408
    %v410 = vmul.f32 1.0, %v409
    %v411 = vtanh.pop %v393
    %v412 = vxor.u32 %v395, 2147483648
    %v413 = vmul.f32 %v412, 1.442695
    %v414 = vpow.pop %v413
    %v415 = vadd.f32 %v414, 1.0
    %v416 = vrcp.pop %v415
    %v417 = vmul.f32 1.0, %v416
    %v418 = vmul.f32 %v410, %v101
    %v419 = vmul.f32 %v404, %v411
    %v420 = vadd.f32 %v418, %v419
    %v421 = vtanh.pop %v420
    %v422 = vmul.f32 %v417, %v421
    %423 = vst [vmem:[#allocation2] sm:$0x1] %v422
    %424 = vst [vmem:[#allocation3] sm:$0x1] %v420
    %v425 = vld [vmem:[#allocation4] sm:$0x1]
    %v426 = vadd.f32 %v422, %v425
    %v427 = vld [vmem:[#allocation5] sm:$0x1]
    %v428 = vpack.c.bf16 %v426, %v426
    %v429 = vld [vmem:[#allocation12] sm:$0xff]
    %v430 = vld [vmem:[#allocation12 + $0x8] sm:$0xff]
    %v431 = vld [vmem:[#allocation12 + $0x10] sm:$0xff]
    %v432 = vld [vmem:[#allocation12 + $0x18] sm:$0xff]
    %v433 = vld [vmem:[#allocation12 + $0x20] sm:$0xff]
    %v434 = vld [vmem:[#allocation12 + $0x28] sm:$0xff]
    %v435 = vld [vmem:[#allocation12 + $0x30] sm:$0xff]
    %v436 = vld [vmem:[#allocation12 + $0x38] sm:$0xff]
    %v437 = vld [vmem:[#allocation12 + $0x40] sm:$0xff]
    %v438 = vld [vmem:[#allocation12 + $0x48] sm:$0xff]
    %v439 = vld [vmem:[#allocation12 + $0x50] sm:$0xff]
    %v440 = vld [vmem:[#allocation12 + $0x58] sm:$0xff]
    %v441 = vld [vmem:[#allocation12 + $0x60] sm:$0xff]
    %v442 = vld [vmem:[#allocation12 + $0x68] sm:$0xff]
    %v443 = vld [vmem:[#allocation12 + $0x70] sm:$0xff]
    %v444 = vld [vmem:[#allocation12 + $0x78] sm:$0xff]
    %v445 = vld [vmem:[#allocation12 + $0x80] sm:$0xff]
    %v446 = vld [vmem:[#allocation12 + $0x88] sm:$0xff]
    %v447 = vld [vmem:[#allocation12 + $0x90] sm:$0xff]
    %v448 = vld [vmem:[#allocation12 + $0x98] sm:$0xff]
    %v449 = vld [vmem:[#allocation12 + $0xa0] sm:$0xff]
    %v450 = vld [vmem:[#allocation12 + $0xa8] sm:$0xff]
    %v451 = vld [vmem:[#allocation12 + $0xb0] sm:$0xff]
    %v452 = vld [vmem:[#allocation12 + $0xb8] sm:$0xff]
    %v453 = vld [vmem:[#allocation12 + $0xc0] sm:$0xff]
    %v454 = vld [vmem:[#allocation12 + $0xc8] sm:$0xff]
    %v455 = vld [vmem:[#allocation12 + $0xd0] sm:$0xff]
    %v456 = vld [vmem:[#allocation12 + $0xd8] sm:$0xff]
    %v457 = vld [vmem:[#allocation12 + $0xe0] sm:$0xff]
    %v458 = vld [vmem:[#allocation12 + $0xe8] sm:$0xff]
    %v459 = vld [vmem:[#allocation12 + $0xf0] sm:$0xff]
    %v460 = vld [vmem:[#allocation12 + $0xf8] sm:$0xff]
    %v461 = vld [vmem:[%s4] sm:$0xf]
    %v494 = vunpack.c.l.b16 %v429
    %v495 = vunpack.c.h.b16 %v429
    %v496 = vunpack.c.l.b16 %v430
    %v497 = vunpack.c.h.b16 %v430
    %v498 = vunpack.c.l.b16 %v431
    %v499 = vunpack.c.h.b16 %v431
    %v500 = vunpack.c.l.b16 %v432
    %v501 = vunpack.c.h.b16 %v432
    %v502 = vunpack.c.l.b16 %v433
    %v503 = vunpack.c.h.b16 %v433
    %v504 = vunpack.c.l.b16 %v434
    %v505 = vunpack.c.h.b16 %v434
    %v506 = vunpack.c.l.b16 %v435
    %v507 = vunpack.c.h.b16 %v435
    %v508 = vunpack.c.l.b16 %v436
    %v509 = vunpack.c.h.b16 %v436
    %v510 = vunpack.c.l.b16 %v437
    %v511 = vunpack.c.h.b16 %v437
    %v512 = vunpack.c.l.b16 %v438
    %v513 = vunpack.c.h.b16 %v438
    %v514 = vunpack.c.l.b16 %v439
    %v515 = vunpack.c.h.b16 %v439
    %v516 = vunpack.c.l.b16 %v440
    %v517 = vunpack.c.h.b16 %v440
    %v518 = vunpack.c.l.b16 %v441
    %v519 = vunpack.c.h.b16 %v441
    %v520 = vunpack.c.l.b16 %v442
    %v521 = vunpack.c.h.b16 %v442
    %v522 = vunpack.c.l.b16 %v443
    %v523 = vunpack.c.h.b16 %v443
    %v524 = vunpack.c.l.b16 %v444
    %v525 = vunpack.c.h.b16 %v444
    %v526 = vunpack.c.l.b16 %v445
    %v527 = vunpack.c.h.b16 %v445
    %v528 = vunpack.c.l.b16 %v446
    %v529 = vunpack.c.h.b16 %v446
    %v530 = vunpack.c.l.b16 %v447
    %v531 = vunpack.c.h.b16 %v447
    %v532 = vunpack.c.l.b16 %v448
    %v533 = vunpack.c.h.b16 %v448
    %v534 = vunpack.c.l.b16 %v449
    %v535 = vunpack.c.h.b16 %v449
    %v536 = vunpack.c.l.b16 %v450
    %v537 = vunpack.c.h.b16 %v450
    %v538 = vunpack.c.l.b16 %v451
    %v539 = vunpack.c.h.b16 %v451
    %v540 = vunpack.c.l.b16 %v452
    %v541 = vunpack.c.h.b16 %v452
    %v542 = vunpack.c.l.b16 %v453
    %v543 = vunpack.c.h.b16 %v453
    %v544 = vunpack.c.l.b16 %v454
    %v545 = vunpack.c.h.b16 %v454
    %v546 = vunpack.c.l.b16 %v455
    %v547 = vunpack.c.h.b16 %v455
    %v548 = vunpack.c.l.b16 %v456
    %v549 = vunpack.c.h.b16 %v456
    %v550 = vunpack.c.l.b16 %v457
    %v551 = vunpack.c.h.b16 %v457
    %v552 = vunpack.c.l.b16 %v458
    %v553 = vunpack.c.h.b16 %v458
    %v554 = vunpack.c.l.b16 %v459
    %v555 = vunpack.c.h.b16 %v459
    %v556 = vunpack.c.l.b16 %v460
    %v557 = vunpack.c.h.b16 %v460
    %v558 = vpack.c.b16 %v498, %v494
    %v559 = vpack.c.b16 %v499, %v495
    %v560 = vpack.c.b16 %v500, %v496
    %v561 = vpack.c.b16 %v501, %v497
    %v562 = vpack.c.b16 %v506, %v502
    %v563 = vpack.c.b16 %v507, %v503
    %v564 = vpack.c.b16 %v508, %v504
    %v565 = vpack.c.b16 %v509, %v505
    %v566 = vpack.c.b16 %v514, %v510
    %v567 = vpack.c.b16 %v515, %v511
    %v568 = vpack.c.b16 %v516, %v512
    %v569 = vpack.c.b16 %v517, %v513
    %v570 = vpack.c.b16 %v522, %v518
    %v571 = vpack.c.b16 %v523, %v519
    %v572 = vpack.c.b16 %v524, %v520
    %v573 = vpack.c.b16 %v525, %v521
    %v574 = vpack.c.b16 %v530, %v526
    %v575 = vpack.c.b16 %v531, %v527
    %v576 = vpack.c.b16 %v532, %v528
    %v577 = vpack.c.b16 %v533, %v529
    %v578 = vpack.c.b16 %v538, %v534
    %v579 = vpack.c.b16 %v539, %v535
    %v580 = vpack.c.b16 %v540, %v536
    %v581 = vpack.c.b16 %v541, %v537
    %v582 = vpack.c.b16 %v546, %v542
    %v583 = vpack.c.b16 %v547, %v543
    %v584 = vpack.c.b16 %v548, %v544
    %v585 = vpack.c.b16 %v549, %v545
    %v586 = vpack.c.b16 %v554, %v550
    %v587 = vpack.c.b16 %v555, %v551
    %v588 = vpack.c.b16 %v556, %v552
    %v589 = vpack.c.b16 %v557, %v553
    %v623 = vlaneseq
    %v624 = vshrl.u32 %v623, 7
    %v625 = vsub.s32 0, %v624
    %v626 = vrot.slane %v461, %v625
    %v627 = vlaneseq
    %v628 = vshrl.u32 %v627, 7
    %v629 = vsub.s32 1, %v628
    %v630 = vrot.slane %v461, %v629
    %v631 = vlaneseq
    %v632 = vshrl.u32 %v631, 7
    %v633 = vsub.s32 2, %v632
    %v634 = vrot.slane %v461, %v633
    %v635 = vlaneseq
    %v636 = vshrl.u32 %v635, 7
    %v637 = vsub.s32 3, %v636
    %v638 = vrot.slane %v461, %v637
    %643 = vmatprep.subr.bf16.mxu0 %v587
    %644 = vmatpush1.bf16.msra.mxu0 %v586
    %645 = vmatprep.subr.bf16.mxu0 %v583
    %646 = vmatpush1.bf16.msra.mxu0 %v582
    %647 = vmatprep.subr.bf16.mxu0 %v579
    %648 = vmatpush1.bf16.msra.mxu0 %v578
    %649 = vmatprep.subr.bf16.mxu0 %v575
    %650 = vmatpush1.bf16.msra.mxu0 %v574
    %651 = vmatprep.subr.bf16.mxu0 %v571
    %652 = vmatpush1.bf16.msra.mxu0 %v570
    %653 = vmatprep.subr.bf16.mxu0 %v567
    %654 = vmatpush1.bf16.msra.mxu0 %v566
    %655 = vmatprep.subr.bf16.mxu0 %v563
    %656 = vmatpush1.bf16.msra.mxu0 %v562
    %657 = vmatprep.subr.bf16.mxu0 %v559
    %658 = vmatpush1.bf16.msra.mxu0 %v558
    %659 = vmatprep.subr.bf16.mxu0 0
    %660 = vmatpush2.bf16.msra.mxu0 0
    %661 = vmatprep.subr.bf16.mxu0 0
    %662 = vmatpush2.bf16.msra.mxu0 0
    %663 = vmatprep.subr.bf16.mxu0 0
    %664 = vmatpush2.bf16.msra.mxu0 0
    %665 = vmatprep.subr.bf16.mxu0 0
    %666 = vmatpush2.bf16.msra.mxu0 0
    %667 = vmatprep.subr.bf16.mxu0 0
    %668 = vmatpush2.bf16.msra.mxu0 0
    %669 = vmatprep.subr.bf16.mxu0 0
    %670 = vmatpush2.bf16.msra.mxu0 0
    %671 = vmatprep.subr.bf16.mxu0 0
    %672 = vmatpush2.bf16.msra.mxu0 0
    %673 = vmatprep.subr.bf16.mxu0 0
    %674 = vmatpush2.bf16.msra.mxu0 0
    %675 = vmatprep.mubr.bf16.mxu0 0
    %676 = vmatmul.mubr.bf16.gmra.mxu0 %v428
    %v677 = vpop.f32.mrf.mxu0
    %v678 = vadd.f32 %v626, %v677
    %v679 = vpop.f32.mrf.mxu0
    %v680 = vadd.f32 %v630, %v679
    %v681 = vpop.f32.mrf.mxu0
    %v682 = vpop.f32.mrf.mxu0
    %683 = vdwg.mxu0
    %684 = vmatprep.subr.bf16.mxu0 %v589
    %685 = vmatpush1.bf16.msra.mxu0 %v588
    %686 = vmatprep.subr.bf16.mxu0 %v585
    %687 = vmatpush1.bf16.msra.mxu0 %v584
    %688 = vmatprep.subr.bf16.mxu0 %v581
    %689 = vmatpush1.bf16.msra.mxu0 %v580
    %690 = vmatprep.subr.bf16.mxu0 %v577
    %691 = vmatpush1.bf16.msra.mxu0 %v576
    %692 = vmatprep.subr.bf16.mxu0 %v573
    %693 = vmatpush1.bf16.msra.mxu0 %v572
    %694 = vmatprep.subr.bf16.mxu0 %v569
    %695 = vmatpush1.bf16.msra.mxu0 %v568
    %696 = vmatprep.subr.bf16.mxu0 %v565
    %697 = vmatpush1.bf16.msra.mxu0 %v564
    %698 = vmatprep.subr.bf16.mxu0 %v561
    %699 = vmatpush1.bf16.msra.mxu0 %v560
    %700 = vmatprep.subr.bf16.mxu0 0
    %701 = vmatpush2.bf16.msra.mxu0 0
    %702 = vmatprep.subr.bf16.mxu0 0
    %703 = vmatpush2.bf16.msra.mxu0 0
    %704 = vmatprep.subr.bf16.mxu0 0
    %705 = vmatpush2.bf16.msra.mxu0 0
    %706 = vmatprep.subr.bf16.mxu0 0
    %707 = vmatpush2.bf16.msra.mxu0 0
    %708 = vmatprep.subr.bf16.mxu0 0
    %709 = vmatpush2.bf16.msra.mxu0 0
    %710 = vmatprep.subr.bf16.mxu0 0
    %711 = vmatpush2.bf16.msra.mxu0 0
    %712 = vmatprep.subr.bf16.mxu0 0
    %713 = vmatpush2.bf16.msra.mxu0 0
    %714 = vmatprep.subr.bf16.mxu0 0
    %715 = vmatpush2.bf16.msra.mxu0 0
    %716 = vmatprep.mubr.bf16.mxu0 0
    %717 = vmatmul.mubr.bf16.gmra.mxu0 %v428
    %v718 = vpop.f32.mrf.mxu0
    %v719 = vadd.f32 %v634, %v718
    %v720 = vpop.f32.mrf.mxu0
    %v721 = vadd.f32 %v638, %v720
    %v722 = vpop.f32.mrf.mxu0
    %v723 = vpop.f32.mrf.mxu0
    %724 = vdwg.mxu0
    %v725 = vxor.u32 %v678, 2147483648
    %v726 = vmul.f32 %v725, 1.442695
    %v727 = vpow.pop %v726
    %v728 = vadd.f32 %v727, 1.0
    %v729 = vrcp.pop %v728
    %v730 = vmul.f32 1.0, %v729
    %v731 = vxor.u32 %v680, 2147483648
    %v732 = vmul.f32 %v731, 1.442695
    %v733 = vpow.pop %v732
    %v734 = vadd.f32 %v733, 1.0
    %v735 = vrcp.pop %v734
    %v736 = vmul.f32 1.0, %v735
    %v737 = vtanh.pop %v719
    %v738 = vxor.u32 %v721, 2147483648
    %v739 = vmul.f32 %v738, 1.442695
    %v740 = vpow.pop %v739
    %v741 = vadd.f32 %v740, 1.0
    %v742 = vrcp.pop %v741
    %v743 = vmul.f32 1.0, %v742
    %v744 = vmul.f32 %v736, %v427
    %v745 = vmul.f32 %v730, %v737
    %v746 = vadd.f32 %v744, %v745
    %v747 = vtanh.pop %v746
    %v748 = vmul.f32 %v743, %v747
    %749 = vst [vmem:[#allocation4] sm:$0x1] %v748
    %750 = vst [vmem:[#allocation5] sm:$0x1] %v746
    %v751 = vpack.c.bf16 %v748, %v748
    %v752 = vld [vmem:[#allocation14] sm:$0xf]
    %v753 = vld [vmem:[#allocation14 + $0x4] sm:$0xf]
    %v754 = vld [vmem:[#allocation14 + $0x8] sm:$0xf]
    %v755 = vld [vmem:[#allocation14 + $0xc] sm:$0xf]
    %v756 = vld [vmem:[#allocation14 + $0x10] sm:$0xf]
    %v757 = vld [vmem:[#allocation14 + $0x14] sm:$0xf]
    %v758 = vld [vmem:[#allocation14 + $0x18] sm:$0xf]
    %v759 = vld [vmem:[#allocation14 + $0x1c] sm:$0xf]
    %v760 = vld [vmem:[#allocation14 + $0x20] sm:$0xf]
    %v761 = vld [vmem:[#allocation14 + $0x24] sm:$0xf]
    %v762 = vld [vmem:[#allocation14 + $0x28] sm:$0xf]
    %v763 = vld [vmem:[#allocation14 + $0x2c] sm:$0xf]
    %v764 = vld [vmem:[#allocation14 + $0x30] sm:$0xf]
    %v765 = vld [vmem:[#allocation14 + $0x34] sm:$0xf]
    %v766 = vld [vmem:[#allocation14 + $0x38] sm:$0xf]
    %v767 = vld [vmem:[#allocation14 + $0x3c] sm:$0xf]
    %v768 = vld [vmem:[%s6] sm:$0x1]
    %v785 = vunpack.c.l.b16 %v752
    %v786 = vunpack.c.l.b16 %v753
    %v787 = vunpack.c.l.b16 %v754
    %v788 = vunpack.c.l.b16 %v755
    %v789 = vunpack.c.l.b16 %v756
    %v790 = vunpack.c.l.b16 %v757
    %v791 = vunpack.c.l.b16 %v758
    %v792 = vunpack.c.l.b16 %v759
    %v793 = vunpack.c.l.b16 %v760
    %v794 = vunpack.c.l.b16 %v761
    %v795 = vunpack.c.l.b16 %v762
    %v796 = vunpack.c.l.b16 %v763
    %v797 = vunpack.c.l.b16 %v764
    %v798 = vunpack.c.l.b16 %v765
    %v799 = vunpack.c.l.b16 %v766
    %v800 = vunpack.c.l.b16 %v767
    %v801 = vpack.c.b16 %v786, %v785
    %v802 = vpack.c.b16 %v788, %v787
    %v803 = vpack.c.b16 %v790, %v789
    %v804 = vpack.c.b16 %v792, %v791
    %v805 = vpack.c.b16 %v794, %v793
    %v806 = vpack.c.b16 %v796, %v795
    %v807 = vpack.c.b16 %v798, %v797
    %v808 = vpack.c.b16 %v800, %v799
    %817 = vmatprep.subr.bf16.mxu0 0
    %818 = vmatpush1.bf16.msra.mxu0 %v808
    %819 = vmatprep.subr.bf16.mxu0 0
    %820 = vmatpush1.bf16.msra.mxu0 %v807
    %821 = vmatprep.subr.bf16.mxu0 0
    %822 = vmatpush1.bf16.msra.mxu0 %v806
    %823 = vmatprep.subr.bf16.mxu0 0
    %824 = vmatpush1.bf16.msra.mxu0 %v805
    %825 = vmatprep.subr.bf16.mxu0 0
    %826 = vmatpush1.bf16.msra.mxu0 %v804
    %827 = vmatprep.subr.bf16.mxu0 0
    %828 = vmatpush1.bf16.msra.mxu0 %v803
    %829 = vmatprep.subr.bf16.mxu0 0
    %830 = vmatpush1.bf16.msra.mxu0 %v802
    %831 = vmatprep.subr.bf16.mxu0 0
    %832 = vmatpush1.bf16.msra.mxu0 %v801
    %833 = vmatprep.subr.bf16.mxu0 0
    %834 = vmatpush2.bf16.msra.mxu0 0
    %835 = vmatprep.subr.bf16.mxu0 0
    %836 = vmatpush2.bf16.msra.mxu0 0
    %837 = vmatprep.subr.bf16.mxu0 0
    %838 = vmatpush2.bf16.msra.mxu0 0
    %839 = vmatprep.subr.bf16.mxu0 0
    %840 = vmatpush2.bf16.msra.mxu0 0
    %841 = vmatprep.subr.bf16.mxu0 0
    %842 = vmatpush2.bf16.msra.mxu0 0
    %843 = vmatprep.subr.bf16.mxu0 0
    %844 = vmatpush2.bf16.msra.mxu0 0
    %845 = vmatprep.subr.bf16.mxu0 0
    %846 = vmatpush2.bf16.msra.mxu0 0
    %847 = vmatprep.subr.bf16.mxu0 0
    %848 = vmatpush2.bf16.msra.mxu0 0
    %849 = vmatprep.mubr.bf16.mxu0 0
    %850 = vmatmul.mubr.bf16.gmra.mxu0 %v751
    %v851 = vpop.f32.mrf.mxu0
    %v852 = vadd.f32 %v768, %v851
    %v853 = vpop.f32.mrf.mxu0
    %v854 = vpop.f32.mrf.mxu0
    %v855 = vpop.f32.mrf.mxu0
    %856 = vdwg.mxu0
    %857 = vst [vmem:[#allocation15] sm:$0x1] %v852
    %s858 = scalar_lea.vmem [#allocation6], 1
    %v859 = vld [vmem:[%s858] sm:$0x1]
    %v860 = vld [vmem:[#allocation2] sm:$0x1]
    %v861 = vadd.f32 %v860, %v859
    %v862 = vld [vmem:[#allocation3] sm:$0x1]
    %v863 = vpack.c.bf16 %v861, %v861
    %v864 = vld [vmem:[#allocation9] sm:$0xff]
    %v865 = vld [vmem:[#allocation9 + $0x8] sm:$0xff]
    %v866 = vld [vmem:[#allocation9 + $0x10] sm:$0xff]
    %v867 = vld [vmem:[#allocation9 + $0x18] sm:$0xff]
    %v868 = vld [vmem:[#allocation9 + $0x20] sm:$0xff]
    %v869 = vld [vmem:[#allocation9 + $0x28] sm:$0xff]
    %v870 = vld [vmem:[#allocation9 + $0x30] sm:$0xff]
    %v871 = vld [vmem:[#allocation9 + $0x38] sm:$0xff]
    %v872 = vld [vmem:[#allocation9 + $0x40] sm:$0xff]
    %v873 = vld [vmem:[#allocation9 + $0x48] sm:$0xff]
    %v874 = vld [vmem:[#allocation9 + $0x50] sm:$0xff]
    %v875 = vld [vmem:[#allocation9 + $0x58] sm:$0xff]
    %v876 = vld [vmem:[#allocation9 + $0x60] sm:$0xff]
    %v877 = vld [vmem:[#allocation9 + $0x68] sm:$0xff]
    %v878 = vld [vmem:[#allocation9 + $0x70] sm:$0xff]
    %v879 = vld [vmem:[#allocation9 + $0x78] sm:$0xff]
    %v880 = vld [vmem:[#allocation9 + $0x80] sm:$0xff]
    %v881 = vld [vmem:[#allocation9 + $0x88] sm:$0xff]
    %v882 = vld [vmem:[#allocation9 + $0x90] sm:$0xff]
    %v883 = vld [vmem:[#allocation9 + $0x98] sm:$0xff]
    %v884 = vld [vmem:[#allocation9 + $0xa0] sm:$0xff]
    %v885 = vld [vmem:[#allocation9 + $0xa8] sm:$0xff]
    %v886 = vld [vmem:[#allocation9 + $0xb0] sm:$0xff]
    %v887 = vld [vmem:[#allocation9 + $0xb8] sm:$0xff]
    %v888 = vld [vmem:[#allocation9 + $0xc0] sm:$0xff]
    %v889 = vld [vmem:[#allocation9 + $0xc8] sm:$0xff]
    %v890 = vld [vmem:[#allocation9 + $0xd0] sm:$0xff]
    %v891 = vld [vmem:[#allocation9 + $0xd8] sm:$0xff]
    %v892 = vld [vmem:[#allocation9 + $0xe0] sm:$0xff]
    %v893 = vld [vmem:[#allocation9 + $0xe8] sm:$0xff]
    %v894 = vld [vmem:[#allocation9 + $0xf0] sm:$0xff]
    %v895 = vld [vmem:[#allocation9 + $0xf8] sm:$0xff]
    %v896 = vld [vmem:[#allocation11] sm:$0xf]
    %v929 = vunpack.c.l.b16 %v864
    %v930 = vunpack.c.h.b16 %v864
    %v931 = vunpack.c.l.b16 %v865
    %v932 = vunpack.c.h.b16 %v865
    %v933 = vunpack.c.l.b16 %v866
    %v934 = vunpack.c.h.b16 %v866
    %v935 = vunpack.c.l.b16 %v867
    %v936 = vunpack.c.h.b16 %v867
    %v937 = vunpack.c.l.b16 %v868
    %v938 = vunpack.c.h.b16 %v868
    %v939 = vunpack.c.l.b16 %v869
    %v940 = vunpack.c.h.b16 %v869
    %v941 = vunpack.c.l.b16 %v870
    %v942 = vunpack.c.h.b16 %v870
    %v943 = vunpack.c.l.b16 %v871
    %v944 = vunpack.c.h.b16 %v871
    %v945 = vunpack.c.l.b16 %v872
    %v946 = vunpack.c.h.b16 %v872
    %v947 = vunpack.c.l.b16 %v873
    %v948 = vunpack.c.h.b16 %v873
    %v949 = vunpack.c.l.b16 %v874
    %v950 = vunpack.c.h.b16 %v874
    %v951 = vunpack.c.l.b16 %v875
    %v952 = vunpack.c.h.b16 %v875
    %v953 = vunpack.c.l.b16 %v876
    %v954 = vunpack.c.h.b16 %v876
    %v955 = vunpack.c.l.b16 %v877
    %v956 = vunpack.c.h.b16 %v877
    %v957 = vunpack.c.l.b16 %v878
    %v958 = vunpack.c.h.b16 %v878
    %v959 = vunpack.c.l.b16 %v879
    %v960 = vunpack.c.h.b16 %v879
    %v961 = vunpack.c.l.b16 %v880
    %v962 = vunpack.c.h.b16 %v880
    %v963 = vunpack.c.l.b16 %v881
    %v964 = vunpack.c.h.b16 %v881
    %v965 = vunpack.c.l.b16 %v882
    %v966 = vunpack.c.h.b16 %v882
    %v967 = vunpack.c.l.b16 %v883
    %v968 = vunpack.c.h.b16 %v883
    %v969 = vunpack.c.l.b16 %v884
    %v970 = vunpack.c.h.b16 %v884
    %v971 = vunpack.c.l.b16 %v885
    %v972 = vunpack.c.h.b16 %v885
    %v973 = vunpack.c.l.b16 %v886
    %v974 = vunpack.c.h.b16 %v886
    %v975 = vunpack.c.l.b16 %v887
    %v976 = vunpack.c.h.b16 %v887
    %v977 = vunpack.c.l.b16 %v888
    %v978 = vunpack.c.h.b16 %v888
    %v979 = vunpack.c.l.b16 %v889
    %v980 = vunpack.c.h.b16 %v889
    %v981 = vunpack.c.l.b16 %v890
    %v982 = vunpack.c.h.b16 %v890
    %v983 = vunpack.c.l.b16 %v891
    %v984 = vunpack.c.h.b16 %v891
    %v985 = vunpack.c.l.b16 %v892
    %v986 = vunpack.c.h.b16 %v892
    %v987 = vunpack.c.l.b16 %v893
    %v988 = vunpack.c.h.b16 %v893
    %v989 = vunpack.c.l.b16 %v894
    %v990 = vunpack.c.h.b16 %v894
    %v991 = vunpack.c.l.b16 %v895
    %v992 = vunpack.c.h.b16 %v895
    %v993 = vpack.c.b16 %v933, %v929
    %v994 = vpack.c.b16 %v934, %v930
    %v995 = vpack.c.b16 %v935, %v931
    %v996 = vpack.c.b16 %v936, %v932
    %v997 = vpack.c.b16 %v941, %v937
    %v998 = vpack.c.b16 %v942, %v938
    %v999 = vpack.c.b16 %v943, %v939
    %v1000 = vpack.c.b16 %v944, %v940
    %v1001 = vpack.c.b16 %v949, %v945
    %v1002 = vpack.c.b16 %v950, %v946
    %v1003 = vpack.c.b16 %v951, %v947
    %v1004 = vpack.c.b16 %v952, %v948
    %v1005 = vpack.c.b16 %v957, %v953
    %v1006 = vpack.c.b16 %v958, %v954
    %v1007 = vpack.c.b16 %v959, %v955
    %v1008 = vpack.c.b16 %v960, %v956
    %v1009 = vpack.c.b16 %v965, %v961
    %v1010 = vpack.c.b16 %v966, %v962
    %v1011 = vpack.c.b16 %v967, %v963
    %v1012 = vpack.c.b16 %v968, %v964
    %v1013 = vpack.c.b16 %v973, %v969
    %v1014 = vpack.c.b16 %v974, %v970
    %v1015 = vpack.c.b16 %v975, %v971
    %v1016 = vpack.c.b16 %v976, %v972
    %v1017 = vpack.c.b16 %v981, %v977
    %v1018 = vpack.c.b16 %v982, %v978
    %v1019 = vpack.c.b16 %v983, %v979
    %v1020 = vpack.c.b16 %v984, %v980
    %v1021 = vpack.c.b16 %v989, %v985
    %v1022 = vpack.c.b16 %v990, %v986
    %v1023 = vpack.c.b16 %v991, %v987
    %v1024 = vpack.c.b16 %v992, %v988
    %v1058 = vlaneseq
    %v1059 = vshrl.u32 %v1058, 7
    %v1060 = vsub.s32 0, %v1059
    %v1061 = vrot.slane %v896, %v1060
    %v1062 = vlaneseq
    %v1063 = vshrl.u32 %v1062, 7
    %v1064 = vsub.s32 1, %v1063
    %v1065 = vrot.slane %v896, %v1064
    %v1066 = vlaneseq
    %v1067 = vshrl.u32 %v1066, 7
    %v1068 = vsub.s32 2, %v1067
    %v1069 = vrot.slane %v896, %v1068
    %v1070 = vlaneseq
    %v1071 = vshrl.u32 %v1070, 7
    %v1072 = vsub.s32 3, %v1071
    %v1073 = vrot.slane %v896, %v1072
    %1078 = vmatprep.subr.bf16.mxu0 %v1022
    %1079 = vmatpush1.bf16.msra.mxu0 %v1021
    %1080 = vmatprep.subr.bf16.mxu0 %v1018
    %1081 = vmatpush1.bf16.msra.mxu0 %v1017
    %1082 = vmatprep.subr.bf16.mxu0 %v1014
    %1083 = vmatpush1.bf16.msra.mxu0 %v1013
    %1084 = vmatprep.subr.bf16.mxu0 %v1010
    %1085 = vmatpush1.bf16.msra.mxu0 %v1009
    %1086 = vmatprep.subr.bf16.mxu0 %v1006
    %1087 = vmatpush1.bf16.msra.mxu0 %v1005
    %1088 = vmatprep.subr.bf16.mxu0 %v1002
    %1089 = vmatpush1.bf16.msra.mxu0 %v1001
    %1090 = vmatprep.subr.bf16.mxu0 %v998
    %1091 = vmatpush1.bf16.msra.mxu0 %v997
    %1092 = vmatprep.subr.bf16.mxu0 %v994
    %1093 = vmatpush1.bf16.msra.mxu0 %v993
    %1094 = vmatprep.subr.bf16.mxu0 0
    %1095 = vmatpush2.bf16.msra.mxu0 0
    %1096 = vmatprep.subr.bf16.mxu0 0
    %1097 = vmatpush2.bf16.msra.mxu0 0
    %1098 = vmatprep.subr.bf16.mxu0 0
    %1099 = vmatpush2.bf16.msra.mxu0 0
    %1100 = vmatprep.subr.bf16.mxu0 0
    %1101 = vmatpush2.bf16.msra.mxu0 0
    %1102 = vmatprep.subr.bf16.mxu0 0
    %1103 = vmatpush2.bf16.msra.mxu0 0
    %1104 = vmatprep.subr.bf16.mxu0 0
    %1105 = vmatpush2.bf16.msra.mxu0 0
    %1106 = vmatprep.subr.bf16.mxu0 0
    %1107 = vmatpush2.bf16.msra.mxu0 0
    %1108 = vmatprep.subr.bf16.mxu0 0
    %1109 = vmatpush2.bf16.msra.mxu0 0
    %1110 = vmatprep.mubr.bf16.mxu0 0
    %1111 = vmatmul.mubr.bf16.gmra.mxu0 %v863
    %v1112 = vpop.f32.mrf.mxu0
    %v1113 = vadd.f32 %v1061, %v1112
    %v1114 = vpop.f32.mrf.mxu0
    %v1115 = vadd.f32 %v1065, %v1114
    %v1116 = vpop.f32.mrf.mxu0
    %v1117 = vpop.f32.mrf.mxu0
    %1118 = vdwg.mxu0
    %1119 = vmatprep.subr.bf16.mxu0 %v1024
    %1120 = vmatpush1.bf16.msra.mxu0 %v1023
    %1121 = vmatprep.subr.bf16.mxu0 %v1020
    %1122 = vmatpush1.bf16.msra.mxu0 %v1019
    %1123 = vmatprep.subr.bf16.mxu0 %v1016
    %1124 = vmatpush1.bf16.msra.mxu0 %v1015
    %1125 = vmatprep.subr.bf16.mxu0 %v1012
    %1126 = vmatpush1.bf16.msra.mxu0 %v1011
    %1127 = vmatprep.subr.bf16.mxu0 %v1008
    %1128 = vmatpush1.bf16.msra.mxu0 %v1007
    %1129 = vmatprep.subr.bf16.mxu0 %v1004
    %1130 = vmatpush1.bf16.msra.mxu0 %v1003
    %1131 = vmatprep.subr.bf16.mxu0 %v1000
    %1132 = vmatpush1.bf16.msra.mxu0 %v999
    %1133 = vmatprep.subr.bf16.mxu0 %v996
    %1134 = vmatpush1.bf16.msra.mxu0 %v995
    %1135 = vmatprep.subr.bf16.mxu0 0
    %1136 = vmatpush2.bf16.msra.mxu0 0
    %1137 = vmatprep.subr.bf16.mxu0 0
    %1138 = vmatpush2.bf16.msra.mxu0 0
    %1139 = vmatprep.subr.bf16.mxu0 0
    %1140 = vmatpush2.bf16.msra.mxu0 0
    %1141 = vmatprep.subr.bf16.mxu0 0
    %1142 = vmatpush2.bf16.msra.mxu0 0
    %1143 = vmatprep.subr.bf16.mxu0 0
    %1144 = vmatpush2.bf16.msra.mxu0 0
    %1145 = vmatprep.subr.bf16.mxu0 0
    %1146 = vmatpush2.bf16.msra.mxu0 0
    %1147 = vmatprep.subr.bf16.mxu0 0
    %1148 = vmatpush2.bf16.msra.mxu0 0
    %1149 = vmatprep.subr.bf16.mxu0 0
    %1150 = vmatpush2.bf16.msra.mxu0 0
    %1151 = vmatprep.mubr.bf16.mxu0 0
    %1152 = vmatmul.mubr.bf16.gmra.mxu0 %v863
    %v1153 = vpop.f32.mrf.mxu0
    %v1154 = vadd.f32 %v1069, %v1153
    %v1155 = vpop.f32.mrf.mxu0
    %v1156 = vadd.f32 %v1073, %v1155
    %v1157 = vpop.f32.mrf.mxu0
    %v1158 = vpop.f32.mrf.mxu0
    %1159 = vdwg.mxu0
    %v1160 = vxor.u32 %v1113, 2147483648
    %v1161 = vmul.f32 %v1160, 1.442695
    %v1162 = vpow.pop %v1161
    %v1163 = vadd.f32 %v1162, 1.0
    %v1164 = vrcp.pop %v1163
    %v1165 = vmul.f32 1.0, %v1164
    %v1166 = vxor.u32 %v1115, 2147483648
    %v1167 = vmul.f32 %v1166, 1.442695
    %v1168 = vpow.pop %v1167
    %v1169 = vadd.f32 %v1168, 1.0
    %v1170 = vrcp.pop %v1169
    %v1171 = vmul.f32 1.0, %v1170
    %v1172 = vtanh.pop %v1154
    %v1173 = vxor.u32 %v1156, 2147483648
    %v1174 = vmul.f32 %v1173, 1.442695
    %v1175 = vpow.pop %v1174
    %v1176 = vadd.f32 %v1175, 1.0
    %v1177 = vrcp.pop %v1176
    %v1178 = vmul.f32 1.0, %v1177
    %v1179 = vmul.f32 %v1171, %v862
    %v1180 = vmul.f32 %v1165, %v1172
    %v1181 = vadd.f32 %v1179, %v1180
    %v1182 = vtanh.pop %v1181
    %v1183 = vmul.f32 %v1178, %v1182
    %1184 = vst [vmem:[#allocation2] sm:$0x1] %v1183
    %1185 = vst [vmem:[#allocation3] sm:$0x1] %v1181
    %v1186 = vld [vmem:[#allocation4] sm:$0x1]
    %v1187 = vadd.f32 %v1183, %v1186
    %v1188 = vld [vmem:[#allocation5] sm:$0x1]
    %v1189 = vpack.c.bf16 %v1187, %v1187
    %v1190 = vld [vmem:[#allocation12] sm:$0xff]
    %v1191 = vld [vmem:[#allocation12 + $0x8] sm:$0xff]
    %v1192 = vld [vmem:[#allocation12 + $0x10] sm:$0xff]
    %v1193 = vld [vmem:[#allocation12 + $0x18] sm:$0xff]
    %v1194 = vld [vmem:[#allocation12 + $0x20] sm:$0xff]
    %v1195 = vld [vmem:[#allocation12 + $0x28] sm:$0xff]
    %v1196 = vld [vmem:[#allocation12 + $0x30] sm:$0xff]
    %v1197 = vld [vmem:[#allocation12 + $0x38] sm:$0xff]
    %v1198 = vld [vmem:[#allocation12 + $0x40] sm:$0xff]
    %v1199 = vld [vmem:[#allocation12 + $0x48] sm:$0xff]
    %v1200 = vld [vmem:[#allocation12 + $0x50] sm:$0xff]
    %v1201 = vld [vmem:[#allocation12 + $0x58] sm:$0xff]
    %v1202 = vld [vmem:[#allocation12 + $0x60] sm:$0xff]
    %v1203 = vld [vmem:[#allocation12 + $0x68] sm:$0xff]
    %v1204 = vld [vmem:[#allocation12 + $0x70] sm:$0xff]
    %v1205 = vld [vmem:[#allocation12 + $0x78] sm:$0xff]
    %v1206 = vld [vmem:[#allocation12 + $0x80] sm:$0xff]
    %v1207 = vld [vmem:[#allocation12 + $0x88] sm:$0xff]
    %v1208 = vld [vmem:[#allocation12 + $0x90] sm:$0xff]
    %v1209 = vld [vmem:[#allocation12 + $0x98] sm:$0xff]
    %v1210 = vld [vmem:[#allocation12 + $0xa0] sm:$0xff]
    %v1211 = vld [vmem:[#allocation12 + $0xa8] sm:$0xff]
    %v1212 = vld [vmem:[#allocation12 + $0xb0] sm:$0xff]
    %v1213 = vld [vmem:[#allocation12 + $0xb8] sm:$0xff]
    %v1214 = vld [vmem:[#allocation12 + $0xc0] sm:$0xff]
    %v1215 = vld [vmem:[#allocation12 + $0xc8] sm:$0xff]
    %v1216 = vld [vmem:[#allocation12 + $0xd0] sm:$0xff]
    %v1217 = vld [vmem:[#allocation12 + $0xd8] sm:$0xff]
    %v1218 = vld [vmem:[#allocation12 + $0xe0] sm:$0xff]
    %v1219 = vld [vmem:[#allocation12 + $0xe8] sm:$0xff]
    %v1220 = vld [vmem:[#allocation12 + $0xf0] sm:$0xff]
    %v1221 = vld [vmem:[#allocation12 + $0xf8] sm:$0xff]
    %v1222 = vld [vmem:[%s4] sm:$0xf]
    %v1255 = vunpack.c.l.b16 %v1190
    %v1256 = vunpack.c.h.b16 %v1190
    %v1257 = vunpack.c.l.b16 %v1191
    %v1258 = vunpack.c.h.b16 %v1191
    %v1259 = vunpack.c.l.b16 %v1192
    %v1260 = vunpack.c.h.b16 %v1192
    %v1261 = vunpack.c.l.b16 %v1193
    %v1262 = vunpack.c.h.b16 %v1193
    %v1263 = vunpack.c.l.b16 %v1194
    %v1264 = vunpack.c.h.b16 %v1194
    %v1265 = vunpack.c.l.b16 %v1195
    %v1266 = vunpack.c.h.b16 %v1195
    %v1267 = vunpack.c.l.b16 %v1196
    %v1268 = vunpack.c.h.b16 %v1196
    %v1269 = vunpack.c.l.b16 %v1197
    %v1270 = vunpack.c.h.b16 %v1197
    %v1271 = vunpack.c.l.b16 %v1198
    %v1272 = vunpack.c.h.b16 %v1198
    %v1273 = vunpack.c.l.b16 %v1199
    %v1274 = vunpack.c.h.b16 %v1199
    %v1275 = vunpack.c.l.b16 %v1200
    %v1276 = vunpack.c.h.b16 %v1200
    %v1277 = vunpack.c.l.b16 %v1201
    %v1278 = vunpack.c.h.b16 %v1201
    %v1279 = vunpack.c.l.b16 %v1202
    %v1280 = vunpack.c.h.b16 %v1202
    %v1281 = vunpack.c.l.b16 %v1203
    %v1282 = vunpack.c.h.b16 %v1203
    %v1283 = vunpack.c.l.b16 %v1204
    %v1284 = vunpack.c.h.b16 %v1204
    %v1285 = vunpack.c.l.b16 %v1205
    %v1286 = vunpack.c.h.b16 %v1205
    %v1287 = vunpack.c.l.b16 %v1206
    %v1288 = vunpack.c.h.b16 %v1206
    %v1289 = vunpack.c.l.b16 %v1207
    %v1290 = vunpack.c.h.b16 %v1207
    %v1291 = vunpack.c.l.b16 %v1208
    %v1292 = vunpack.c.h.b16 %v1208
    %v1293 = vunpack.c.l.b16 %v1209
    %v1294 = vunpack.c.h.b16 %v1209
    %v1295 = vunpack.c.l.b16 %v1210
    %v1296 = vunpack.c.h.b16 %v1210
    %v1297 = vunpack.c.l.b16 %v1211
    %v1298 = vunpack.c.h.b16 %v1211
    %v1299 = vunpack.c.l.b16 %v1212
    %v1300 = vunpack.c.h.b16 %v1212
    %v1301 = vunpack.c.l.b16 %v1213
    %v1302 = vunpack.c.h.b16 %v1213
    %v1303 = vunpack.c.l.b16 %v1214
    %v1304 = vunpack.c.h.b16 %v1214
    %v1305 = vunpack.c.l.b16 %v1215
    %v1306 = vunpack.c.h.b16 %v1215
    %v1307 = vunpack.c.l.b16 %v1216
    %v1308 = vunpack.c.h.b16 %v1216
    %v1309 = vunpack.c.l.b16 %v1217
    %v1310 = vunpack.c.h.b16 %v1217
    %v1311 = vunpack.c.l.b16 %v1218
    %v1312 = vunpack.c.h.b16 %v1218
    %v1313 = vunpack.c.l.b16 %v1219
    %v1314 = vunpack.c.h.b16 %v1219
    %v1315 = vunpack.c.l.b16 %v1220
    %v1316 = vunpack.c.h.b16 %v1220
    %v1317 = vunpack.c.l.b16 %v1221
    %v1318 = vunpack.c.h.b16 %v1221
    %v1319 = vpack.c.b16 %v1259, %v1255
    %v1320 = vpack.c.b16 %v1260, %v1256
    %v1321 = vpack.c.b16 %v1261, %v1257
    %v1322 = vpack.c.b16 %v1262, %v1258
    %v1323 = vpack.c.b16 %v1267, %v1263
    %v1324 = vpack.c.b16 %v1268, %v1264
    %v1325 = vpack.c.b16 %v1269, %v1265
    %v1326 = vpack.c.b16 %v1270, %v1266
    %v1327 = vpack.c.b16 %v1275, %v1271
    %v1328 = vpack.c.b16 %v1276, %v1272
    %v1329 = vpack.c.b16 %v1277, %v1273
    %v1330 = vpack.c.b16 %v1278, %v1274
    %v1331 = vpack.c.b16 %v1283, %v1279
    %v1332 = vpack.c.b16 %v1284, %v1280
    %v1333 = vpack.c.b16 %v1285, %v1281
    %v1334 = vpack.c.b16 %v1286, %v1282
    %v1335 = vpack.c.b16 %v1291, %v1287
    %v1336 = vpack.c.b16 %v1292, %v1288
    %v1337 = vpack.c.b16 %v1293, %v1289
    %v1338 = vpack.c.b16 %v1294, %v1290
    %v1339 = vpack.c.b16 %v1299, %v1295
    %v1340 = vpack.c.b16 %v1300, %v1296
    %v1341 = vpack.c.b16 %v1301, %v1297
    %v1342 = vpack.c.b16 %v1302, %v1298
    %v1343 = vpack.c.b16 %v1307, %v1303
    %v1344 = vpack.c.b16 %v1308, %v1304
    %v1345 = vpack.c.b16 %v1309, %v1305
    %v1346 = vpack.c.b16 %v1310, %v1306
    %v1347 = vpack.c.b16 %v1315, %v1311
    %v1348 = vpack.c.b16 %v1316, %v1312
    %v1349 = vpack.c.b16 %v1317, %v1313
    %v1350 = vpack.c.b16 %v1318, %v1314
    %v1384 = vlaneseq
    %v1385 = vshrl.u32 %v1384, 7
    %v1386 = vsub.s32 0, %v1385
    %v1387 = vrot.slane %v1222, %v1386
    %v1388 = vlaneseq
    %v1389 = vshrl.u32 %v1388, 7
    %v1390 = vsub.s32 1, %v1389
    %v1391 = vrot.slane %v1222, %v1390
    %v1392 = vlaneseq
    %v1393 = vshrl.u32 %v1392, 7
    %v1394 = vsub.s32 2, %v1393
    %v1395 = vrot.slane %v1222, %v1394
    %v1396 = vlaneseq
    %v1397 = vshrl.u32 %v1396, 7
    %v1398 = vsub.s32 3, %v1397
    %v1399 = vrot.slane %v1222, %v1398
    %1404 = vmatprep.subr.bf16.mxu0 %v1348
    %1405 = vmatpush1.bf16.msra.mxu0 %v1347
    %1406 = vmatprep.subr.bf16.mxu0 %v1344
    %1407 = vmatpush1.bf16.msra.mxu0 %v1343
    %1408 = vmatprep.subr.bf16.mxu0 %v1340
    %1409 = vmatpush1.bf16.msra.mxu0 %v1339
    %1410 = vmatprep.subr.bf16.mxu0 %v1336
    %1411 = vmatpush1.bf16.msra.mxu0 %v1335
    %1412 = vmatprep.subr.bf16.mxu0 %v1332
    %1413 = vmatpush1.bf16.msra.mxu0 %v1331
    %1414 = vmatprep.subr.bf16.mxu0 %v1328
    %1415 = vmatpush1.bf16.msra.mxu0 %v1327
    %1416 = vmatprep.subr.bf16.mxu0 %v1324
    %1417 = vmatpush1.bf16.msra.mxu0 %v1323
    %1418 = vmatprep.subr.bf16.mxu0 %v1320
    %1419 = vmatpush1.bf16.msra.mxu0 %v1319
    %1420 = vmatprep.subr.bf16.mxu0 0
    %1421 = vmatpush2.bf16.msra.mxu0 0
    %1422 = vmatprep.subr.bf16.mxu0 0
    %1423 = vmatpush2.bf16.msra.mxu0 0
    %1424 = vmatprep.subr.bf16.mxu0 0
    %1425 = vmatpush2.bf16.msra.mxu0 0
    %1426 = vmatprep.subr.bf16.mxu0 0
    %1427 = vmatpush2.bf16.msra.mxu0 0
    %1428 = vmatprep.subr.bf16.mxu0 0
    %1429 = vmatpush2.bf16.msra.mxu0 0
    %1430 = vmatprep.subr.bf16.mxu0 0
    %1431 = vmatpush2.bf16.msra.mxu0 0
    %1432 = vmatprep.subr.bf16.mxu0 0
    %1433 = vmatpush2.bf16.msra.mxu0 0
    %1434 = vmatprep.subr.bf16.mxu0 0
    %1435 = vmatpush2.bf16.msra.mxu0 0
    %1436 = vmatprep.mubr.bf16.mxu0 0
    %1437 = vmatmul.mubr.bf16.gmra.mxu0 %v1189
    %v1438 = vpop.f32.mrf.mxu0
    %v1439 = vadd.f32 %v1387, %v1438
    %v1440 = vpop.f32.mrf.mxu0
    %v1441 = vadd.f32 %v1391, %v1440
    %v1442 = vpop.f32.mrf.mxu0
    %v1443 = vpop.f32.mrf.mxu0
    %1444 = vdwg.mxu0
    %1445 = vmatprep.subr.bf16.mxu0 %v1350
    %1446 = vmatpush1.bf16.msra.mxu0 %v1349
    %1447 = vmatprep.subr.bf16.mxu0 %v1346
    %1448 = vmatpush1.bf16.msra.mxu0 %v1345
    %1449 = vmatprep.subr.bf16.mxu0 %v1342
    %1450 = vmatpush1.bf16.msra.mxu0 %v1341
    %1451 = vmatprep.subr.bf16.mxu0 %v1338
    %1452 = vmatpush1.bf16.msra.mxu0 %v1337
    %1453 = vmatprep.subr.bf16.mxu0 %v1334
    %1454 = vmatpush1.bf16.msra.mxu0 %v1333
    %1455 = vmatprep.subr.bf16.mxu0 %v1330
    %1456 = vmatpush1.bf16.msra.mxu0 %v1329
    %1457 = vmatprep.subr.bf16.mxu0 %v1326
    %1458 = vmatpush1.bf16.msra.mxu0 %v1325
    %1459 = vmatprep.subr.bf16.mxu0 %v1322
    %1460 = vmatpush1.bf16.msra.mxu0 %v1321
    %1461 = vmatprep.subr.bf16.mxu0 0
    %1462 = vmatpush2.bf16.msra.mxu0 0
    %1463 = vmatprep.subr.bf16.mxu0 0
    %1464 = vmatpush2.bf16.msra.mxu0 0
    %1465 = vmatprep.subr.bf16.mxu0 0
    %1466 = vmatpush2.bf16.msra.mxu0 0
    %1467 = vmatprep.subr.bf16.mxu0 0
    %1468 = vmatpush2.bf16.msra.mxu0 0
    %1469 = vmatprep.subr.bf16.mxu0 0
    %1470 = vmatpush2.bf16.msra.mxu0 0
    %1471 = vmatprep.subr.bf16.mxu0 0
    %1472 = vmatpush2.bf16.msra.mxu0 0
    %1473 = vmatprep.subr.bf16.mxu0 0
    %1474 = vmatpush2.bf16.msra.mxu0 0
    %1475 = vmatprep.subr.bf16.mxu0 0
    %1476 = vmatpush2.bf16.msra.mxu0 0
    %1477 = vmatprep.mubr.bf16.mxu0 0
    %1478 = vmatmul.mubr.bf16.gmra.mxu0 %v1189
    %v1479 = vpop.f32.mrf.mxu0
    %v1480 = vadd.f32 %v1395, %v1479
    %v1481 = vpop.f32.mrf.mxu0
    %v1482 = vadd.f32 %v1399, %v1481
    %v1483 = vpop.f32.mrf.mxu0
    %v1484 = vpop.f32.mrf.mxu0
    %1485 = vdwg.mxu0
    %v1486 = vxor.u32 %v1439, 2147483648
    %v1487 = vmul.f32 %v1486, 1.442695
    %v1488 = vpow.pop %v1487
    %v1489 = vadd.f32 %v1488, 1.0
    %v1490 = vrcp.pop %v1489
    %v1491 = vmul.f32 1.0, %v1490
    %v1492 = vxor.u32 %v1441, 2147483648
    %v1493 = vmul.f32 %v1492, 1.442695
    %v1494 = vpow.pop %v1493
    %v1495 = vadd.f32 %v1494, 1.0
    %v1496 = vrcp.pop %v1495
    %v1497 = vmul.f32 1.0, %v1496
    %v1498 = vtanh.pop %v1480
    %v1499 = vxor.u32 %v1482, 2147483648
    %v1500 = vmul.f32 %v1499, 1.442695
    %v1501 = vpow.pop %v1500
    %v1502 = vadd.f32 %v1501, 1.0
    %v1503 = vrcp.pop %v1502
    %v1504 = vmul.f32 1.0, %v1503
    %v1505 = vmul.f32 %v1497, %v1188
    %v1506 = vmul.f32 %v1491, %v1498
    %v1507 = vadd.f32 %v1505, %v1506
    %v1508 = vtanh.pop %v1507
    %v1509 = vmul.f32 %v1504, %v1508
    %1510 = vst [vmem:[#allocation4] sm:$0x1] %v1509
    %1511 = vst [vmem:[#allocation5] sm:$0x1] %v1507
    %v1512 = vpack.c.bf16 %v1509, %v1509
    %v1513 = vld [vmem:[#allocation14] sm:$0xf]
    %v1514 = vld [vmem:[#allocation14 + $0x4] sm:$0xf]
    %v1515 = vld [vmem:[#allocation14 + $0x8] sm:$0xf]
    %v1516 = vld [vmem:[#allocation14 + $0xc] sm:$0xf]
    %v1517 = vld [vmem:[#allocation14 + $0x10] sm:$0xf]
    %v1518 = vld [vmem:[#allocation14 + $0x14] sm:$0xf]
    %v1519 = vld [vmem:[#allocation14 + $0x18] sm:$0xf]
    %v1520 = vld [vmem:[#allocation14 + $0x1c] sm:$0xf]
    %v1521 = vld [vmem:[#allocation14 + $0x20] sm:$0xf]
    %v1522 = vld [vmem:[#allocation14 + $0x24] sm:$0xf]
    %v1523 = vld [vmem:[#allocation14 + $0x28] sm:$0xf]
    %v1524 = vld [vmem:[#allocation14 + $0x2c] sm:$0xf]
    %v1525 = vld [vmem:[#allocation14 + $0x30] sm:$0xf]
    %v1526 = vld [vmem:[#allocation14 + $0x34] sm:$0xf]
    %v1527 = vld [vmem:[#allocation14 + $0x38] sm:$0xf]
    %v1528 = vld [vmem:[#allocation14 + $0x3c] sm:$0xf]
    %v1529 = vld [vmem:[%s6] sm:$0x1]
    %v1546 = vunpack.c.l.b16 %v1513
    %v1547 = vunpack.c.l.b16 %v1514
    %v1548 = vunpack.c.l.b16 %v1515
    %v1549 = vunpack.c.l.b16 %v1516
    %v1550 = vunpack.c.l.b16 %v1517
    %v1551 = vunpack.c.l.b16 %v1518
    %v1552 = vunpack.c.l.b16 %v1519
    %v1553 = vunpack.c.l.b16 %v1520
    %v1554 = vunpack.c.l.b16 %v1521
    %v1555 = vunpack.c.l.b16 %v1522
    %v1556 = vunpack.c.l.b16 %v1523
    %v1557 = vunpack.c.l.b16 %v1524
    %v1558 = vunpack.c.l.b16 %v1525
    %v1559 = vunpack.c.l.b16 %v1526
    %v1560 = vunpack.c.l.b16 %v1527
    %v1561 = vunpack.c.l.b16 %v1528
    %v1562 = vpack.c.b16 %v1547, %v1546
    %v1563 = vpack.c.b16 %v1549, %v1548
    %v1564 = vpack.c.b16 %v1551, %v1550
    %v1565 = vpack.c.b16 %v1553, %v1552
    %v1566 = vpack.c.b16 %v1555, %v1554
    %v1567 = vpack.c.b16 %v1557, %v1556
    %v1568 = vpack.c.b16 %v1559, %v1558
    %v1569 = vpack.c.b16 %v1561, %v1560
    %1578 = vmatprep.subr.bf16.mxu0 0
    %1579 = vmatpush1.bf16.msra.mxu0 %v1569
    %1580 = vmatprep.subr.bf16.mxu0 0
    %1581 = vmatpush1.bf16.msra.mxu0 %v1568
    %1582 = vmatprep.subr.bf16.mxu0 0
    %1583 = vmatpush1.bf16.msra.mxu0 %v1567
    %1584 = vmatprep.subr.bf16.mxu0 0
    %1585 = vmatpush1.bf16.msra.mxu0 %v1566
    %1586 = vmatprep.subr.bf16.mxu0 0
    %1587 = vmatpush1.bf16.msra.mxu0 %v1565
    %1588 = vmatprep.subr.bf16.mxu0 0
    %1589 = vmatpush1.bf16.msra.mxu0 %v1564
    %1590 = vmatprep.subr.bf16.mxu0 0
    %1591 = vmatpush1.bf16.msra.mxu0 %v1563
    %1592 = vmatprep.subr.bf16.mxu0 0
    %1593 = vmatpush1.bf16.msra.mxu0 %v1562
    %1594 = vmatprep.subr.bf16.mxu0 0
    %1595 = vmatpush2.bf16.msra.mxu0 0
    %1596 = vmatprep.subr.bf16.mxu0 0
    %1597 = vmatpush2.bf16.msra.mxu0 0
    %1598 = vmatprep.subr.bf16.mxu0 0
    %1599 = vmatpush2.bf16.msra.mxu0 0
    %1600 = vmatprep.subr.bf16.mxu0 0
    %1601 = vmatpush2.bf16.msra.mxu0 0
    %1602 = vmatprep.subr.bf16.mxu0 0
    %1603 = vmatpush2.bf16.msra.mxu0 0
    %1604 = vmatprep.subr.bf16.mxu0 0
    %1605 = vmatpush2.bf16.msra.mxu0 0
    %1606 = vmatprep.subr.bf16.mxu0 0
    %1607 = vmatpush2.bf16.msra.mxu0 0
    %1608 = vmatprep.subr.bf16.mxu0 0
    %1609 = vmatpush2.bf16.msra.mxu0 0
    %1610 = vmatprep.mubr.bf16.mxu0 0
    %1611 = vmatmul.mubr.bf16.gmra.mxu0 %v1512
    %v1612 = vpop.f32.mrf.mxu0
    %v1613 = vadd.f32 %v1529, %v1612
    %v1614 = vpop.f32.mrf.mxu0
    %v1615 = vpop.f32.mrf.mxu0
    %v1616 = vpop.f32.mrf.mxu0
    %1617 = vdwg.mxu0
    %s1618 = scalar_lea.vmem [#allocation15], 1
    %1619 = vst [vmem:[%s1618] sm:$0x1] %v1613
    %s1620 = scalar_lea.vmem [#allocation6], 2
    %v1621 = vld [vmem:[%s1620] sm:$0x1]
    %v1622 = vld [vmem:[#allocation2] sm:$0x1]
    %v1623 = vadd.f32 %v1622, %v1621
    %v1624 = vld [vmem:[#allocation3] sm:$0x1]
    %v1625 = vpack.c.bf16 %v1623, %v1623
    %v1626 = vld [vmem:[#allocation9] sm:$0xff]
    %v1627 = vld [vmem:[#allocation9 + $0x8] sm:$0xff]
    %v1628 = vld [vmem:[#allocation9 + $0x10] sm:$0xff]
    %v1629 = vld [vmem:[#allocation9 + $0x18] sm:$0xff]
    %v1630 = vld [vmem:[#allocation9 + $0x20] sm:$0xff]
    %v1631 = vld [vmem:[#allocation9 + $0x28] sm:$0xff]
    %v1632 = vld [vmem:[#allocation9 + $0x30] sm:$0xff]
    %v1633 = vld [vmem:[#allocation9 + $0x38] sm:$0xff]
    %v1634 = vld [vmem:[#allocation9 + $0x40] sm:$0xff]
    %v1635 = vld [vmem:[#allocation9 + $0x48] sm:$0xff]
    %v1636 = vld [vmem:[#allocation9 + $0x50] sm:$0xff]
    %v1637 = vld [vmem:[#allocation9 + $0x58] sm:$0xff]
    %v1638 = vld [vmem:[#allocation9 + $0x60] sm:$0xff]
    %v1639 = vld [vmem:[#allocation9 + $0x68] sm:$0xff]
    %v1640 = vld [vmem:[#allocation9 + $0x70] sm:$0xff]
    %v1641 = vld [vmem:[#allocation9 + $0x78] sm:$0xff]
    %v1642 = vld [vmem:[#allocation9 + $0x80] sm:$0xff]
    %v1643 = vld [vmem:[#allocation9 + $0x88] sm:$0xff]
    %v1644 = vld [vmem:[#allocation9 + $0x90] sm:$0xff]
    %v1645 = vld [vmem:[#allocation9 + $0x98] sm:$0xff]
    %v1646 = vld [vmem:[#allocation9 + $0xa0] sm:$0xff]
    %v1647 = vld [vmem:[#allocation9 + $0xa8] sm:$0xff]
    %v1648 = vld [vmem:[#allocation9 + $0xb0] sm:$0xff]
    %v1649 = vld [vmem:[#allocation9 + $0xb8] sm:$0xff]
    %v1650 = vld [vmem:[#allocation9 + $0xc0] sm:$0xff]
    %v1651 = vld [vmem:[#allocation9 + $0xc8] sm:$0xff]
    %v1652 = vld [vmem:[#allocation9 + $0xd0] sm:$0xff]
    %v1653 = vld [vmem:[#allocation9 + $0xd8] sm:$0xff]
    %v1654 = vld [vmem:[#allocation9 + $0xe0] sm:$0xff]
    %v1655 = vld [vmem:[#allocation9 + $0xe8] sm:$0xff]
    %v1656 = vld [vmem:[#allocation9 + $0xf0] sm:$0xff]
    %v1657 = vld [vmem:[#allocation9 + $0xf8] sm:$0xff]
    %v1658 = vld [vmem:[#allocation11] sm:$0xf]
    %v1691 = vunpack.c.l.b16 %v1626
    %v1692 = vunpack.c.h.b16 %v1626
    %v1693 = vunpack.c.l.b16 %v1627
    %v1694 = vunpack.c.h.b16 %v1627
    %v1695 = vunpack.c.l.b16 %v1628
    %v1696 = vunpack.c.h.b16 %v1628
    %v1697 = vunpack.c.l.b16 %v1629
    %v1698 = vunpack.c.h.b16 %v1629
    %v1699 = vunpack.c.l.b16 %v1630
    %v1700 = vunpack.c.h.b16 %v1630
    %v1701 = vunpack.c.l.b16 %v1631
    %v1702 = vunpack.c.h.b16 %v1631
    %v1703 = vunpack.c.l.b16 %v1632
    %v1704 = vunpack.c.h.b16 %v1632
    %v1705 = vunpack.c.l.b16 %v1633
    %v1706 = vunpack.c.h.b16 %v1633
    %v1707 = vunpack.c.l.b16 %v1634
    %v1708 = vunpack.c.h.b16 %v1634
    %v1709 = vunpack.c.l.b16 %v1635
    %v1710 = vunpack.c.h.b16 %v1635
    %v1711 = vunpack.c.l.b16 %v1636
    %v1712 = vunpack.c.h.b16 %v1636
    %v1713 = vunpack.c.l.b16 %v1637
    %v1714 = vunpack.c.h.b16 %v1637
    %v1715 = vunpack.c.l.b16 %v1638
    %v1716 = vunpack.c.h.b16 %v1638
    %v1717 = vunpack.c.l.b16 %v1639
    %v1718 = vunpack.c.h.b16 %v1639
    %v1719 = vunpack.c.l.b16 %v1640
    %v1720 = vunpack.c.h.b16 %v1640
    %v1721 = vunpack.c.l.b16 %v1641
    %v1722 = vunpack.c.h.b16 %v1641
    %v1723 = vunpack.c.l.b16 %v1642
    %v1724 = vunpack.c.h.b16 %v1642
    %v1725 = vunpack.c.l.b16 %v1643
    %v1726 = vunpack.c.h.b16 %v1643
    %v1727 = vunpack.c.l.b16 %v1644
    %v1728 = vunpack.c.h.b16 %v1644
    %v1729 = vunpack.c.l.b16 %v1645
    %v1730 = vunpack.c.h.b16 %v1645
    %v1731 = vunpack.c.l.b16 %v1646
    %v1732 = vunpack.c.h.b16 %v1646
    %v1733 = vunpack.c.l.b16 %v1647
    %v1734 = vunpack.c.h.b16 %v1647
    %v1735 = vunpack.c.l.b16 %v1648
    %v1736 = vunpack.c.h.b16 %v1648
    %v1737 = vunpack.c.l.b16 %v1649
    %v1738 = vunpack.c.h.b16 %v1649
    %v1739 = vunpack.c.l.b16 %v1650
    %v1740 = vunpack.c.h.b16 %v1650
    %v1741 = vunpack.c.l.b16 %v1651
    %v1742 = vunpack.c.h.b16 %v1651
    %v1743 = vunpack.c.l.b16 %v1652
    %v1744 = vunpack.c.h.b16 %v1652
    %v1745 = vunpack.c.l.b16 %v1653
    %v1746 = vunpack.c.h.b16 %v1653
    %v1747 = vunpack.c.l.b16 %v1654
    %v1748 = vunpack.c.h.b16 %v1654
    %v1749 = vunpack.c.l.b16 %v1655
    %v1750 = vunpack.c.h.b16 %v1655
    %v1751 = vunpack.c.l.b16 %v1656
    %v1752 = vunpack.c.h.b16 %v1656
    %v1753 = vunpack.c.l.b16 %v1657
    %v1754 = vunpack.c.h.b16 %v1657
    %v1755 = vpack.c.b16 %v1695, %v1691
    %v1756 = vpack.c.b16 %v1696, %v1692
    %v1757 = vpack.c.b16 %v1697, %v1693
    %v1758 = vpack.c.b16 %v1698, %v1694
    %v1759 = vpack.c.b16 %v1703, %v1699
    %v1760 = vpack.c.b16 %v1704, %v1700
    %v1761 = vpack.c.b16 %v1705, %v1701
    %v1762 = vpack.c.b16 %v1706, %v1702
    %v1763 = vpack.c.b16 %v1711, %v1707
    %v1764 = vpack.c.b16 %v1712, %v1708
    %v1765 = vpack.c.b16 %v1713, %v1709
    %v1766 = vpack.c.b16 %v1714, %v1710
    %v1767 = vpack.c.b16 %v1719, %v1715
    %v1768 = vpack.c.b16 %v1720, %v1716
    %v1769 = vpack.c.b16 %v1721, %v1717
    %v1770 = vpack.c.b16 %v1722, %v1718
    %v1771 = vpack.c.b16 %v1727, %v1723
    %v1772 = vpack.c.b16 %v1728, %v1724
    %v1773 = vpack.c.b16 %v1729, %v1725
    %v1774 = vpack.c.b16 %v1730, %v1726
    %v1775 = vpack.c.b16 %v1735, %v1731
    %v1776 = vpack.c.b16 %v1736, %v1732
    %v1777 = vpack.c.b16 %v1737, %v1733
    %v1778 = vpack.c.b16 %v1738, %v1734
    %v1779 = vpack.c.b16 %v1743, %v1739
    %v1780 = vpack.c.b16 %v1744, %v1740
    %v1781 = vpack.c.b16 %v1745, %v1741
    %v1782 = vpack.c.b16 %v1746, %v1742
    %v1783 = vpack.c.b16 %v1751, %v1747
    %v1784 = vpack.c.b16 %v1752, %v1748
    %v1785 = vpack.c.b16 %v1753, %v1749
    %v1786 = vpack.c.b16 %v1754, %v1750
    %v1820 = vlaneseq
    %v1821 = vshrl.u32 %v1820, 7
    %v1822 = vsub.s32 0, %v1821
    %v1823 = vrot.slane %v1658, %v1822
    %v1824 = vlaneseq
    %v1825 = vshrl.u32 %v1824, 7
    %v1826 = vsub.s32 1, %v1825
    %v1827 = vrot.slane %v1658, %v1826
    %v1828 = vlaneseq
    %v1829 = vshrl.u32 %v1828, 7
    %v1830 = vsub.s32 2, %v1829
    %v1831 = vrot.slane %v1658, %v1830
    %v1832 = vlaneseq
    %v1833 = vshrl.u32 %v1832, 7
    %v1834 = vsub.s32 3, %v1833
    %v1835 = vrot.slane %v1658, %v1834
    %1840 = vmatprep.subr.bf16.mxu0 %v1784
    %1841 = vmatpush1.bf16.msra.mxu0 %v1783
    %1842 = vmatprep.subr.bf16.mxu0 %v1780
    %1843 = vmatpush1.bf16.msra.mxu0 %v1779
    %1844 = vmatprep.subr.bf16.mxu0 %v1776
    %1845 = vmatpush1.bf16.msra.mxu0 %v1775
    %1846 = vmatprep.subr.bf16.mxu0 %v1772
    %1847 = vmatpush1.bf16.msra.mxu0 %v1771
    %1848 = vmatprep.subr.bf16.mxu0 %v1768
    %1849 = vmatpush1.bf16.msra.mxu0 %v1767
    %1850 = vmatprep.subr.bf16.mxu0 %v1764
    %1851 = vmatpush1.bf16.msra.mxu0 %v1763
    %1852 = vmatprep.subr.bf16.mxu0 %v1760
    %1853 = vmatpush1.bf16.msra.mxu0 %v1759
    %1854 = vmatprep.subr.bf16.mxu0 %v1756
    %1855 = vmatpush1.bf16.msra.mxu0 %v1755
    %1856 = vmatprep.subr.bf16.mxu0 0
    %1857 = vmatpush2.bf16.msra.mxu0 0
    %1858 = vmatprep.subr.bf16.mxu0 0
    %1859 = vmatpush2.bf16.msra.mxu0 0
    %1860 = vmatprep.subr.bf16.mxu0 0
    %1861 = vmatpush2.bf16.msra.mxu0 0
    %1862 = vmatprep.subr.bf16.mxu0 0
    %1863 = vmatpush2.bf16.msra.mxu0 0
    %1864 = vmatprep.subr.bf16.mxu0 0
    %1865 = vmatpush2.bf16.msra.mxu0 0
    %1866 = vmatprep.subr.bf16.mxu0 0
    %1867 = vmatpush2.bf16.msra.mxu0 0
    %1868 = vmatprep.subr.bf16.mxu0 0
    %1869 = vmatpush2.bf16.msra.mxu0 0
    %1870 = vmatprep.subr.bf16.mxu0 0
    %1871 = vmatpush2.bf16.msra.mxu0 0
    %1872 = vmatprep.mubr.bf16.mxu0 0
    %1873 = vmatmul.mubr.bf16.gmra.mxu0 %v1625
    %v1874 = vpop.f32.mrf.mxu0
    %v1875 = vadd.f32 %v1823, %v1874
    %v1876 = vpop.f32.mrf.mxu0
    %v1877 = vadd.f32 %v1827, %v1876
    %v1878 = vpop.f32.mrf.mxu0
    %v1879 = vpop.f32.mrf.mxu0
    %1880 = vdwg.mxu0
    %1881 = vmatprep.subr.bf16.mxu0 %v1786
    %1882 = vmatpush1.bf16.msra.mxu0 %v1785
    %1883 = vmatprep.subr.bf16.mxu0 %v1782
    %1884 = vmatpush1.bf16.msra.mxu0 %v1781
    %1885 = vmatprep.subr.bf16.mxu0 %v1778
    %1886 = vmatpush1.bf16.msra.mxu0 %v1777
    %1887 = vmatprep.subr.bf16.mxu0 %v1774
    %1888 = vmatpush1.bf16.msra.mxu0 %v1773
    %1889 = vmatprep.subr.bf16.mxu0 %v1770
    %1890 = vmatpush1.bf16.msra.mxu0 %v1769
    %1891 = vmatprep.subr.bf16.mxu0 %v1766
    %1892 = vmatpush1.bf16.msra.mxu0 %v1765
    %1893 = vmatprep.subr.bf16.mxu0 %v1762
    %1894 = vmatpush1.bf16.msra.mxu0 %v1761
    %1895 = vmatprep.subr.bf16.mxu0 %v1758
    %1896 = vmatpush1.bf16.msra.mxu0 %v1757
    %1897 = vmatprep.subr.bf16.mxu0 0
    %1898 = vmatpush2.bf16.msra.mxu0 0
    %1899 = vmatprep.subr.bf16.mxu0 0
    %1900 = vmatpush2.bf16.msra.mxu0 0
    %1901 = vmatprep.subr.bf16.mxu0 0
    %1902 = vmatpush2.bf16.msra.mxu0 0
    %1903 = vmatprep.subr.bf16.mxu0 0
    %1904 = vmatpush2.bf16.msra.mxu0 0
    %1905 = vmatprep.subr.bf16.mxu0 0
    %1906 = vmatpush2.bf16.msra.mxu0 0
    %1907 = vmatprep.subr.bf16.mxu0 0
    %1908 = vmatpush2.bf16.msra.mxu0 0
    %1909 = vmatprep.subr.bf16.mxu0 0
    %1910 = vmatpush2.bf16.msra.mxu0 0
    %1911 = vmatprep.subr.bf16.mxu0 0
    %1912 = vmatpush2.bf16.msra.mxu0 0
    %1913 = vmatprep.mubr.bf16.mxu0 0
    %1914 = vmatmul.mubr.bf16.gmra.mxu0 %v1625
    %v1915 = vpop.f32.mrf.mxu0
    %v1916 = vadd.f32 %v1831, %v1915
    %v1917 = vpop.f32.mrf.mxu0
    %v1918 = vadd.f32 %v1835, %v1917
    %v1919 = vpop.f32.mrf.mxu0
    %v1920 = vpop.f32.mrf.mxu0
    %1921 = vdwg.mxu0
    %v1922 = vxor.u32 %v1875, 2147483648
    %v1923 = vmul.f32 %v1922, 1.442695
    %v1924 = vpow.pop %v1923
    %v1925 = vadd.f32 %v1924, 1.0
    %v1926 = vrcp.pop %v1925
    %v1927 = vmul.f32 1.0, %v1926
    %v1928 = vxor.u32 %v1877, 2147483648
    %v1929 = vmul.f32 %v1928, 1.442695
    %v1930 = vpow.pop %v1929
    %v1931 = vadd.f32 %v1930, 1.0
    %v1932 = vrcp.pop %v1931
    %v1933 = vmul.f32 1.0, %v1932
    %v1934 = vtanh.pop %v1916
    %v1935 = vxor.u32 %v1918, 2147483648
    %v1936 = vmul.f32 %v1935, 1.442695
    %v1937 = vpow.pop %v1936
    %v1938 = vadd.f32 %v1937, 1.0
    %v1939 = vrcp.pop %v1938
    %v1940 = vmul.f32 1.0, %v1939
    %v1941 = vmul.f32 %v1933, %v1624
    %v1942 = vmul.f32 %v1927, %v1934
    %v1943 = vadd.f32 %v1941, %v1942
    %v1944 = vtanh.pop %v1943
    %v1945 = vmul.f32 %v1940, %v1944
    %1946 = vst [vmem:[#allocation2] sm:$0x1] %v1945
    %1947 = vst [vmem:[#allocation3] sm:$0x1] %v1943
    %v1948 = vld [vmem:[#allocation4] sm:$0x1]
    %v1949 = vadd.f32 %v1945, %v1948
    %v1950 = vld [vmem:[#allocation5] sm:$0x1]
    %v1951 = vpack.c.bf16 %v1949, %v1949
    %v1952 = vld [vmem:[#allocation12] sm:$0xff]
    %v1953 = vld [vmem:[#allocation12 + $0x8] sm:$0xff]
    %v1954 = vld [vmem:[#allocation12 + $0x10] sm:$0xff]
    %v1955 = vld [vmem:[#allocation12 + $0x18] sm:$0xff]
    %v1956 = vld [vmem:[#allocation12 + $0x20] sm:$0xff]
    %v1957 = vld [vmem:[#allocation12 + $0x28] sm:$0xff]
    %v1958 = vld [vmem:[#allocation12 + $0x30] sm:$0xff]
    %v1959 = vld [vmem:[#allocation12 + $0x38] sm:$0xff]
    %v1960 = vld [vmem:[#allocation12 + $0x40] sm:$0xff]
    %v1961 = vld [vmem:[#allocation12 + $0x48] sm:$0xff]
    %v1962 = vld [vmem:[#allocation12 + $0x50] sm:$0xff]
    %v1963 = vld [vmem:[#allocation12 + $0x58] sm:$0xff]
    %v1964 = vld [vmem:[#allocation12 + $0x60] sm:$0xff]
    %v1965 = vld [vmem:[#allocation12 + $0x68] sm:$0xff]
    %v1966 = vld [vmem:[#allocation12 + $0x70] sm:$0xff]
    %v1967 = vld [vmem:[#allocation12 + $0x78] sm:$0xff]
    %v1968 = vld [vmem:[#allocation12 + $0x80] sm:$0xff]
    %v1969 = vld [vmem:[#allocation12 + $0x88] sm:$0xff]
    %v1970 = vld [vmem:[#allocation12 + $0x90] sm:$0xff]
    %v1971 = vld [vmem:[#allocation12 + $0x98] sm:$0xff]
    %v1972 = vld [vmem:[#allocation12 + $0xa0] sm:$0xff]
    %v1973 = vld [vmem:[#allocation12 + $0xa8] sm:$0xff]
    %v1974 = vld [vmem:[#allocation12 + $0xb0] sm:$0xff]
    %v1975 = vld [vmem:[#allocation12 + $0xb8] sm:$0xff]
    %v1976 = vld [vmem:[#allocation12 + $0xc0] sm:$0xff]
    %v1977 = vld [vmem:[#allocation12 + $0xc8] sm:$0xff]
    %v1978 = vld [vmem:[#allocation12 + $0xd0] sm:$0xff]
    %v1979 = vld [vmem:[#allocation12 + $0xd8] sm:$0xff]
    %v1980 = vld [vmem:[#allocation12 + $0xe0] sm:$0xff]
    %v1981 = vld [vmem:[#allocation12 + $0xe8] sm:$0xff]
    %v1982 = vld [vmem:[#allocation12 + $0xf0] sm:$0xff]
    %v1983 = vld [vmem:[#allocation12 + $0xf8] sm:$0xff]
    %v1984 = vld [vmem:[%s4] sm:$0xf]
    %v2017 = vunpack.c.l.b16 %v1952
    %v2018 = vunpack.c.h.b16 %v1952
    %v2019 = vunpack.c.l.b16 %v1953
    %v2020 = vunpack.c.h.b16 %v1953
    %v2021 = vunpack.c.l.b16 %v1954
    %v2022 = vunpack.c.h.b16 %v1954
    %v2023 = vunpack.c.l.b16 %v1955
    %v2024 = vunpack.c.h.b16 %v1955
    %v2025 = vunpack.c.l.b16 %v1956
    %v2026 = vunpack.c.h.b16 %v1956
    %v2027 = vunpack.c.l.b16 %v1957
    %v2028 = vunpack.c.h.b16 %v1957
    %v2029 = vunpack.c.l.b16 %v1958
    %v2030 = vunpack.c.h.b16 %v1958
    %v2031 = vunpack.c.l.b16 %v1959
    %v2032 = vunpack.c.h.b16 %v1959
    %v2033 = vunpack.c.l.b16 %v1960
    %v2034 = vunpack.c.h.b16 %v1960
    %v2035 = vunpack.c.l.b16 %v1961
    %v2036 = vunpack.c.h.b16 %v1961
    %v2037 = vunpack.c.l.b16 %v1962
    %v2038 = vunpack.c.h.b16 %v1962
    %v2039 = vunpack.c.l.b16 %v1963
    %v2040 = vunpack.c.h.b16 %v1963
    %v2041 = vunpack.c.l.b16 %v1964
    %v2042 = vunpack.c.h.b16 %v1964
    %v2043 = vunpack.c.l.b16 %v1965
    %v2044 = vunpack.c.h.b16 %v1965
    %v2045 = vunpack.c.l.b16 %v1966
    %v2046 = vunpack.c.h.b16 %v1966
    %v2047 = vunpack.c.l.b16 %v1967
    %v2048 = vunpack.c.h.b16 %v1967
    %v2049 = vunpack.c.l.b16 %v1968
    %v2050 = vunpack.c.h.b16 %v1968
    %v2051 = vunpack.c.l.b16 %v1969
    %v2052 = vunpack.c.h.b16 %v1969
    %v2053 = vunpack.c.l.b16 %v1970
    %v2054 = vunpack.c.h.b16 %v1970
    %v2055 = vunpack.c.l.b16 %v1971
    %v2056 = vunpack.c.h.b16 %v1971
    %v2057 = vunpack.c.l.b16 %v1972
    %v2058 = vunpack.c.h.b16 %v1972
    %v2059 = vunpack.c.l.b16 %v1973
    %v2060 = vunpack.c.h.b16 %v1973
    %v2061 = vunpack.c.l.b16 %v1974
    %v2062 = vunpack.c.h.b16 %v1974
    %v2063 = vunpack.c.l.b16 %v1975
    %v2064 = vunpack.c.h.b16 %v1975
    %v2065 = vunpack.c.l.b16 %v1976
    %v2066 = vunpack.c.h.b16 %v1976
    %v2067 = vunpack.c.l.b16 %v1977
    %v2068 = vunpack.c.h.b16 %v1977
    %v2069 = vunpack.c.l.b16 %v1978
    %v2070 = vunpack.c.h.b16 %v1978
    %v2071 = vunpack.c.l.b16 %v1979
    %v2072 = vunpack.c.h.b16 %v1979
    %v2073 = vunpack.c.l.b16 %v1980
    %v2074 = vunpack.c.h.b16 %v1980
    %v2075 = vunpack.c.l.b16 %v1981
    %v2076 = vunpack.c.h.b16 %v1981
    %v2077 = vunpack.c.l.b16 %v1982
    %v2078 = vunpack.c.h.b16 %v1982
    %v2079 = vunpack.c.l.b16 %v1983
    %v2080 = vunpack.c.h.b16 %v1983
    %v2081 = vpack.c.b16 %v2021, %v2017
    %v2082 = vpack.c.b16 %v2022, %v2018
    %v2083 = vpack.c.b16 %v2023, %v2019
    %v2084 = vpack.c.b16 %v2024, %v2020
    %v2085 = vpack.c.b16 %v2029, %v2025
    %v2086 = vpack.c.b16 %v2030, %v2026
    %v2087 = vpack.c.b16 %v2031, %v2027
    %v2088 = vpack.c.b16 %v2032, %v2028
    %v2089 = vpack.c.b16 %v2037, %v2033
    %v2090 = vpack.c.b16 %v2038, %v2034
    %v2091 = vpack.c.b16 %v2039, %v2035
    %v2092 = vpack.c.b16 %v2040, %v2036
    %v2093 = vpack.c.b16 %v2045, %v2041
    %v2094 = vpack.c.b16 %v2046, %v2042
    %v2095 = vpack.c.b16 %v2047, %v2043
    %v2096 = vpack.c.b16 %v2048, %v2044
    %v2097 = vpack.c.b16 %v2053, %v2049
    %v2098 = vpack.c.b16 %v2054, %v2050
    %v2099 = vpack.c.b16 %v2055, %v2051
    %v2100 = vpack.c.b16 %v2056, %v2052
    %v2101 = vpack.c.b16 %v2061, %v2057
    %v2102 = vpack.c.b16 %v2062, %v2058
    %v2103 = vpack.c.b16 %v2063, %v2059
    %v2104 = vpack.c.b16 %v2064, %v2060
    %v2105 = vpack.c.b16 %v2069, %v2065
    %v2106 = vpack.c.b16 %v2070, %v2066
    %v2107 = vpack.c.b16 %v2071, %v2067
    %v2108 = vpack.c.b16 %v2072, %v2068
    %v2109 = vpack.c.b16 %v2077, %v2073
    %v2110 = vpack.c.b16 %v2078, %v2074
    %v2111 = vpack.c.b16 %v2079, %v2075
    %v2112 = vpack.c.b16 %v2080, %v2076
    %v2146 = vlaneseq
    %v2147 = vshrl.u32 %v2146, 7
    %v2148 = vsub.s32 0, %v2147
    %v2149 = vrot.slane %v1984, %v2148
    %v2150 = vlaneseq
    %v2151 = vshrl.u32 %v2150, 7
    %v2152 = vsub.s32 1, %v2151
    %v2153 = vrot.slane %v1984, %v2152
    %v2154 = vlaneseq
    %v2155 = vshrl.u32 %v2154, 7
    %v2156 = vsub.s32 2, %v2155
    %v2157 = vrot.slane %v1984, %v2156
    %v2158 = vlaneseq
    %v2159 = vshrl.u32 %v2158, 7
    %v2160 = vsub.s32 3, %v2159
    %v2161 = vrot.slane %v1984, %v2160
    %2166 = vmatprep.subr.bf16.mxu0 %v2110
    %2167 = vmatpush1.bf16.msra.mxu0 %v2109
    %2168 = vmatprep.subr.bf16.mxu0 %v2106
    %2169 = vmatpush1.bf16.msra.mxu0 %v2105
    %2170 = vmatprep.subr.bf16.mxu0 %v2102
    %2171 = vmatpush1.bf16.msra.mxu0 %v2101
    %2172 = vmatprep.subr.bf16.mxu0 %v2098
    %2173 = vmatpush1.bf16.msra.mxu0 %v2097
    %2174 = vmatprep.subr.bf16.mxu0 %v2094
    %2175 = vmatpush1.bf16.msra.mxu0 %v2093
    %2176 = vmatprep.subr.bf16.mxu0 %v2090
    %2177 = vmatpush1.bf16.msra.mxu0 %v2089
    %2178 = vmatprep.subr.bf16.mxu0 %v2086
    %2179 = vmatpush1.bf16.msra.mxu0 %v2085
    %2180 = vmatprep.subr.bf16.mxu0 %v2082
    %2181 = vmatpush1.bf16.msra.mxu0 %v2081
    %2182 = vmatprep.subr.bf16.mxu0 0
    %2183 = vmatpush2.bf16.msra.mxu0 0
    %2184 = vmatprep.subr.bf16.mxu0 0
    %2185 = vmatpush2.bf16.msra.mxu0 0
    %2186 = vmatprep.subr.bf16.mxu0 0
    %2187 = vmatpush2.bf16.msra.mxu0 0
    %2188 = vmatprep.subr.bf16.mxu0 0
    %2189 = vmatpush2.bf16.msra.mxu0 0
    %2190 = vmatprep.subr.bf16.mxu0 0
    %2191 = vmatpush2.bf16.msra.mxu0 0
    %2192 = vmatprep.subr.bf16.mxu0 0
    %2193 = vmatpush2.bf16.msra.mxu0 0
    %2194 = vmatprep.subr.bf16.mxu0 0
    %2195 = vmatpush2.bf16.msra.mxu0 0
    %2196 = vmatprep.subr.bf16.mxu0 0
    %2197 = vmatpush2.bf16.msra.mxu0 0
    %2198 = vmatprep.mubr.bf16.mxu0 0
    %2199 = vmatmul.mubr.bf16.gmra.mxu0 %v1951
    %v2200 = vpop.f32.mrf.mxu0
    %v2201 = vadd.f32 %v2149, %v2200
    %v2202 = vpop.f32.mrf.mxu0
    %v2203 = vadd.f32 %v2153, %v2202
    %v2204 = vpop.f32.mrf.mxu0
    %v2205 = vpop.f32.mrf.mxu0
    %2206 = vdwg.mxu0
    %2207 = vmatprep.subr.bf16.mxu0 %v2112
    %2208 = vmatpush1.bf16.msra.mxu0 %v2111
    %2209 = vmatprep.subr.bf16.mxu0 %v2108
    %2210 = vmatpush1.bf16.msra.mxu0 %v2107
    %2211 = vmatprep.subr.bf16.mxu0 %v2104
    %2212 = vmatpush1.bf16.msra.mxu0 %v2103
    %2213 = vmatprep.subr.bf16.mxu0 %v2100
    %2214 = vmatpush1.bf16.msra.mxu0 %v2099
    %2215 = vmatprep.subr.bf16.mxu0 %v2096
    %2216 = vmatpush1.bf16.msra.mxu0 %v2095
    %2217 = vmatprep.subr.bf16.mxu0 %v2092
    %2218 = vmatpush1.bf16.msra.mxu0 %v2091
    %2219 = vmatprep.subr.bf16.mxu0 %v2088
    %2220 = vmatpush1.bf16.msra.mxu0 %v2087
    %2221 = vmatprep.subr.bf16.mxu0 %v2084
    %2222 = vmatpush1.bf16.msra.mxu0 %v2083
    %2223 = vmatprep.subr.bf16.mxu0 0
    %2224 = vmatpush2.bf16.msra.mxu0 0
    %2225 = vmatprep.subr.bf16.mxu0 0
    %2226 = vmatpush2.bf16.msra.mxu0 0
    %2227 = vmatprep.subr.bf16.mxu0 0
    %2228 = vmatpush2.bf16.msra.mxu0 0
    %2229 = vmatprep.subr.bf16.mxu0 0
    %2230 = vmatpush2.bf16.msra.mxu0 0
    %2231 = vmatprep.subr.bf16.mxu0 0
    %2232 = vmatpush2.bf16.msra.mxu0 0
    %2233 = vmatprep.subr.bf16.mxu0 0
    %2234 = vmatpush2.bf16.msra.mxu0 0
    %2235 = vmatprep.subr.bf16.mxu0 0
    %2236 = vmatpush2.bf16.msra.mxu0 0
    %2237 = vmatprep.subr.bf16.mxu0 0
    %2238 = vmatpush2.bf16.msra.mxu0 0
    %2239 = vmatprep.mubr.bf16.mxu0 0
    %2240 = vmatmul.mubr.bf16.gmra.mxu0 %v1951
    %v2241 = vpop.f32.mrf.mxu0
    %v2242 = vadd.f32 %v2157, %v2241
    %v2243 = vpop.f32.mrf.mxu0
    %v2244 = vadd.f32 %v2161, %v2243
    %v2245 = vpop.f32.mrf.mxu0
    %v2246 = vpop.f32.mrf.mxu0
    %2247 = vdwg.mxu0
    %v2248 = vxor.u32 %v2201, 2147483648
    %v2249 = vmul.f32 %v2248, 1.442695
    %v2250 = vpow.pop %v2249
    %v2251 = vadd.f32 %v2250, 1.0
    %v2252 = vrcp.pop %v2251
    %v2253 = vmul.f32 1.0, %v2252
    %v2254 = vxor.u32 %v2203, 2147483648
    %v2255 = vmul.f32 %v2254, 1.442695
    %v2256 = vpow.pop %v2255
    %v2257 = vadd.f32 %v2256, 1.0
    %v2258 = vrcp.pop %v2257
    %v2259 = vmul.f32 1.0, %v2258
    %v2260 = vtanh.pop %v2242
    %v2261 = vxor.u32 %v2244, 2147483648
    %v2262 = vmul.f32 %v2261, 1.442695
    %v2263 = vpow.pop %v2262
    %v2264 = vadd.f32 %v2263, 1.0
    %v2265 = vrcp.pop %v2264
    %v2266 = vmul.f32 1.0, %v2265
    %v2267 = vmul.f32 %v2259, %v1950
    %v2268 = vmul.f32 %v2253, %v2260
    %v2269 = vadd.f32 %v2267, %v2268
    %v2270 = vtanh.pop %v2269
    %v2271 = vmul.f32 %v2266, %v2270
    %2272 = vst [vmem:[#allocation4] sm:$0x1] %v2271
    %2273 = vst [vmem:[#allocation5] sm:$0x1] %v2269
    %v2274 = vpack.c.bf16 %v2271, %v2271
    %v2275 = vld [vmem:[#allocation14] sm:$0xf]
    %v2276 = vld [vmem:[#allocation14 + $0x4] sm:$0xf]
    %v2277 = vld [vmem:[#allocation14 + $0x8] sm:$0xf]
    %v2278 = vld [vmem:[#allocation14 + $0xc] sm:$0xf]
    %v2279 = vld [vmem:[#allocation14 + $0x10] sm:$0xf]
    %v2280 = vld [vmem:[#allocation14 + $0x14] sm:$0xf]
    %v2281 = vld [vmem:[#allocation14 + $0x18] sm:$0xf]
    %v2282 = vld [vmem:[#allocation14 + $0x1c] sm:$0xf]
    %v2283 = vld [vmem:[#allocation14 + $0x20] sm:$0xf]
    %v2284 = vld [vmem:[#allocation14 + $0x24] sm:$0xf]
    %v2285 = vld [vmem:[#allocation14 + $0x28] sm:$0xf]
    %v2286 = vld [vmem:[#allocation14 + $0x2c] sm:$0xf]
    %v2287 = vld [vmem:[#allocation14 + $0x30] sm:$0xf]
    %v2288 = vld [vmem:[#allocation14 + $0x34] sm:$0xf]
    %v2289 = vld [vmem:[#allocation14 + $0x38] sm:$0xf]
    %v2290 = vld [vmem:[#allocation14 + $0x3c] sm:$0xf]
    %v2291 = vld [vmem:[%s6] sm:$0x1]
    %v2308 = vunpack.c.l.b16 %v2275
    %v2309 = vunpack.c.l.b16 %v2276
    %v2310 = vunpack.c.l.b16 %v2277
    %v2311 = vunpack.c.l.b16 %v2278
    %v2312 = vunpack.c.l.b16 %v2279
    %v2313 = vunpack.c.l.b16 %v2280
    %v2314 = vunpack.c.l.b16 %v2281
    %v2315 = vunpack.c.l.b16 %v2282
    %v2316 = vunpack.c.l.b16 %v2283
    %v2317 = vunpack.c.l.b16 %v2284
    %v2318 = vunpack.c.l.b16 %v2285
    %v2319 = vunpack.c.l.b16 %v2286
    %v2320 = vunpack.c.l.b16 %v2287
    %v2321 = vunpack.c.l.b16 %v2288
    %v2322 = vunpack.c.l.b16 %v2289
    %v2323 = vunpack.c.l.b16 %v2290
    %v2324 = vpack.c.b16 %v2309, %v2308
    %v2325 = vpack.c.b16 %v2311, %v2310
    %v2326 = vpack.c.b16 %v2313, %v2312
    %v2327 = vpack.c.b16 %v2315, %v2314
    %v2328 = vpack.c.b16 %v2317, %v2316
    %v2329 = vpack.c.b16 %v2319, %v2318
    %v2330 = vpack.c.b16 %v2321, %v2320
    %v2331 = vpack.c.b16 %v2323, %v2322
    %2340 = vmatprep.subr.bf16.mxu0 0
    %2341 = vmatpush1.bf16.msra.mxu0 %v2331
    %2342 = vmatprep.subr.bf16.mxu0 0
    %2343 = vmatpush1.bf16.msra.mxu0 %v2330
    %2344 = vmatprep.subr.bf16.mxu0 0
    %2345 = vmatpush1.bf16.msra.mxu0 %v2329
    %2346 = vmatprep.subr.bf16.mxu0 0
    %2347 = vmatpush1.bf16.msra.mxu0 %v2328
    %2348 = vmatprep.subr.bf16.mxu0 0
    %2349 = vmatpush1.bf16.msra.mxu0 %v2327
    %2350 = vmatprep.subr.bf16.mxu0 0
    %2351 = vmatpush1.bf16.msra.mxu0 %v2326
    %2352 = vmatprep.subr.bf16.mxu0 0
    %2353 = vmatpush1.bf16.msra.mxu0 %v2325
    %2354 = vmatprep.subr.bf16.mxu0 0
    %2355 = vmatpush1.bf16.msra.mxu0 %v2324
    %2356 = vmatprep.subr.bf16.mxu0 0
    %2357 = vmatpush2.bf16.msra.mxu0 0
    %2358 = vmatprep.subr.bf16.mxu0 0
    %2359 = vmatpush2.bf16.msra.mxu0 0
    %2360 = vmatprep.subr.bf16.mxu0 0
    %2361 = vmatpush2.bf16.msra.mxu0 0
    %2362 = vmatprep.subr.bf16.mxu0 0
    %2363 = vmatpush2.bf16.msra.mxu0 0
    %2364 = vmatprep.subr.bf16.mxu0 0
    %2365 = vmatpush2.bf16.msra.mxu0 0
    %2366 = vmatprep.subr.bf16.mxu0 0
    %2367 = vmatpush2.bf16.msra.mxu0 0
    %2368 = vmatprep.subr.bf16.mxu0 0
    %2369 = vmatpush2.bf16.msra.mxu0 0
    %2370 = vmatprep.subr.bf16.mxu0 0
    %2371 = vmatpush2.bf16.msra.mxu0 0
    %2372 = vmatprep.mubr.bf16.mxu0 0
    %2373 = vmatmul.mubr.bf16.gmra.mxu0 %v2274
    %v2374 = vpop.f32.mrf.mxu0
    %v2375 = vadd.f32 %v2291, %v2374
    %v2376 = vpop.f32.mrf.mxu0
    %v2377 = vpop.f32.mrf.mxu0
    %v2378 = vpop.f32.mrf.mxu0
    %2379 = vdwg.mxu0
    %s2380 = scalar_lea.vmem [#allocation15], 2
    %2381 = vst [vmem:[%s2380] sm:$0x1] %v2375
    %s2382 = scalar_lea.vmem [#allocation6], 3
    %v2383 = vld [vmem:[%s2382] sm:$0x1]
    %v2384 = vld [vmem:[#allocation2] sm:$0x1]
    %v2385 = vadd.f32 %v2384, %v2383
    %v2386 = vld [vmem:[#allocation3] sm:$0x1]
    %v2387 = vpack.c.bf16 %v2385, %v2385
    %v2388 = vld [vmem:[#allocation9] sm:$0xff]
    %v2389 = vld [vmem:[#allocation9 + $0x8] sm:$0xff]
    %v2390 = vld [vmem:[#allocation9 + $0x10] sm:$0xff]
    %v2391 = vld [vmem:[#allocation9 + $0x18] sm:$0xff]
    %v2392 = vld [vmem:[#allocation9 + $0x20] sm:$0xff]
    %v2393 = vld [vmem:[#allocation9 + $0x28] sm:$0xff]
    %v2394 = vld [vmem:[#allocation9 + $0x30] sm:$0xff]
    %v2395 = vld [vmem:[#allocation9 + $0x38] sm:$0xff]
    %v2396 = vld [vmem:[#allocation9 + $0x40] sm:$0xff]
    %v2397 = vld [vmem:[#allocation9 + $0x48] sm:$0xff]
    %v2398 = vld [vmem:[#allocation9 + $0x50] sm:$0xff]
    %v2399 = vld [vmem:[#allocation9 + $0x58] sm:$0xff]
    %v2400 = vld [vmem:[#allocation9 + $0x60] sm:$0xff]
    %v2401 = vld [vmem:[#allocation9 + $0x68] sm:$0xff]
    %v2402 = vld [vmem:[#allocation9 + $0x70] sm:$0xff]
    %v2403 = vld [vmem:[#allocation9 + $0x78] sm:$0xff]
    %v2404 = vld [vmem:[#allocation9 + $0x80] sm:$0xff]
    %v2405 = vld [vmem:[#allocation9 + $0x88] sm:$0xff]
    %v2406 = vld [vmem:[#allocation9 + $0x90] sm:$0xff]
    %v2407 = vld [vmem:[#allocation9 + $0x98] sm:$0xff]
    %v2408 = vld [vmem:[#allocation9 + $0xa0] sm:$0xff]
    %v2409 = vld [vmem:[#allocation9 + $0xa8] sm:$0xff]
    %v2410 = vld [vmem:[#allocation9 + $0xb0] sm:$0xff]
    %v2411 = vld [vmem:[#allocation9 + $0xb8] sm:$0xff]
    %v2412 = vld [vmem:[#allocation9 + $0xc0] sm:$0xff]
    %v2413 = vld [vmem:[#allocation9 + $0xc8] sm:$0xff]
    %v2414 = vld [vmem:[#allocation9 + $0xd0] sm:$0xff]
    %v2415 = vld [vmem:[#allocation9 + $0xd8] sm:$0xff]
    %v2416 = vld [vmem:[#allocation9 + $0xe0] sm:$0xff]
    %v2417 = vld [vmem:[#allocation9 + $0xe8] sm:$0xff]
    %v2418 = vld [vmem:[#allocation9 + $0xf0] sm:$0xff]
    %v2419 = vld [vmem:[#allocation9 + $0xf8] sm:$0xff]
    %v2420 = vld [vmem:[#allocation11] sm:$0xf]
    %v2453 = vunpack.c.l.b16 %v2388
    %v2454 = vunpack.c.h.b16 %v2388
    %v2455 = vunpack.c.l.b16 %v2389
    %v2456 = vunpack.c.h.b16 %v2389
    %v2457 = vunpack.c.l.b16 %v2390
    %v2458 = vunpack.c.h.b16 %v2390
    %v2459 = vunpack.c.l.b16 %v2391
    %v2460 = vunpack.c.h.b16 %v2391
    %v2461 = vunpack.c.l.b16 %v2392
    %v2462 = vunpack.c.h.b16 %v2392
    %v2463 = vunpack.c.l.b16 %v2393
    %v2464 = vunpack.c.h.b16 %v2393
    %v2465 = vunpack.c.l.b16 %v2394
    %v2466 = vunpack.c.h.b16 %v2394
    %v2467 = vunpack.c.l.b16 %v2395
    %v2468 = vunpack.c.h.b16 %v2395
    %v2469 = vunpack.c.l.b16 %v2396
    %v2470 = vunpack.c.h.b16 %v2396
    %v2471 = vunpack.c.l.b16 %v2397
    %v2472 = vunpack.c.h.b16 %v2397
    %v2473 = vunpack.c.l.b16 %v2398
    %v2474 = vunpack.c.h.b16 %v2398
    %v2475 = vunpack.c.l.b16 %v2399
    %v2476 = vunpack.c.h.b16 %v2399
    %v2477 = vunpack.c.l.b16 %v2400
    %v2478 = vunpack.c.h.b16 %v2400
    %v2479 = vunpack.c.l.b16 %v2401
    %v2480 = vunpack.c.h.b16 %v2401
    %v2481 = vunpack.c.l.b16 %v2402
    %v2482 = vunpack.c.h.b16 %v2402
    %v2483 = vunpack.c.l.b16 %v2403
    %v2484 = vunpack.c.h.b16 %v2403
    %v2485 = vunpack.c.l.b16 %v2404
    %v2486 = vunpack.c.h.b16 %v2404
    %v2487 = vunpack.c.l.b16 %v2405
    %v2488 = vunpack.c.h.b16 %v2405
    %v2489 = vunpack.c.l.b16 %v2406
    %v2490 = vunpack.c.h.b16 %v2406
    %v2491 = vunpack.c.l.b16 %v2407
    %v2492 = vunpack.c.h.b16 %v2407
    %v2493 = vunpack.c.l.b16 %v2408
    %v2494 = vunpack.c.h.b16 %v2408
    %v2495 = vunpack.c.l.b16 %v2409
    %v2496 = vunpack.c.h.b16 %v2409
    %v2497 = vunpack.c.l.b16 %v2410
    %v2498 = vunpack.c.h.b16 %v2410
    %v2499 = vunpack.c.l.b16 %v2411
    %v2500 = vunpack.c.h.b16 %v2411
    %v2501 = vunpack.c.l.b16 %v2412
    %v2502 = vunpack.c.h.b16 %v2412
    %v2503 = vunpack.c.l.b16 %v2413
    %v2504 = vunpack.c.h.b16 %v2413
    %v2505 = vunpack.c.l.b16 %v2414
    %v2506 = vunpack.c.h.b16 %v2414
    %v2507 = vunpack.c.l.b16 %v2415
    %v2508 = vunpack.c.h.b16 %v2415
    %v2509 = vunpack.c.l.b16 %v2416
    %v2510 = vunpack.c.h.b16 %v2416
    %v2511 = vunpack.c.l.b16 %v2417
    %v2512 = vunpack.c.h.b16 %v2417
    %v2513 = vunpack.c.l.b16 %v2418
    %v2514 = vunpack.c.h.b16 %v2418
    %v2515 = vunpack.c.l.b16 %v2419
    %v2516 = vunpack.c.h.b16 %v2419
    %v2517 = vpack.c.b16 %v2457, %v2453
    %v2518 = vpack.c.b16 %v2458, %v2454
    %v2519 = vpack.c.b16 %v2459, %v2455
    %v2520 = vpack.c.b16 %v2460, %v2456
    %v2521 = vpack.c.b16 %v2465, %v2461
    %v2522 = vpack.c.b16 %v2466, %v2462
    %v2523 = vpack.c.b16 %v2467, %v2463
    %v2524 = vpack.c.b16 %v2468, %v2464
    %v2525 = vpack.c.b16 %v2473, %v2469
    %v2526 = vpack.c.b16 %v2474, %v2470
    %v2527 = vpack.c.b16 %v2475, %v2471
    %v2528 = vpack.c.b16 %v2476, %v2472
    %v2529 = vpack.c.b16 %v2481, %v2477
    %v2530 = vpack.c.b16 %v2482, %v2478
    %v2531 = vpack.c.b16 %v2483, %v2479
    %v2532 = vpack.c.b16 %v2484, %v2480
    %v2533 = vpack.c.b16 %v2489, %v2485
    %v2534 = vpack.c.b16 %v2490, %v2486
    %v2535 = vpack.c.b16 %v2491, %v2487
    %v2536 = vpack.c.b16 %v2492, %v2488
    %v2537 = vpack.c.b16 %v2497, %v2493
    %v2538 = vpack.c.b16 %v2498, %v2494
    %v2539 = vpack.c.b16 %v2499, %v2495
    %v2540 = vpack.c.b16 %v2500, %v2496
    %v2541 = vpack.c.b16 %v2505, %v2501
    %v2542 = vpack.c.b16 %v2506, %v2502
    %v2543 = vpack.c.b16 %v2507, %v2503
    %v2544 = vpack.c.b16 %v2508, %v2504
    %v2545 = vpack.c.b16 %v2513, %v2509
    %v2546 = vpack.c.b16 %v2514, %v2510
    %v2547 = vpack.c.b16 %v2515, %v2511
    %v2548 = vpack.c.b16 %v2516, %v2512
    %v2582 = vlaneseq
    %v2583 = vshrl.u32 %v2582, 7
    %v2584 = vsub.s32 0, %v2583
    %v2585 = vrot.slane %v2420, %v2584
    %v2586 = vlaneseq
    %v2587 = vshrl.u32 %v2586, 7
    %v2588 = vsub.s32 1, %v2587
    %v2589 = vrot.slane %v2420, %v2588
    %v2590 = vlaneseq
    %v2591 = vshrl.u32 %v2590, 7
    %v2592 = vsub.s32 2, %v2591
    %v2593 = vrot.slane %v2420, %v2592
    %v2594 = vlaneseq
    %v2595 = vshrl.u32 %v2594, 7
    %v2596 = vsub.s32 3, %v2595
    %v2597 = vrot.slane %v2420, %v2596
    %2602 = vmatprep.subr.bf16.mxu0 %v2546
    %2603 = vmatpush1.bf16.msra.mxu0 %v2545
    %2604 = vmatprep.subr.bf16.mxu0 %v2542
    %2605 = vmatpush1.bf16.msra.mxu0 %v2541
    %2606 = vmatprep.subr.bf16.mxu0 %v2538
    %2607 = vmatpush1.bf16.msra.mxu0 %v2537
    %2608 = vmatprep.subr.bf16.mxu0 %v2534
    %2609 = vmatpush1.bf16.msra.mxu0 %v2533
    %2610 = vmatprep.subr.bf16.mxu0 %v2530
    %2611 = vmatpush1.bf16.msra.mxu0 %v2529
    %2612 = vmatprep.subr.bf16.mxu0 %v2526
    %2613 = vmatpush1.bf16.msra.mxu0 %v2525
    %2614 = vmatprep.subr.bf16.mxu0 %v2522
    %2615 = vmatpush1.bf16.msra.mxu0 %v2521
    %2616 = vmatprep.subr.bf16.mxu0 %v2518
    %2617 = vmatpush1.bf16.msra.mxu0 %v2517
    %2618 = vmatprep.subr.bf16.mxu0 0
    %2619 = vmatpush2.bf16.msra.mxu0 0
    %2620 = vmatprep.subr.bf16.mxu0 0
    %2621 = vmatpush2.bf16.msra.mxu0 0
    %2622 = vmatprep.subr.bf16.mxu0 0
    %2623 = vmatpush2.bf16.msra.mxu0 0
    %2624 = vmatprep.subr.bf16.mxu0 0
    %2625 = vmatpush2.bf16.msra.mxu0 0
    %2626 = vmatprep.subr.bf16.mxu0 0
    %2627 = vmatpush2.bf16.msra.mxu0 0
    %2628 = vmatprep.subr.bf16.mxu0 0
    %2629 = vmatpush2.bf16.msra.mxu0 0
    %2630 = vmatprep.subr.bf16.mxu0 0
    %2631 = vmatpush2.bf16.msra.mxu0 0
    %2632 = vmatprep.subr.bf16.mxu0 0
    %2633 = vmatpush2.bf16.msra.mxu0 0
    %2634 = vmatprep.mubr.bf16.mxu0 0
    %2635 = vmatmul.mubr.bf16.gmra.mxu0 %v2387
    %v2636 = vpop.f32.mrf.mxu0
    %v2637 = vadd.f32 %v2585, %v2636
    %v2638 = vpop.f32.mrf.mxu0
    %v2639 = vadd.f32 %v2589, %v2638
    %v2640 = vpop.f32.mrf.mxu0
    %v2641 = vpop.f32.mrf.mxu0
    %2642 = vdwg.mxu0
    %2643 = vmatprep.subr.bf16.mxu0 %v2548
    %2644 = vmatpush1.bf16.msra.mxu0 %v2547
    %2645 = vmatprep.subr.bf16.mxu0 %v2544
    %2646 = vmatpush1.bf16.msra.mxu0 %v2543
    %2647 = vmatprep.subr.bf16.mxu0 %v2540
    %2648 = vmatpush1.bf16.msra.mxu0 %v2539
    %2649 = vmatprep.subr.bf16.mxu0 %v2536
    %2650 = vmatpush1.bf16.msra.mxu0 %v2535
    %2651 = vmatprep.subr.bf16.mxu0 %v2532
    %2652 = vmatpush1.bf16.msra.mxu0 %v2531
    %2653 = vmatprep.subr.bf16.mxu0 %v2528
    %2654 = vmatpush1.bf16.msra.mxu0 %v2527
    %2655 = vmatprep.subr.bf16.mxu0 %v2524
    %2656 = vmatpush1.bf16.msra.mxu0 %v2523
    %2657 = vmatprep.subr.bf16.mxu0 %v2520
    %2658 = vmatpush1.bf16.msra.mxu0 %v2519
    %2659 = vmatprep.subr.bf16.mxu0 0
    %2660 = vmatpush2.bf16.msra.mxu0 0
    %2661 = vmatprep.subr.bf16.mxu0 0
    %2662 = vmatpush2.bf16.msra.mxu0 0
    %2663 = vmatprep.subr.bf16.mxu0 0
    %2664 = vmatpush2.bf16.msra.mxu0 0
    %2665 = vmatprep.subr.bf16.mxu0 0
    %2666 = vmatpush2.bf16.msra.mxu0 0
    %2667 = vmatprep.subr.bf16.mxu0 0
    %2668 = vmatpush2.bf16.msra.mxu0 0
    %2669 = vmatprep.subr.bf16.mxu0 0
    %2670 = vmatpush2.bf16.msra.mxu0 0
    %2671 = vmatprep.subr.bf16.mxu0 0
    %2672 = vmatpush2.bf16.msra.mxu0 0
    %2673 = vmatprep.subr.bf16.mxu0 0
    %2674 = vmatpush2.bf16.msra.mxu0 0
    %2675 = vmatprep.mubr.bf16.mxu0 0
    %2676 = vmatmul.mubr.bf16.gmra.mxu0 %v2387
    %v2677 = vpop.f32.mrf.mxu0
    %v2678 = vadd.f32 %v2593, %v2677
    %v2679 = vpop.f32.mrf.mxu0
    %v2680 = vadd.f32 %v2597, %v2679
    %v2681 = vpop.f32.mrf.mxu0
    %v2682 = vpop.f32.mrf.mxu0
    %2683 = vdwg.mxu0
    %v2684 = vxor.u32 %v2637, 2147483648
    %v2685 = vmul.f32 %v2684, 1.442695
    %v2686 = vpow.pop %v2685
    %v2687 = vadd.f32 %v2686, 1.0
    %v2688 = vrcp.pop %v2687
    %v2689 = vmul.f32 1.0, %v2688
    %v2690 = vxor.u32 %v2639, 2147483648
    %v2691 = vmul.f32 %v2690, 1.442695
    %v2692 = vpow.pop %v2691
    %v2693 = vadd.f32 %v2692, 1.0
    %v2694 = vrcp.pop %v2693
    %v2695 = vmul.f32 1.0, %v2694
    %v2696 = vtanh.pop %v2678
    %v2697 = vxor.u32 %v2680, 2147483648
    %v2698 = vmul.f32 %v2697, 1.442695
    %v2699 = vpow.pop %v2698
    %v2700 = vadd.f32 %v2699, 1.0
    %v2701 = vrcp.pop %v2700
    %v2702 = vmul.f32 1.0, %v2701
    %v2703 = vmul.f32 %v2695, %v2386
    %v2704 = vmul.f32 %v2689, %v2696
    %v2705 = vadd.f32 %v2703, %v2704
    %v2706 = vtanh.pop %v2705
    %v2707 = vmul.f32 %v2702, %v2706
    %2708 = vst [vmem:[#allocation2] sm:$0x1] %v2707
    %2709 = vst [vmem:[#allocation3] sm:$0x1] %v2705
    %v2710 = vld [vmem:[#allocation4] sm:$0x1]
    %v2711 = vadd.f32 %v2707, %v2710
    %v2712 = vld [vmem:[#allocation5] sm:$0x1]
    %v2713 = vpack.c.bf16 %v2711, %v2711
    %v2714 = vld [vmem:[#allocation12] sm:$0xff]
    %v2715 = vld [vmem:[#allocation12 + $0x8] sm:$0xff]
    %v2716 = vld [vmem:[#allocation12 + $0x10] sm:$0xff]
    %v2717 = vld [vmem:[#allocation12 + $0x18] sm:$0xff]
    %v2718 = vld [vmem:[#allocation12 + $0x20] sm:$0xff]
    %v2719 = vld [vmem:[#allocation12 + $0x28] sm:$0xff]
    %v2720 = vld [vmem:[#allocation12 + $0x30] sm:$0xff]
    %v2721 = vld [vmem:[#allocation12 + $0x38] sm:$0xff]
    %v2722 = vld [vmem:[#allocation12 + $0x40] sm:$0xff]
    %v2723 = vld [vmem:[#allocation12 + $0x48] sm:$0xff]
    %v2724 = vld [vmem:[#allocation12 + $0x50] sm:$0xff]
    %v2725 = vld [vmem:[#allocation12 + $0x58] sm:$0xff]
    %v2726 = vld [vmem:[#allocation12 + $0x60] sm:$0xff]
    %v2727 = vld [vmem:[#allocation12 + $0x68] sm:$0xff]
    %v2728 = vld [vmem:[#allocation12 + $0x70] sm:$0xff]
    %v2729 = vld [vmem:[#allocation12 + $0x78] sm:$0xff]
    %v2730 = vld [vmem:[#allocation12 + $0x80] sm:$0xff]
    %v2731 = vld [vmem:[#allocation12 + $0x88] sm:$0xff]
    %v2732 = vld [vmem:[#allocation12 + $0x90] sm:$0xff]
    %v2733 = vld [vmem:[#allocation12 + $0x98] sm:$0xff]
    %v2734 = vld [vmem:[#allocation12 + $0xa0] sm:$0xff]
    %v2735 = vld [vmem:[#allocation12 + $0xa8] sm:$0xff]
    %v2736 = vld [vmem:[#allocation12 + $0xb0] sm:$0xff]
    %v2737 = vld [vmem:[#allocation12 + $0xb8] sm:$0xff]
    %v2738 = vld [vmem:[#allocation12 + $0xc0] sm:$0xff]
    %v2739 = vld [vmem:[#allocation12 + $0xc8] sm:$0xff]
    %v2740 = vld [vmem:[#allocation12 + $0xd0] sm:$0xff]
    %v2741 = vld [vmem:[#allocation12 + $0xd8] sm:$0xff]
    %v2742 = vld [vmem:[#allocation12 + $0xe0] sm:$0xff]
    %v2743 = vld [vmem:[#allocation12 + $0xe8] sm:$0xff]
    %v2744 = vld [vmem:[#allocation12 + $0xf0] sm:$0xff]
    %v2745 = vld [vmem:[#allocation12 + $0xf8] sm:$0xff]
    %v2746 = vld [vmem:[%s4] sm:$0xf]
    %v2779 = vunpack.c.l.b16 %v2714
    %v2780 = vunpack.c.h.b16 %v2714
    %v2781 = vunpack.c.l.b16 %v2715
    %v2782 = vunpack.c.h.b16 %v2715
    %v2783 = vunpack.c.l.b16 %v2716
    %v2784 = vunpack.c.h.b16 %v2716
    %v2785 = vunpack.c.l.b16 %v2717
    %v2786 = vunpack.c.h.b16 %v2717
    %v2787 = vunpack.c.l.b16 %v2718
    %v2788 = vunpack.c.h.b16 %v2718
    %v2789 = vunpack.c.l.b16 %v2719
    %v2790 = vunpack.c.h.b16 %v2719
    %v2791 = vunpack.c.l.b16 %v2720
    %v2792 = vunpack.c.h.b16 %v2720
    %v2793 = vunpack.c.l.b16 %v2721
    %v2794 = vunpack.c.h.b16 %v2721
    %v2795 = vunpack.c.l.b16 %v2722
    %v2796 = vunpack.c.h.b16 %v2722
    %v2797 = vunpack.c.l.b16 %v2723
    %v2798 = vunpack.c.h.b16 %v2723
    %v2799 = vunpack.c.l.b16 %v2724
    %v2800 = vunpack.c.h.b16 %v2724
    %v2801 = vunpack.c.l.b16 %v2725
    %v2802 = vunpack.c.h.b16 %v2725
    %v2803 = vunpack.c.l.b16 %v2726
    %v2804 = vunpack.c.h.b16 %v2726
    %v2805 = vunpack.c.l.b16 %v2727
    %v2806 = vunpack.c.h.b16 %v2727
    %v2807 = vunpack.c.l.b16 %v2728
    %v2808 = vunpack.c.h.b16 %v2728
    %v2809 = vunpack.c.l.b16 %v2729
    %v2810 = vunpack.c.h.b16 %v2729
    %v2811 = vunpack.c.l.b16 %v2730
    %v2812 = vunpack.c.h.b16 %v2730
    %v2813 = vunpack.c.l.b16 %v2731
    %v2814 = vunpack.c.h.b16 %v2731
    %v2815 = vunpack.c.l.b16 %v2732
    %v2816 = vunpack.c.h.b16 %v2732
    %v2817 = vunpack.c.l.b16 %v2733
    %v2818 = vunpack.c.h.b16 %v2733
    %v2819 = vunpack.c.l.b16 %v2734
    %v2820 = vunpack.c.h.b16 %v2734
    %v2821 = vunpack.c.l.b16 %v2735
    %v2822 = vunpack.c.h.b16 %v2735
    %v2823 = vunpack.c.l.b16 %v2736
    %v2824 = vunpack.c.h.b16 %v2736
    %v2825 = vunpack.c.l.b16 %v2737
    %v2826 = vunpack.c.h.b16 %v2737
    %v2827 = vunpack.c.l.b16 %v2738
    %v2828 = vunpack.c.h.b16 %v2738
    %v2829 = vunpack.c.l.b16 %v2739
    %v2830 = vunpack.c.h.b16 %v2739
    %v2831 = vunpack.c.l.b16 %v2740
    %v2832 = vunpack.c.h.b16 %v2740
    %v2833 = vunpack.c.l.b16 %v2741
    %v2834 = vunpack.c.h.b16 %v2741
    %v2835 = vunpack.c.l.b16 %v2742
    %v2836 = vunpack.c.h.b16 %v2742
    %v2837 = vunpack.c.l.b16 %v2743
    %v2838 = vunpack.c.h.b16 %v2743
    %v2839 = vunpack.c.l.b16 %v2744
    %v2840 = vunpack.c.h.b16 %v2744
    %v2841 = vunpack.c.l.b16 %v2745
    %v2842 = vunpack.c.h.b16 %v2745
    %v2843 = vpack.c.b16 %v2783, %v2779
    %v2844 = vpack.c.b16 %v2784, %v2780
    %v2845 = vpack.c.b16 %v2785, %v2781
    %v2846 = vpack.c.b16 %v2786, %v2782
    %v2847 = vpack.c.b16 %v2791, %v2787
    %v2848 = vpack.c.b16 %v2792, %v2788
    %v2849 = vpack.c.b16 %v2793, %v2789
    %v2850 = vpack.c.b16 %v2794, %v2790
    %v2851 = vpack.c.b16 %v2799, %v2795
    %v2852 = vpack.c.b16 %v2800, %v2796
    %v2853 = vpack.c.b16 %v2801, %v2797
    %v2854 = vpack.c.b16 %v2802, %v2798
    %v2855 = vpack.c.b16 %v2807, %v2803
    %v2856 = vpack.c.b16 %v2808, %v2804
    %v2857 = vpack.c.b16 %v2809, %v2805
    %v2858 = vpack.c.b16 %v2810, %v2806
    %v2859 = vpack.c.b16 %v2815, %v2811
    %v2860 = vpack.c.b16 %v2816, %v2812
    %v2861 = vpack.c.b16 %v2817, %v2813
    %v2862 = vpack.c.b16 %v2818, %v2814
    %v2863 = vpack.c.b16 %v2823, %v2819
    %v2864 = vpack.c.b16 %v2824, %v2820
    %v2865 = vpack.c.b16 %v2825, %v2821
    %v2866 = vpack.c.b16 %v2826, %v2822
    %v2867 = vpack.c.b16 %v2831, %v2827
    %v2868 = vpack.c.b16 %v2832, %v2828
    %v2869 = vpack.c.b16 %v2833, %v2829
    %v2870 = vpack.c.b16 %v2834, %v2830
    %v2871 = vpack.c.b16 %v2839, %v2835
    %v2872 = vpack.c.b16 %v2840, %v2836
    %v2873 = vpack.c.b16 %v2841, %v2837
    %v2874 = vpack.c.b16 %v2842, %v2838
    %v2908 = vlaneseq
    %v2909 = vshrl.u32 %v2908, 7
    %v2910 = vsub.s32 0, %v2909
    %v2911 = vrot.slane %v2746, %v2910
    %v2912 = vlaneseq
    %v2913 = vshrl.u32 %v2912, 7
    %v2914 = vsub.s32 1, %v2913
    %v2915 = vrot.slane %v2746, %v2914
    %v2916 = vlaneseq
    %v2917 = vshrl.u32 %v2916, 7
    %v2918 = vsub.s32 2, %v2917
    %v2919 = vrot.slane %v2746, %v2918
    %v2920 = vlaneseq
    %v2921 = vshrl.u32 %v2920, 7
    %v2922 = vsub.s32 3, %v2921
    %v2923 = vrot.slane %v2746, %v2922
    %2928 = vmatprep.subr.bf16.mxu0 %v2872
    %2929 = vmatpush1.bf16.msra.mxu0 %v2871
    %2930 = vmatprep.subr.bf16.mxu0 %v2868
    %2931 = vmatpush1.bf16.msra.mxu0 %v2867
    %2932 = vmatprep.subr.bf16.mxu0 %v2864
    %2933 = vmatpush1.bf16.msra.mxu0 %v2863
    %2934 = vmatprep.subr.bf16.mxu0 %v2860
    %2935 = vmatpush1.bf16.msra.mxu0 %v2859
    %2936 = vmatprep.subr.bf16.mxu0 %v2856
    %2937 = vmatpush1.bf16.msra.mxu0 %v2855
    %2938 = vmatprep.subr.bf16.mxu0 %v2852
    %2939 = vmatpush1.bf16.msra.mxu0 %v2851
    %2940 = vmatprep.subr.bf16.mxu0 %v2848
    %2941 = vmatpush1.bf16.msra.mxu0 %v2847
    %2942 = vmatprep.subr.bf16.mxu0 %v2844
    %2943 = vmatpush1.bf16.msra.mxu0 %v2843
    %2944 = vmatprep.subr.bf16.mxu0 0
    %2945 = vmatpush2.bf16.msra.mxu0 0
    %2946 = vmatprep.subr.bf16.mxu0 0
    %2947 = vmatpush2.bf16.msra.mxu0 0
    %2948 = vmatprep.subr.bf16.mxu0 0
    %2949 = vmatpush2.bf16.msra.mxu0 0
    %2950 = vmatprep.subr.bf16.mxu0 0
    %2951 = vmatpush2.bf16.msra.mxu0 0
    %2952 = vmatprep.subr.bf16.mxu0 0
    %2953 = vmatpush2.bf16.msra.mxu0 0
    %2954 = vmatprep.subr.bf16.mxu0 0
    %2955 = vmatpush2.bf16.msra.mxu0 0
    %2956 = vmatprep.subr.bf16.mxu0 0
    %2957 = vmatpush2.bf16.msra.mxu0 0
    %2958 = vmatprep.subr.bf16.mxu0 0
    %2959 = vmatpush2.bf16.msra.mxu0 0
    %2960 = vmatprep.mubr.bf16.mxu0 0
    %2961 = vmatmul.mubr.bf16.gmra.mxu0 %v2713
    %v2962 = vpop.f32.mrf.mxu0
    %v2963 = vadd.f32 %v2911, %v2962
    %v2964 = vpop.f32.mrf.mxu0
    %v2965 = vadd.f32 %v2915, %v2964
    %v2966 = vpop.f32.mrf.mxu0
    %v2967 = vpop.f32.mrf.mxu0
    %2968 = vdwg.mxu0
    %2969 = vmatprep.subr.bf16.mxu0 %v2874
    %2970 = vmatpush1.bf16.msra.mxu0 %v2873
    %2971 = vmatprep.subr.bf16.mxu0 %v2870
    %2972 = vmatpush1.bf16.msra.mxu0 %v2869
    %2973 = vmatprep.subr.bf16.mxu0 %v2866
    %2974 = vmatpush1.bf16.msra.mxu0 %v2865
    %2975 = vmatprep.subr.bf16.mxu0 %v2862
    %2976 = vmatpush1.bf16.msra.mxu0 %v2861
    %2977 = vmatprep.subr.bf16.mxu0 %v2858
    %2978 = vmatpush1.bf16.msra.mxu0 %v2857
    %2979 = vmatprep.subr.bf16.mxu0 %v2854
    %2980 = vmatpush1.bf16.msra.mxu0 %v2853
    %2981 = vmatprep.subr.bf16.mxu0 %v2850
    %2982 = vmatpush1.bf16.msra.mxu0 %v2849
    %2983 = vmatprep.subr.bf16.mxu0 %v2846
    %2984 = vmatpush1.bf16.msra.mxu0 %v2845
    %2985 = vmatprep.subr.bf16.mxu0 0
    %2986 = vmatpush2.bf16.msra.mxu0 0
    %2987 = vmatprep.subr.bf16.mxu0 0
    %2988 = vmatpush2.bf16.msra.mxu0 0
    %2989 = vmatprep.subr.bf16.mxu0 0
    %2990 = vmatpush2.bf16.msra.mxu0 0
    %2991 = vmatprep.subr.bf16.mxu0 0
    %2992 = vmatpush2.bf16.msra.mxu0 0
    %2993 = vmatprep.subr.bf16.mxu0 0
    %2994 = vmatpush2.bf16.msra.mxu0 0
    %2995 = vmatprep.subr.bf16.mxu0 0
    %2996 = vmatpush2.bf16.msra.mxu0 0
    %2997 = vmatprep.subr.bf16.mxu0 0
    %2998 = vmatpush2.bf16.msra.mxu0 0
    %2999 = vmatprep.subr.bf16.mxu0 0
    %3000 = vmatpush2.bf16.msra.mxu0 0
    %3001 = vmatprep.mubr.bf16.mxu0 0
    %3002 = vmatmul.mubr.bf16.gmra.mxu0 %v2713
    %v3003 = vpop.f32.mrf.mxu0
    %v3004 = vadd.f32 %v2919, %v3003
    %v3005 = vpop.f32.mrf.mxu0
    %v3006 = vadd.f32 %v2923, %v3005
    %v3007 = vpop.f32.mrf.mxu0
    %v3008 = vpop.f32.mrf.mxu0
    %3009 = vdwg.mxu0
    %v3010 = vxor.u32 %v2963, 2147483648
    %v3011 = vmul.f32 %v3010, 1.442695
    %v3012 = vpow.pop %v3011
    %v3013 = vadd.f32 %v3012, 1.0
    %v3014 = vrcp.pop %v3013
    %v3015 = vmul.f32 1.0, %v3014
    %v3016 = vxor.u32 %v2965, 2147483648
    %v3017 = vmul.f32 %v3016, 1.442695
    %v3018 = vpow.pop %v3017
    %v3019 = vadd.f32 %v3018, 1.0
    %v3020 = vrcp.pop %v3019
    %v3021 = vmul.f32 1.0, %v3020
    %v3022 = vtanh.pop %v3004
    %v3023 = vxor.u32 %v3006, 2147483648
    %v3024 = vmul.f32 %v3023, 1.442695
    %v3025 = vpow.pop %v3024
    %v3026 = vadd.f32 %v3025, 1.0
    %v3027 = vrcp.pop %v3026
    %v3028 = vmul.f32 1.0, %v3027
    %v3029 = vmul.f32 %v3021, %v2712
    %v3030 = vmul.f32 %v3015, %v3022
    %v3031 = vadd.f32 %v3029, %v3030
    %v3032 = vtanh.pop %v3031
    %v3033 = vmul.f32 %v3028, %v3032
    %3034 = vst [vmem:[#allocation4] sm:$0x1] %v3033
    %3035 = vst [vmem:[#allocation5] sm:$0x1] %v3031
    %v3036 = vpack.c.bf16 %v3033, %v3033
    %v3037 = vld [vmem:[#allocation14] sm:$0xf]
    %v3038 = vld [vmem:[#allocation14 + $0x4] sm:$0xf]
    %v3039 = vld [vmem:[#allocation14 + $0x8] sm:$0xf]
    %v3040 = vld [vmem:[#allocation14 + $0xc] sm:$0xf]
    %v3041 = vld [vmem:[#allocation14 + $0x10] sm:$0xf]
    %v3042 = vld [vmem:[#allocation14 + $0x14] sm:$0xf]
    %v3043 = vld [vmem:[#allocation14 + $0x18] sm:$0xf]
    %v3044 = vld [vmem:[#allocation14 + $0x1c] sm:$0xf]
    %v3045 = vld [vmem:[#allocation14 + $0x20] sm:$0xf]
    %v3046 = vld [vmem:[#allocation14 + $0x24] sm:$0xf]
    %v3047 = vld [vmem:[#allocation14 + $0x28] sm:$0xf]
    %v3048 = vld [vmem:[#allocation14 + $0x2c] sm:$0xf]
    %v3049 = vld [vmem:[#allocation14 + $0x30] sm:$0xf]
    %v3050 = vld [vmem:[#allocation14 + $0x34] sm:$0xf]
    %v3051 = vld [vmem:[#allocation14 + $0x38] sm:$0xf]
    %v3052 = vld [vmem:[#allocation14 + $0x3c] sm:$0xf]
    %v3053 = vld [vmem:[%s6] sm:$0x1]
    %v3070 = vunpack.c.l.b16 %v3037
    %v3071 = vunpack.c.l.b16 %v3038
    %v3072 = vunpack.c.l.b16 %v3039
    %v3073 = vunpack.c.l.b16 %v3040
    %v3074 = vunpack.c.l.b16 %v3041
    %v3075 = vunpack.c.l.b16 %v3042
    %v3076 = vunpack.c.l.b16 %v3043
    %v3077 = vunpack.c.l.b16 %v3044
    %v3078 = vunpack.c.l.b16 %v3045
    %v3079 = vunpack.c.l.b16 %v3046
    %v3080 = vunpack.c.l.b16 %v3047
    %v3081 = vunpack.c.l.b16 %v3048
    %v3082 = vunpack.c.l.b16 %v3049
    %v3083 = vunpack.c.l.b16 %v3050
    %v3084 = vunpack.c.l.b16 %v3051
    %v3085 = vunpack.c.l.b16 %v3052
    %v3086 = vpack.c.b16 %v3071, %v3070
    %v3087 = vpack.c.b16 %v3073, %v3072
    %v3088 = vpack.c.b16 %v3075, %v3074
    %v3089 = vpack.c.b16 %v3077, %v3076
    %v3090 = vpack.c.b16 %v3079, %v3078
    %v3091 = vpack.c.b16 %v3081, %v3080
    %v3092 = vpack.c.b16 %v3083, %v3082
    %v3093 = vpack.c.b16 %v3085, %v3084
    %3102 = vmatprep.subr.bf16.mxu0 0
    %3103 = vmatpush1.bf16.msra.mxu0 %v3093
    %3104 = vmatprep.subr.bf16.mxu0 0
    %3105 = vmatpush1.bf16.msra.mxu0 %v3092
    %3106 = vmatprep.subr.bf16.mxu0 0
    %3107 = vmatpush1.bf16.msra.mxu0 %v3091
    %3108 = vmatprep.subr.bf16.mxu0 0
    %3109 = vmatpush1.bf16.msra.mxu0 %v3090
    %3110 = vmatprep.subr.bf16.mxu0 0
    %3111 = vmatpush1.bf16.msra.mxu0 %v3089
    %3112 = vmatprep.subr.bf16.mxu0 0
    %3113 = vmatpush1.bf16.msra.mxu0 %v3088
    %3114 = vmatprep.subr.bf16.mxu0 0
    %3115 = vmatpush1.bf16.msra.mxu0 %v3087
    %3116 = vmatprep.subr.bf16.mxu0 0
    %3117 = vmatpush1.bf16.msra.mxu0 %v3086
    %3118 = vmatprep.subr.bf16.mxu0 0
    %3119 = vmatpush2.bf16.msra.mxu0 0
    %3120 = vmatprep.subr.bf16.mxu0 0
    %3121 = vmatpush2.bf16.msra.mxu0 0
    %3122 = vmatprep.subr.bf16.mxu0 0
    %3123 = vmatpush2.bf16.msra.mxu0 0
    %3124 = vmatprep.subr.bf16.mxu0 0
    %3125 = vmatpush2.bf16.msra.mxu0 0
    %3126 = vmatprep.subr.bf16.mxu0 0
    %3127 = vmatpush2.bf16.msra.mxu0 0
    %3128 = vmatprep.subr.bf16.mxu0 0
    %3129 = vmatpush2.bf16.msra.mxu0 0
    %3130 = vmatprep.subr.bf16.mxu0 0
    %3131 = vmatpush2.bf16.msra.mxu0 0
    %3132 = vmatprep.subr.bf16.mxu0 0
    %3133 = vmatpush2.bf16.msra.mxu0 0
    %3134 = vmatprep.mubr.bf16.mxu0 0
    %3135 = vmatmul.mubr.bf16.gmra.mxu0 %v3036
    %v3136 = vpop.f32.mrf.mxu0
    %v3137 = vadd.f32 %v3053, %v3136
    %v3138 = vpop.f32.mrf.mxu0
    %v3139 = vpop.f32.mrf.mxu0
    %v3140 = vpop.f32.mrf.mxu0
    %3141 = vdwg.mxu0
    %s3142 = scalar_lea.vmem [#allocation15], 3
    %3143 = vst [vmem:[%s3142] sm:$0x1] %v3137
    %s3144 = scalar_lea.vmem [#allocation6], 4
    %v3145 = vld [vmem:[%s3144] sm:$0x1]
    %v3146 = vld [vmem:[#allocation2] sm:$0x1]
    %v3147 = vadd.f32 %v3146, %v3145
    %v3148 = vld [vmem:[#allocation3] sm:$0x1]
    %v3149 = vpack.c.bf16 %v3147, %v3147
    %v3150 = vld [vmem:[#allocation9] sm:$0xff]
    %v3151 = vld [vmem:[#allocation9 + $0x8] sm:$0xff]
    %v3152 = vld [vmem:[#allocation9 + $0x10] sm:$0xff]
    %v3153 = vld [vmem:[#allocation9 + $0x18] sm:$0xff]
    %v3154 = vld [vmem:[#allocation9 + $0x20] sm:$0xff]
    %v3155 = vld [vmem:[#allocation9 + $0x28] sm:$0xff]
    %v3156 = vld [vmem:[#allocation9 + $0x30] sm:$0xff]
    %v3157 = vld [vmem:[#allocation9 + $0x38] sm:$0xff]
    %v3158 = vld [vmem:[#allocation9 + $0x40] sm:$0xff]
    %v3159 = vld [vmem:[#allocation9 + $0x48] sm:$0xff]
    %v3160 = vld [vmem:[#allocation9 + $0x50] sm:$0xff]
    %v3161 = vld [vmem:[#allocation9 + $0x58] sm:$0xff]
    %v3162 = vld [vmem:[#allocation9 + $0x60] sm:$0xff]
    %v3163 = vld [vmem:[#allocation9 + $0x68] sm:$0xff]
    %v3164 = vld [vmem:[#allocation9 + $0x70] sm:$0xff]
    %v3165 = vld [vmem:[#allocation9 + $0x78] sm:$0xff]
    %v3166 = vld [vmem:[#allocation9 + $0x80] sm:$0xff]
    %v3167 = vld [vmem:[#allocation9 + $0x88] sm:$0xff]
    %v3168 = vld [vmem:[#allocation9 + $0x90] sm:$0xff]
    %v3169 = vld [vmem:[#allocation9 + $0x98] sm:$0xff]
    %v3170 = vld [vmem:[#allocation9 + $0xa0] sm:$0xff]
    %v3171 = vld [vmem:[#allocation9 + $0xa8] sm:$0xff]
    %v3172 = vld [vmem:[#allocation9 + $0xb0] sm:$0xff]
    %v3173 = vld [vmem:[#allocation9 + $0xb8] sm:$0xff]
    %v3174 = vld [vmem:[#allocation9 + $0xc0] sm:$0xff]
    %v3175 = vld [vmem:[#allocation9 + $0xc8] sm:$0xff]
    %v3176 = vld [vmem:[#allocation9 + $0xd0] sm:$0xff]
    %v3177 = vld [vmem:[#allocation9 + $0xd8] sm:$0xff]
    %v3178 = vld [vmem:[#allocation9 + $0xe0] sm:$0xff]
    %v3179 = vld [vmem:[#allocation9 + $0xe8] sm:$0xff]
    %v3180 = vld [vmem:[#allocation9 + $0xf0] sm:$0xff]
    %v3181 = vld [vmem:[#allocation9 + $0xf8] sm:$0xff]
    %v3182 = vld [vmem:[#allocation11] sm:$0xf]
    %v3215 = vunpack.c.l.b16 %v3150
    %v3216 = vunpack.c.h.b16 %v3150
    %v3217 = vunpack.c.l.b16 %v3151
    %v3218 = vunpack.c.h.b16 %v3151
    %v3219 = vunpack.c.l.b16 %v3152
    %v3220 = vunpack.c.h.b16 %v3152
    %v3221 = vunpack.c.l.b16 %v3153
    %v3222 = vunpack.c.h.b16 %v3153
    %v3223 = vunpack.c.l.b16 %v3154
    %v3224 = vunpack.c.h.b16 %v3154
    %v3225 = vunpack.c.l.b16 %v3155
    %v3226 = vunpack.c.h.b16 %v3155
    %v3227 = vunpack.c.l.b16 %v3156
    %v3228 = vunpack.c.h.b16 %v3156
    %v3229 = vunpack.c.l.b16 %v3157
    %v3230 = vunpack.c.h.b16 %v3157
    %v3231 = vunpack.c.l.b16 %v3158
    %v3232 = vunpack.c.h.b16 %v3158
    %v3233 = vunpack.c.l.b16 %v3159
    %v3234 = vunpack.c.h.b16 %v3159
    %v3235 = vunpack.c.l.b16 %v3160
    %v3236 = vunpack.c.h.b16 %v3160
    %v3237 = vunpack.c.l.b16 %v3161
    %v3238 = vunpack.c.h.b16 %v3161
    %v3239 = vunpack.c.l.b16 %v3162
    %v3240 = vunpack.c.h.b16 %v3162
    %v3241 = vunpack.c.l.b16 %v3163
    %v3242 = vunpack.c.h.b16 %v3163
    %v3243 = vunpack.c.l.b16 %v3164
    %v3244 = vunpack.c.h.b16 %v3164
    %v3245 = vunpack.c.l.b16 %v3165
    %v3246 = vunpack.c.h.b16 %v3165
    %v3247 = vunpack.c.l.b16 %v3166
    %v3248 = vunpack.c.h.b16 %v3166
    %v3249 = vunpack.c.l.b16 %v3167
    %v3250 = vunpack.c.h.b16 %v3167
    %v3251 = vunpack.c.l.b16 %v3168
    %v3252 = vunpack.c.h.b16 %v3168
    %v3253 = vunpack.c.l.b16 %v3169
    %v3254 = vunpack.c.h.b16 %v3169
    %v3255 = vunpack.c.l.b16 %v3170
    %v3256 = vunpack.c.h.b16 %v3170
    %v3257 = vunpack.c.l.b16 %v3171
    %v3258 = vunpack.c.h.b16 %v3171
    %v3259 = vunpack.c.l.b16 %v3172
    %v3260 = vunpack.c.h.b16 %v3172
    %v3261 = vunpack.c.l.b16 %v3173
    %v3262 = vunpack.c.h.b16 %v3173
    %v3263 = vunpack.c.l.b16 %v3174
    %v3264 = vunpack.c.h.b16 %v3174
    %v3265 = vunpack.c.l.b16 %v3175
    %v3266 = vunpack.c.h.b16 %v3175
    %v3267 = vunpack.c.l.b16 %v3176
    %v3268 = vunpack.c.h.b16 %v3176
    %v3269 = vunpack.c.l.b16 %v3177
    %v3270 = vunpack.c.h.b16 %v3177
    %v3271 = vunpack.c.l.b16 %v3178
    %v3272 = vunpack.c.h.b16 %v3178
    %v3273 = vunpack.c.l.b16 %v3179
    %v3274 = vunpack.c.h.b16 %v3179
    %v3275 = vunpack.c.l.b16 %v3180
    %v3276 = vunpack.c.h.b16 %v3180
    %v3277 = vunpack.c.l.b16 %v3181
    %v3278 = vunpack.c.h.b16 %v3181
    %v3279 = vpack.c.b16 %v3219, %v3215
    %v3280 = vpack.c.b16 %v3220, %v3216
    %v3281 = vpack.c.b16 %v3221, %v3217
    %v3282 = vpack.c.b16 %v3222, %v3218
    %v3283 = vpack.c.b16 %v3227, %v3223
    %v3284 = vpack.c.b16 %v3228, %v3224
    %v3285 = vpack.c.b16 %v3229, %v3225
    %v3286 = vpack.c.b16 %v3230, %v3226
    %v3287 = vpack.c.b16 %v3235, %v3231
    %v3288 = vpack.c.b16 %v3236, %v3232
    %v3289 = vpack.c.b16 %v3237, %v3233
    %v3290 = vpack.c.b16 %v3238, %v3234
    %v3291 = vpack.c.b16 %v3243, %v3239
    %v3292 = vpack.c.b16 %v3244, %v3240
    %v3293 = vpack.c.b16 %v3245, %v3241
    %v3294 = vpack.c.b16 %v3246, %v3242
    %v3295 = vpack.c.b16 %v3251, %v3247
    %v3296 = vpack.c.b16 %v3252, %v3248
    %v3297 = vpack.c.b16 %v3253, %v3249
    %v3298 = vpack.c.b16 %v3254, %v3250
    %v3299 = vpack.c.b16 %v3259, %v3255
    %v3300 = vpack.c.b16 %v3260, %v3256
    %v3301 = vpack.c.b16 %v3261, %v3257
    %v3302 = vpack.c.b16 %v3262, %v3258
    %v3303 = vpack.c.b16 %v3267, %v3263
    %v3304 = vpack.c.b16 %v3268, %v3264
    %v3305 = vpack.c.b16 %v3269, %v3265
    %v3306 = vpack.c.b16 %v3270, %v3266
    %v3307 = vpack.c.b16 %v3275, %v3271
    %v3308 = vpack.c.b16 %v3276, %v3272
    %v3309 = vpack.c.b16 %v3277, %v3273
    %v3310 = vpack.c.b16 %v3278, %v3274
    %v3344 = vlaneseq
    %v3345 = vshrl.u32 %v3344, 7
    %v3346 = vsub.s32 0, %v3345
    %v3347 = vrot.slane %v3182, %v3346
    %v3348 = vlaneseq
    %v3349 = vshrl.u32 %v3348, 7
    %v3350 = vsub.s32 1, %v3349
    %v3351 = vrot.slane %v3182, %v3350
    %v3352 = vlaneseq
    %v3353 = vshrl.u32 %v3352, 7
    %v3354 = vsub.s32 2, %v3353
    %v3355 = vrot.slane %v3182, %v3354
    %v3356 = vlaneseq
    %v3357 = vshrl.u32 %v3356, 7
    %v3358 = vsub.s32 3, %v3357
    %v3359 = vrot.slane %v3182, %v3358
    %3364 = vmatprep.subr.bf16.mxu0 %v3308
    %3365 = vmatpush1.bf16.msra.mxu0 %v3307
    %3366 = vmatprep.subr.bf16.mxu0 %v3304
    %3367 = vmatpush1.bf16.msra.mxu0 %v3303
    %3368 = vmatprep.subr.bf16.mxu0 %v3300
    %3369 = vmatpush1.bf16.msra.mxu0 %v3299
    %3370 = vmatprep.subr.bf16.mxu0 %v3296
    %3371 = vmatpush1.bf16.msra.mxu0 %v3295
    %3372 = vmatprep.subr.bf16.mxu0 %v3292
    %3373 = vmatpush1.bf16.msra.mxu0 %v3291
    %3374 = vmatprep.subr.bf16.mxu0 %v3288
    %3375 = vmatpush1.bf16.msra.mxu0 %v3287
    %3376 = vmatprep.subr.bf16.mxu0 %v3284
    %3377 = vmatpush1.bf16.msra.mxu0 %v3283
    %3378 = vmatprep.subr.bf16.mxu0 %v3280
    %3379 = vmatpush1.bf16.msra.mxu0 %v3279
    %3380 = vmatprep.subr.bf16.mxu0 0
    %3381 = vmatpush2.bf16.msra.mxu0 0
    %3382 = vmatprep.subr.bf16.mxu0 0
    %3383 = vmatpush2.bf16.msra.mxu0 0
    %3384 = vmatprep.subr.bf16.mxu0 0
    %3385 = vmatpush2.bf16.msra.mxu0 0
    %3386 = vmatprep.subr.bf16.mxu0 0
    %3387 = vmatpush2.bf16.msra.mxu0 0
    %3388 = vmatprep.subr.bf16.mxu0 0
    %3389 = vmatpush2.bf16.msra.mxu0 0
    %3390 = vmatprep.subr.bf16.mxu0 0
    %3391 = vmatpush2.bf16.msra.mxu0 0
    %3392 = vmatprep.subr.bf16.mxu0 0
    %3393 = vmatpush2.bf16.msra.mxu0 0
    %3394 = vmatprep.subr.bf16.mxu0 0
    %3395 = vmatpush2.bf16.msra.mxu0 0
    %3396 = vmatprep.mubr.bf16.mxu0 0
    %3397 = vmatmul.mubr.bf16.gmra.mxu0 %v3149
    %v3398 = vpop.f32.mrf.mxu0
    %v3399 = vadd.f32 %v3347, %v3398
    %v3400 = vpop.f32.mrf.mxu0
    %v3401 = vadd.f32 %v3351, %v3400
    %v3402 = vpop.f32.mrf.mxu0
    %v3403 = vpop.f32.mrf.mxu0
    %3404 = vdwg.mxu0
    %3405 = vmatprep.subr.bf16.mxu0 %v3310
    %3406 = vmatpush1.bf16.msra.mxu0 %v3309
    %3407 = vmatprep.subr.bf16.mxu0 %v3306
    %3408 = vmatpush1.bf16.msra.mxu0 %v3305
    %3409 = vmatprep.subr.bf16.mxu0 %v3302
    %3410 = vmatpush1.bf16.msra.mxu0 %v3301
    %3411 = vmatprep.subr.bf16.mxu0 %v3298
    %3412 = vmatpush1.bf16.msra.mxu0 %v3297
    %3413 = vmatprep.subr.bf16.mxu0 %v3294
    %3414 = vmatpush1.bf16.msra.mxu0 %v3293
    %3415 = vmatprep.subr.bf16.mxu0 %v3290
    %3416 = vmatpush1.bf16.msra.mxu0 %v3289
    %3417 = vmatprep.subr.bf16.mxu0 %v3286
    %3418 = vmatpush1.bf16.msra.mxu0 %v3285
    %3419 = vmatprep.subr.bf16.mxu0 %v3282
    %3420 = vmatpush1.bf16.msra.mxu0 %v3281
    %3421 = vmatprep.subr.bf16.mxu0 0
    %3422 = vmatpush2.bf16.msra.mxu0 0
    %3423 = vmatprep.subr.bf16.mxu0 0
    %3424 = vmatpush2.bf16.msra.mxu0 0
    %3425 = vmatprep.subr.bf16.mxu0 0
    %3426 = vmatpush2.bf16.msra.mxu0 0
    %3427 = vmatprep.subr.bf16.mxu0 0
    %3428 = vmatpush2.bf16.msra.mxu0 0
    %3429 = vmatprep.subr.bf16.mxu0 0
    %3430 = vmatpush2.bf16.msra.mxu0 0
    %3431 = vmatprep.subr.bf16.mxu0 0
    %3432 = vmatpush2.bf16.msra.mxu0 0
    %3433 = vmatprep.subr.bf16.mxu0 0
    %3434 = vmatpush2.bf16.msra.mxu0 0
    %3435 = vmatprep.subr.bf16.mxu0 0
    %3436 = vmatpush2.bf16.msra.mxu0 0
    %3437 = vmatprep.mubr.bf16.mxu0 0
    %3438 = vmatmul.mubr.bf16.gmra.mxu0 %v3149
    %v3439 = vpop.f32.mrf.mxu0
    %v3440 = vadd.f32 %v3355, %v3439
    %v3441 = vpop.f32.mrf.mxu0
    %v3442 = vadd.f32 %v3359, %v3441
    %v3443 = vpop.f32.mrf.mxu0
    %v3444 = vpop.f32.mrf.mxu0
    %3445 = vdwg.mxu0
    %v3446 = vxor.u32 %v3399, 2147483648
    %v3447 = vmul.f32 %v3446, 1.442695
    %v3448 = vpow.pop %v3447
    %v3449 = vadd.f32 %v3448, 1.0
    %v3450 = vrcp.pop %v3449
    %v3451 = vmul.f32 1.0, %v3450
    %v3452 = vxor.u32 %v3401, 2147483648
    %v3453 = vmul.f32 %v3452, 1.442695
    %v3454 = vpow.pop %v3453
    %v3455 = vadd.f32 %v3454, 1.0
    %v3456 = vrcp.pop %v3455
    %v3457 = vmul.f32 1.0, %v3456
    %v3458 = vtanh.pop %v3440
    %v3459 = vxor.u32 %v3442, 2147483648
    %v3460 = vmul.f32 %v3459, 1.442695
    %v3461 = vpow.pop %v3460
    %v3462 = vadd.f32 %v3461, 1.0
    %v3463 = vrcp.pop %v3462
    %v3464 = vmul.f32 1.0, %v3463
    %v3465 = vmul.f32 %v3457, %v3148
    %v3466 = vmul.f32 %v3451, %v3458
    %v3467 = vadd.f32 %v3465, %v3466
    %v3468 = vtanh.pop %v3467
    %v3469 = vmul.f32 %v3464, %v3468
    %3470 = vst [vmem:[#allocation2] sm:$0x1] %v3469
    %3471 = vst [vmem:[#allocation3] sm:$0x1] %v3467
    %v3472 = vld [vmem:[#allocation4] sm:$0x1]
    %v3473 = vadd.f32 %v3469, %v3472
    %v3474 = vld [vmem:[#allocation5] sm:$0x1]
    %v3475 = vpack.c.bf16 %v3473, %v3473
    %v3476 = vld [vmem:[#allocation12] sm:$0xff]
    %v3477 = vld [vmem:[#allocation12 + $0x8] sm:$0xff]
    %v3478 = vld [vmem:[#allocation12 + $0x10] sm:$0xff]
    %v3479 = vld [vmem:[#allocation12 + $0x18] sm:$0xff]
    %v3480 = vld [vmem:[#allocation12 + $0x20] sm:$0xff]
    %v3481 = vld [vmem:[#allocation12 + $0x28] sm:$0xff]
    %v3482 = vld [vmem:[#allocation12 + $0x30] sm:$0xff]
    %v3483 = vld [vmem:[#allocation12 + $0x38] sm:$0xff]
    %v3484 = vld [vmem:[#allocation12 + $0x40] sm:$0xff]
    %v3485 = vld [vmem:[#allocation12 + $0x48] sm:$0xff]
    %v3486 = vld [vmem:[#allocation12 + $0x50] sm:$0xff]
    %v3487 = vld [vmem:[#allocation12 + $0x58] sm:$0xff]
    %v3488 = vld [vmem:[#allocation12 + $0x60] sm:$0xff]
    %v3489 = vld [vmem:[#allocation12 + $0x68] sm:$0xff]
    %v3490 = vld [vmem:[#allocation12 + $0x70] sm:$0xff]
    %v3491 = vld [vmem:[#allocation12 + $0x78] sm:$0xff]
    %v3492 = vld [vmem:[#allocation12 + $0x80] sm:$0xff]
    %v3493 = vld [vmem:[#allocation12 + $0x88] sm:$0xff]
    %v3494 = vld [vmem:[#allocation12 + $0x90] sm:$0xff]
    %v3495 = vld [vmem:[#allocation12 + $0x98] sm:$0xff]
    %v3496 = vld [vmem:[#allocation12 + $0xa0] sm:$0xff]
    %v3497 = vld [vmem:[#allocation12 + $0xa8] sm:$0xff]
    %v3498 = vld [vmem:[#allocation12 + $0xb0] sm:$0xff]
    %v3499 = vld [vmem:[#allocation12 + $0xb8] sm:$0xff]
    %v3500 = vld [vmem:[#allocation12 + $0xc0] sm:$0xff]
    %v3501 = vld [vmem:[#allocation12 + $0xc8] sm:$0xff]
    %v3502 = vld [vmem:[#allocation12 + $0xd0] sm:$0xff]
    %v3503 = vld [vmem:[#allocation12 + $0xd8] sm:$0xff]
    %v3504 = vld [vmem:[#allocation12 + $0xe0] sm:$0xff]
    %v3505 = vld [vmem:[#allocation12 + $0xe8] sm:$0xff]
    %v3506 = vld [vmem:[#allocation12 + $0xf0] sm:$0xff]
    %v3507 = vld [vmem:[#allocation12 + $0xf8] sm:$0xff]
    %v3508 = vld [vmem:[%s4] sm:$0xf]
    %v3541 = vunpack.c.l.b16 %v3476
    %v3542 = vunpack.c.h.b16 %v3476
    %v3543 = vunpack.c.l.b16 %v3477
    %v3544 = vunpack.c.h.b16 %v3477
    %v3545 = vunpack.c.l.b16 %v3478
    %v3546 = vunpack.c.h.b16 %v3478
    %v3547 = vunpack.c.l.b16 %v3479
    %v3548 = vunpack.c.h.b16 %v3479
    %v3549 = vunpack.c.l.b16 %v3480
    %v3550 = vunpack.c.h.b16 %v3480
    %v3551 = vunpack.c.l.b16 %v3481
    %v3552 = vunpack.c.h.b16 %v3481
    %v3553 = vunpack.c.l.b16 %v3482
    %v3554 = vunpack.c.h.b16 %v3482
    %v3555 = vunpack.c.l.b16 %v3483
    %v3556 = vunpack.c.h.b16 %v3483
    %v3557 = vunpack.c.l.b16 %v3484
    %v3558 = vunpack.c.h.b16 %v3484
    %v3559 = vunpack.c.l.b16 %v3485
    %v3560 = vunpack.c.h.b16 %v3485
    %v3561 = vunpack.c.l.b16 %v3486
    %v3562 = vunpack.c.h.b16 %v3486
    %v3563 = vunpack.c.l.b16 %v3487
    %v3564 = vunpack.c.h.b16 %v3487
    %v3565 = vunpack.c.l.b16 %v3488
    %v3566 = vunpack.c.h.b16 %v3488
    %v3567 = vunpack.c.l.b16 %v3489
    %v3568 = vunpack.c.h.b16 %v3489
    %v3569 = vunpack.c.l.b16 %v3490
    %v3570 = vunpack.c.h.b16 %v3490
    %v3571 = vunpack.c.l.b16 %v3491
    %v3572 = vunpack.c.h.b16 %v3491
    %v3573 = vunpack.c.l.b16 %v3492
    %v3574 = vunpack.c.h.b16 %v3492
    %v3575 = vunpack.c.l.b16 %v3493
    %v3576 = vunpack.c.h.b16 %v3493
    %v3577 = vunpack.c.l.b16 %v3494
    %v3578 = vunpack.c.h.b16 %v3494
    %v3579 = vunpack.c.l.b16 %v3495
    %v3580 = vunpack.c.h.b16 %v3495
    %v3581 = vunpack.c.l.b16 %v3496
    %v3582 = vunpack.c.h.b16 %v3496
    %v3583 = vunpack.c.l.b16 %v3497
    %v3584 = vunpack.c.h.b16 %v3497
    %v3585 = vunpack.c.l.b16 %v3498
    %v3586 = vunpack.c.h.b16 %v3498
    %v3587 = vunpack.c.l.b16 %v3499
    %v3588 = vunpack.c.h.b16 %v3499
    %v3589 = vunpack.c.l.b16 %v3500
    %v3590 = vunpack.c.h.b16 %v3500
    %v3591 = vunpack.c.l.b16 %v3501
    %v3592 = vunpack.c.h.b16 %v3501
    %v3593 = vunpack.c.l.b16 %v3502
    %v3594 = vunpack.c.h.b16 %v3502
    %v3595 = vunpack.c.l.b16 %v3503
    %v3596 = vunpack.c.h.b16 %v3503
    %v3597 = vunpack.c.l.b16 %v3504
    %v3598 = vunpack.c.h.b16 %v3504
    %v3599 = vunpack.c.l.b16 %v3505
    %v3600 = vunpack.c.h.b16 %v3505
    %v3601 = vunpack.c.l.b16 %v3506
    %v3602 = vunpack.c.h.b16 %v3506
    %v3603 = vunpack.c.l.b16 %v3507
    %v3604 = vunpack.c.h.b16 %v3507
    %v3605 = vpack.c.b16 %v3545, %v3541
    %v3606 = vpack.c.b16 %v3546, %v3542
    %v3607 = vpack.c.b16 %v3547, %v3543
    %v3608 = vpack.c.b16 %v3548, %v3544
    %v3609 = vpack.c.b16 %v3553, %v3549
    %v3610 = vpack.c.b16 %v3554, %v3550
    %v3611 = vpack.c.b16 %v3555, %v3551
    %v3612 = vpack.c.b16 %v3556, %v3552
    %v3613 = vpack.c.b16 %v3561, %v3557
    %v3614 = vpack.c.b16 %v3562, %v3558
    %v3615 = vpack.c.b16 %v3563, %v3559
    %v3616 = vpack.c.b16 %v3564, %v3560
    %v3617 = vpack.c.b16 %v3569, %v3565
    %v3618 = vpack.c.b16 %v3570, %v3566
    %v3619 = vpack.c.b16 %v3571, %v3567
    %v3620 = vpack.c.b16 %v3572, %v3568
    %v3621 = vpack.c.b16 %v3577, %v3573
    %v3622 = vpack.c.b16 %v3578, %v3574
    %v3623 = vpack.c.b16 %v3579, %v3575
    %v3624 = vpack.c.b16 %v3580, %v3576
    %v3625 = vpack.c.b16 %v3585, %v3581
    %v3626 = vpack.c.b16 %v3586, %v3582
    %v3627 = vpack.c.b16 %v3587, %v3583
    %v3628 = vpack.c.b16 %v3588, %v3584
    %v3629 = vpack.c.b16 %v3593, %v3589
    %v3630 = vpack.c.b16 %v3594, %v3590
    %v3631 = vpack.c.b16 %v3595, %v3591
    %v3632 = vpack.c.b16 %v3596, %v3592
    %v3633 = vpack.c.b16 %v3601, %v3597
    %v3634 = vpack.c.b16 %v3602, %v3598
    %v3635 = vpack.c.b16 %v3603, %v3599
    %v3636 = vpack.c.b16 %v3604, %v3600
    %v3670 = vlaneseq
    %v3671 = vshrl.u32 %v3670, 7
    %v3672 = vsub.s32 0, %v3671
    %v3673 = vrot.slane %v3508, %v3672
    %v3674 = vlaneseq
    %v3675 = vshrl.u32 %v3674, 7
    %v3676 = vsub.s32 1, %v3675
    %v3677 = vrot.slane %v3508, %v3676
    %v3678 = vlaneseq
    %v3679 = vshrl.u32 %v3678, 7
    %v3680 = vsub.s32 2, %v3679
    %v3681 = vrot.slane %v3508, %v3680
    %v3682 = vlaneseq
    %v3683 = vshrl.u32 %v3682, 7
    %v3684 = vsub.s32 3, %v3683
    %v3685 = vrot.slane %v3508, %v3684
    %3690 = vmatprep.subr.bf16.mxu0 %v3634
    %3691 = vmatpush1.bf16.msra.mxu0 %v3633
    %3692 = vmatprep.subr.bf16.mxu0 %v3630
    %3693 = vmatpush1.bf16.msra.mxu0 %v3629
    %3694 = vmatprep.subr.bf16.mxu0 %v3626
    %3695 = vmatpush1.bf16.msra.mxu0 %v3625
    %3696 = vmatprep.subr.bf16.mxu0 %v3622
    %3697 = vmatpush1.bf16.msra.mxu0 %v3621
    %3698 = vmatprep.subr.bf16.mxu0 %v3618
    %3699 = vmatpush1.bf16.msra.mxu0 %v3617
    %3700 = vmatprep.subr.bf16.mxu0 %v3614
    %3701 = vmatpush1.bf16.msra.mxu0 %v3613
    %3702 = vmatprep.subr.bf16.mxu0 %v3610
    %3703 = vmatpush1.bf16.msra.mxu0 %v3609
    %3704 = vmatprep.subr.bf16.mxu0 %v3606
    %3705 = vmatpush1.bf16.msra.mxu0 %v3605
    %3706 = vmatprep.subr.bf16.mxu0 0
    %3707 = vmatpush2.bf16.msra.mxu0 0
    %3708 = vmatprep.subr.bf16.mxu0 0
    %3709 = vmatpush2.bf16.msra.mxu0 0
    %3710 = vmatprep.subr.bf16.mxu0 0
    %3711 = vmatpush2.bf16.msra.mxu0 0
    %3712 = vmatprep.subr.bf16.mxu0 0
    %3713 = vmatpush2.bf16.msra.mxu0 0
    %3714 = vmatprep.subr.bf16.mxu0 0
    %3715 = vmatpush2.bf16.msra.mxu0 0
    %3716 = vmatprep.subr.bf16.mxu0 0
    %3717 = vmatpush2.bf16.msra.mxu0 0
    %3718 = vmatprep.subr.bf16.mxu0 0
    %3719 = vmatpush2.bf16.msra.mxu0 0
    %3720 = vmatprep.subr.bf16.mxu0 0
    %3721 = vmatpush2.bf16.msra.mxu0 0
    %3722 = vmatprep.mubr.bf16.mxu0 0
    %3723 = vmatmul.mubr.bf16.gmra.mxu0 %v3475
    %v3724 = vpop.f32.mrf.mxu0
    %v3725 = vadd.f32 %v3673, %v3724
    %v3726 = vpop.f32.mrf.mxu0
    %v3727 = vadd.f32 %v3677, %v3726
    %v3728 = vpop.f32.mrf.mxu0
    %v3729 = vpop.f32.mrf.mxu0
    %3730 = vdwg.mxu0
    %3731 = vmatprep.subr.bf16.mxu0 %v3636
    %3732 = vmatpush1.bf16.msra.mxu0 %v3635
    %3733 = vmatprep.subr.bf16.mxu0 %v3632
    %3734 = vmatpush1.bf16.msra.mxu0 %v3631
    %3735 = vmatprep.subr.bf16.mxu0 %v3628
    %3736 = vmatpush1.bf16.msra.mxu0 %v3627
    %3737 = vmatprep.subr.bf16.mxu0 %v3624
    %3738 = vmatpush1.bf16.msra.mxu0 %v3623
    %3739 = vmatprep.subr.bf16.mxu0 %v3620
    %3740 = vmatpush1.bf16.msra.mxu0 %v3619
    %3741 = vmatprep.subr.bf16.mxu0 %v3616
    %3742 = vmatpush1.bf16.msra.mxu0 %v3615
    %3743 = vmatprep.subr.bf16.mxu0 %v3612
    %3744 = vmatpush1.bf16.msra.mxu0 %v3611
    %3745 = vmatprep.subr.bf16.mxu0 %v3608
    %3746 = vmatpush1.bf16.msra.mxu0 %v3607
    %3747 = vmatprep.subr.bf16.mxu0 0
    %3748 = vmatpush2.bf16.msra.mxu0 0
    %3749 = vmatprep.subr.bf16.mxu0 0
    %3750 = vmatpush2.bf16.msra.mxu0 0
    %3751 = vmatprep.subr.bf16.mxu0 0
    %3752 = vmatpush2.bf16.msra.mxu0 0
    %3753 = vmatprep.subr.bf16.mxu0 0
    %3754 = vmatpush2.bf16.msra.mxu0 0
    %3755 = vmatprep.subr.bf16.mxu0 0
    %3756 = vmatpush2.bf16.msra.mxu0 0
    %3757 = vmatprep.subr.bf16.mxu0 0
    %3758 = vmatpush2.bf16.msra.mxu0 0
    %3759 = vmatprep.subr.bf16.mxu0 0
    %3760 = vmatpush2.bf16.msra.mxu0 0
    %3761 = vmatprep.subr.bf16.mxu0 0
    %3762 = vmatpush2.bf16.msra.mxu0 0
    %3763 = vmatprep.mubr.bf16.mxu0 0
    %3764 = vmatmul.mubr.bf16.gmra.mxu0 %v3475
    %v3765 = vpop.f32.mrf.mxu0
    %v3766 = vadd.f32 %v3681, %v3765
    %v3767 = vpop.f32.mrf.mxu0
    %v3768 = vadd.f32 %v3685, %v3767
    %v3769 = vpop.f32.mrf.mxu0
    %v3770 = vpop.f32.mrf.mxu0
    %3771 = vdwg.mxu0
    %v3772 = vxor.u32 %v3725, 2147483648
    %v3773 = vmul.f32 %v3772, 1.442695
    %v3774 = vpow.pop %v3773
    %v3775 = vadd.f32 %v3774, 1.0
    %v3776 = vrcp.pop %v3775
    %v3777 = vmul.f32 1.0, %v3776
    %v3778 = vxor.u32 %v3727, 2147483648
    %v3779 = vmul.f32 %v3778, 1.442695
    %v3780 = vpow.pop %v3779
    %v3781 = vadd.f32 %v3780, 1.0
    %v3782 = vrcp.pop %v3781
    %v3783 = vmul.f32 1.0, %v3782
    %v3784 = vtanh.pop %v3766
    %v3785 = vxor.u32 %v3768, 2147483648
    %v3786 = vmul.f32 %v3785, 1.442695
    %v3787 = vpow.pop %v3786
    %v3788 = vadd.f32 %v3787, 1.0
    %v3789 = vrcp.pop %v3788
    %v3790 = vmul.f32 1.0, %v3789
    %v3791 = vmul.f32 %v3783, %v3474
    %v3792 = vmul.f32 %v3777, %v3784
    %v3793 = vadd.f32 %v3791, %v3792
    %v3794 = vtanh.pop %v3793
    %v3795 = vmul.f32 %v3790, %v3794
    %3796 = vst [vmem:[#allocation4] sm:$0x1] %v3795
    %3797 = vst [vmem:[#allocation5] sm:$0x1] %v3793
    %v3798 = vpack.c.bf16 %v3795, %v3795
    %v3799 = vld [vmem:[#allocation14] sm:$0xf]
    %v3800 = vld [vmem:[#allocation14 + $0x4] sm:$0xf]
    %v3801 = vld [vmem:[#allocation14 + $0x8] sm:$0xf]
    %v3802 = vld [vmem:[#allocation14 + $0xc] sm:$0xf]
    %v3803 = vld [vmem:[#allocation14 + $0x10] sm:$0xf]
    %v3804 = vld [vmem:[#allocation14 + $0x14] sm:$0xf]
    %v3805 = vld [vmem:[#allocation14 + $0x18] sm:$0xf]
    %v3806 = vld [vmem:[#allocation14 + $0x1c] sm:$0xf]
    %v3807 = vld [vmem:[#allocation14 + $0x20] sm:$0xf]
    %v3808 = vld [vmem:[#allocation14 + $0x24] sm:$0xf]
    %v3809 = vld [vmem:[#allocation14 + $0x28] sm:$0xf]
    %v3810 = vld [vmem:[#allocation14 + $0x2c] sm:$0xf]
    %v3811 = vld [vmem:[#allocation14 + $0x30] sm:$0xf]
    %v3812 = vld [vmem:[#allocation14 + $0x34] sm:$0xf]
    %v3813 = vld [vmem:[#allocation14 + $0x38] sm:$0xf]
    %v3814 = vld [vmem:[#allocation14 + $0x3c] sm:$0xf]
    %v3815 = vld [vmem:[%s6] sm:$0x1]
    %v3832 = vunpack.c.l.b16 %v3799
    %v3833 = vunpack.c.l.b16 %v3800
    %v3834 = vunpack.c.l.b16 %v3801
    %v3835 = vunpack.c.l.b16 %v3802
    %v3836 = vunpack.c.l.b16 %v3803
    %v3837 = vunpack.c.l.b16 %v3804
    %v3838 = vunpack.c.l.b16 %v3805
    %v3839 = vunpack.c.l.b16 %v3806
    %v3840 = vunpack.c.l.b16 %v3807
    %v3841 = vunpack.c.l.b16 %v3808
    %v3842 = vunpack.c.l.b16 %v3809
    %v3843 = vunpack.c.l.b16 %v3810
    %v3844 = vunpack.c.l.b16 %v3811
    %v3845 = vunpack.c.l.b16 %v3812
    %v3846 = vunpack.c.l.b16 %v3813
    %v3847 = vunpack.c.l.b16 %v3814
    %v3848 = vpack.c.b16 %v3833, %v3832
    %v3849 = vpack.c.b16 %v3835, %v3834
    %v3850 = vpack.c.b16 %v3837, %v3836
    %v3851 = vpack.c.b16 %v3839, %v3838
    %v3852 = vpack.c.b16 %v3841, %v3840
    %v3853 = vpack.c.b16 %v3843, %v3842
    %v3854 = vpack.c.b16 %v3845, %v3844
    %v3855 = vpack.c.b16 %v3847, %v3846
    %3864 = vmatprep.subr.bf16.mxu0 0
    %3865 = vmatpush1.bf16.msra.mxu0 %v3855
    %3866 = vmatprep.subr.bf16.mxu0 0
    %3867 = vmatpush1.bf16.msra.mxu0 %v3854
    %3868 = vmatprep.subr.bf16.mxu0 0
    %3869 = vmatpush1.bf16.msra.mxu0 %v3853
    %3870 = vmatprep.subr.bf16.mxu0 0
    %3871 = vmatpush1.bf16.msra.mxu0 %v3852
    %3872 = vmatprep.subr.bf16.mxu0 0
    %3873 = vmatpush1.bf16.msra.mxu0 %v3851
    %3874 = vmatprep.subr.bf16.mxu0 0
    %3875 = vmatpush1.bf16.msra.mxu0 %v3850
    %3876 = vmatprep.subr.bf16.mxu0 0
    %3877 = vmatpush1.bf16.msra.mxu0 %v3849
    %3878 = vmatprep.subr.bf16.mxu0 0
    %3879 = vmatpush1.bf16.msra.mxu0 %v3848
    %3880 = vmatprep.subr.bf16.mxu0 0
    %3881 = vmatpush2.bf16.msra.mxu0 0
    %3882 = vmatprep.subr.bf16.mxu0 0
    %3883 = vmatpush2.bf16.msra.mxu0 0
    %3884 = vmatprep.subr.bf16.mxu0 0
    %3885 = vmatpush2.bf16.msra.mxu0 0
    %3886 = vmatprep.subr.bf16.mxu0 0
    %3887 = vmatpush2.bf16.msra.mxu0 0
    %3888 = vmatprep.subr.bf16.mxu0 0
    %3889 = vmatpush2.bf16.msra.mxu0 0
    %3890 = vmatprep.subr.bf16.mxu0 0
    %3891 = vmatpush2.bf16.msra.mxu0 0
    %3892 = vmatprep.subr.bf16.mxu0 0
    %3893 = vmatpush2.bf16.msra.mxu0 0
    %3894 = vmatprep.subr.bf16.mxu0 0
    %3895 = vmatpush2.bf16.msra.mxu0 0
    %3896 = vmatprep.mubr.bf16.mxu0 0
    %3897 = vmatmul.mubr.bf16.gmra.mxu0 %v3798
    %v3898 = vpop.f32.mrf.mxu0
    %v3899 = vadd.f32 %v3815, %v3898
    %v3900 = vpop.f32.mrf.mxu0
    %v3901 = vpop.f32.mrf.mxu0
    %v3902 = vpop.f32.mrf.mxu0
    %3903 = vdwg.mxu0
    %s3904 = scalar_lea.vmem [#allocation15], 4
    %3905 = vst [vmem:[%s3904] sm:$0x1] %v3899
    %s3906 = scalar_lea.vmem [#allocation6], 5
    %v3907 = vld [vmem:[%s3906] sm:$0x1]
    %v3908 = vld [vmem:[#allocation2] sm:$0x1]
    %v3909 = vadd.f32 %v3908, %v3907
    %v3910 = vld [vmem:[#allocation3] sm:$0x1]
    %v3911 = vpack.c.bf16 %v3909, %v3909
    %v3912 = vld [vmem:[#allocation9] sm:$0xff]
    %v3913 = vld [vmem:[#allocation9 + $0x8] sm:$0xff]
    %v3914 = vld [vmem:[#allocation9 + $0x10] sm:$0xff]
    %v3915 = vld [vmem:[#allocation9 + $0x18] sm:$0xff]
    %v3916 = vld [vmem:[#allocation9 + $0x20] sm:$0xff]
    %v3917 = vld [vmem:[#allocation9 + $0x28] sm:$0xff]
    %v3918 = vld [vmem:[#allocation9 + $0x30] sm:$0xff]
    %v3919 = vld [vmem:[#allocation9 + $0x38] sm:$0xff]
    %v3920 = vld [vmem:[#allocation9 + $0x40] sm:$0xff]
    %v3921 = vld [vmem:[#allocation9 + $0x48] sm:$0xff]
    %v3922 = vld [vmem:[#allocation9 + $0x50] sm:$0xff]
    %v3923 = vld [vmem:[#allocation9 + $0x58] sm:$0xff]
    %v3924 = vld [vmem:[#allocation9 + $0x60] sm:$0xff]
    %v3925 = vld [vmem:[#allocation9 + $0x68] sm:$0xff]
    %v3926 = vld [vmem:[#allocation9 + $0x70] sm:$0xff]
    %v3927 = vld [vmem:[#allocation9 + $0x78] sm:$0xff]
    %v3928 = vld [vmem:[#allocation9 + $0x80] sm:$0xff]
    %v3929 = vld [vmem:[#allocation9 + $0x88] sm:$0xff]
    %v3930 = vld [vmem:[#allocation9 + $0x90] sm:$0xff]
    %v3931 = vld [vmem:[#allocation9 + $0x98] sm:$0xff]
    %v3932 = vld [vmem:[#allocation9 + $0xa0] sm:$0xff]
    %v3933 = vld [vmem:[#allocation9 + $0xa8] sm:$0xff]
    %v3934 = vld [vmem:[#allocation9 + $0xb0] sm:$0xff]
    %v3935 = vld [vmem:[#allocation9 + $0xb8] sm:$0xff]
    %v3936 = vld [vmem:[#allocation9 + $0xc0] sm:$0xff]
    %v3937 = vld [vmem:[#allocation9 + $0xc8] sm:$0xff]
    %v3938 = vld [vmem:[#allocation9 + $0xd0] sm:$0xff]
    %v3939 = vld [vmem:[#allocation9 + $0xd8] sm:$0xff]
    %v3940 = vld [vmem:[#allocation9 + $0xe0] sm:$0xff]
    %v3941 = vld [vmem:[#allocation9 + $0xe8] sm:$0xff]
    %v3942 = vld [vmem:[#allocation9 + $0xf0] sm:$0xff]
    %v3943 = vld [vmem:[#allocation9 + $0xf8] sm:$0xff]
    %v3944 = vld [vmem:[#allocation11] sm:$0xf]
    %v3977 = vunpack.c.l.b16 %v3912
    %v3978 = vunpack.c.h.b16 %v3912
    %v3979 = vunpack.c.l.b16 %v3913
    %v3980 = vunpack.c.h.b16 %v3913
    %v3981 = vunpack.c.l.b16 %v3914
    %v3982 = vunpack.c.h.b16 %v3914
    %v3983 = vunpack.c.l.b16 %v3915
    %v3984 = vunpack.c.h.b16 %v3915
    %v3985 = vunpack.c.l.b16 %v3916
    %v3986 = vunpack.c.h.b16 %v3916
    %v3987 = vunpack.c.l.b16 %v3917
    %v3988 = vunpack.c.h.b16 %v3917
    %v3989 = vunpack.c.l.b16 %v3918
    %v3990 = vunpack.c.h.b16 %v3918
    %v3991 = vunpack.c.l.b16 %v3919
    %v3992 = vunpack.c.h.b16 %v3919
    %v3993 = vunpack.c.l.b16 %v3920
    %v3994 = vunpack.c.h.b16 %v3920
    %v3995 = vunpack.c.l.b16 %v3921
    %v3996 = vunpack.c.h.b16 %v3921
    %v3997 = vunpack.c.l.b16 %v3922
    %v3998 = vunpack.c.h.b16 %v3922
    %v3999 = vunpack.c.l.b16 %v3923
    %v4000 = vunpack.c.h.b16 %v3923
    %v4001 = vunpack.c.l.b16 %v3924
    %v4002 = vunpack.c.h.b16 %v3924
    %v4003 = vunpack.c.l.b16 %v3925
    %v4004 = vunpack.c.h.b16 %v3925
    %v4005 = vunpack.c.l.b16 %v3926
    %v4006 = vunpack.c.h.b16 %v3926
    %v4007 = vunpack.c.l.b16 %v3927
    %v4008 = vunpack.c.h.b16 %v3927
    %v4009 = vunpack.c.l.b16 %v3928
    %v4010 = vunpack.c.h.b16 %v3928
    %v4011 = vunpack.c.l.b16 %v3929
    %v4012 = vunpack.c.h.b16 %v3929
    %v4013 = vunpack.c.l.b16 %v3930
    %v4014 = vunpack.c.h.b16 %v3930
    %v4015 = vunpack.c.l.b16 %v3931
    %v4016 = vunpack.c.h.b16 %v3931
    %v4017 = vunpack.c.l.b16 %v3932
    %v4018 = vunpack.c.h.b16 %v3932
    %v4019 = vunpack.c.l.b16 %v3933
    %v4020 = vunpack.c.h.b16 %v3933
    %v4021 = vunpack.c.l.b16 %v3934
    %v4022 = vunpack.c.h.b16 %v3934
    %v4023 = vunpack.c.l.b16 %v3935
    %v4024 = vunpack.c.h.b16 %v3935
    %v4025 = vunpack.c.l.b16 %v3936
    %v4026 = vunpack.c.h.b16 %v3936
    %v4027 = vunpack.c.l.b16 %v3937
    %v4028 = vunpack.c.h.b16 %v3937
    %v4029 = vunpack.c.l.b16 %v3938
    %v4030 = vunpack.c.h.b16 %v3938
    %v4031 = vunpack.c.l.b16 %v3939
    %v4032 = vunpack.c.h.b16 %v3939
    %v4033 = vunpack.c.l.b16 %v3940
    %v4034 = vunpack.c.h.b16 %v3940
    %v4035 = vunpack.c.l.b16 %v3941
    %v4036 = vunpack.c.h.b16 %v3941
    %v4037 = vunpack.c.l.b16 %v3942
    %v4038 = vunpack.c.h.b16 %v3942
    %v4039 = vunpack.c.l.b16 %v3943
    %v4040 = vunpack.c.h.b16 %v3943
    %v4041 = vpack.c.b16 %v3981, %v3977
    %v4042 = vpack.c.b16 %v3982, %v3978
    %v4043 = vpack.c.b16 %v3983, %v3979
    %v4044 = vpack.c.b16 %v3984, %v3980
    %v4045 = vpack.c.b16 %v3989, %v3985
    %v4046 = vpack.c.b16 %v3990, %v3986
    %v4047 = vpack.c.b16 %v3991, %v3987
    %v4048 = vpack.c.b16 %v3992, %v3988
    %v4049 = vpack.c.b16 %v3997, %v3993
    %v4050 = vpack.c.b16 %v3998, %v3994
    %v4051 = vpack.c.b16 %v3999, %v3995
    %v4052 = vpack.c.b16 %v4000, %v3996
    %v4053 = vpack.c.b16 %v4005, %v4001
    %v4054 = vpack.c.b16 %v4006, %v4002
    %v4055 = vpack.c.b16 %v4007, %v4003
    %v4056 = vpack.c.b16 %v4008, %v4004
    %v4057 = vpack.c.b16 %v4013, %v4009
    %v4058 = vpack.c.b16 %v4014, %v4010
    %v4059 = vpack.c.b16 %v4015, %v4011
    %v4060 = vpack.c.b16 %v4016, %v4012
    %v4061 = vpack.c.b16 %v4021, %v4017
    %v4062 = vpack.c.b16 %v4022, %v4018
    %v4063 = vpack.c.b16 %v4023, %v4019
    %v4064 = vpack.c.b16 %v4024, %v4020
    %v4065 = vpack.c.b16 %v4029, %v4025
    %v4066 = vpack.c.b16 %v4030, %v4026
    %v4067 = vpack.c.b16 %v4031, %v4027
    %v4068 = vpack.c.b16 %v4032, %v4028
    %v4069 = vpack.c.b16 %v4037, %v4033
    %v4070 = vpack.c.b16 %v4038, %v4034
    %v4071 = vpack.c.b16 %v4039, %v4035
    %v4072 = vpack.c.b16 %v4040, %v4036
    %v4106 = vlaneseq
    %v4107 = vshrl.u32 %v4106, 7
    %v4108 = vsub.s32 0, %v4107
    %v4109 = vrot.slane %v3944, %v4108
    %v4110 = vlaneseq
    %v4111 = vshrl.u32 %v4110, 7
    %v4112 = vsub.s32 1, %v4111
    %v4113 = vrot.slane %v3944, %v4112
    %v4114 = vlaneseq
    %v4115 = vshrl.u32 %v4114, 7
    %v4116 = vsub.s32 2, %v4115
    %v4117 = vrot.slane %v3944, %v4116
    %v4118 = vlaneseq
    %v4119 = vshrl.u32 %v4118, 7
    %v4120 = vsub.s32 3, %v4119
    %v4121 = vrot.slane %v3944, %v4120
    %4126 = vmatprep.subr.bf16.mxu0 %v4070
    %4127 = vmatpush1.bf16.msra.mxu0 %v4069
    %4128 = vmatprep.subr.bf16.mxu0 %v4066
    %4129 = vmatpush1.bf16.msra.mxu0 %v4065
    %4130 = vmatprep.subr.bf16.mxu0 %v4062
    %4131 = vmatpush1.bf16.msra.mxu0 %v4061
    %4132 = vmatprep.subr.bf16.mxu0 %v4058
    %4133 = vmatpush1.bf16.msra.mxu0 %v4057
    %4134 = vmatprep.subr.bf16.mxu0 %v4054
    %4135 = vmatpush1.bf16.msra.mxu0 %v4053
    %4136 = vmatprep.subr.bf16.mxu0 %v4050
    %4137 = vmatpush1.bf16.msra.mxu0 %v4049
    %4138 = vmatprep.subr.bf16.mxu0 %v4046
    %4139 = vmatpush1.bf16.msra.mxu0 %v4045
    %4140 = vmatprep.subr.bf16.mxu0 %v4042
    %4141 = vmatpush1.bf16.msra.mxu0 %v4041
    %4142 = vmatprep.subr.bf16.mxu0 0
    %4143 = vmatpush2.bf16.msra.mxu0 0
    %4144 = vmatprep.subr.bf16.mxu0 0
    %4145 = vmatpush2.bf16.msra.mxu0 0
    %4146 = vmatprep.subr.bf16.mxu0 0
    %4147 = vmatpush2.bf16.msra.mxu0 0
    %4148 = vmatprep.subr.bf16.mxu0 0
    %4149 = vmatpush2.bf16.msra.mxu0 0
    %4150 = vmatprep.subr.bf16.mxu0 0
    %4151 = vmatpush2.bf16.msra.mxu0 0
    %4152 = vmatprep.subr.bf16.mxu0 0
    %4153 = vmatpush2.bf16.msra.mxu0 0
    %4154 = vmatprep.subr.bf16.mxu0 0
    %4155 = vmatpush2.bf16.msra.mxu0 0
    %4156 = vmatprep.subr.bf16.mxu0 0
    %4157 = vmatpush2.bf16.msra.mxu0 0
    %4158 = vmatprep.mubr.bf16.mxu0 0
    %4159 = vmatmul.mubr.bf16.gmra.mxu0 %v3911
    %v4160 = vpop.f32.mrf.mxu0
    %v4161 = vadd.f32 %v4109, %v4160
    %v4162 = vpop.f32.mrf.mxu0
    %v4163 = vadd.f32 %v4113, %v4162
    %v4164 = vpop.f32.mrf.mxu0
    %v4165 = vpop.f32.mrf.mxu0
    %4166 = vdwg.mxu0
    %4167 = vmatprep.subr.bf16.mxu0 %v4072
    %4168 = vmatpush1.bf16.msra.mxu0 %v4071
    %4169 = vmatprep.subr.bf16.mxu0 %v4068
    %4170 = vmatpush1.bf16.msra.mxu0 %v4067
    %4171 = vmatprep.subr.bf16.mxu0 %v4064
    %4172 = vmatpush1.bf16.msra.mxu0 %v4063
    %4173 = vmatprep.subr.bf16.mxu0 %v4060
    %4174 = vmatpush1.bf16.msra.mxu0 %v4059
    %4175 = vmatprep.subr.bf16.mxu0 %v4056
    %4176 = vmatpush1.bf16.msra.mxu0 %v4055
    %4177 = vmatprep.subr.bf16.mxu0 %v4052
    %4178 = vmatpush1.bf16.msra.mxu0 %v4051
    %4179 = vmatprep.subr.bf16.mxu0 %v4048
    %4180 = vmatpush1.bf16.msra.mxu0 %v4047
    %4181 = vmatprep.subr.bf16.mxu0 %v4044
    %4182 = vmatpush1.bf16.msra.mxu0 %v4043
    %4183 = vmatprep.subr.bf16.mxu0 0
    %4184 = vmatpush2.bf16.msra.mxu0 0
    %4185 = vmatprep.subr.bf16.mxu0 0
    %4186 = vmatpush2.bf16.msra.mxu0 0
    %4187 = vmatprep.subr.bf16.mxu0 0
    %4188 = vmatpush2.bf16.msra.mxu0 0
    %4189 = vmatprep.subr.bf16.mxu0 0
    %4190 = vmatpush2.bf16.msra.mxu0 0
    %4191 = vmatprep.subr.bf16.mxu0 0
    %4192 = vmatpush2.bf16.msra.mxu0 0
    %4193 = vmatprep.subr.bf16.mxu0 0
    %4194 = vmatpush2.bf16.msra.mxu0 0
    %4195 = vmatprep.subr.bf16.mxu0 0
    %4196 = vmatpush2.bf16.msra.mxu0 0
    %4197 = vmatprep.subr.bf16.mxu0 0
    %4198 = vmatpush2.bf16.msra.mxu0 0
    %4199 = vmatprep.mubr.bf16.mxu0 0
    %4200 = vmatmul.mubr.bf16.gmra.mxu0 %v3911
    %v4201 = vpop.f32.mrf.mxu0
    %v4202 = vadd.f32 %v4117, %v4201
    %v4203 = vpop.f32.mrf.mxu0
    %v4204 = vadd.f32 %v4121, %v4203
    %v4205 = vpop.f32.mrf.mxu0
    %v4206 = vpop.f32.mrf.mxu0
    %4207 = vdwg.mxu0
    %v4208 = vxor.u32 %v4161, 2147483648
    %v4209 = vmul.f32 %v4208, 1.442695
    %v4210 = vpow.pop %v4209
    %v4211 = vadd.f32 %v4210, 1.0
    %v4212 = vrcp.pop %v4211
    %v4213 = vmul.f32 1.0, %v4212
    %v4214 = vxor.u32 %v4163, 2147483648
    %v4215 = vmul.f32 %v4214, 1.442695
    %v4216 = vpow.pop %v4215
    %v4217 = vadd.f32 %v4216, 1.0
    %v4218 = vrcp.pop %v4217
    %v4219 = vmul.f32 1.0, %v4218
    %v4220 = vtanh.pop %v4202
    %v4221 = vxor.u32 %v4204, 2147483648
    %v4222 = vmul.f32 %v4221, 1.442695
    %v4223 = vpow.pop %v4222
    %v4224 = vadd.f32 %v4223, 1.0
    %v4225 = vrcp.pop %v4224
    %v4226 = vmul.f32 1.0, %v4225
    %v4227 = vmul.f32 %v4219, %v3910
    %v4228 = vmul.f32 %v4213, %v4220
    %v4229 = vadd.f32 %v4227, %v4228
    %v4230 = vtanh.pop %v4229
    %v4231 = vmul.f32 %v4226, %v4230
    %4232 = vst [vmem:[#allocation2] sm:$0x1] %v4231
    %4233 = vst [vmem:[#allocation3] sm:$0x1] %v4229
    %v4234 = vld [vmem:[#allocation4] sm:$0x1]
    %v4235 = vadd.f32 %v4231, %v4234
    %v4236 = vld [vmem:[#allocation5] sm:$0x1]
    %v4237 = vpack.c.bf16 %v4235, %v4235
    %v4238 = vld [vmem:[#allocation12] sm:$0xff]
    %v4239 = vld [vmem:[#allocation12 + $0x8] sm:$0xff]
    %v4240 = vld [vmem:[#allocation12 + $0x10] sm:$0xff]
    %v4241 = vld [vmem:[#allocation12 + $0x18] sm:$0xff]
    %v4242 = vld [vmem:[#allocation12 + $0x20] sm:$0xff]
    %v4243 = vld [vmem:[#allocation12 + $0x28] sm:$0xff]
    %v4244 = vld [vmem:[#allocation12 + $0x30] sm:$0xff]
    %v4245 = vld [vmem:[#allocation12 + $0x38] sm:$0xff]
    %v4246 = vld [vmem:[#allocation12 + $0x40] sm:$0xff]
    %v4247 = vld [vmem:[#allocation12 + $0x48] sm:$0xff]
    %v4248 = vld [vmem:[#allocation12 + $0x50] sm:$0xff]
    %v4249 = vld [vmem:[#allocation12 + $0x58] sm:$0xff]
    %v4250 = vld [vmem:[#allocation12 + $0x60] sm:$0xff]
    %v4251 = vld [vmem:[#allocation12 + $0x68] sm:$0xff]
    %v4252 = vld [vmem:[#allocation12 + $0x70] sm:$0xff]
    %v4253 = vld [vmem:[#allocation12 + $0x78] sm:$0xff]
    %v4254 = vld [vmem:[#allocation12 + $0x80] sm:$0xff]
    %v4255 = vld [vmem:[#allocation12 + $0x88] sm:$0xff]
    %v4256 = vld [vmem:[#allocation12 + $0x90] sm:$0xff]
    %v4257 = vld [vmem:[#allocation12 + $0x98] sm:$0xff]
    %v4258 = vld [vmem:[#allocation12 + $0xa0] sm:$0xff]
    %v4259 = vld [vmem:[#allocation12 + $0xa8] sm:$0xff]
    %v4260 = vld [vmem:[#allocation12 + $0xb0] sm:$0xff]
    %v4261 = vld [vmem:[#allocation12 + $0xb8] sm:$0xff]
    %v4262 = vld [vmem:[#allocation12 + $0xc0] sm:$0xff]
    %v4263 = vld [vmem:[#allocation12 + $0xc8] sm:$0xff]
    %v4264 = vld [vmem:[#allocation12 + $0xd0] sm:$0xff]
    %v4265 = vld [vmem:[#allocation12 + $0xd8] sm:$0xff]
    %v4266 = vld [vmem:[#allocation12 + $0xe0] sm:$0xff]
    %v4267 = vld [vmem:[#allocation12 + $0xe8] sm:$0xff]
    %v4268 = vld [vmem:[#allocation12 + $0xf0] sm:$0xff]
    %v4269 = vld [vmem:[#allocation12 + $0xf8] sm:$0xff]
    %v4270 = vld [vmem:[%s4] sm:$0xf]
    %v4303 = vunpack.c.l.b16 %v4238
    %v4304 = vunpack.c.h.b16 %v4238
    %v4305 = vunpack.c.l.b16 %v4239
    %v4306 = vunpack.c.h.b16 %v4239
    %v4307 = vunpack.c.l.b16 %v4240
    %v4308 = vunpack.c.h.b16 %v4240
    %v4309 = vunpack.c.l.b16 %v4241
    %v4310 = vunpack.c.h.b16 %v4241
    %v4311 = vunpack.c.l.b16 %v4242
    %v4312 = vunpack.c.h.b16 %v4242
    %v4313 = vunpack.c.l.b16 %v4243
    %v4314 = vunpack.c.h.b16 %v4243
    %v4315 = vunpack.c.l.b16 %v4244
    %v4316 = vunpack.c.h.b16 %v4244
    %v4317 = vunpack.c.l.b16 %v4245
    %v4318 = vunpack.c.h.b16 %v4245
    %v4319 = vunpack.c.l.b16 %v4246
    %v4320 = vunpack.c.h.b16 %v4246
    %v4321 = vunpack.c.l.b16 %v4247
    %v4322 = vunpack.c.h.b16 %v4247
    %v4323 = vunpack.c.l.b16 %v4248
    %v4324 = vunpack.c.h.b16 %v4248
    %v4325 = vunpack.c.l.b16 %v4249
    %v4326 = vunpack.c.h.b16 %v4249
    %v4327 = vunpack.c.l.b16 %v4250
    %v4328 = vunpack.c.h.b16 %v4250
    %v4329 = vunpack.c.l.b16 %v4251
    %v4330 = vunpack.c.h.b16 %v4251
    %v4331 = vunpack.c.l.b16 %v4252
    %v4332 = vunpack.c.h.b16 %v4252
    %v4333 = vunpack.c.l.b16 %v4253
    %v4334 = vunpack.c.h.b16 %v4253
    %v4335 = vunpack.c.l.b16 %v4254
    %v4336 = vunpack.c.h.b16 %v4254
    %v4337 = vunpack.c.l.b16 %v4255
    %v4338 = vunpack.c.h.b16 %v4255
    %v4339 = vunpack.c.l.b16 %v4256
    %v4340 = vunpack.c.h.b16 %v4256
    %v4341 = vunpack.c.l.b16 %v4257
    %v4342 = vunpack.c.h.b16 %v4257
    %v4343 = vunpack.c.l.b16 %v4258
    %v4344 = vunpack.c.h.b16 %v4258
    %v4345 = vunpack.c.l.b16 %v4259
    %v4346 = vunpack.c.h.b16 %v4259
    %v4347 = vunpack.c.l.b16 %v4260
    %v4348 = vunpack.c.h.b16 %v4260
    %v4349 = vunpack.c.l.b16 %v4261
    %v4350 = vunpack.c.h.b16 %v4261
    %v4351 = vunpack.c.l.b16 %v4262
    %v4352 = vunpack.c.h.b16 %v4262
    %v4353 = vunpack.c.l.b16 %v4263
    %v4354 = vunpack.c.h.b16 %v4263
    %v4355 = vunpack.c.l.b16 %v4264
    %v4356 = vunpack.c.h.b16 %v4264
    %v4357 = vunpack.c.l.b16 %v4265
    %v4358 = vunpack.c.h.b16 %v4265
    %v4359 = vunpack.c.l.b16 %v4266
    %v4360 = vunpack.c.h.b16 %v4266
    %v4361 = vunpack.c.l.b16 %v4267
    %v4362 = vunpack.c.h.b16 %v4267
    %v4363 = vunpack.c.l.b16 %v4268
    %v4364 = vunpack.c.h.b16 %v4268
    %v4365 = vunpack.c.l.b16 %v4269
    %v4366 = vunpack.c.h.b16 %v4269
    %v4367 = vpack.c.b16 %v4307, %v4303
    %v4368 = vpack.c.b16 %v4308, %v4304
    %v4369 = vpack.c.b16 %v4309, %v4305
    %v4370 = vpack.c.b16 %v4310, %v4306
    %v4371 = vpack.c.b16 %v4315, %v4311
    %v4372 = vpack.c.b16 %v4316, %v4312
    %v4373 = vpack.c.b16 %v4317, %v4313
    %v4374 = vpack.c.b16 %v4318, %v4314
    %v4375 = vpack.c.b16 %v4323, %v4319
    %v4376 = vpack.c.b16 %v4324, %v4320
    %v4377 = vpack.c.b16 %v4325, %v4321
    %v4378 = vpack.c.b16 %v4326, %v4322
    %v4379 = vpack.c.b16 %v4331, %v4327
    %v4380 = vpack.c.b16 %v4332, %v4328
    %v4381 = vpack.c.b16 %v4333, %v4329
    %v4382 = vpack.c.b16 %v4334, %v4330
    %v4383 = vpack.c.b16 %v4339, %v4335
    %v4384 = vpack.c.b16 %v4340, %v4336
    %v4385 = vpack.c.b16 %v4341, %v4337
    %v4386 = vpack.c.b16 %v4342, %v4338
    %v4387 = vpack.c.b16 %v4347, %v4343
    %v4388 = vpack.c.b16 %v4348, %v4344
    %v4389 = vpack.c.b16 %v4349, %v4345
    %v4390 = vpack.c.b16 %v4350, %v4346
    %v4391 = vpack.c.b16 %v4355, %v4351
    %v4392 = vpack.c.b16 %v4356, %v4352
    %v4393 = vpack.c.b16 %v4357, %v4353
    %v4394 = vpack.c.b16 %v4358, %v4354
    %v4395 = vpack.c.b16 %v4363, %v4359
    %v4396 = vpack.c.b16 %v4364, %v4360
    %v4397 = vpack.c.b16 %v4365, %v4361
    %v4398 = vpack.c.b16 %v4366, %v4362
    %v4432 = vlaneseq
    %v4433 = vshrl.u32 %v4432, 7
    %v4434 = vsub.s32 0, %v4433
    %v4435 = vrot.slane %v4270, %v4434
    %v4436 = vlaneseq
    %v4437 = vshrl.u32 %v4436, 7
    %v4438 = vsub.s32 1, %v4437
    %v4439 = vrot.slane %v4270, %v4438
    %v4440 = vlaneseq
    %v4441 = vshrl.u32 %v4440, 7
    %v4442 = vsub.s32 2, %v4441
    %v4443 = vrot.slane %v4270, %v4442
    %v4444 = vlaneseq
    %v4445 = vshrl.u32 %v4444, 7
    %v4446 = vsub.s32 3, %v4445
    %v4447 = vrot.slane %v4270, %v4446
    %4452 = vmatprep.subr.bf16.mxu0 %v4396
    %4453 = vmatpush1.bf16.msra.mxu0 %v4395
    %4454 = vmatprep.subr.bf16.mxu0 %v4392
    %4455 = vmatpush1.bf16.msra.mxu0 %v4391
    %4456 = vmatprep.subr.bf16.mxu0 %v4388
    %4457 = vmatpush1.bf16.msra.mxu0 %v4387
    %4458 = vmatprep.subr.bf16.mxu0 %v4384
    %4459 = vmatpush1.bf16.msra.mxu0 %v4383
    %4460 = vmatprep.subr.bf16.mxu0 %v4380
    %4461 = vmatpush1.bf16.msra.mxu0 %v4379
    %4462 = vmatprep.subr.bf16.mxu0 %v4376
    %4463 = vmatpush1.bf16.msra.mxu0 %v4375
    %4464 = vmatprep.subr.bf16.mxu0 %v4372
    %4465 = vmatpush1.bf16.msra.mxu0 %v4371
    %4466 = vmatprep.subr.bf16.mxu0 %v4368
    %4467 = vmatpush1.bf16.msra.mxu0 %v4367
    %4468 = vmatprep.subr.bf16.mxu0 0
    %4469 = vmatpush2.bf16.msra.mxu0 0
    %4470 = vmatprep.subr.bf16.mxu0 0
    %4471 = vmatpush2.bf16.msra.mxu0 0
    %4472 = vmatprep.subr.bf16.mxu0 0
    %4473 = vmatpush2.bf16.msra.mxu0 0
    %4474 = vmatprep.subr.bf16.mxu0 0
    %4475 = vmatpush2.bf16.msra.mxu0 0
    %4476 = vmatprep.subr.bf16.mxu0 0
    %4477 = vmatpush2.bf16.msra.mxu0 0
    %4478 = vmatprep.subr.bf16.mxu0 0
    %4479 = vmatpush2.bf16.msra.mxu0 0
    %4480 = vmatprep.subr.bf16.mxu0 0
    %4481 = vmatpush2.bf16.msra.mxu0 0
    %4482 = vmatprep.subr.bf16.mxu0 0
    %4483 = vmatpush2.bf16.msra.mxu0 0
    %4484 = vmatprep.mubr.bf16.mxu0 0
    %4485 = vmatmul.mubr.bf16.gmra.mxu0 %v4237
    %v4486 = vpop.f32.mrf.mxu0
    %v4487 = vadd.f32 %v4435, %v4486
    %v4488 = vpop.f32.mrf.mxu0
    %v4489 = vadd.f32 %v4439, %v4488
    %v4490 = vpop.f32.mrf.mxu0
    %v4491 = vpop.f32.mrf.mxu0
    %4492 = vdwg.mxu0
    %4493 = vmatprep.subr.bf16.mxu0 %v4398
    %4494 = vmatpush1.bf16.msra.mxu0 %v4397
    %4495 = vmatprep.subr.bf16.mxu0 %v4394
    %4496 = vmatpush1.bf16.msra.mxu0 %v4393
    %4497 = vmatprep.subr.bf16.mxu0 %v4390
    %4498 = vmatpush1.bf16.msra.mxu0 %v4389
    %4499 = vmatprep.subr.bf16.mxu0 %v4386
    %4500 = vmatpush1.bf16.msra.mxu0 %v4385
    %4501 = vmatprep.subr.bf16.mxu0 %v4382
    %4502 = vmatpush1.bf16.msra.mxu0 %v4381
    %4503 = vmatprep.subr.bf16.mxu0 %v4378
    %4504 = vmatpush1.bf16.msra.mxu0 %v4377
    %4505 = vmatprep.subr.bf16.mxu0 %v4374
    %4506 = vmatpush1.bf16.msra.mxu0 %v4373
    %4507 = vmatprep.subr.bf16.mxu0 %v4370
    %4508 = vmatpush1.bf16.msra.mxu0 %v4369
    %4509 = vmatprep.subr.bf16.mxu0 0
    %4510 = vmatpush2.bf16.msra.mxu0 0
    %4511 = vmatprep.subr.bf16.mxu0 0
    %4512 = vmatpush2.bf16.msra.mxu0 0
    %4513 = vmatprep.subr.bf16.mxu0 0
    %4514 = vmatpush2.bf16.msra.mxu0 0
    %4515 = vmatprep.subr.bf16.mxu0 0
    %4516 = vmatpush2.bf16.msra.mxu0 0
    %4517 = vmatprep.subr.bf16.mxu0 0
    %4518 = vmatpush2.bf16.msra.mxu0 0
    %4519 = vmatprep.subr.bf16.mxu0 0
    %4520 = vmatpush2.bf16.msra.mxu0 0
    %4521 = vmatprep.subr.bf16.mxu0 0
    %4522 = vmatpush2.bf16.msra.mxu0 0
    %4523 = vmatprep.subr.bf16.mxu0 0
    %4524 = vmatpush2.bf16.msra.mxu0 0
    %4525 = vmatprep.mubr.bf16.mxu0 0
    %4526 = vmatmul.mubr.bf16.gmra.mxu0 %v4237
    %v4527 = vpop.f32.mrf.mxu0
    %v4528 = vadd.f32 %v4443, %v4527
    %v4529 = vpop.f32.mrf.mxu0
    %v4530 = vadd.f32 %v4447, %v4529
    %v4531 = vpop.f32.mrf.mxu0
    %v4532 = vpop.f32.mrf.mxu0
    %4533 = vdwg.mxu0
    %v4534 = vxor.u32 %v4487, 2147483648
    %v4535 = vmul.f32 %v4534, 1.442695
    %v4536 = vpow.pop %v4535
    %v4537 = vadd.f32 %v4536, 1.0
    %v4538 = vrcp.pop %v4537
    %v4539 = vmul.f32 1.0, %v4538
    %v4540 = vxor.u32 %v4489, 2147483648
    %v4541 = vmul.f32 %v4540, 1.442695
    %v4542 = vpow.pop %v4541
    %v4543 = vadd.f32 %v4542, 1.0
    %v4544 = vrcp.pop %v4543
    %v4545 = vmul.f32 1.0, %v4544
    %v4546 = vtanh.pop %v4528
    %v4547 = vxor.u32 %v4530, 2147483648
    %v4548 = vmul.f32 %v4547, 1.442695
    %v4549 = vpow.pop %v4548
    %v4550 = vadd.f32 %v4549, 1.0
    %v4551 = vrcp.pop %v4550
    %v4552 = vmul.f32 1.0, %v4551
    %v4553 = vmul.f32 %v4545, %v4236
    %v4554 = vmul.f32 %v4539, %v4546
    %v4555 = vadd.f32 %v4553, %v4554
    %v4556 = vtanh.pop %v4555
    %v4557 = vmul.f32 %v4552, %v4556
    %4558 = vst [vmem:[#allocation4] sm:$0x1] %v4557
    %4559 = vst [vmem:[#allocation5] sm:$0x1] %v4555
    %v4560 = vpack.c.bf16 %v4557, %v4557
    %v4561 = vld [vmem:[#allocation14] sm:$0xf]
    %v4562 = vld [vmem:[#allocation14 + $0x4] sm:$0xf]
    %v4563 = vld [vmem:[#allocation14 + $0x8] sm:$0xf]
    %v4564 = vld [vmem:[#allocation14 + $0xc] sm:$0xf]
    %v4565 = vld [vmem:[#allocation14 + $0x10] sm:$0xf]
    %v4566 = vld [vmem:[#allocation14 + $0x14] sm:$0xf]
    %v4567 = vld [vmem:[#allocation14 + $0x18] sm:$0xf]
    %v4568 = vld [vmem:[#allocation14 + $0x1c] sm:$0xf]
    %v4569 = vld [vmem:[#allocation14 + $0x20] sm:$0xf]
    %v4570 = vld [vmem:[#allocation14 + $0x24] sm:$0xf]
    %v4571 = vld [vmem:[#allocation14 + $0x28] sm:$0xf]
    %v4572 = vld [vmem:[#allocation14 + $0x2c] sm:$0xf]
    %v4573 = vld [vmem:[#allocation14 + $0x30] sm:$0xf]
    %v4574 = vld [vmem:[#allocation14 + $0x34] sm:$0xf]
    %v4575 = vld [vmem:[#allocation14 + $0x38] sm:$0xf]
    %v4576 = vld [vmem:[#allocation14 + $0x3c] sm:$0xf]
    %v4577 = vld [vmem:[%s6] sm:$0x1]
    %v4594 = vunpack.c.l.b16 %v4561
    %v4595 = vunpack.c.l.b16 %v4562
    %v4596 = vunpack.c.l.b16 %v4563
    %v4597 = vunpack.c.l.b16 %v4564
    %v4598 = vunpack.c.l.b16 %v4565
    %v4599 = vunpack.c.l.b16 %v4566
    %v4600 = vunpack.c.l.b16 %v4567
    %v4601 = vunpack.c.l.b16 %v4568
    %v4602 = vunpack.c.l.b16 %v4569
    %v4603 = vunpack.c.l.b16 %v4570
    %v4604 = vunpack.c.l.b16 %v4571
    %v4605 = vunpack.c.l.b16 %v4572
    %v4606 = vunpack.c.l.b16 %v4573
    %v4607 = vunpack.c.l.b16 %v4574
    %v4608 = vunpack.c.l.b16 %v4575
    %v4609 = vunpack.c.l.b16 %v4576
    %v4610 = vpack.c.b16 %v4595, %v4594
    %v4611 = vpack.c.b16 %v4597, %v4596
    %v4612 = vpack.c.b16 %v4599, %v4598
    %v4613 = vpack.c.b16 %v4601, %v4600
    %v4614 = vpack.c.b16 %v4603, %v4602
    %v4615 = vpack.c.b16 %v4605, %v4604
    %v4616 = vpack.c.b16 %v4607, %v4606
    %v4617 = vpack.c.b16 %v4609, %v4608
    %4626 = vmatprep.subr.bf16.mxu0 0
    %4627 = vmatpush1.bf16.msra.mxu0 %v4617
    %4628 = vmatprep.subr.bf16.mxu0 0
    %4629 = vmatpush1.bf16.msra.mxu0 %v4616
    %4630 = vmatprep.subr.bf16.mxu0 0
    %4631 = vmatpush1.bf16.msra.mxu0 %v4615
    %4632 = vmatprep.subr.bf16.mxu0 0
    %4633 = vmatpush1.bf16.msra.mxu0 %v4614
    %4634 = vmatprep.subr.bf16.mxu0 0
    %4635 = vmatpush1.bf16.msra.mxu0 %v4613
    %4636 = vmatprep.subr.bf16.mxu0 0
    %4637 = vmatpush1.bf16.msra.mxu0 %v4612
    %4638 = vmatprep.subr.bf16.mxu0 0
    %4639 = vmatpush1.bf16.msra.mxu0 %v4611
    %4640 = vmatprep.subr.bf16.mxu0 0
    %4641 = vmatpush1.bf16.msra.mxu0 %v4610
    %4642 = vmatprep.subr.bf16.mxu0 0
    %4643 = vmatpush2.bf16.msra.mxu0 0
    %4644 = vmatprep.subr.bf16.mxu0 0
    %4645 = vmatpush2.bf16.msra.mxu0 0
    %4646 = vmatprep.subr.bf16.mxu0 0
    %4647 = vmatpush2.bf16.msra.mxu0 0
    %4648 = vmatprep.subr.bf16.mxu0 0
    %4649 = vmatpush2.bf16.msra.mxu0 0
    %4650 = vmatprep.subr.bf16.mxu0 0
    %4651 = vmatpush2.bf16.msra.mxu0 0
    %4652 = vmatprep.subr.bf16.mxu0 0
    %4653 = vmatpush2.bf16.msra.mxu0 0
    %4654 = vmatprep.subr.bf16.mxu0 0
    %4655 = vmatpush2.bf16.msra.mxu0 0
    %4656 = vmatprep.subr.bf16.mxu0 0
    %4657 = vmatpush2.bf16.msra.mxu0 0
    %4658 = vmatprep.mubr.bf16.mxu0 0
    %4659 = vmatmul.mubr.bf16.gmra.mxu0 %v4560
    %v4660 = vpop.f32.mrf.mxu0
    %v4661 = vadd.f32 %v4577, %v4660
    %v4662 = vpop.f32.mrf.mxu0
    %v4663 = vpop.f32.mrf.mxu0
    %v4664 = vpop.f32.mrf.mxu0
    %4665 = vdwg.mxu0
    %s4666 = scalar_lea.vmem [#allocation15], 5
    %4667 = vst [vmem:[%s4666] sm:$0x1] %v4661
    %s4668 = scalar_lea.vmem [#allocation6], 6
    %v4669 = vld [vmem:[%s4668] sm:$0x1]
    %v4670 = vld [vmem:[#allocation2] sm:$0x1]
    %v4671 = vadd.f32 %v4670, %v4669
    %v4672 = vld [vmem:[#allocation3] sm:$0x1]
    %v4673 = vpack.c.bf16 %v4671, %v4671
    %v4674 = vld [vmem:[#allocation9] sm:$0xff]
    %v4675 = vld [vmem:[#allocation9 + $0x8] sm:$0xff]
    %v4676 = vld [vmem:[#allocation9 + $0x10] sm:$0xff]
    %v4677 = vld [vmem:[#allocation9 + $0x18] sm:$0xff]
    %v4678 = vld [vmem:[#allocation9 + $0x20] sm:$0xff]
    %v4679 = vld [vmem:[#allocation9 + $0x28] sm:$0xff]
    %v4680 = vld [vmem:[#allocation9 + $0x30] sm:$0xff]
    %v4681 = vld [vmem:[#allocation9 + $0x38] sm:$0xff]
    %v4682 = vld [vmem:[#allocation9 + $0x40] sm:$0xff]
    %v4683 = vld [vmem:[#allocation9 + $0x48] sm:$0xff]
    %v4684 = vld [vmem:[#allocation9 + $0x50] sm:$0xff]
    %v4685 = vld [vmem:[#allocation9 + $0x58] sm:$0xff]
    %v4686 = vld [vmem:[#allocation9 + $0x60] sm:$0xff]
    %v4687 = vld [vmem:[#allocation9 + $0x68] sm:$0xff]
    %v4688 = vld [vmem:[#allocation9 + $0x70] sm:$0xff]
    %v4689 = vld [vmem:[#allocation9 + $0x78] sm:$0xff]
    %v4690 = vld [vmem:[#allocation9 + $0x80] sm:$0xff]
    %v4691 = vld [vmem:[#allocation9 + $0x88] sm:$0xff]
    %v4692 = vld [vmem:[#allocation9 + $0x90] sm:$0xff]
    %v4693 = vld [vmem:[#allocation9 + $0x98] sm:$0xff]
    %v4694 = vld [vmem:[#allocation9 + $0xa0] sm:$0xff]
    %v4695 = vld [vmem:[#allocation9 + $0xa8] sm:$0xff]
    %v4696 = vld [vmem:[#allocation9 + $0xb0] sm:$0xff]
    %v4697 = vld [vmem:[#allocation9 + $0xb8] sm:$0xff]
    %v4698 = vld [vmem:[#allocation9 + $0xc0] sm:$0xff]
    %v4699 = vld [vmem:[#allocation9 + $0xc8] sm:$0xff]
    %v4700 = vld [vmem:[#allocation9 + $0xd0] sm:$0xff]
    %v4701 = vld [vmem:[#allocation9 + $0xd8] sm:$0xff]
    %v4702 = vld [vmem:[#allocation9 + $0xe0] sm:$0xff]
    %v4703 = vld [vmem:[#allocation9 + $0xe8] sm:$0xff]
    %v4704 = vld [vmem:[#allocation9 + $0xf0] sm:$0xff]
    %v4705 = vld [vmem:[#allocation9 + $0xf8] sm:$0xff]
    %v4706 = vld [vmem:[#allocation11] sm:$0xf]
    %v4739 = vunpack.c.l.b16 %v4674
    %v4740 = vunpack.c.h.b16 %v4674
    %v4741 = vunpack.c.l.b16 %v4675
    %v4742 = vunpack.c.h.b16 %v4675
    %v4743 = vunpack.c.l.b16 %v4676
    %v4744 = vunpack.c.h.b16 %v4676
    %v4745 = vunpack.c.l.b16 %v4677
    %v4746 = vunpack.c.h.b16 %v4677
    %v4747 = vunpack.c.l.b16 %v4678
    %v4748 = vunpack.c.h.b16 %v4678
    %v4749 = vunpack.c.l.b16 %v4679
    %v4750 = vunpack.c.h.b16 %v4679
    %v4751 = vunpack.c.l.b16 %v4680
    %v4752 = vunpack.c.h.b16 %v4680
    %v4753 = vunpack.c.l.b16 %v4681
    %v4754 = vunpack.c.h.b16 %v4681
    %v4755 = vunpack.c.l.b16 %v4682
    %v4756 = vunpack.c.h.b16 %v4682
    %v4757 = vunpack.c.l.b16 %v4683
    %v4758 = vunpack.c.h.b16 %v4683
    %v4759 = vunpack.c.l.b16 %v4684
    %v4760 = vunpack.c.h.b16 %v4684
    %v4761 = vunpack.c.l.b16 %v4685
    %v4762 = vunpack.c.h.b16 %v4685
    %v4763 = vunpack.c.l.b16 %v4686
    %v4764 = vunpack.c.h.b16 %v4686
    %v4765 = vunpack.c.l.b16 %v4687
    %v4766 = vunpack.c.h.b16 %v4687
    %v4767 = vunpack.c.l.b16 %v4688
    %v4768 = vunpack.c.h.b16 %v4688
    %v4769 = vunpack.c.l.b16 %v4689
    %v4770 = vunpack.c.h.b16 %v4689
    %v4771 = vunpack.c.l.b16 %v4690
    %v4772 = vunpack.c.h.b16 %v4690
    %v4773 = vunpack.c.l.b16 %v4691
    %v4774 = vunpack.c.h.b16 %v4691
    %v4775 = vunpack.c.l.b16 %v4692
    %v4776 = vunpack.c.h.b16 %v4692
    %v4777 = vunpack.c.l.b16 %v4693
    %v4778 = vunpack.c.h.b16 %v4693
    %v4779 = vunpack.c.l.b16 %v4694
    %v4780 = vunpack.c.h.b16 %v4694
    %v4781 = vunpack.c.l.b16 %v4695
    %v4782 = vunpack.c.h.b16 %v4695
    %v4783 = vunpack.c.l.b16 %v4696
    %v4784 = vunpack.c.h.b16 %v4696
    %v4785 = vunpack.c.l.b16 %v4697
    %v4786 = vunpack.c.h.b16 %v4697
    %v4787 = vunpack.c.l.b16 %v4698
    %v4788 = vunpack.c.h.b16 %v4698
    %v4789 = vunpack.c.l.b16 %v4699
    %v4790 = vunpack.c.h.b16 %v4699
    %v4791 = vunpack.c.l.b16 %v4700
    %v4792 = vunpack.c.h.b16 %v4700
    %v4793 = vunpack.c.l.b16 %v4701
    %v4794 = vunpack.c.h.b16 %v4701
    %v4795 = vunpack.c.l.b16 %v4702
    %v4796 = vunpack.c.h.b16 %v4702
    %v4797 = vunpack.c.l.b16 %v4703
    %v4798 = vunpack.c.h.b16 %v4703
    %v4799 = vunpack.c.l.b16 %v4704
    %v4800 = vunpack.c.h.b16 %v4704
    %v4801 = vunpack.c.l.b16 %v4705
    %v4802 = vunpack.c.h.b16 %v4705
    %v4803 = vpack.c.b16 %v4743, %v4739
    %v4804 = vpack.c.b16 %v4744, %v4740
    %v4805 = vpack.c.b16 %v4745, %v4741
    %v4806 = vpack.c.b16 %v4746, %v4742
    %v4807 = vpack.c.b16 %v4751, %v4747
    %v4808 = vpack.c.b16 %v4752, %v4748
    %v4809 = vpack.c.b16 %v4753, %v4749
    %v4810 = vpack.c.b16 %v4754, %v4750
    %v4811 = vpack.c.b16 %v4759, %v4755
    %v4812 = vpack.c.b16 %v4760, %v4756
    %v4813 = vpack.c.b16 %v4761, %v4757
    %v4814 = vpack.c.b16 %v4762, %v4758
    %v4815 = vpack.c.b16 %v4767, %v4763
    %v4816 = vpack.c.b16 %v4768, %v4764
    %v4817 = vpack.c.b16 %v4769, %v4765
    %v4818 = vpack.c.b16 %v4770, %v4766
    %v4819 = vpack.c.b16 %v4775, %v4771
    %v4820 = vpack.c.b16 %v4776, %v4772
    %v4821 = vpack.c.b16 %v4777, %v4773
    %v4822 = vpack.c.b16 %v4778, %v4774
    %v4823 = vpack.c.b16 %v4783, %v4779
    %v4824 = vpack.c.b16 %v4784, %v4780
    %v4825 = vpack.c.b16 %v4785, %v4781
    %v4826 = vpack.c.b16 %v4786, %v4782
    %v4827 = vpack.c.b16 %v4791, %v4787
    %v4828 = vpack.c.b16 %v4792, %v4788
    %v4829 = vpack.c.b16 %v4793, %v4789
    %v4830 = vpack.c.b16 %v4794, %v4790
    %v4831 = vpack.c.b16 %v4799, %v4795
    %v4832 = vpack.c.b16 %v4800, %v4796
    %v4833 = vpack.c.b16 %v4801, %v4797
    %v4834 = vpack.c.b16 %v4802, %v4798
    %v4868 = vlaneseq
    %v4869 = vshrl.u32 %v4868, 7
    %v4870 = vsub.s32 0, %v4869
    %v4871 = vrot.slane %v4706, %v4870
    %v4872 = vlaneseq
    %v4873 = vshrl.u32 %v4872, 7
    %v4874 = vsub.s32 1, %v4873
    %v4875 = vrot.slane %v4706, %v4874
    %v4876 = vlaneseq
    %v4877 = vshrl.u32 %v4876, 7
    %v4878 = vsub.s32 2, %v4877
    %v4879 = vrot.slane %v4706, %v4878
    %v4880 = vlaneseq
    %v4881 = vshrl.u32 %v4880, 7
    %v4882 = vsub.s32 3, %v4881
    %v4883 = vrot.slane %v4706, %v4882
    %4888 = vmatprep.subr.bf16.mxu0 %v4832
    %4889 = vmatpush1.bf16.msra.mxu0 %v4831
    %4890 = vmatprep.subr.bf16.mxu0 %v4828
    %4891 = vmatpush1.bf16.msra.mxu0 %v4827
    %4892 = vmatprep.subr.bf16.mxu0 %v4824
    %4893 = vmatpush1.bf16.msra.mxu0 %v4823
    %4894 = vmatprep.subr.bf16.mxu0 %v4820
    %4895 = vmatpush1.bf16.msra.mxu0 %v4819
    %4896 = vmatprep.subr.bf16.mxu0 %v4816
    %4897 = vmatpush1.bf16.msra.mxu0 %v4815
    %4898 = vmatprep.subr.bf16.mxu0 %v4812
    %4899 = vmatpush1.bf16.msra.mxu0 %v4811
    %4900 = vmatprep.subr.bf16.mxu0 %v4808
    %4901 = vmatpush1.bf16.msra.mxu0 %v4807
    %4902 = vmatprep.subr.bf16.mxu0 %v4804
    %4903 = vmatpush1.bf16.msra.mxu0 %v4803
    %4904 = vmatprep.subr.bf16.mxu0 0
    %4905 = vmatpush2.bf16.msra.mxu0 0
    %4906 = vmatprep.subr.bf16.mxu0 0
    %4907 = vmatpush2.bf16.msra.mxu0 0
    %4908 = vmatprep.subr.bf16.mxu0 0
    %4909 = vmatpush2.bf16.msra.mxu0 0
    %4910 = vmatprep.subr.bf16.mxu0 0
    %4911 = vmatpush2.bf16.msra.mxu0 0
    %4912 = vmatprep.subr.bf16.mxu0 0
    %4913 = vmatpush2.bf16.msra.mxu0 0
    %4914 = vmatprep.subr.bf16.mxu0 0
    %4915 = vmatpush2.bf16.msra.mxu0 0
    %4916 = vmatprep.subr.bf16.mxu0 0
    %4917 = vmatpush2.bf16.msra.mxu0 0
    %4918 = vmatprep.subr.bf16.mxu0 0
    %4919 = vmatpush2.bf16.msra.mxu0 0
    %4920 = vmatprep.mubr.bf16.mxu0 0
    %4921 = vmatmul.mubr.bf16.gmra.mxu0 %v4673
    %v4922 = vpop.f32.mrf.mxu0
    %v4923 = vadd.f32 %v4871, %v4922
    %v4924 = vpop.f32.mrf.mxu0
    %v4925 = vadd.f32 %v4875, %v4924
    %v4926 = vpop.f32.mrf.mxu0
    %v4927 = vpop.f32.mrf.mxu0
    %4928 = vdwg.mxu0
    %4929 = vmatprep.subr.bf16.mxu0 %v4834
    %4930 = vmatpush1.bf16.msra.mxu0 %v4833
    %4931 = vmatprep.subr.bf16.mxu0 %v4830
    %4932 = vmatpush1.bf16.msra.mxu0 %v4829
    %4933 = vmatprep.subr.bf16.mxu0 %v4826
    %4934 = vmatpush1.bf16.msra.mxu0 %v4825
    %4935 = vmatprep.subr.bf16.mxu0 %v4822
    %4936 = vmatpush1.bf16.msra.mxu0 %v4821
    %4937 = vmatprep.subr.bf16.mxu0 %v4818
    %4938 = vmatpush1.bf16.msra.mxu0 %v4817
    %4939 = vmatprep.subr.bf16.mxu0 %v4814
    %4940 = vmatpush1.bf16.msra.mxu0 %v4813
    %4941 = vmatprep.subr.bf16.mxu0 %v4810
    %4942 = vmatpush1.bf16.msra.mxu0 %v4809
    %4943 = vmatprep.subr.bf16.mxu0 %v4806
    %4944 = vmatpush1.bf16.msra.mxu0 %v4805
    %4945 = vmatprep.subr.bf16.mxu0 0
    %4946 = vmatpush2.bf16.msra.mxu0 0
    %4947 = vmatprep.subr.bf16.mxu0 0
    %4948 = vmatpush2.bf16.msra.mxu0 0
    %4949 = vmatprep.subr.bf16.mxu0 0
    %4950 = vmatpush2.bf16.msra.mxu0 0
    %4951 = vmatprep.subr.bf16.mxu0 0
    %4952 = vmatpush2.bf16.msra.mxu0 0
    %4953 = vmatprep.subr.bf16.mxu0 0
    %4954 = vmatpush2.bf16.msra.mxu0 0
    %4955 = vmatprep.subr.bf16.mxu0 0
    %4956 = vmatpush2.bf16.msra.mxu0 0
    %4957 = vmatprep.subr.bf16.mxu0 0
    %4958 = vmatpush2.bf16.msra.mxu0 0
    %4959 = vmatprep.subr.bf16.mxu0 0
    %4960 = vmatpush2.bf16.msra.mxu0 0
    %4961 = vmatprep.mubr.bf16.mxu0 0
    %4962 = vmatmul.mubr.bf16.gmra.mxu0 %v4673
    %v4963 = vpop.f32.mrf.mxu0
    %v4964 = vadd.f32 %v4879, %v4963
    %v4965 = vpop.f32.mrf.mxu0
    %v4966 = vadd.f32 %v4883, %v4965
    %v4967 = vpop.f32.mrf.mxu0
    %v4968 = vpop.f32.mrf.mxu0
    %4969 = vdwg.mxu0
    %v4970 = vxor.u32 %v4923, 2147483648
    %v4971 = vmul.f32 %v4970, 1.442695
    %v4972 = vpow.pop %v4971
    %v4973 = vadd.f32 %v4972, 1.0
    %v4974 = vrcp.pop %v4973
    %v4975 = vmul.f32 1.0, %v4974
    %v4976 = vxor.u32 %v4925, 2147483648
    %v4977 = vmul.f32 %v4976, 1.442695
    %v4978 = vpow.pop %v4977
    %v4979 = vadd.f32 %v4978, 1.0
    %v4980 = vrcp.pop %v4979
    %v4981 = vmul.f32 1.0, %v4980
    %v4982 = vtanh.pop %v4964
    %v4983 = vxor.u32 %v4966, 2147483648
    %v4984 = vmul.f32 %v4983, 1.442695
    %v4985 = vpow.pop %v4984
    %v4986 = vadd.f32 %v4985, 1.0
    %v4987 = vrcp.pop %v4986
    %v4988 = vmul.f32 1.0, %v4987
    %v4989 = vmul.f32 %v4981, %v4672
    %v4990 = vmul.f32 %v4975, %v4982
    %v4991 = vadd.f32 %v4989, %v4990
    %v4992 = vtanh.pop %v4991
    %v4993 = vmul.f32 %v4988, %v4992
    %4994 = vst [vmem:[#allocation2] sm:$0x1] %v4993
    %4995 = vst [vmem:[#allocation3] sm:$0x1] %v4991
    %v4996 = vld [vmem:[#allocation4] sm:$0x1]
    %v4997 = vadd.f32 %v4993, %v4996
    %v4998 = vld [vmem:[#allocation5] sm:$0x1]
    %v4999 = vpack.c.bf16 %v4997, %v4997
    %v5000 = vld [vmem:[#allocation12] sm:$0xff]
    %v5001 = vld [vmem:[#allocation12 + $0x8] sm:$0xff]
    %v5002 = vld [vmem:[#allocation12 + $0x10] sm:$0xff]
    %v5003 = vld [vmem:[#allocation12 + $0x18] sm:$0xff]
    %v5004 = vld [vmem:[#allocation12 + $0x20] sm:$0xff]
    %v5005 = vld [vmem:[#allocation12 + $0x28] sm:$0xff]
    %v5006 = vld [vmem:[#allocation12 + $0x30] sm:$0xff]
    %v5007 = vld [vmem:[#allocation12 + $0x38] sm:$0xff]
    %v5008 = vld [vmem:[#allocation12 + $0x40] sm:$0xff]
    %v5009 = vld [vmem:[#allocation12 + $0x48] sm:$0xff]
    %v5010 = vld [vmem:[#allocation12 + $0x50] sm:$0xff]
    %v5011 = vld [vmem:[#allocation12 + $0x58] sm:$0xff]
    %v5012 = vld [vmem:[#allocation12 + $0x60] sm:$0xff]
    %v5013 = vld [vmem:[#allocation12 + $0x68] sm:$0xff]
    %v5014 = vld [vmem:[#allocation12 + $0x70] sm:$0xff]
    %v5015 = vld [vmem:[#allocation12 + $0x78] sm:$0xff]
    %v5016 = vld [vmem:[#allocation12 + $0x80] sm:$0xff]
    %v5017 = vld [vmem:[#allocation12 + $0x88] sm:$0xff]
    %v5018 = vld [vmem:[#allocation12 + $0x90] sm:$0xff]
    %v5019 = vld [vmem:[#allocation12 + $0x98] sm:$0xff]
    %v5020 = vld [vmem:[#allocation12 + $0xa0] sm:$0xff]
    %v5021 = vld [vmem:[#allocation12 + $0xa8] sm:$0xff]
    %v5022 = vld [vmem:[#allocation12 + $0xb0] sm:$0xff]
    %v5023 = vld [vmem:[#allocation12 + $0xb8] sm:$0xff]
    %v5024 = vld [vmem:[#allocation12 + $0xc0] sm:$0xff]
    %v5025 = vld [vmem:[#allocation12 + $0xc8] sm:$0xff]
    %v5026 = vld [vmem:[#allocation12 + $0xd0] sm:$0xff]
    %v5027 = vld [vmem:[#allocation12 + $0xd8] sm:$0xff]
    %v5028 = vld [vmem:[#allocation12 + $0xe0] sm:$0xff]
    %v5029 = vld [vmem:[#allocation12 + $0xe8] sm:$0xff]
    %v5030 = vld [vmem:[#allocation12 + $0xf0] sm:$0xff]
    %v5031 = vld [vmem:[#allocation12 + $0xf8] sm:$0xff]
    %v5032 = vld [vmem:[%s4] sm:$0xf]
    %v5065 = vunpack.c.l.b16 %v5000
    %v5066 = vunpack.c.h.b16 %v5000
    %v5067 = vunpack.c.l.b16 %v5001
    %v5068 = vunpack.c.h.b16 %v5001
    %v5069 = vunpack.c.l.b16 %v5002
    %v5070 = vunpack.c.h.b16 %v5002
    %v5071 = vunpack.c.l.b16 %v5003
    %v5072 = vunpack.c.h.b16 %v5003
    %v5073 = vunpack.c.l.b16 %v5004
    %v5074 = vunpack.c.h.b16 %v5004
    %v5075 = vunpack.c.l.b16 %v5005
    %v5076 = vunpack.c.h.b16 %v5005
    %v5077 = vunpack.c.l.b16 %v5006
    %v5078 = vunpack.c.h.b16 %v5006
    %v5079 = vunpack.c.l.b16 %v5007
    %v5080 = vunpack.c.h.b16 %v5007
    %v5081 = vunpack.c.l.b16 %v5008
    %v5082 = vunpack.c.h.b16 %v5008
    %v5083 = vunpack.c.l.b16 %v5009
    %v5084 = vunpack.c.h.b16 %v5009
    %v5085 = vunpack.c.l.b16 %v5010
    %v5086 = vunpack.c.h.b16 %v5010
    %v5087 = vunpack.c.l.b16 %v5011
    %v5088 = vunpack.c.h.b16 %v5011
    %v5089 = vunpack.c.l.b16 %v5012
    %v5090 = vunpack.c.h.b16 %v5012
    %v5091 = vunpack.c.l.b16 %v5013
    %v5092 = vunpack.c.h.b16 %v5013
    %v5093 = vunpack.c.l.b16 %v5014
    %v5094 = vunpack.c.h.b16 %v5014
    %v5095 = vunpack.c.l.b16 %v5015
    %v5096 = vunpack.c.h.b16 %v5015
    %v5097 = vunpack.c.l.b16 %v5016
    %v5098 = vunpack.c.h.b16 %v5016
    %v5099 = vunpack.c.l.b16 %v5017
    %v5100 = vunpack.c.h.b16 %v5017
    %v5101 = vunpack.c.l.b16 %v5018
    %v5102 = vunpack.c.h.b16 %v5018
    %v5103 = vunpack.c.l.b16 %v5019
    %v5104 = vunpack.c.h.b16 %v5019
    %v5105 = vunpack.c.l.b16 %v5020
    %v5106 = vunpack.c.h.b16 %v5020
    %v5107 = vunpack.c.l.b16 %v5021
    %v5108 = vunpack.c.h.b16 %v5021
    %v5109 = vunpack.c.l.b16 %v5022
    %v5110 = vunpack.c.h.b16 %v5022
    %v5111 = vunpack.c.l.b16 %v5023
    %v5112 = vunpack.c.h.b16 %v5023
    %v5113 = vunpack.c.l.b16 %v5024
    %v5114 = vunpack.c.h.b16 %v5024
    %v5115 = vunpack.c.l.b16 %v5025
    %v5116 = vunpack.c.h.b16 %v5025
    %v5117 = vunpack.c.l.b16 %v5026
    %v5118 = vunpack.c.h.b16 %v5026
    %v5119 = vunpack.c.l.b16 %v5027
    %v5120 = vunpack.c.h.b16 %v5027
    %v5121 = vunpack.c.l.b16 %v5028
    %v5122 = vunpack.c.h.b16 %v5028
    %v5123 = vunpack.c.l.b16 %v5029
    %v5124 = vunpack.c.h.b16 %v5029
    %v5125 = vunpack.c.l.b16 %v5030
    %v5126 = vunpack.c.h.b16 %v5030
    %v5127 = vunpack.c.l.b16 %v5031
    %v5128 = vunpack.c.h.b16 %v5031
    %v5129 = vpack.c.b16 %v5069, %v5065
    %v5130 = vpack.c.b16 %v5070, %v5066
    %v5131 = vpack.c.b16 %v5071, %v5067
    %v5132 = vpack.c.b16 %v5072, %v5068
    %v5133 = vpack.c.b16 %v5077, %v5073
    %v5134 = vpack.c.b16 %v5078, %v5074
    %v5135 = vpack.c.b16 %v5079, %v5075
    %v5136 = vpack.c.b16 %v5080, %v5076
    %v5137 = vpack.c.b16 %v5085, %v5081
    %v5138 = vpack.c.b16 %v5086, %v5082
    %v5139 = vpack.c.b16 %v5087, %v5083
    %v5140 = vpack.c.b16 %v5088, %v5084
    %v5141 = vpack.c.b16 %v5093, %v5089
    %v5142 = vpack.c.b16 %v5094, %v5090
    %v5143 = vpack.c.b16 %v5095, %v5091
    %v5144 = vpack.c.b16 %v5096, %v5092
    %v5145 = vpack.c.b16 %v5101, %v5097
    %v5146 = vpack.c.b16 %v5102, %v5098
    %v5147 = vpack.c.b16 %v5103, %v5099
    %v5148 = vpack.c.b16 %v5104, %v5100
    %v5149 = vpack.c.b16 %v5109, %v5105
    %v5150 = vpack.c.b16 %v5110, %v5106
    %v5151 = vpack.c.b16 %v5111, %v5107
    %v5152 = vpack.c.b16 %v5112, %v5108
    %v5153 = vpack.c.b16 %v5117, %v5113
    %v5154 = vpack.c.b16 %v5118, %v5114
    %v5155 = vpack.c.b16 %v5119, %v5115
    %v5156 = vpack.c.b16 %v5120, %v5116
    %v5157 = vpack.c.b16 %v5125, %v5121
    %v5158 = vpack.c.b16 %v5126, %v5122
    %v5159 = vpack.c.b16 %v5127, %v5123
    %v5160 = vpack.c.b16 %v5128, %v5124
    %v5194 = vlaneseq
    %v5195 = vshrl.u32 %v5194, 7
    %v5196 = vsub.s32 0, %v5195
    %v5197 = vrot.slane %v5032, %v5196
    %v5198 = vlaneseq
    %v5199 = vshrl.u32 %v5198, 7
    %v5200 = vsub.s32 1, %v5199
    %v5201 = vrot.slane %v5032, %v5200
    %v5202 = vlaneseq
    %v5203 = vshrl.u32 %v5202, 7
    %v5204 = vsub.s32 2, %v5203
    %v5205 = vrot.slane %v5032, %v5204
    %v5206 = vlaneseq
    %v5207 = vshrl.u32 %v5206, 7
    %v5208 = vsub.s32 3, %v5207
    %v5209 = vrot.slane %v5032, %v5208
    %5214 = vmatprep.subr.bf16.mxu0 %v5158
    %5215 = vmatpush1.bf16.msra.mxu0 %v5157
    %5216 = vmatprep.subr.bf16.mxu0 %v5154
    %5217 = vmatpush1.bf16.msra.mxu0 %v5153
    %5218 = vmatprep.subr.bf16.mxu0 %v5150
    %5219 = vmatpush1.bf16.msra.mxu0 %v5149
    %5220 = vmatprep.subr.bf16.mxu0 %v5146
    %5221 = vmatpush1.bf16.msra.mxu0 %v5145
    %5222 = vmatprep.subr.bf16.mxu0 %v5142
    %5223 = vmatpush1.bf16.msra.mxu0 %v5141
    %5224 = vmatprep.subr.bf16.mxu0 %v5138
    %5225 = vmatpush1.bf16.msra.mxu0 %v5137
    %5226 = vmatprep.subr.bf16.mxu0 %v5134
    %5227 = vmatpush1.bf16.msra.mxu0 %v5133
    %5228 = vmatprep.subr.bf16.mxu0 %v5130
    %5229 = vmatpush1.bf16.msra.mxu0 %v5129
    %5230 = vmatprep.subr.bf16.mxu0 0
    %5231 = vmatpush2.bf16.msra.mxu0 0
    %5232 = vmatprep.subr.bf16.mxu0 0
    %5233 = vmatpush2.bf16.msra.mxu0 0
    %5234 = vmatprep.subr.bf16.mxu0 0
    %5235 = vmatpush2.bf16.msra.mxu0 0
    %5236 = vmatprep.subr.bf16.mxu0 0
    %5237 = vmatpush2.bf16.msra.mxu0 0
    %5238 = vmatprep.subr.bf16.mxu0 0
    %5239 = vmatpush2.bf16.msra.mxu0 0
    %5240 = vmatprep.subr.bf16.mxu0 0
    %5241 = vmatpush2.bf16.msra.mxu0 0
    %5242 = vmatprep.subr.bf16.mxu0 0
    %5243 = vmatpush2.bf16.msra.mxu0 0
    %5244 = vmatprep.subr.bf16.mxu0 0
    %5245 = vmatpush2.bf16.msra.mxu0 0
    %5246 = vmatprep.mubr.bf16.mxu0 0
    %5247 = vmatmul.mubr.bf16.gmra.mxu0 %v4999
    %v5248 = vpop.f32.mrf.mxu0
    %v5249 = vadd.f32 %v5197, %v5248
    %v5250 = vpop.f32.mrf.mxu0
    %v5251 = vadd.f32 %v5201, %v5250
    %v5252 = vpop.f32.mrf.mxu0
    %v5253 = vpop.f32.mrf.mxu0
    %5254 = vdwg.mxu0
    %5255 = vmatprep.subr.bf16.mxu0 %v5160
    %5256 = vmatpush1.bf16.msra.mxu0 %v5159
    %5257 = vmatprep.subr.bf16.mxu0 %v5156
    %5258 = vmatpush1.bf16.msra.mxu0 %v5155
    %5259 = vmatprep.subr.bf16.mxu0 %v5152
    %5260 = vmatpush1.bf16.msra.mxu0 %v5151
    %5261 = vmatprep.subr.bf16.mxu0 %v5148
    %5262 = vmatpush1.bf16.msra.mxu0 %v5147
    %5263 = vmatprep.subr.bf16.mxu0 %v5144
    %5264 = vmatpush1.bf16.msra.mxu0 %v5143
    %5265 = vmatprep.subr.bf16.mxu0 %v5140
    %5266 = vmatpush1.bf16.msra.mxu0 %v5139
    %5267 = vmatprep.subr.bf16.mxu0 %v5136
    %5268 = vmatpush1.bf16.msra.mxu0 %v5135
    %5269 = vmatprep.subr.bf16.mxu0 %v5132
    %5270 = vmatpush1.bf16.msra.mxu0 %v5131
    %5271 = vmatprep.subr.bf16.mxu0 0
    %5272 = vmatpush2.bf16.msra.mxu0 0
    %5273 = vmatprep.subr.bf16.mxu0 0
    %5274 = vmatpush2.bf16.msra.mxu0 0
    %5275 = vmatprep.subr.bf16.mxu0 0
    %5276 = vmatpush2.bf16.msra.mxu0 0
    %5277 = vmatprep.subr.bf16.mxu0 0
    %5278 = vmatpush2.bf16.msra.mxu0 0
    %5279 = vmatprep.subr.bf16.mxu0 0
    %5280 = vmatpush2.bf16.msra.mxu0 0
    %5281 = vmatprep.subr.bf16.mxu0 0
    %5282 = vmatpush2.bf16.msra.mxu0 0
    %5283 = vmatprep.subr.bf16.mxu0 0
    %5284 = vmatpush2.bf16.msra.mxu0 0
    %5285 = vmatprep.subr.bf16.mxu0 0
    %5286 = vmatpush2.bf16.msra.mxu0 0
    %5287 = vmatprep.mubr.bf16.mxu0 0
    %5288 = vmatmul.mubr.bf16.gmra.mxu0 %v4999
    %v5289 = vpop.f32.mrf.mxu0
    %v5290 = vadd.f32 %v5205, %v5289
    %v5291 = vpop.f32.mrf.mxu0
    %v5292 = vadd.f32 %v5209, %v5291
    %v5293 = vpop.f32.mrf.mxu0
    %v5294 = vpop.f32.mrf.mxu0
    %5295 = vdwg.mxu0
    %v5296 = vxor.u32 %v5249, 2147483648
    %v5297 = vmul.f32 %v5296, 1.442695
    %v5298 = vpow.pop %v5297
    %v5299 = vadd.f32 %v5298, 1.0
    %v5300 = vrcp.pop %v5299
    %v5301 = vmul.f32 1.0, %v5300
    %v5302 = vxor.u32 %v5251, 2147483648
    %v5303 = vmul.f32 %v5302, 1.442695
    %v5304 = vpow.pop %v5303
    %v5305 = vadd.f32 %v5304, 1.0
    %v5306 = vrcp.pop %v5305
    %v5307 = vmul.f32 1.0, %v5306
    %v5308 = vtanh.pop %v5290
    %v5309 = vxor.u32 %v5292, 2147483648
    %v5310 = vmul.f32 %v5309, 1.442695
    %v5311 = vpow.pop %v5310
    %v5312 = vadd.f32 %v5311, 1.0
    %v5313 = vrcp.pop %v5312
    %v5314 = vmul.f32 1.0, %v5313
    %v5315 = vmul.f32 %v5307, %v4998
    %v5316 = vmul.f32 %v5301, %v5308
    %v5317 = vadd.f32 %v5315, %v5316
    %v5318 = vtanh.pop %v5317
    %v5319 = vmul.f32 %v5314, %v5318
    %5320 = vst [vmem:[#allocation4] sm:$0x1] %v5319
    %5321 = vst [vmem:[#allocation5] sm:$0x1] %v5317
    %v5322 = vpack.c.bf16 %v5319, %v5319
    %v5323 = vld [vmem:[#allocation14] sm:$0xf]
    %v5324 = vld [vmem:[#allocation14 + $0x4] sm:$0xf]
    %v5325 = vld [vmem:[#allocation14 + $0x8] sm:$0xf]
    %v5326 = vld [vmem:[#allocation14 + $0xc] sm:$0xf]
    %v5327 = vld [vmem:[#allocation14 + $0x10] sm:$0xf]
    %v5328 = vld [vmem:[#allocation14 + $0x14] sm:$0xf]
    %v5329 = vld [vmem:[#allocation14 + $0x18] sm:$0xf]
    %v5330 = vld [vmem:[#allocation14 + $0x1c] sm:$0xf]
    %v5331 = vld [vmem:[#allocation14 + $0x20] sm:$0xf]
    %v5332 = vld [vmem:[#allocation14 + $0x24] sm:$0xf]
    %v5333 = vld [vmem:[#allocation14 + $0x28] sm:$0xf]
    %v5334 = vld [vmem:[#allocation14 + $0x2c] sm:$0xf]
    %v5335 = vld [vmem:[#allocation14 + $0x30] sm:$0xf]
    %v5336 = vld [vmem:[#allocation14 + $0x34] sm:$0xf]
    %v5337 = vld [vmem:[#allocation14 + $0x38] sm:$0xf]
    %v5338 = vld [vmem:[#allocation14 + $0x3c] sm:$0xf]
    %v5339 = vld [vmem:[%s6] sm:$0x1]
    %v5356 = vunpack.c.l.b16 %v5323
    %v5357 = vunpack.c.l.b16 %v5324
    %v5358 = vunpack.c.l.b16 %v5325
    %v5359 = vunpack.c.l.b16 %v5326
    %v5360 = vunpack.c.l.b16 %v5327
    %v5361 = vunpack.c.l.b16 %v5328
    %v5362 = vunpack.c.l.b16 %v5329
    %v5363 = vunpack.c.l.b16 %v5330
    %v5364 = vunpack.c.l.b16 %v5331
    %v5365 = vunpack.c.l.b16 %v5332
    %v5366 = vunpack.c.l.b16 %v5333
    %v5367 = vunpack.c.l.b16 %v5334
    %v5368 = vunpack.c.l.b16 %v5335
    %v5369 = vunpack.c.l.b16 %v5336
    %v5370 = vunpack.c.l.b16 %v5337
    %v5371 = vunpack.c.l.b16 %v5338
    %v5372 = vpack.c.b16 %v5357, %v5356
    %v5373 = vpack.c.b16 %v5359, %v5358
    %v5374 = vpack.c.b16 %v5361, %v5360
    %v5375 = vpack.c.b16 %v5363, %v5362
    %v5376 = vpack.c.b16 %v5365, %v5364
    %v5377 = vpack.c.b16 %v5367, %v5366
    %v5378 = vpack.c.b16 %v5369, %v5368
    %v5379 = vpack.c.b16 %v5371, %v5370
    %5388 = vmatprep.subr.bf16.mxu0 0
    %5389 = vmatpush1.bf16.msra.mxu0 %v5379
    %5390 = vmatprep.subr.bf16.mxu0 0
    %5391 = vmatpush1.bf16.msra.mxu0 %v5378
    %5392 = vmatprep.subr.bf16.mxu0 0
    %5393 = vmatpush1.bf16.msra.mxu0 %v5377
    %5394 = vmatprep.subr.bf16.mxu0 0
    %5395 = vmatpush1.bf16.msra.mxu0 %v5376
    %5396 = vmatprep.subr.bf16.mxu0 0
    %5397 = vmatpush1.bf16.msra.mxu0 %v5375
    %5398 = vmatprep.subr.bf16.mxu0 0
    %5399 = vmatpush1.bf16.msra.mxu0 %v5374
    %5400 = vmatprep.subr.bf16.mxu0 0
    %5401 = vmatpush1.bf16.msra.mxu0 %v5373
    %5402 = vmatprep.subr.bf16.mxu0 0
    %5403 = vmatpush1.bf16.msra.mxu0 %v5372
    %5404 = vmatprep.subr.bf16.mxu0 0
    %5405 = vmatpush2.bf16.msra.mxu0 0
    %5406 = vmatprep.subr.bf16.mxu0 0
    %5407 = vmatpush2.bf16.msra.mxu0 0
    %5408 = vmatprep.subr.bf16.mxu0 0
    %5409 = vmatpush2.bf16.msra.mxu0 0
    %5410 = vmatprep.subr.bf16.mxu0 0
    %5411 = vmatpush2.bf16.msra.mxu0 0
    %5412 = vmatprep.subr.bf16.mxu0 0
    %5413 = vmatpush2.bf16.msra.mxu0 0
    %5414 = vmatprep.subr.bf16.mxu0 0
    %5415 = vmatpush2.bf16.msra.mxu0 0
    %5416 = vmatprep.subr.bf16.mxu0 0
    %5417 = vmatpush2.bf16.msra.mxu0 0
    %5418 = vmatprep.subr.bf16.mxu0 0
    %5419 = vmatpush2.bf16.msra.mxu0 0
    %5420 = vmatprep.mubr.bf16.mxu0 0
    %5421 = vmatmul.mubr.bf16.gmra.mxu0 %v5322
    %v5422 = vpop.f32.mrf.mxu0
    %v5423 = vadd.f32 %v5339, %v5422
    %v5424 = vpop.f32.mrf.mxu0
    %v5425 = vpop.f32.mrf.mxu0
    %v5426 = vpop.f32.mrf.mxu0
    %5427 = vdwg.mxu0
    %s5428 = scalar_lea.vmem [#allocation15], 6
    %5429 = vst [vmem:[%s5428] sm:$0x1] %v5423
    %s5430 = scalar_lea.vmem [#allocation6], 7
    %v5431 = vld [vmem:[%s5430] sm:$0x1]
    %v5432 = vld [vmem:[#allocation2] sm:$0x1]
    %v5433 = vadd.f32 %v5432, %v5431
    %v5434 = vld [vmem:[#allocation3] sm:$0x1]
    %v5435 = vpack.c.bf16 %v5433, %v5433
    %v5436 = vld [vmem:[#allocation9] sm:$0xff]
    %v5437 = vld [vmem:[#allocation9 + $0x8] sm:$0xff]
    %v5438 = vld [vmem:[#allocation9 + $0x10] sm:$0xff]
    %v5439 = vld [vmem:[#allocation9 + $0x18] sm:$0xff]
    %v5440 = vld [vmem:[#allocation9 + $0x20] sm:$0xff]
    %v5441 = vld [vmem:[#allocation9 + $0x28] sm:$0xff]
    %v5442 = vld [vmem:[#allocation9 + $0x30] sm:$0xff]
    %v5443 = vld [vmem:[#allocation9 + $0x38] sm:$0xff]
    %v5444 = vld [vmem:[#allocation9 + $0x40] sm:$0xff]
    %v5445 = vld [vmem:[#allocation9 + $0x48] sm:$0xff]
    %v5446 = vld [vmem:[#allocation9 + $0x50] sm:$0xff]
    %v5447 = vld [vmem:[#allocation9 + $0x58] sm:$0xff]
    %v5448 = vld [vmem:[#allocation9 + $0x60] sm:$0xff]
    %v5449 = vld [vmem:[#allocation9 + $0x68] sm:$0xff]
    %v5450 = vld [vmem:[#allocation9 + $0x70] sm:$0xff]
    %v5451 = vld [vmem:[#allocation9 + $0x78] sm:$0xff]
    %v5452 = vld [vmem:[#allocation9 + $0x80] sm:$0xff]
    %v5453 = vld [vmem:[#allocation9 + $0x88] sm:$0xff]
    %v5454 = vld [vmem:[#allocation9 + $0x90] sm:$0xff]
    %v5455 = vld [vmem:[#allocation9 + $0x98] sm:$0xff]
    %v5456 = vld [vmem:[#allocation9 + $0xa0] sm:$0xff]
    %v5457 = vld [vmem:[#allocation9 + $0xa8] sm:$0xff]
    %v5458 = vld [vmem:[#allocation9 + $0xb0] sm:$0xff]
    %v5459 = vld [vmem:[#allocation9 + $0xb8] sm:$0xff]
    %v5460 = vld [vmem:[#allocation9 + $0xc0] sm:$0xff]
    %v5461 = vld [vmem:[#allocation9 + $0xc8] sm:$0xff]
    %v5462 = vld [vmem:[#allocation9 + $0xd0] sm:$0xff]
    %v5463 = vld [vmem:[#allocation9 + $0xd8] sm:$0xff]
    %v5464 = vld [vmem:[#allocation9 + $0xe0] sm:$0xff]
    %v5465 = vld [vmem:[#allocation9 + $0xe8] sm:$0xff]
    %v5466 = vld [vmem:[#allocation9 + $0xf0] sm:$0xff]
    %v5467 = vld [vmem:[#allocation9 + $0xf8] sm:$0xff]
    %v5468 = vld [vmem:[#allocation11] sm:$0xf]
    %v5501 = vunpack.c.l.b16 %v5436
    %v5502 = vunpack.c.h.b16 %v5436
    %v5503 = vunpack.c.l.b16 %v5437
    %v5504 = vunpack.c.h.b16 %v5437
    %v5505 = vunpack.c.l.b16 %v5438
    %v5506 = vunpack.c.h.b16 %v5438
    %v5507 = vunpack.c.l.b16 %v5439
    %v5508 = vunpack.c.h.b16 %v5439
    %v5509 = vunpack.c.l.b16 %v5440
    %v5510 = vunpack.c.h.b16 %v5440
    %v5511 = vunpack.c.l.b16 %v5441
    %v5512 = vunpack.c.h.b16 %v5441
    %v5513 = vunpack.c.l.b16 %v5442
    %v5514 = vunpack.c.h.b16 %v5442
    %v5515 = vunpack.c.l.b16 %v5443
    %v5516 = vunpack.c.h.b16 %v5443
    %v5517 = vunpack.c.l.b16 %v5444
    %v5518 = vunpack.c.h.b16 %v5444
    %v5519 = vunpack.c.l.b16 %v5445
    %v5520 = vunpack.c.h.b16 %v5445
    %v5521 = vunpack.c.l.b16 %v5446
    %v5522 = vunpack.c.h.b16 %v5446
    %v5523 = vunpack.c.l.b16 %v5447
    %v5524 = vunpack.c.h.b16 %v5447
    %v5525 = vunpack.c.l.b16 %v5448
    %v5526 = vunpack.c.h.b16 %v5448
    %v5527 = vunpack.c.l.b16 %v5449
    %v5528 = vunpack.c.h.b16 %v5449
    %v5529 = vunpack.c.l.b16 %v5450
    %v5530 = vunpack.c.h.b16 %v5450
    %v5531 = vunpack.c.l.b16 %v5451
    %v5532 = vunpack.c.h.b16 %v5451
    %v5533 = vunpack.c.l.b16 %v5452
    %v5534 = vunpack.c.h.b16 %v5452
    %v5535 = vunpack.c.l.b16 %v5453
    %v5536 = vunpack.c.h.b16 %v5453
    %v5537 = vunpack.c.l.b16 %v5454
    %v5538 = vunpack.c.h.b16 %v5454
    %v5539 = vunpack.c.l.b16 %v5455
    %v5540 = vunpack.c.h.b16 %v5455
    %v5541 = vunpack.c.l.b16 %v5456
    %v5542 = vunpack.c.h.b16 %v5456
    %v5543 = vunpack.c.l.b16 %v5457
    %v5544 = vunpack.c.h.b16 %v5457
    %v5545 = vunpack.c.l.b16 %v5458
    %v5546 = vunpack.c.h.b16 %v5458
    %v5547 = vunpack.c.l.b16 %v5459
    %v5548 = vunpack.c.h.b16 %v5459
    %v5549 = vunpack.c.l.b16 %v5460
    %v5550 = vunpack.c.h.b16 %v5460
    %v5551 = vunpack.c.l.b16 %v5461
    %v5552 = vunpack.c.h.b16 %v5461
    %v5553 = vunpack.c.l.b16 %v5462
    %v5554 = vunpack.c.h.b16 %v5462
    %v5555 = vunpack.c.l.b16 %v5463
    %v5556 = vunpack.c.h.b16 %v5463
    %v5557 = vunpack.c.l.b16 %v5464
    %v5558 = vunpack.c.h.b16 %v5464
    %v5559 = vunpack.c.l.b16 %v5465
    %v5560 = vunpack.c.h.b16 %v5465
    %v5561 = vunpack.c.l.b16 %v5466
    %v5562 = vunpack.c.h.b16 %v5466
    %v5563 = vunpack.c.l.b16 %v5467
    %v5564 = vunpack.c.h.b16 %v5467
    %v5565 = vpack.c.b16 %v5505, %v5501
    %v5566 = vpack.c.b16 %v5506, %v5502
    %v5567 = vpack.c.b16 %v5507, %v5503
    %v5568 = vpack.c.b16 %v5508, %v5504
    %v5569 = vpack.c.b16 %v5513, %v5509
    %v5570 = vpack.c.b16 %v5514, %v5510
    %v5571 = vpack.c.b16 %v5515, %v5511
    %v5572 = vpack.c.b16 %v5516, %v5512
    %v5573 = vpack.c.b16 %v5521, %v5517
    %v5574 = vpack.c.b16 %v5522, %v5518
    %v5575 = vpack.c.b16 %v5523, %v5519
    %v5576 = vpack.c.b16 %v5524, %v5520
    %v5577 = vpack.c.b16 %v5529, %v5525
    %v5578 = vpack.c.b16 %v5530, %v5526
    %v5579 = vpack.c.b16 %v5531, %v5527
    %v5580 = vpack.c.b16 %v5532, %v5528
    %v5581 = vpack.c.b16 %v5537, %v5533
    %v5582 = vpack.c.b16 %v5538, %v5534
    %v5583 = vpack.c.b16 %v5539, %v5535
    %v5584 = vpack.c.b16 %v5540, %v5536
    %v5585 = vpack.c.b16 %v5545, %v5541
    %v5586 = vpack.c.b16 %v5546, %v5542
    %v5587 = vpack.c.b16 %v5547, %v5543
    %v5588 = vpack.c.b16 %v5548, %v5544
    %v5589 = vpack.c.b16 %v5553, %v5549
    %v5590 = vpack.c.b16 %v5554, %v5550
    %v5591 = vpack.c.b16 %v5555, %v5551
    %v5592 = vpack.c.b16 %v5556, %v5552
    %v5593 = vpack.c.b16 %v5561, %v5557
    %v5594 = vpack.c.b16 %v5562, %v5558
    %v5595 = vpack.c.b16 %v5563, %v5559
    %v5596 = vpack.c.b16 %v5564, %v5560
    %v5630 = vlaneseq
    %v5631 = vshrl.u32 %v5630, 7
    %v5632 = vsub.s32 0, %v5631
    %v5633 = vrot.slane %v5468, %v5632
    %v5634 = vlaneseq
    %v5635 = vshrl.u32 %v5634, 7
    %v5636 = vsub.s32 1, %v5635
    %v5637 = vrot.slane %v5468, %v5636
    %v5638 = vlaneseq
    %v5639 = vshrl.u32 %v5638, 7
    %v5640 = vsub.s32 2, %v5639
    %v5641 = vrot.slane %v5468, %v5640
    %v5642 = vlaneseq
    %v5643 = vshrl.u32 %v5642, 7
    %v5644 = vsub.s32 3, %v5643
    %v5645 = vrot.slane %v5468, %v5644
    %5650 = vmatprep.subr.bf16.mxu0 %v5594
    %5651 = vmatpush1.bf16.msra.mxu0 %v5593
    %5652 = vmatprep.subr.bf16.mxu0 %v5590
    %5653 = vmatpush1.bf16.msra.mxu0 %v5589
    %5654 = vmatprep.subr.bf16.mxu0 %v5586
    %5655 = vmatpush1.bf16.msra.mxu0 %v5585
    %5656 = vmatprep.subr.bf16.mxu0 %v5582
    %5657 = vmatpush1.bf16.msra.mxu0 %v5581
    %5658 = vmatprep.subr.bf16.mxu0 %v5578
    %5659 = vmatpush1.bf16.msra.mxu0 %v5577
    %5660 = vmatprep.subr.bf16.mxu0 %v5574
    %5661 = vmatpush1.bf16.msra.mxu0 %v5573
    %5662 = vmatprep.subr.bf16.mxu0 %v5570
    %5663 = vmatpush1.bf16.msra.mxu0 %v5569
    %5664 = vmatprep.subr.bf16.mxu0 %v5566
    %5665 = vmatpush1.bf16.msra.mxu0 %v5565
    %5666 = vmatprep.subr.bf16.mxu0 0
    %5667 = vmatpush2.bf16.msra.mxu0 0
    %5668 = vmatprep.subr.bf16.mxu0 0
    %5669 = vmatpush2.bf16.msra.mxu0 0
    %5670 = vmatprep.subr.bf16.mxu0 0
    %5671 = vmatpush2.bf16.msra.mxu0 0
    %5672 = vmatprep.subr.bf16.mxu0 0
    %5673 = vmatpush2.bf16.msra.mxu0 0
    %5674 = vmatprep.subr.bf16.mxu0 0
    %5675 = vmatpush2.bf16.msra.mxu0 0
    %5676 = vmatprep.subr.bf16.mxu0 0
    %5677 = vmatpush2.bf16.msra.mxu0 0
    %5678 = vmatprep.subr.bf16.mxu0 0
    %5679 = vmatpush2.bf16.msra.mxu0 0
    %5680 = vmatprep.subr.bf16.mxu0 0
    %5681 = vmatpush2.bf16.msra.mxu0 0
    %5682 = vmatprep.mubr.bf16.mxu0 0
    %5683 = vmatmul.mubr.bf16.gmra.mxu0 %v5435
    %v5684 = vpop.f32.mrf.mxu0
    %v5685 = vadd.f32 %v5633, %v5684
    %v5686 = vpop.f32.mrf.mxu0
    %v5687 = vadd.f32 %v5637, %v5686
    %v5688 = vpop.f32.mrf.mxu0
    %v5689 = vpop.f32.mrf.mxu0
    %5690 = vdwg.mxu0
    %5691 = vmatprep.subr.bf16.mxu0 %v5596
    %5692 = vmatpush1.bf16.msra.mxu0 %v5595
    %5693 = vmatprep.subr.bf16.mxu0 %v5592
    %5694 = vmatpush1.bf16.msra.mxu0 %v5591
    %5695 = vmatprep.subr.bf16.mxu0 %v5588
    %5696 = vmatpush1.bf16.msra.mxu0 %v5587
    %5697 = vmatprep.subr.bf16.mxu0 %v5584
    %5698 = vmatpush1.bf16.msra.mxu0 %v5583
    %5699 = vmatprep.subr.bf16.mxu0 %v5580
    %5700 = vmatpush1.bf16.msra.mxu0 %v5579
    %5701 = vmatprep.subr.bf16.mxu0 %v5576
    %5702 = vmatpush1.bf16.msra.mxu0 %v5575
    %5703 = vmatprep.subr.bf16.mxu0 %v5572
    %5704 = vmatpush1.bf16.msra.mxu0 %v5571
    %5705 = vmatprep.subr.bf16.mxu0 %v5568
    %5706 = vmatpush1.bf16.msra.mxu0 %v5567
    %5707 = vmatprep.subr.bf16.mxu0 0
    %5708 = vmatpush2.bf16.msra.mxu0 0
    %5709 = vmatprep.subr.bf16.mxu0 0
    %5710 = vmatpush2.bf16.msra.mxu0 0
    %5711 = vmatprep.subr.bf16.mxu0 0
    %5712 = vmatpush2.bf16.msra.mxu0 0
    %5713 = vmatprep.subr.bf16.mxu0 0
    %5714 = vmatpush2.bf16.msra.mxu0 0
    %5715 = vmatprep.subr.bf16.mxu0 0
    %5716 = vmatpush2.bf16.msra.mxu0 0
    %5717 = vmatprep.subr.bf16.mxu0 0
    %5718 = vmatpush2.bf16.msra.mxu0 0
    %5719 = vmatprep.subr.bf16.mxu0 0
    %5720 = vmatpush2.bf16.msra.mxu0 0
    %5721 = vmatprep.subr.bf16.mxu0 0
    %5722 = vmatpush2.bf16.msra.mxu0 0
    %5723 = vmatprep.mubr.bf16.mxu0 0
    %5724 = vmatmul.mubr.bf16.gmra.mxu0 %v5435
    %v5725 = vpop.f32.mrf.mxu0
    %v5726 = vadd.f32 %v5641, %v5725
    %v5727 = vpop.f32.mrf.mxu0
    %v5728 = vadd.f32 %v5645, %v5727
    %v5729 = vpop.f32.mrf.mxu0
    %v5730 = vpop.f32.mrf.mxu0
    %5731 = vdwg.mxu0
    %v5732 = vxor.u32 %v5685, 2147483648
    %v5733 = vmul.f32 %v5732, 1.442695
    %v5734 = vpow.pop %v5733
    %v5735 = vadd.f32 %v5734, 1.0
    %v5736 = vrcp.pop %v5735
    %v5737 = vmul.f32 1.0, %v5736
    %v5738 = vxor.u32 %v5687, 2147483648
    %v5739 = vmul.f32 %v5738, 1.442695
    %v5740 = vpow.pop %v5739
    %v5741 = vadd.f32 %v5740, 1.0
    %v5742 = vrcp.pop %v5741
    %v5743 = vmul.f32 1.0, %v5742
    %v5744 = vtanh.pop %v5726
    %v5745 = vxor.u32 %v5728, 2147483648
    %v5746 = vmul.f32 %v5745, 1.442695
    %v5747 = vpow.pop %v5746
    %v5748 = vadd.f32 %v5747, 1.0
    %v5749 = vrcp.pop %v5748
    %v5750 = vmul.f32 1.0, %v5749
    %v5751 = vmul.f32 %v5743, %v5434
    %v5752 = vmul.f32 %v5737, %v5744
    %v5753 = vadd.f32 %v5751, %v5752
    %v5754 = vtanh.pop %v5753
    %v5755 = vmul.f32 %v5750, %v5754
    %5756 = vst [vmem:[#allocation2] sm:$0x1] %v5755
    %5757 = vst [vmem:[#allocation3] sm:$0x1] %v5753
    %v5758 = vld [vmem:[#allocation4] sm:$0x1]
    %v5759 = vadd.f32 %v5755, %v5758
    %v5760 = vld [vmem:[#allocation5] sm:$0x1]
    %v5761 = vpack.c.bf16 %v5759, %v5759
    %v5762 = vld [vmem:[#allocation12] sm:$0xff]
    %v5763 = vld [vmem:[#allocation12 + $0x8] sm:$0xff]
    %v5764 = vld [vmem:[#allocation12 + $0x10] sm:$0xff]
    %v5765 = vld [vmem:[#allocation12 + $0x18] sm:$0xff]
    %v5766 = vld [vmem:[#allocation12 + $0x20] sm:$0xff]
    %v5767 = vld [vmem:[#allocation12 + $0x28] sm:$0xff]
    %v5768 = vld [vmem:[#allocation12 + $0x30] sm:$0xff]
    %v5769 = vld [vmem:[#allocation12 + $0x38] sm:$0xff]
    %v5770 = vld [vmem:[#allocation12 + $0x40] sm:$0xff]
    %v5771 = vld [vmem:[#allocation12 + $0x48] sm:$0xff]
    %v5772 = vld [vmem:[#allocation12 + $0x50] sm:$0xff]
    %v5773 = vld [vmem:[#allocation12 + $0x58] sm:$0xff]
    %v5774 = vld [vmem:[#allocation12 + $0x60] sm:$0xff]
    %v5775 = vld [vmem:[#allocation12 + $0x68] sm:$0xff]
    %v5776 = vld [vmem:[#allocation12 + $0x70] sm:$0xff]
    %v5777 = vld [vmem:[#allocation12 + $0x78] sm:$0xff]
    %v5778 = vld [vmem:[#allocation12 + $0x80] sm:$0xff]
    %v5779 = vld [vmem:[#allocation12 + $0x88] sm:$0xff]
    %v5780 = vld [vmem:[#allocation12 + $0x90] sm:$0xff]
    %v5781 = vld [vmem:[#allocation12 + $0x98] sm:$0xff]
    %v5782 = vld [vmem:[#allocation12 + $0xa0] sm:$0xff]
    %v5783 = vld [vmem:[#allocation12 + $0xa8] sm:$0xff]
    %v5784 = vld [vmem:[#allocation12 + $0xb0] sm:$0xff]
    %v5785 = vld [vmem:[#allocation12 + $0xb8] sm:$0xff]
    %v5786 = vld [vmem:[#allocation12 + $0xc0] sm:$0xff]
    %v5787 = vld [vmem:[#allocation12 + $0xc8] sm:$0xff]
    %v5788 = vld [vmem:[#allocation12 + $0xd0] sm:$0xff]
    %v5789 = vld [vmem:[#allocation12 + $0xd8] sm:$0xff]
    %v5790 = vld [vmem:[#allocation12 + $0xe0] sm:$0xff]
    %v5791 = vld [vmem:[#allocation12 + $0xe8] sm:$0xff]
    %v5792 = vld [vmem:[#allocation12 + $0xf0] sm:$0xff]
    %v5793 = vld [vmem:[#allocation12 + $0xf8] sm:$0xff]
    %v5794 = vld [vmem:[%s4] sm:$0xf]
    %v5827 = vunpack.c.l.b16 %v5762
    %v5828 = vunpack.c.h.b16 %v5762
    %v5829 = vunpack.c.l.b16 %v5763
    %v5830 = vunpack.c.h.b16 %v5763
    %v5831 = vunpack.c.l.b16 %v5764
    %v5832 = vunpack.c.h.b16 %v5764
    %v5833 = vunpack.c.l.b16 %v5765
    %v5834 = vunpack.c.h.b16 %v5765
    %v5835 = vunpack.c.l.b16 %v5766
    %v5836 = vunpack.c.h.b16 %v5766
    %v5837 = vunpack.c.l.b16 %v5767
    %v5838 = vunpack.c.h.b16 %v5767
    %v5839 = vunpack.c.l.b16 %v5768
    %v5840 = vunpack.c.h.b16 %v5768
    %v5841 = vunpack.c.l.b16 %v5769
    %v5842 = vunpack.c.h.b16 %v5769
    %v5843 = vunpack.c.l.b16 %v5770
    %v5844 = vunpack.c.h.b16 %v5770
    %v5845 = vunpack.c.l.b16 %v5771
    %v5846 = vunpack.c.h.b16 %v5771
    %v5847 = vunpack.c.l.b16 %v5772
    %v5848 = vunpack.c.h.b16 %v5772
    %v5849 = vunpack.c.l.b16 %v5773
    %v5850 = vunpack.c.h.b16 %v5773
    %v5851 = vunpack.c.l.b16 %v5774
    %v5852 = vunpack.c.h.b16 %v5774
    %v5853 = vunpack.c.l.b16 %v5775
    %v5854 = vunpack.c.h.b16 %v5775
    %v5855 = vunpack.c.l.b16 %v5776
    %v5856 = vunpack.c.h.b16 %v5776
    %v5857 = vunpack.c.l.b16 %v5777
    %v5858 = vunpack.c.h.b16 %v5777
    %v5859 = vunpack.c.l.b16 %v5778
    %v5860 = vunpack.c.h.b16 %v5778
    %v5861 = vunpack.c.l.b16 %v5779
    %v5862 = vunpack.c.h.b16 %v5779
    %v5863 = vunpack.c.l.b16 %v5780
    %v5864 = vunpack.c.h.b16 %v5780
    %v5865 = vunpack.c.l.b16 %v5781
    %v5866 = vunpack.c.h.b16 %v5781
    %v5867 = vunpack.c.l.b16 %v5782
    %v5868 = vunpack.c.h.b16 %v5782
    %v5869 = vunpack.c.l.b16 %v5783
    %v5870 = vunpack.c.h.b16 %v5783
    %v5871 = vunpack.c.l.b16 %v5784
    %v5872 = vunpack.c.h.b16 %v5784
    %v5873 = vunpack.c.l.b16 %v5785
    %v5874 = vunpack.c.h.b16 %v5785
    %v5875 = vunpack.c.l.b16 %v5786
    %v5876 = vunpack.c.h.b16 %v5786
    %v5877 = vunpack.c.l.b16 %v5787
    %v5878 = vunpack.c.h.b16 %v5787
    %v5879 = vunpack.c.l.b16 %v5788
    %v5880 = vunpack.c.h.b16 %v5788
    %v5881 = vunpack.c.l.b16 %v5789
    %v5882 = vunpack.c.h.b16 %v5789
    %v5883 = vunpack.c.l.b16 %v5790
    %v5884 = vunpack.c.h.b16 %v5790
    %v5885 = vunpack.c.l.b16 %v5791
    %v5886 = vunpack.c.h.b16 %v5791
    %v5887 = vunpack.c.l.b16 %v5792
    %v5888 = vunpack.c.h.b16 %v5792
    %v5889 = vunpack.c.l.b16 %v5793
    %v5890 = vunpack.c.h.b16 %v5793
    %v5891 = vpack.c.b16 %v5831, %v5827
    %v5892 = vpack.c.b16 %v5832, %v5828
    %v5893 = vpack.c.b16 %v5833, %v5829
    %v5894 = vpack.c.b16 %v5834, %v5830
    %v5895 = vpack.c.b16 %v5839, %v5835
    %v5896 = vpack.c.b16 %v5840, %v5836
    %v5897 = vpack.c.b16 %v5841, %v5837
    %v5898 = vpack.c.b16 %v5842, %v5838
    %v5899 = vpack.c.b16 %v5847, %v5843
    %v5900 = vpack.c.b16 %v5848, %v5844
    %v5901 = vpack.c.b16 %v5849, %v5845
    %v5902 = vpack.c.b16 %v5850, %v5846
    %v5903 = vpack.c.b16 %v5855, %v5851
    %v5904 = vpack.c.b16 %v5856, %v5852
    %v5905 = vpack.c.b16 %v5857, %v5853
    %v5906 = vpack.c.b16 %v5858, %v5854
    %v5907 = vpack.c.b16 %v5863, %v5859
    %v5908 = vpack.c.b16 %v5864, %v5860
    %v5909 = vpack.c.b16 %v5865, %v5861
    %v5910 = vpack.c.b16 %v5866, %v5862
    %v5911 = vpack.c.b16 %v5871, %v5867
    %v5912 = vpack.c.b16 %v5872, %v5868
    %v5913 = vpack.c.b16 %v5873, %v5869
    %v5914 = vpack.c.b16 %v5874, %v5870
    %v5915 = vpack.c.b16 %v5879, %v5875
    %v5916 = vpack.c.b16 %v5880, %v5876
    %v5917 = vpack.c.b16 %v5881, %v5877
    %v5918 = vpack.c.b16 %v5882, %v5878
    %v5919 = vpack.c.b16 %v5887, %v5883
    %v5920 = vpack.c.b16 %v5888, %v5884
    %v5921 = vpack.c.b16 %v5889, %v5885
    %v5922 = vpack.c.b16 %v5890, %v5886
    %v5956 = vlaneseq
    %v5957 = vshrl.u32 %v5956, 7
    %v5958 = vsub.s32 0, %v5957
    %v5959 = vrot.slane %v5794, %v5958
    %v5960 = vlaneseq
    %v5961 = vshrl.u32 %v5960, 7
    %v5962 = vsub.s32 1, %v5961
    %v5963 = vrot.slane %v5794, %v5962
    %v5964 = vlaneseq
    %v5965 = vshrl.u32 %v5964, 7
    %v5966 = vsub.s32 2, %v5965
    %v5967 = vrot.slane %v5794, %v5966
    %v5968 = vlaneseq
    %v5969 = vshrl.u32 %v5968, 7
    %v5970 = vsub.s32 3, %v5969
    %v5971 = vrot.slane %v5794, %v5970
    %5976 = vmatprep.subr.bf16.mxu0 %v5920
    %5977 = vmatpush1.bf16.msra.mxu0 %v5919
    %5978 = vmatprep.subr.bf16.mxu0 %v5916
    %5979 = vmatpush1.bf16.msra.mxu0 %v5915
    %5980 = vmatprep.subr.bf16.mxu0 %v5912
    %5981 = vmatpush1.bf16.msra.mxu0 %v5911
    %5982 = vmatprep.subr.bf16.mxu0 %v5908
    %5983 = vmatpush1.bf16.msra.mxu0 %v5907
    %5984 = vmatprep.subr.bf16.mxu0 %v5904
    %5985 = vmatpush1.bf16.msra.mxu0 %v5903
    %5986 = vmatprep.subr.bf16.mxu0 %v5900
    %5987 = vmatpush1.bf16.msra.mxu0 %v5899
    %5988 = vmatprep.subr.bf16.mxu0 %v5896
    %5989 = vmatpush1.bf16.msra.mxu0 %v5895
    %5990 = vmatprep.subr.bf16.mxu0 %v5892
    %5991 = vmatpush1.bf16.msra.mxu0 %v5891
    %5992 = vmatprep.subr.bf16.mxu0 0
    %5993 = vmatpush2.bf16.msra.mxu0 0
    %5994 = vmatprep.subr.bf16.mxu0 0
    %5995 = vmatpush2.bf16.msra.mxu0 0
    %5996 = vmatprep.subr.bf16.mxu0 0
    %5997 = vmatpush2.bf16.msra.mxu0 0
    %5998 = vmatprep.subr.bf16.mxu0 0
    %5999 = vmatpush2.bf16.msra.mxu0 0
    %6000 = vmatprep.subr.bf16.mxu0 0
    %6001 = vmatpush2.bf16.msra.mxu0 0
    %6002 = vmatprep.subr.bf16.mxu0 0
    %6003 = vmatpush2.bf16.msra.mxu0 0
    %6004 = vmatprep.subr.bf16.mxu0 0
    %6005 = vmatpush2.bf16.msra.mxu0 0
    %6006 = vmatprep.subr.bf16.mxu0 0
    %6007 = vmatpush2.bf16.msra.mxu0 0
    %6008 = vmatprep.mubr.bf16.mxu0 0
    %6009 = vmatmul.mubr.bf16.gmra.mxu0 %v5761
    %v6010 = vpop.f32.mrf.mxu0
    %v6011 = vadd.f32 %v5959, %v6010
    %v6012 = vpop.f32.mrf.mxu0
    %v6013 = vadd.f32 %v5963, %v6012
    %v6014 = vpop.f32.mrf.mxu0
    %v6015 = vpop.f32.mrf.mxu0
    %6016 = vdwg.mxu0
    %6017 = vmatprep.subr.bf16.mxu0 %v5922
    %6018 = vmatpush1.bf16.msra.mxu0 %v5921
    %6019 = vmatprep.subr.bf16.mxu0 %v5918
    %6020 = vmatpush1.bf16.msra.mxu0 %v5917
    %6021 = vmatprep.subr.bf16.mxu0 %v5914
    %6022 = vmatpush1.bf16.msra.mxu0 %v5913
    %6023 = vmatprep.subr.bf16.mxu0 %v5910
    %6024 = vmatpush1.bf16.msra.mxu0 %v5909
    %6025 = vmatprep.subr.bf16.mxu0 %v5906
    %6026 = vmatpush1.bf16.msra.mxu0 %v5905
    %6027 = vmatprep.subr.bf16.mxu0 %v5902
    %6028 = vmatpush1.bf16.msra.mxu0 %v5901
    %6029 = vmatprep.subr.bf16.mxu0 %v5898
    %6030 = vmatpush1.bf16.msra.mxu0 %v5897
    %6031 = vmatprep.subr.bf16.mxu0 %v5894
    %6032 = vmatpush1.bf16.msra.mxu0 %v5893
    %6033 = vmatprep.subr.bf16.mxu0 0
    %6034 = vmatpush2.bf16.msra.mxu0 0
    %6035 = vmatprep.subr.bf16.mxu0 0
    %6036 = vmatpush2.bf16.msra.mxu0 0
    %6037 = vmatprep.subr.bf16.mxu0 0
    %6038 = vmatpush2.bf16.msra.mxu0 0
    %6039 = vmatprep.subr.bf16.mxu0 0
    %6040 = vmatpush2.bf16.msra.mxu0 0
    %6041 = vmatprep.subr.bf16.mxu0 0
    %6042 = vmatpush2.bf16.msra.mxu0 0
    %6043 = vmatprep.subr.bf16.mxu0 0
    %6044 = vmatpush2.bf16.msra.mxu0 0
    %6045 = vmatprep.subr.bf16.mxu0 0
    %6046 = vmatpush2.bf16.msra.mxu0 0
    %6047 = vmatprep.subr.bf16.mxu0 0
    %6048 = vmatpush2.bf16.msra.mxu0 0
    %6049 = vmatprep.mubr.bf16.mxu0 0
    %6050 = vmatmul.mubr.bf16.gmra.mxu0 %v5761
    %v6051 = vpop.f32.mrf.mxu0
    %v6052 = vadd.f32 %v5967, %v6051
    %v6053 = vpop.f32.mrf.mxu0
    %v6054 = vadd.f32 %v5971, %v6053
    %v6055 = vpop.f32.mrf.mxu0
    %v6056 = vpop.f32.mrf.mxu0
    %6057 = vdwg.mxu0
    %v6058 = vxor.u32 %v6011, 2147483648
    %v6059 = vmul.f32 %v6058, 1.442695
    %v6060 = vpow.pop %v6059
    %v6061 = vadd.f32 %v6060, 1.0
    %v6062 = vrcp.pop %v6061
    %v6063 = vmul.f32 1.0, %v6062
    %v6064 = vxor.u32 %v6013, 2147483648
    %v6065 = vmul.f32 %v6064, 1.442695
    %v6066 = vpow.pop %v6065
    %v6067 = vadd.f32 %v6066, 1.0
    %v6068 = vrcp.pop %v6067
    %v6069 = vmul.f32 1.0, %v6068
    %v6070 = vtanh.pop %v6052
    %v6071 = vxor.u32 %v6054, 2147483648
    %v6072 = vmul.f32 %v6071, 1.442695
    %v6073 = vpow.pop %v6072
    %v6074 = vadd.f32 %v6073, 1.0
    %v6075 = vrcp.pop %v6074
    %v6076 = vmul.f32 1.0, %v6075
    %v6077 = vmul.f32 %v6069, %v5760
    %v6078 = vmul.f32 %v6063, %v6070
    %v6079 = vadd.f32 %v6077, %v6078
    %v6080 = vtanh.pop %v6079
    %v6081 = vmul.f32 %v6076, %v6080
    %6082 = vst [vmem:[#allocation4] sm:$0x1] %v6081
    %6083 = vst [vmem:[#allocation5] sm:$0x1] %v6079
    %v6084 = vpack.c.bf16 %v6081, %v6081
    %v6085 = vld [vmem:[#allocation14] sm:$0xf]
    %v6086 = vld [vmem:[#allocation14 + $0x4] sm:$0xf]
    %v6087 = vld [vmem:[#allocation14 + $0x8] sm:$0xf]
    %v6088 = vld [vmem:[#allocation14 + $0xc] sm:$0xf]
    %v6089 = vld [vmem:[#allocation14 + $0x10] sm:$0xf]
    %v6090 = vld [vmem:[#allocation14 + $0x14] sm:$0xf]
    %v6091 = vld [vmem:[#allocation14 + $0x18] sm:$0xf]
    %v6092 = vld [vmem:[#allocation14 + $0x1c] sm:$0xf]
    %v6093 = vld [vmem:[#allocation14 + $0x20] sm:$0xf]
    %v6094 = vld [vmem:[#allocation14 + $0x24] sm:$0xf]
    %v6095 = vld [vmem:[#allocation14 + $0x28] sm:$0xf]
    %v6096 = vld [vmem:[#allocation14 + $0x2c] sm:$0xf]
    %v6097 = vld [vmem:[#allocation14 + $0x30] sm:$0xf]
    %v6098 = vld [vmem:[#allocation14 + $0x34] sm:$0xf]
    %v6099 = vld [vmem:[#allocation14 + $0x38] sm:$0xf]
    %v6100 = vld [vmem:[#allocation14 + $0x3c] sm:$0xf]
    %v6101 = vld [vmem:[%s6] sm:$0x1]
    %v6118 = vunpack.c.l.b16 %v6085
    %v6119 = vunpack.c.l.b16 %v6086
    %v6120 = vunpack.c.l.b16 %v6087
    %v6121 = vunpack.c.l.b16 %v6088
    %v6122 = vunpack.c.l.b16 %v6089
    %v6123 = vunpack.c.l.b16 %v6090
    %v6124 = vunpack.c.l.b16 %v6091
    %v6125 = vunpack.c.l.b16 %v6092
    %v6126 = vunpack.c.l.b16 %v6093
    %v6127 = vunpack.c.l.b16 %v6094
    %v6128 = vunpack.c.l.b16 %v6095
    %v6129 = vunpack.c.l.b16 %v6096
    %v6130 = vunpack.c.l.b16 %v6097
    %v6131 = vunpack.c.l.b16 %v6098
    %v6132 = vunpack.c.l.b16 %v6099
    %v6133 = vunpack.c.l.b16 %v6100
    %v6134 = vpack.c.b16 %v6119, %v6118
    %v6135 = vpack.c.b16 %v6121, %v6120
    %v6136 = vpack.c.b16 %v6123, %v6122
    %v6137 = vpack.c.b16 %v6125, %v6124
    %v6138 = vpack.c.b16 %v6127, %v6126
    %v6139 = vpack.c.b16 %v6129, %v6128
    %v6140 = vpack.c.b16 %v6131, %v6130
    %v6141 = vpack.c.b16 %v6133, %v6132
    %6150 = vmatprep.subr.bf16.mxu0 0
    %6151 = vmatpush1.bf16.msra.mxu0 %v6141
    %6152 = vmatprep.subr.bf16.mxu0 0
    %6153 = vmatpush1.bf16.msra.mxu0 %v6140
    %6154 = vmatprep.subr.bf16.mxu0 0
    %6155 = vmatpush1.bf16.msra.mxu0 %v6139
    %6156 = vmatprep.subr.bf16.mxu0 0
    %6157 = vmatpush1.bf16.msra.mxu0 %v6138
    %6158 = vmatprep.subr.bf16.mxu0 0
    %6159 = vmatpush1.bf16.msra.mxu0 %v6137
    %6160 = vmatprep.subr.bf16.mxu0 0
    %6161 = vmatpush1.bf16.msra.mxu0 %v6136
    %6162 = vmatprep.subr.bf16.mxu0 0
    %6163 = vmatpush1.bf16.msra.mxu0 %v6135
    %6164 = vmatprep.subr.bf16.mxu0 0
    %6165 = vmatpush1.bf16.msra.mxu0 %v6134
    %6166 = vmatprep.subr.bf16.mxu0 0
    %6167 = vmatpush2.bf16.msra.mxu0 0
    %6168 = vmatprep.subr.bf16.mxu0 0
    %6169 = vmatpush2.bf16.msra.mxu0 0
    %6170 = vmatprep.subr.bf16.mxu0 0
    %6171 = vmatpush2.bf16.msra.mxu0 0
    %6172 = vmatprep.subr.bf16.mxu0 0
    %6173 = vmatpush2.bf16.msra.mxu0 0
    %6174 = vmatprep.subr.bf16.mxu0 0
    %6175 = vmatpush2.bf16.msra.mxu0 0
    %6176 = vmatprep.subr.bf16.mxu0 0
    %6177 = vmatpush2.bf16.msra.mxu0 0
    %6178 = vmatprep.subr.bf16.mxu0 0
    %6179 = vmatpush2.bf16.msra.mxu0 0
    %6180 = vmatprep.subr.bf16.mxu0 0
    %6181 = vmatpush2.bf16.msra.mxu0 0
    %6182 = vmatprep.mubr.bf16.mxu0 0
    %6183 = vmatmul.mubr.bf16.gmra.mxu0 %v6084
    %v6184 = vpop.f32.mrf.mxu0
    %v6185 = vadd.f32 %v6101, %v6184
    %v6186 = vpop.f32.mrf.mxu0
    %v6187 = vpop.f32.mrf.mxu0
    %v6188 = vpop.f32.mrf.mxu0
    %6189 = vdwg.mxu0
    %s6190 = scalar_lea.vmem [#allocation15], 7
    %6191 = vst [vmem:[%s6190] sm:$0x1] %v6185
    %v6192 = vld [vmem:[%s5430] sm:$0x1]
    %v6193 = vld [vmem:[#allocation2] sm:$0x1]
    %v6194 = vadd.f32 %v6193, %v6192
    %v6195 = vld [vmem:[#allocation3] sm:$0x1]
    %v6196 = vpack.c.bf16 %v6194, %v6194
    %v6197 = vld [vmem:[#allocation9] sm:$0xff]
    %v6198 = vld [vmem:[#allocation9 + $0x8] sm:$0xff]
    %v6199 = vld [vmem:[#allocation9 + $0x10] sm:$0xff]
    %v6200 = vld [vmem:[#allocation9 + $0x18] sm:$0xff]
    %v6201 = vld [vmem:[#allocation9 + $0x20] sm:$0xff]
    %v6202 = vld [vmem:[#allocation9 + $0x28] sm:$0xff]
    %v6203 = vld [vmem:[#allocation9 + $0x30] sm:$0xff]
    %v6204 = vld [vmem:[#allocation9 + $0x38] sm:$0xff]
    %v6205 = vld [vmem:[#allocation9 + $0x40] sm:$0xff]
    %v6206 = vld [vmem:[#allocation9 + $0x48] sm:$0xff]
    %v6207 = vld [vmem:[#allocation9 + $0x50] sm:$0xff]
    %v6208 = vld [vmem:[#allocation9 + $0x58] sm:$0xff]
    %v6209 = vld [vmem:[#allocation9 + $0x60] sm:$0xff]
    %v6210 = vld [vmem:[#allocation9 + $0x68] sm:$0xff]
    %v6211 = vld [vmem:[#allocation9 + $0x70] sm:$0xff]
    %v6212 = vld [vmem:[#allocation9 + $0x78] sm:$0xff]
    %v6213 = vld [vmem:[#allocation9 + $0x80] sm:$0xff]
    %v6214 = vld [vmem:[#allocation9 + $0x88] sm:$0xff]
    %v6215 = vld [vmem:[#allocation9 + $0x90] sm:$0xff]
    %v6216 = vld [vmem:[#allocation9 + $0x98] sm:$0xff]
    %v6217 = vld [vmem:[#allocation9 + $0xa0] sm:$0xff]
    %v6218 = vld [vmem:[#allocation9 + $0xa8] sm:$0xff]
    %v6219 = vld [vmem:[#allocation9 + $0xb0] sm:$0xff]
    %v6220 = vld [vmem:[#allocation9 + $0xb8] sm:$0xff]
    %v6221 = vld [vmem:[#allocation9 + $0xc0] sm:$0xff]
    %v6222 = vld [vmem:[#allocation9 + $0xc8] sm:$0xff]
    %v6223 = vld [vmem:[#allocation9 + $0xd0] sm:$0xff]
    %v6224 = vld [vmem:[#allocation9 + $0xd8] sm:$0xff]
    %v6225 = vld [vmem:[#allocation9 + $0xe0] sm:$0xff]
    %v6226 = vld [vmem:[#allocation9 + $0xe8] sm:$0xff]
    %v6227 = vld [vmem:[#allocation9 + $0xf0] sm:$0xff]
    %v6228 = vld [vmem:[#allocation9 + $0xf8] sm:$0xff]
    %v6229 = vld [vmem:[#allocation11] sm:$0xf]
    %v6262 = vunpack.c.l.b16 %v6197
    %v6263 = vunpack.c.h.b16 %v6197
    %v6264 = vunpack.c.l.b16 %v6198
    %v6265 = vunpack.c.h.b16 %v6198
    %v6266 = vunpack.c.l.b16 %v6199
    %v6267 = vunpack.c.h.b16 %v6199
    %v6268 = vunpack.c.l.b16 %v6200
    %v6269 = vunpack.c.h.b16 %v6200
    %v6270 = vunpack.c.l.b16 %v6201
    %v6271 = vunpack.c.h.b16 %v6201
    %v6272 = vunpack.c.l.b16 %v6202
    %v6273 = vunpack.c.h.b16 %v6202
    %v6274 = vunpack.c.l.b16 %v6203
    %v6275 = vunpack.c.h.b16 %v6203
    %v6276 = vunpack.c.l.b16 %v6204
    %v6277 = vunpack.c.h.b16 %v6204
    %v6278 = vunpack.c.l.b16 %v6205
    %v6279 = vunpack.c.h.b16 %v6205
    %v6280 = vunpack.c.l.b16 %v6206
    %v6281 = vunpack.c.h.b16 %v6206
    %v6282 = vunpack.c.l.b16 %v6207
    %v6283 = vunpack.c.h.b16 %v6207
    %v6284 = vunpack.c.l.b16 %v6208
    %v6285 = vunpack.c.h.b16 %v6208
    %v6286 = vunpack.c.l.b16 %v6209
    %v6287 = vunpack.c.h.b16 %v6209
    %v6288 = vunpack.c.l.b16 %v6210
    %v6289 = vunpack.c.h.b16 %v6210
    %v6290 = vunpack.c.l.b16 %v6211
    %v6291 = vunpack.c.h.b16 %v6211
    %v6292 = vunpack.c.l.b16 %v6212
    %v6293 = vunpack.c.h.b16 %v6212
    %v6294 = vunpack.c.l.b16 %v6213
    %v6295 = vunpack.c.h.b16 %v6213
    %v6296 = vunpack.c.l.b16 %v6214
    %v6297 = vunpack.c.h.b16 %v6214
    %v6298 = vunpack.c.l.b16 %v6215
    %v6299 = vunpack.c.h.b16 %v6215
    %v6300 = vunpack.c.l.b16 %v6216
    %v6301 = vunpack.c.h.b16 %v6216
    %v6302 = vunpack.c.l.b16 %v6217
    %v6303 = vunpack.c.h.b16 %v6217
    %v6304 = vunpack.c.l.b16 %v6218
    %v6305 = vunpack.c.h.b16 %v6218
    %v6306 = vunpack.c.l.b16 %v6219
    %v6307 = vunpack.c.h.b16 %v6219
    %v6308 = vunpack.c.l.b16 %v6220
    %v6309 = vunpack.c.h.b16 %v6220
    %v6310 = vunpack.c.l.b16 %v6221
    %v6311 = vunpack.c.h.b16 %v6221
    %v6312 = vunpack.c.l.b16 %v6222
    %v6313 = vunpack.c.h.b16 %v6222
    %v6314 = vunpack.c.l.b16 %v6223
    %v6315 = vunpack.c.h.b16 %v6223
    %v6316 = vunpack.c.l.b16 %v6224
    %v6317 = vunpack.c.h.b16 %v6224
    %v6318 = vunpack.c.l.b16 %v6225
    %v6319 = vunpack.c.h.b16 %v6225
    %v6320 = vunpack.c.l.b16 %v6226
    %v6321 = vunpack.c.h.b16 %v6226
    %v6322 = vunpack.c.l.b16 %v6227
    %v6323 = vunpack.c.h.b16 %v6227
    %v6324 = vunpack.c.l.b16 %v6228
    %v6325 = vunpack.c.h.b16 %v6228
    %v6326 = vpack.c.b16 %v6266, %v6262
    %v6327 = vpack.c.b16 %v6267, %v6263
    %v6328 = vpack.c.b16 %v6268, %v6264
    %v6329 = vpack.c.b16 %v6269, %v6265
    %v6330 = vpack.c.b16 %v6274, %v6270
    %v6331 = vpack.c.b16 %v6275, %v6271
    %v6332 = vpack.c.b16 %v6276, %v6272
    %v6333 = vpack.c.b16 %v6277, %v6273
    %v6334 = vpack.c.b16 %v6282, %v6278
    %v6335 = vpack.c.b16 %v6283, %v6279
    %v6336 = vpack.c.b16 %v6284, %v6280
    %v6337 = vpack.c.b16 %v6285, %v6281
    %v6338 = vpack.c.b16 %v6290, %v6286
    %v6339 = vpack.c.b16 %v6291, %v6287
    %v6340 = vpack.c.b16 %v6292, %v6288
    %v6341 = vpack.c.b16 %v6293, %v6289
    %v6342 = vpack.c.b16 %v6298, %v6294
    %v6343 = vpack.c.b16 %v6299, %v6295
    %v6344 = vpack.c.b16 %v6300, %v6296
    %v6345 = vpack.c.b16 %v6301, %v6297
    %v6346 = vpack.c.b16 %v6306, %v6302
    %v6347 = vpack.c.b16 %v6307, %v6303
    %v6348 = vpack.c.b16 %v6308, %v6304
    %v6349 = vpack.c.b16 %v6309, %v6305
    %v6350 = vpack.c.b16 %v6314, %v6310
    %v6351 = vpack.c.b16 %v6315, %v6311
    %v6352 = vpack.c.b16 %v6316, %v6312
    %v6353 = vpack.c.b16 %v6317, %v6313
    %v6354 = vpack.c.b16 %v6322, %v6318
    %v6355 = vpack.c.b16 %v6323, %v6319
    %v6356 = vpack.c.b16 %v6324, %v6320
    %v6357 = vpack.c.b16 %v6325, %v6321
    %v6391 = vlaneseq
    %v6392 = vshrl.u32 %v6391, 7
    %v6393 = vsub.s32 0, %v6392
    %v6394 = vrot.slane %v6229, %v6393
    %v6395 = vlaneseq
    %v6396 = vshrl.u32 %v6395, 7
    %v6397 = vsub.s32 1, %v6396
    %v6398 = vrot.slane %v6229, %v6397
    %v6399 = vlaneseq
    %v6400 = vshrl.u32 %v6399, 7
    %v6401 = vsub.s32 2, %v6400
    %v6402 = vrot.slane %v6229, %v6401
    %v6403 = vlaneseq
    %v6404 = vshrl.u32 %v6403, 7
    %v6405 = vsub.s32 3, %v6404
    %v6406 = vrot.slane %v6229, %v6405
    %6411 = vmatprep.subr.bf16.mxu0 %v6355
    %6412 = vmatpush1.bf16.msra.mxu0 %v6354
    %6413 = vmatprep.subr.bf16.mxu0 %v6351
    %6414 = vmatpush1.bf16.msra.mxu0 %v6350
    %6415 = vmatprep.subr.bf16.mxu0 %v6347
    %6416 = vmatpush1.bf16.msra.mxu0 %v6346
    %6417 = vmatprep.subr.bf16.mxu0 %v6343
    %6418 = vmatpush1.bf16.msra.mxu0 %v6342
    %6419 = vmatprep.subr.bf16.mxu0 %v6339
    %6420 = vmatpush1.bf16.msra.mxu0 %v6338
    %6421 = vmatprep.subr.bf16.mxu0 %v6335
    %6422 = vmatpush1.bf16.msra.mxu0 %v6334
    %6423 = vmatprep.subr.bf16.mxu0 %v6331
    %6424 = vmatpush1.bf16.msra.mxu0 %v6330
    %6425 = vmatprep.subr.bf16.mxu0 %v6327
    %6426 = vmatpush1.bf16.msra.mxu0 %v6326
    %6427 = vmatprep.subr.bf16.mxu0 0
    %6428 = vmatpush2.bf16.msra.mxu0 0
    %6429 = vmatprep.subr.bf16.mxu0 0
    %6430 = vmatpush2.bf16.msra.mxu0 0
    %6431 = vmatprep.subr.bf16.mxu0 0
    %6432 = vmatpush2.bf16.msra.mxu0 0
    %6433 = vmatprep.subr.bf16.mxu0 0
    %6434 = vmatpush2.bf16.msra.mxu0 0
    %6435 = vmatprep.subr.bf16.mxu0 0
    %6436 = vmatpush2.bf16.msra.mxu0 0
    %6437 = vmatprep.subr.bf16.mxu0 0
    %6438 = vmatpush2.bf16.msra.mxu0 0
    %6439 = vmatprep.subr.bf16.mxu0 0
    %6440 = vmatpush2.bf16.msra.mxu0 0
    %6441 = vmatprep.subr.bf16.mxu0 0
    %6442 = vmatpush2.bf16.msra.mxu0 0
    %6443 = vmatprep.mubr.bf16.mxu0 0
    %6444 = vmatmul.mubr.bf16.gmra.mxu0 %v6196
    %v6445 = vpop.f32.mrf.mxu0
    %v6446 = vadd.f32 %v6394, %v6445
    %v6447 = vpop.f32.mrf.mxu0
    %v6448 = vadd.f32 %v6398, %v6447
    %v6449 = vpop.f32.mrf.mxu0
    %v6450 = vpop.f32.mrf.mxu0
    %6451 = vdwg.mxu0
    %6452 = vmatprep.subr.bf16.mxu0 %v6357
    %6453 = vmatpush1.bf16.msra.mxu0 %v6356
    %6454 = vmatprep.subr.bf16.mxu0 %v6353
    %6455 = vmatpush1.bf16.msra.mxu0 %v6352
    %6456 = vmatprep.subr.bf16.mxu0 %v6349
    %6457 = vmatpush1.bf16.msra.mxu0 %v6348
    %6458 = vmatprep.subr.bf16.mxu0 %v6345
    %6459 = vmatpush1.bf16.msra.mxu0 %v6344
    %6460 = vmatprep.subr.bf16.mxu0 %v6341
    %6461 = vmatpush1.bf16.msra.mxu0 %v6340
    %6462 = vmatprep.subr.bf16.mxu0 %v6337
    %6463 = vmatpush1.bf16.msra.mxu0 %v6336
    %6464 = vmatprep.subr.bf16.mxu0 %v6333
    %6465 = vmatpush1.bf16.msra.mxu0 %v6332
    %6466 = vmatprep.subr.bf16.mxu0 %v6329
    %6467 = vmatpush1.bf16.msra.mxu0 %v6328
    %6468 = vmatprep.subr.bf16.mxu0 0
    %6469 = vmatpush2.bf16.msra.mxu0 0
    %6470 = vmatprep.subr.bf16.mxu0 0
    %6471 = vmatpush2.bf16.msra.mxu0 0
    %6472 = vmatprep.subr.bf16.mxu0 0
    %6473 = vmatpush2.bf16.msra.mxu0 0
    %6474 = vmatprep.subr.bf16.mxu0 0
    %6475 = vmatpush2.bf16.msra.mxu0 0
    %6476 = vmatprep.subr.bf16.mxu0 0
    %6477 = vmatpush2.bf16.msra.mxu0 0
    %6478 = vmatprep.subr.bf16.mxu0 0
    %6479 = vmatpush2.bf16.msra.mxu0 0
    %6480 = vmatprep.subr.bf16.mxu0 0
    %6481 = vmatpush2.bf16.msra.mxu0 0
    %6482 = vmatprep.subr.bf16.mxu0 0
    %6483 = vmatpush2.bf16.msra.mxu0 0
    %6484 = vmatprep.mubr.bf16.mxu0 0
    %6485 = vmatmul.mubr.bf16.gmra.mxu0 %v6196
    %v6486 = vpop.f32.mrf.mxu0
    %v6487 = vadd.f32 %v6402, %v6486
    %v6488 = vpop.f32.mrf.mxu0
    %v6489 = vadd.f32 %v6406, %v6488
    %v6490 = vpop.f32.mrf.mxu0
    %v6491 = vpop.f32.mrf.mxu0
    %6492 = vdwg.mxu0
    %v6493 = vxor.u32 %v6446, 2147483648
    %v6494 = vmul.f32 %v6493, 1.442695
    %v6495 = vpow.pop %v6494
    %v6496 = vadd.f32 %v6495, 1.0
    %v6497 = vrcp.pop %v6496
    %v6498 = vmul.f32 1.0, %v6497
    %v6499 = vxor.u32 %v6448, 2147483648
    %v6500 = vmul.f32 %v6499, 1.442695
    %v6501 = vpow.pop %v6500
    %v6502 = vadd.f32 %v6501, 1.0
    %v6503 = vrcp.pop %v6502
    %v6504 = vmul.f32 1.0, %v6503
    %v6505 = vtanh.pop %v6487
    %v6506 = vxor.u32 %v6489, 2147483648
    %v6507 = vmul.f32 %v6506, 1.442695
    %v6508 = vpow.pop %v6507
    %v6509 = vadd.f32 %v6508, 1.0
    %v6510 = vrcp.pop %v6509
    %v6511 = vmul.f32 1.0, %v6510
    %v6512 = vmul.f32 %v6504, %v6195
    %v6513 = vmul.f32 %v6498, %v6505
    %v6514 = vadd.f32 %v6512, %v6513
    %v6515 = vtanh.pop %v6514
    %v6516 = vmul.f32 %v6511, %v6515
    %6517 = vst [vmem:[#allocation2] sm:$0x1] %v6516
    %6518 = vst [vmem:[#allocation3] sm:$0x1] %v6514
    %v6519 = vld [vmem:[#allocation4] sm:$0x1]
    %v6520 = vadd.f32 %v6516, %v6519
    %v6521 = vld [vmem:[#allocation5] sm:$0x1]
    %v6522 = vpack.c.bf16 %v6520, %v6520
    %v6523 = vld [vmem:[#allocation12] sm:$0xff]
    %v6524 = vld [vmem:[#allocation12 + $0x8] sm:$0xff]
    %v6525 = vld [vmem:[#allocation12 + $0x10] sm:$0xff]
    %v6526 = vld [vmem:[#allocation12 + $0x18] sm:$0xff]
    %v6527 = vld [vmem:[#allocation12 + $0x20] sm:$0xff]
    %v6528 = vld [vmem:[#allocation12 + $0x28] sm:$0xff]
    %v6529 = vld [vmem:[#allocation12 + $0x30] sm:$0xff]
    %v6530 = vld [vmem:[#allocation12 + $0x38] sm:$0xff]
    %v6531 = vld [vmem:[#allocation12 + $0x40] sm:$0xff]
    %v6532 = vld [vmem:[#allocation12 + $0x48] sm:$0xff]
    %v6533 = vld [vmem:[#allocation12 + $0x50] sm:$0xff]
    %v6534 = vld [vmem:[#allocation12 + $0x58] sm:$0xff]
    %v6535 = vld [vmem:[#allocation12 + $0x60] sm:$0xff]
    %v6536 = vld [vmem:[#allocation12 + $0x68] sm:$0xff]
    %v6537 = vld [vmem:[#allocation12 + $0x70] sm:$0xff]
    %v6538 = vld [vmem:[#allocation12 + $0x78] sm:$0xff]
    %v6539 = vld [vmem:[#allocation12 + $0x80] sm:$0xff]
    %v6540 = vld [vmem:[#allocation12 + $0x88] sm:$0xff]
    %v6541 = vld [vmem:[#allocation12 + $0x90] sm:$0xff]
    %v6542 = vld [vmem:[#allocation12 + $0x98] sm:$0xff]
    %v6543 = vld [vmem:[#allocation12 + $0xa0] sm:$0xff]
    %v6544 = vld [vmem:[#allocation12 + $0xa8] sm:$0xff]
    %v6545 = vld [vmem:[#allocation12 + $0xb0] sm:$0xff]
    %v6546 = vld [vmem:[#allocation12 + $0xb8] sm:$0xff]
    %v6547 = vld [vmem:[#allocation12 + $0xc0] sm:$0xff]
    %v6548 = vld [vmem:[#allocation12 + $0xc8] sm:$0xff]
    %v6549 = vld [vmem:[#allocation12 + $0xd0] sm:$0xff]
    %v6550 = vld [vmem:[#allocation12 + $0xd8] sm:$0xff]
    %v6551 = vld [vmem:[#allocation12 + $0xe0] sm:$0xff]
    %v6552 = vld [vmem:[#allocation12 + $0xe8] sm:$0xff]
    %v6553 = vld [vmem:[#allocation12 + $0xf0] sm:$0xff]
    %v6554 = vld [vmem:[#allocation12 + $0xf8] sm:$0xff]
    %v6555 = vld [vmem:[%s4] sm:$0xf]
    %v6588 = vunpack.c.l.b16 %v6523
    %v6589 = vunpack.c.h.b16 %v6523
    %v6590 = vunpack.c.l.b16 %v6524
    %v6591 = vunpack.c.h.b16 %v6524
    %v6592 = vunpack.c.l.b16 %v6525
    %v6593 = vunpack.c.h.b16 %v6525
    %v6594 = vunpack.c.l.b16 %v6526
    %v6595 = vunpack.c.h.b16 %v6526
    %v6596 = vunpack.c.l.b16 %v6527
    %v6597 = vunpack.c.h.b16 %v6527
    %v6598 = vunpack.c.l.b16 %v6528
    %v6599 = vunpack.c.h.b16 %v6528
    %v6600 = vunpack.c.l.b16 %v6529
    %v6601 = vunpack.c.h.b16 %v6529
    %v6602 = vunpack.c.l.b16 %v6530
    %v6603 = vunpack.c.h.b16 %v6530
    %v6604 = vunpack.c.l.b16 %v6531
    %v6605 = vunpack.c.h.b16 %v6531
    %v6606 = vunpack.c.l.b16 %v6532
    %v6607 = vunpack.c.h.b16 %v6532
    %v6608 = vunpack.c.l.b16 %v6533
    %v6609 = vunpack.c.h.b16 %v6533
    %v6610 = vunpack.c.l.b16 %v6534
    %v6611 = vunpack.c.h.b16 %v6534
    %v6612 = vunpack.c.l.b16 %v6535
    %v6613 = vunpack.c.h.b16 %v6535
    %v6614 = vunpack.c.l.b16 %v6536
    %v6615 = vunpack.c.h.b16 %v6536
    %v6616 = vunpack.c.l.b16 %v6537
    %v6617 = vunpack.c.h.b16 %v6537
    %v6618 = vunpack.c.l.b16 %v6538
    %v6619 = vunpack.c.h.b16 %v6538
    %v6620 = vunpack.c.l.b16 %v6539
    %v6621 = vunpack.c.h.b16 %v6539
    %v6622 = vunpack.c.l.b16 %v6540
    %v6623 = vunpack.c.h.b16 %v6540
    %v6624 = vunpack.c.l.b16 %v6541
    %v6625 = vunpack.c.h.b16 %v6541
    %v6626 = vunpack.c.l.b16 %v6542
    %v6627 = vunpack.c.h.b16 %v6542
    %v6628 = vunpack.c.l.b16 %v6543
    %v6629 = vunpack.c.h.b16 %v6543
    %v6630 = vunpack.c.l.b16 %v6544
    %v6631 = vunpack.c.h.b16 %v6544
    %v6632 = vunpack.c.l.b16 %v6545
    %v6633 = vunpack.c.h.b16 %v6545
    %v6634 = vunpack.c.l.b16 %v6546
    %v6635 = vunpack.c.h.b16 %v6546
    %v6636 = vunpack.c.l.b16 %v6547
    %v6637 = vunpack.c.h.b16 %v6547
    %v6638 = vunpack.c.l.b16 %v6548
    %v6639 = vunpack.c.h.b16 %v6548
    %v6640 = vunpack.c.l.b16 %v6549
    %v6641 = vunpack.c.h.b16 %v6549
    %v6642 = vunpack.c.l.b16 %v6550
    %v6643 = vunpack.c.h.b16 %v6550
    %v6644 = vunpack.c.l.b16 %v6551
    %v6645 = vunpack.c.h.b16 %v6551
    %v6646 = vunpack.c.l.b16 %v6552
    %v6647 = vunpack.c.h.b16 %v6552
    %v6648 = vunpack.c.l.b16 %v6553
    %v6649 = vunpack.c.h.b16 %v6553
    %v6650 = vunpack.c.l.b16 %v6554
    %v6651 = vunpack.c.h.b16 %v6554
    %v6652 = vpack.c.b16 %v6592, %v6588
    %v6653 = vpack.c.b16 %v6593, %v6589
    %v6654 = vpack.c.b16 %v6594, %v6590
    %v6655 = vpack.c.b16 %v6595, %v6591
    %v6656 = vpack.c.b16 %v6600, %v6596
    %v6657 = vpack.c.b16 %v6601, %v6597
    %v6658 = vpack.c.b16 %v6602, %v6598
    %v6659 = vpack.c.b16 %v6603, %v6599
    %v6660 = vpack.c.b16 %v6608, %v6604
    %v6661 = vpack.c.b16 %v6609, %v6605
    %v6662 = vpack.c.b16 %v6610, %v6606
    %v6663 = vpack.c.b16 %v6611, %v6607
    %v6664 = vpack.c.b16 %v6616, %v6612
    %v6665 = vpack.c.b16 %v6617, %v6613
    %v6666 = vpack.c.b16 %v6618, %v6614
    %v6667 = vpack.c.b16 %v6619, %v6615
    %v6668 = vpack.c.b16 %v6624, %v6620
    %v6669 = vpack.c.b16 %v6625, %v6621
    %v6670 = vpack.c.b16 %v6626, %v6622
    %v6671 = vpack.c.b16 %v6627, %v6623
    %v6672 = vpack.c.b16 %v6632, %v6628
    %v6673 = vpack.c.b16 %v6633, %v6629
    %v6674 = vpack.c.b16 %v6634, %v6630
    %v6675 = vpack.c.b16 %v6635, %v6631
    %v6676 = vpack.c.b16 %v6640, %v6636
    %v6677 = vpack.c.b16 %v6641, %v6637
    %v6678 = vpack.c.b16 %v6642, %v6638
    %v6679 = vpack.c.b16 %v6643, %v6639
    %v6680 = vpack.c.b16 %v6648, %v6644
    %v6681 = vpack.c.b16 %v6649, %v6645
    %v6682 = vpack.c.b16 %v6650, %v6646
    %v6683 = vpack.c.b16 %v6651, %v6647
    %v6717 = vlaneseq
    %v6718 = vshrl.u32 %v6717, 7
    %v6719 = vsub.s32 0, %v6718
    %v6720 = vrot.slane %v6555, %v6719
    %v6721 = vlaneseq
    %v6722 = vshrl.u32 %v6721, 7
    %v6723 = vsub.s32 1, %v6722
    %v6724 = vrot.slane %v6555, %v6723
    %v6725 = vlaneseq
    %v6726 = vshrl.u32 %v6725, 7
    %v6727 = vsub.s32 2, %v6726
    %v6728 = vrot.slane %v6555, %v6727
    %v6729 = vlaneseq
    %v6730 = vshrl.u32 %v6729, 7
    %v6731 = vsub.s32 3, %v6730
    %v6732 = vrot.slane %v6555, %v6731
    %6737 = vmatprep.subr.bf16.mxu0 %v6681
    %6738 = vmatpush1.bf16.msra.mxu0 %v6680
    %6739 = vmatprep.subr.bf16.mxu0 %v6677
    %6740 = vmatpush1.bf16.msra.mxu0 %v6676
    %6741 = vmatprep.subr.bf16.mxu0 %v6673
    %6742 = vmatpush1.bf16.msra.mxu0 %v6672
    %6743 = vmatprep.subr.bf16.mxu0 %v6669
    %6744 = vmatpush1.bf16.msra.mxu0 %v6668
    %6745 = vmatprep.subr.bf16.mxu0 %v6665
    %6746 = vmatpush1.bf16.msra.mxu0 %v6664
    %6747 = vmatprep.subr.bf16.mxu0 %v6661
    %6748 = vmatpush1.bf16.msra.mxu0 %v6660
    %6749 = vmatprep.subr.bf16.mxu0 %v6657
    %6750 = vmatpush1.bf16.msra.mxu0 %v6656
    %6751 = vmatprep.subr.bf16.mxu0 %v6653
    %6752 = vmatpush1.bf16.msra.mxu0 %v6652
    %6753 = vmatprep.subr.bf16.mxu0 0
    %6754 = vmatpush2.bf16.msra.mxu0 0
    %6755 = vmatprep.subr.bf16.mxu0 0
    %6756 = vmatpush2.bf16.msra.mxu0 0
    %6757 = vmatprep.subr.bf16.mxu0 0
    %6758 = vmatpush2.bf16.msra.mxu0 0
    %6759 = vmatprep.subr.bf16.mxu0 0
    %6760 = vmatpush2.bf16.msra.mxu0 0
    %6761 = vmatprep.subr.bf16.mxu0 0
    %6762 = vmatpush2.bf16.msra.mxu0 0
    %6763 = vmatprep.subr.bf16.mxu0 0
    %6764 = vmatpush2.bf16.msra.mxu0 0
    %6765 = vmatprep.subr.bf16.mxu0 0
    %6766 = vmatpush2.bf16.msra.mxu0 0
    %6767 = vmatprep.subr.bf16.mxu0 0
    %6768 = vmatpush2.bf16.msra.mxu0 0
    %6769 = vmatprep.mubr.bf16.mxu0 0
    %6770 = vmatmul.mubr.bf16.gmra.mxu0 %v6522
    %v6771 = vpop.f32.mrf.mxu0
    %v6772 = vadd.f32 %v6720, %v6771
    %v6773 = vpop.f32.mrf.mxu0
    %v6774 = vadd.f32 %v6724, %v6773
    %v6775 = vpop.f32.mrf.mxu0
    %v6776 = vpop.f32.mrf.mxu0
    %6777 = vdwg.mxu0
    %6778 = vmatprep.subr.bf16.mxu0 %v6683
    %6779 = vmatpush1.bf16.msra.mxu0 %v6682
    %6780 = vmatprep.subr.bf16.mxu0 %v6679
    %6781 = vmatpush1.bf16.msra.mxu0 %v6678
    %6782 = vmatprep.subr.bf16.mxu0 %v6675
    %6783 = vmatpush1.bf16.msra.mxu0 %v6674
    %6784 = vmatprep.subr.bf16.mxu0 %v6671
    %6785 = vmatpush1.bf16.msra.mxu0 %v6670
    %6786 = vmatprep.subr.bf16.mxu0 %v6667
    %6787 = vmatpush1.bf16.msra.mxu0 %v6666
    %6788 = vmatprep.subr.bf16.mxu0 %v6663
    %6789 = vmatpush1.bf16.msra.mxu0 %v6662
    %6790 = vmatprep.subr.bf16.mxu0 %v6659
    %6791 = vmatpush1.bf16.msra.mxu0 %v6658
    %6792 = vmatprep.subr.bf16.mxu0 %v6655
    %6793 = vmatpush1.bf16.msra.mxu0 %v6654
    %6794 = vmatprep.subr.bf16.mxu0 0
    %6795 = vmatpush2.bf16.msra.mxu0 0
    %6796 = vmatprep.subr.bf16.mxu0 0
    %6797 = vmatpush2.bf16.msra.mxu0 0
    %6798 = vmatprep.subr.bf16.mxu0 0
    %6799 = vmatpush2.bf16.msra.mxu0 0
    %6800 = vmatprep.subr.bf16.mxu0 0
    %6801 = vmatpush2.bf16.msra.mxu0 0
    %6802 = vmatprep.subr.bf16.mxu0 0
    %6803 = vmatpush2.bf16.msra.mxu0 0
    %6804 = vmatprep.subr.bf16.mxu0 0
    %6805 = vmatpush2.bf16.msra.mxu0 0
    %6806 = vmatprep.subr.bf16.mxu0 0
    %6807 = vmatpush2.bf16.msra.mxu0 0
    %6808 = vmatprep.subr.bf16.mxu0 0
    %6809 = vmatpush2.bf16.msra.mxu0 0
    %6810 = vmatprep.mubr.bf16.mxu0 0
    %6811 = vmatmul.mubr.bf16.gmra.mxu0 %v6522
    %v6812 = vpop.f32.mrf.mxu0
    %v6813 = vadd.f32 %v6728, %v6812
    %v6814 = vpop.f32.mrf.mxu0
    %v6815 = vadd.f32 %v6732, %v6814
    %v6816 = vpop.f32.mrf.mxu0
    %v6817 = vpop.f32.mrf.mxu0
    %6818 = vdwg.mxu0
    %v6819 = vxor.u32 %v6772, 2147483648
    %v6820 = vmul.f32 %v6819, 1.442695
    %v6821 = vpow.pop %v6820
    %v6822 = vadd.f32 %v6821, 1.0
    %v6823 = vrcp.pop %v6822
    %v6824 = vmul.f32 1.0, %v6823
    %v6825 = vxor.u32 %v6774, 2147483648
    %v6826 = vmul.f32 %v6825, 1.442695
    %v6827 = vpow.pop %v6826
    %v6828 = vadd.f32 %v6827, 1.0
    %v6829 = vrcp.pop %v6828
    %v6830 = vmul.f32 1.0, %v6829
    %v6831 = vtanh.pop %v6813
    %v6832 = vxor.u32 %v6815, 2147483648
    %v6833 = vmul.f32 %v6832, 1.442695
    %v6834 = vpow.pop %v6833
    %v6835 = vadd.f32 %v6834, 1.0
    %v6836 = vrcp.pop %v6835
    %v6837 = vmul.f32 1.0, %v6836
    %v6838 = vmul.f32 %v6830, %v6521
    %v6839 = vmul.f32 %v6824, %v6831
    %v6840 = vadd.f32 %v6838, %v6839
    %v6841 = vtanh.pop %v6840
    %v6842 = vmul.f32 %v6837, %v6841
    %6843 = vst [vmem:[#allocation4] sm:$0x1] %v6842
    %6844 = vst [vmem:[#allocation5] sm:$0x1] %v6840
    %v6845 = vpack.c.bf16 %v6842, %v6842
    %v6846 = vld [vmem:[#allocation14] sm:$0xf]
    %v6847 = vld [vmem:[#allocation14 + $0x4] sm:$0xf]
    %v6848 = vld [vmem:[#allocation14 + $0x8] sm:$0xf]
    %v6849 = vld [vmem:[#allocation14 + $0xc] sm:$0xf]
    %v6850 = vld [vmem:[#allocation14 + $0x10] sm:$0xf]
    %v6851 = vld [vmem:[#allocation14 + $0x14] sm:$0xf]
    %v6852 = vld [vmem:[#allocation14 + $0x18] sm:$0xf]
    %v6853 = vld [vmem:[#allocation14 + $0x1c] sm:$0xf]
    %v6854 = vld [vmem:[#allocation14 + $0x20] sm:$0xf]
    %v6855 = vld [vmem:[#allocation14 + $0x24] sm:$0xf]
    %v6856 = vld [vmem:[#allocation14 + $0x28] sm:$0xf]
    %v6857 = vld [vmem:[#allocation14 + $0x2c] sm:$0xf]
    %v6858 = vld [vmem:[#allocation14 + $0x30] sm:$0xf]
    %v6859 = vld [vmem:[#allocation14 + $0x34] sm:$0xf]
    %v6860 = vld [vmem:[#allocation14 + $0x38] sm:$0xf]
    %v6861 = vld [vmem:[#allocation14 + $0x3c] sm:$0xf]
    %v6862 = vld [vmem:[%s6] sm:$0x1]
    %v6879 = vunpack.c.l.b16 %v6846
    %v6880 = vunpack.c.l.b16 %v6847
    %v6881 = vunpack.c.l.b16 %v6848
    %v6882 = vunpack.c.l.b16 %v6849
    %v6883 = vunpack.c.l.b16 %v6850
    %v6884 = vunpack.c.l.b16 %v6851
    %v6885 = vunpack.c.l.b16 %v6852
    %v6886 = vunpack.c.l.b16 %v6853
    %v6887 = vunpack.c.l.b16 %v6854
    %v6888 = vunpack.c.l.b16 %v6855
    %v6889 = vunpack.c.l.b16 %v6856
    %v6890 = vunpack.c.l.b16 %v6857
    %v6891 = vunpack.c.l.b16 %v6858
    %v6892 = vunpack.c.l.b16 %v6859
    %v6893 = vunpack.c.l.b16 %v6860
    %v6894 = vunpack.c.l.b16 %v6861
    %v6895 = vpack.c.b16 %v6880, %v6879
    %v6896 = vpack.c.b16 %v6882, %v6881
    %v6897 = vpack.c.b16 %v6884, %v6883
    %v6898 = vpack.c.b16 %v6886, %v6885
    %v6899 = vpack.c.b16 %v6888, %v6887
    %v6900 = vpack.c.b16 %v6890, %v6889
    %v6901 = vpack.c.b16 %v6892, %v6891
    %v6902 = vpack.c.b16 %v6894, %v6893
    %6911 = vmatprep.subr.bf16.mxu0 0
    %6912 = vmatpush1.bf16.msra.mxu0 %v6902
    %6913 = vmatprep.subr.bf16.mxu0 0
    %6914 = vmatpush1.bf16.msra.mxu0 %v6901
    %6915 = vmatprep.subr.bf16.mxu0 0
    %6916 = vmatpush1.bf16.msra.mxu0 %v6900
    %6917 = vmatprep.subr.bf16.mxu0 0
    %6918 = vmatpush1.bf16.msra.mxu0 %v6899
    %6919 = vmatprep.subr.bf16.mxu0 0
    %6920 = vmatpush1.bf16.msra.mxu0 %v6898
    %6921 = vmatprep.subr.bf16.mxu0 0
    %6922 = vmatpush1.bf16.msra.mxu0 %v6897
    %6923 = vmatprep.subr.bf16.mxu0 0
    %6924 = vmatpush1.bf16.msra.mxu0 %v6896
    %6925 = vmatprep.subr.bf16.mxu0 0
    %6926 = vmatpush1.bf16.msra.mxu0 %v6895
    %6927 = vmatprep.subr.bf16.mxu0 0
    %6928 = vmatpush2.bf16.msra.mxu0 0
    %6929 = vmatprep.subr.bf16.mxu0 0
    %6930 = vmatpush2.bf16.msra.mxu0 0
    %6931 = vmatprep.subr.bf16.mxu0 0
    %6932 = vmatpush2.bf16.msra.mxu0 0
    %6933 = vmatprep.subr.bf16.mxu0 0
    %6934 = vmatpush2.bf16.msra.mxu0 0
    %6935 = vmatprep.subr.bf16.mxu0 0
    %6936 = vmatpush2.bf16.msra.mxu0 0
    %6937 = vmatprep.subr.bf16.mxu0 0
    %6938 = vmatpush2.bf16.msra.mxu0 0
    %6939 = vmatprep.subr.bf16.mxu0 0
    %6940 = vmatpush2.bf16.msra.mxu0 0
    %6941 = vmatprep.subr.bf16.mxu0 0
    %6942 = vmatpush2.bf16.msra.mxu0 0
    %6943 = vmatprep.mubr.bf16.mxu0 0
    %6944 = vmatmul.mubr.bf16.gmra.mxu0 %v6845
    %v6945 = vpop.f32.mrf.mxu0
    %v6946 = vadd.f32 %v6862, %v6945
    %v6947 = vpop.f32.mrf.mxu0
    %v6948 = vpop.f32.mrf.mxu0
    %v6949 = vpop.f32.mrf.mxu0
    %6950 = vdwg.mxu0
    %s6951 = scalar_lea.vmem [#allocation15], 8
    %6952 = vst [vmem:[%s6951] sm:$0x1] %v6946
    %v6953 = vld [vmem:[#allocation2] sm:$0x1]
    %v6954 = vadd.f32 %v6953, %v6946
    %v6955 = vld [vmem:[#allocation3] sm:$0x1]
    %v6956 = vpack.c.bf16 %v6954, %v6954
    %v6957 = vld [vmem:[#allocation9] sm:$0xff]
    %v6958 = vld [vmem:[#allocation9 + $0x8] sm:$0xff]
    %v6959 = vld [vmem:[#allocation9 + $0x10] sm:$0xff]
    %v6960 = vld [vmem:[#allocation9 + $0x18] sm:$0xff]
    %v6961 = vld [vmem:[#allocation9 + $0x20] sm:$0xff]
    %v6962 = vld [vmem:[#allocation9 + $0x28] sm:$0xff]
    %v6963 = vld [vmem:[#allocation9 + $0x30] sm:$0xff]
    %v6964 = vld [vmem:[#allocation9 + $0x38] sm:$0xff]
    %v6965 = vld [vmem:[#allocation9 + $0x40] sm:$0xff]
    %v6966 = vld [vmem:[#allocation9 + $0x48] sm:$0xff]
    %v6967 = vld [vmem:[#allocation9 + $0x50] sm:$0xff]
    %v6968 = vld [vmem:[#allocation9 + $0x58] sm:$0xff]
    %v6969 = vld [vmem:[#allocation9 + $0x60] sm:$0xff]
    %v6970 = vld [vmem:[#allocation9 + $0x68] sm:$0xff]
    %v6971 = vld [vmem:[#allocation9 + $0x70] sm:$0xff]
    %v6972 = vld [vmem:[#allocation9 + $0x78] sm:$0xff]
    %v6973 = vld [vmem:[#allocation9 + $0x80] sm:$0xff]
    %v6974 = vld [vmem:[#allocation9 + $0x88] sm:$0xff]
    %v6975 = vld [vmem:[#allocation9 + $0x90] sm:$0xff]
    %v6976 = vld [vmem:[#allocation9 + $0x98] sm:$0xff]
    %v6977 = vld [vmem:[#allocation9 + $0xa0] sm:$0xff]
    %v6978 = vld [vmem:[#allocation9 + $0xa8] sm:$0xff]
    %v6979 = vld [vmem:[#allocation9 + $0xb0] sm:$0xff]
    %v6980 = vld [vmem:[#allocation9 + $0xb8] sm:$0xff]
    %v6981 = vld [vmem:[#allocation9 + $0xc0] sm:$0xff]
    %v6982 = vld [vmem:[#allocation9 + $0xc8] sm:$0xff]
    %v6983 = vld [vmem:[#allocation9 + $0xd0] sm:$0xff]
    %v6984 = vld [vmem:[#allocation9 + $0xd8] sm:$0xff]
    %v6985 = vld [vmem:[#allocation9 + $0xe0] sm:$0xff]
    %v6986 = vld [vmem:[#allocation9 + $0xe8] sm:$0xff]
    %v6987 = vld [vmem:[#allocation9 + $0xf0] sm:$0xff]
    %v6988 = vld [vmem:[#allocation9 + $0xf8] sm:$0xff]
    %v6989 = vld [vmem:[#allocation11] sm:$0xf]
    %v7022 = vunpack.c.l.b16 %v6957
    %v7023 = vunpack.c.h.b16 %v6957
    %v7024 = vunpack.c.l.b16 %v6958
    %v7025 = vunpack.c.h.b16 %v6958
    %v7026 = vunpack.c.l.b16 %v6959
    %v7027 = vunpack.c.h.b16 %v6959
    %v7028 = vunpack.c.l.b16 %v6960
    %v7029 = vunpack.c.h.b16 %v6960
    %v7030 = vunpack.c.l.b16 %v6961
    %v7031 = vunpack.c.h.b16 %v6961
    %v7032 = vunpack.c.l.b16 %v6962
    %v7033 = vunpack.c.h.b16 %v6962
    %v7034 = vunpack.c.l.b16 %v6963
    %v7035 = vunpack.c.h.b16 %v6963
    %v7036 = vunpack.c.l.b16 %v6964
    %v7037 = vunpack.c.h.b16 %v6964
    %v7038 = vunpack.c.l.b16 %v6965
    %v7039 = vunpack.c.h.b16 %v6965
    %v7040 = vunpack.c.l.b16 %v6966
    %v7041 = vunpack.c.h.b16 %v6966
    %v7042 = vunpack.c.l.b16 %v6967
    %v7043 = vunpack.c.h.b16 %v6967
    %v7044 = vunpack.c.l.b16 %v6968
    %v7045 = vunpack.c.h.b16 %v6968
    %v7046 = vunpack.c.l.b16 %v6969
    %v7047 = vunpack.c.h.b16 %v6969
    %v7048 = vunpack.c.l.b16 %v6970
    %v7049 = vunpack.c.h.b16 %v6970
    %v7050 = vunpack.c.l.b16 %v6971
    %v7051 = vunpack.c.h.b16 %v6971
    %v7052 = vunpack.c.l.b16 %v6972
    %v7053 = vunpack.c.h.b16 %v6972
    %v7054 = vunpack.c.l.b16 %v6973
    %v7055 = vunpack.c.h.b16 %v6973
    %v7056 = vunpack.c.l.b16 %v6974
    %v7057 = vunpack.c.h.b16 %v6974
    %v7058 = vunpack.c.l.b16 %v6975
    %v7059 = vunpack.c.h.b16 %v6975
    %v7060 = vunpack.c.l.b16 %v6976
    %v7061 = vunpack.c.h.b16 %v6976
    %v7062 = vunpack.c.l.b16 %v6977
    %v7063 = vunpack.c.h.b16 %v6977
    %v7064 = vunpack.c.l.b16 %v6978
    %v7065 = vunpack.c.h.b16 %v6978
    %v7066 = vunpack.c.l.b16 %v6979
    %v7067 = vunpack.c.h.b16 %v6979
    %v7068 = vunpack.c.l.b16 %v6980
    %v7069 = vunpack.c.h.b16 %v6980
    %v7070 = vunpack.c.l.b16 %v6981
    %v7071 = vunpack.c.h.b16 %v6981
    %v7072 = vunpack.c.l.b16 %v6982
    %v7073 = vunpack.c.h.b16 %v6982
    %v7074 = vunpack.c.l.b16 %v6983
    %v7075 = vunpack.c.h.b16 %v6983
    %v7076 = vunpack.c.l.b16 %v6984
    %v7077 = vunpack.c.h.b16 %v6984
    %v7078 = vunpack.c.l.b16 %v6985
    %v7079 = vunpack.c.h.b16 %v6985
    %v7080 = vunpack.c.l.b16 %v6986
    %v7081 = vunpack.c.h.b16 %v6986
    %v7082 = vunpack.c.l.b16 %v6987
    %v7083 = vunpack.c.h.b16 %v6987
    %v7084 = vunpack.c.l.b16 %v6988
    %v7085 = vunpack.c.h.b16 %v6988
    %v7086 = vpack.c.b16 %v7026, %v7022
    %v7087 = vpack.c.b16 %v7027, %v7023
    %v7088 = vpack.c.b16 %v7028, %v7024
    %v7089 = vpack.c.b16 %v7029, %v7025
    %v7090 = vpack.c.b16 %v7034, %v7030
    %v7091 = vpack.c.b16 %v7035, %v7031
    %v7092 = vpack.c.b16 %v7036, %v7032
    %v7093 = vpack.c.b16 %v7037, %v7033
    %v7094 = vpack.c.b16 %v7042, %v7038
    %v7095 = vpack.c.b16 %v7043, %v7039
    %v7096 = vpack.c.b16 %v7044, %v7040
    %v7097 = vpack.c.b16 %v7045, %v7041
    %v7098 = vpack.c.b16 %v7050, %v7046
    %v7099 = vpack.c.b16 %v7051, %v7047
    %v7100 = vpack.c.b16 %v7052, %v7048
    %v7101 = vpack.c.b16 %v7053, %v7049
    %v7102 = vpack.c.b16 %v7058, %v7054
    %v7103 = vpack.c.b16 %v7059, %v7055
    %v7104 = vpack.c.b16 %v7060, %v7056
    %v7105 = vpack.c.b16 %v7061, %v7057
    %v7106 = vpack.c.b16 %v7066, %v7062
    %v7107 = vpack.c.b16 %v7067, %v7063
    %v7108 = vpack.c.b16 %v7068, %v7064
    %v7109 = vpack.c.b16 %v7069, %v7065
    %v7110 = vpack.c.b16 %v7074, %v7070
    %v7111 = vpack.c.b16 %v7075, %v7071
    %v7112 = vpack.c.b16 %v7076, %v7072
    %v7113 = vpack.c.b16 %v7077, %v7073
    %v7114 = vpack.c.b16 %v7082, %v7078
    %v7115 = vpack.c.b16 %v7083, %v7079
    %v7116 = vpack.c.b16 %v7084, %v7080
    %v7117 = vpack.c.b16 %v7085, %v7081
    %v7151 = vlaneseq
    %v7152 = vshrl.u32 %v7151, 7
    %v7153 = vsub.s32 0, %v7152
    %v7154 = vrot.slane %v6989, %v7153
    %v7155 = vlaneseq
    %v7156 = vshrl.u32 %v7155, 7
    %v7157 = vsub.s32 1, %v7156
    %v7158 = vrot.slane %v6989, %v7157
    %v7159 = vlaneseq
    %v7160 = vshrl.u32 %v7159, 7
    %v7161 = vsub.s32 2, %v7160
    %v7162 = vrot.slane %v6989, %v7161
    %v7163 = vlaneseq
    %v7164 = vshrl.u32 %v7163, 7
    %v7165 = vsub.s32 3, %v7164
    %v7166 = vrot.slane %v6989, %v7165
    %7171 = vmatprep.subr.bf16.mxu0 %v7115
    %7172 = vmatpush1.bf16.msra.mxu0 %v7114
    %7173 = vmatprep.subr.bf16.mxu0 %v7111
    %7174 = vmatpush1.bf16.msra.mxu0 %v7110
    %7175 = vmatprep.subr.bf16.mxu0 %v7107
    %7176 = vmatpush1.bf16.msra.mxu0 %v7106
    %7177 = vmatprep.subr.bf16.mxu0 %v7103
    %7178 = vmatpush1.bf16.msra.mxu0 %v7102
    %7179 = vmatprep.subr.bf16.mxu0 %v7099
    %7180 = vmatpush1.bf16.msra.mxu0 %v7098
    %7181 = vmatprep.subr.bf16.mxu0 %v7095
    %7182 = vmatpush1.bf16.msra.mxu0 %v7094
    %7183 = vmatprep.subr.bf16.mxu0 %v7091
    %7184 = vmatpush1.bf16.msra.mxu0 %v7090
    %7185 = vmatprep.subr.bf16.mxu0 %v7087
    %7186 = vmatpush1.bf16.msra.mxu0 %v7086
    %7187 = vmatprep.subr.bf16.mxu0 0
    %7188 = vmatpush2.bf16.msra.mxu0 0
    %7189 = vmatprep.subr.bf16.mxu0 0
    %7190 = vmatpush2.bf16.msra.mxu0 0
    %7191 = vmatprep.subr.bf16.mxu0 0
    %7192 = vmatpush2.bf16.msra.mxu0 0
    %7193 = vmatprep.subr.bf16.mxu0 0
    %7194 = vmatpush2.bf16.msra.mxu0 0
    %7195 = vmatprep.subr.bf16.mxu0 0
    %7196 = vmatpush2.bf16.msra.mxu0 0
    %7197 = vmatprep.subr.bf16.mxu0 0
    %7198 = vmatpush2.bf16.msra.mxu0 0
    %7199 = vmatprep.subr.bf16.mxu0 0
    %7200 = vmatpush2.bf16.msra.mxu0 0
    %7201 = vmatprep.subr.bf16.mxu0 0
    %7202 = vmatpush2.bf16.msra.mxu0 0
    %7203 = vmatprep.mubr.bf16.mxu0 0
    %7204 = vmatmul.mubr.bf16.gmra.mxu0 %v6956
    %v7205 = vpop.f32.mrf.mxu0
    %v7206 = vadd.f32 %v7154, %v7205
    %v7207 = vpop.f32.mrf.mxu0
    %v7208 = vadd.f32 %v7158, %v7207
    %v7209 = vpop.f32.mrf.mxu0
    %v7210 = vpop.f32.mrf.mxu0
    %7211 = vdwg.mxu0
    %7212 = vmatprep.subr.bf16.mxu0 %v7117
    %7213 = vmatpush1.bf16.msra.mxu0 %v7116
    %7214 = vmatprep.subr.bf16.mxu0 %v7113
    %7215 = vmatpush1.bf16.msra.mxu0 %v7112
    %7216 = vmatprep.subr.bf16.mxu0 %v7109
    %7217 = vmatpush1.bf16.msra.mxu0 %v7108
    %7218 = vmatprep.subr.bf16.mxu0 %v7105
    %7219 = vmatpush1.bf16.msra.mxu0 %v7104
    %7220 = vmatprep.subr.bf16.mxu0 %v7101
    %7221 = vmatpush1.bf16.msra.mxu0 %v7100
    %7222 = vmatprep.subr.bf16.mxu0 %v7097
    %7223 = vmatpush1.bf16.msra.mxu0 %v7096
    %7224 = vmatprep.subr.bf16.mxu0 %v7093
    %7225 = vmatpush1.bf16.msra.mxu0 %v7092
    %7226 = vmatprep.subr.bf16.mxu0 %v7089
    %7227 = vmatpush1.bf16.msra.mxu0 %v7088
    %7228 = vmatprep.subr.bf16.mxu0 0
    %7229 = vmatpush2.bf16.msra.mxu0 0
    %7230 = vmatprep.subr.bf16.mxu0 0
    %7231 = vmatpush2.bf16.msra.mxu0 0
    %7232 = vmatprep.subr.bf16.mxu0 0
    %7233 = vmatpush2.bf16.msra.mxu0 0
    %7234 = vmatprep.subr.bf16.mxu0 0
    %7235 = vmatpush2.bf16.msra.mxu0 0
    %7236 = vmatprep.subr.bf16.mxu0 0
    %7237 = vmatpush2.bf16.msra.mxu0 0
    %7238 = vmatprep.subr.bf16.mxu0 0
    %7239 = vmatpush2.bf16.msra.mxu0 0
    %7240 = vmatprep.subr.bf16.mxu0 0
    %7241 = vmatpush2.bf16.msra.mxu0 0
    %7242 = vmatprep.subr.bf16.mxu0 0
    %7243 = vmatpush2.bf16.msra.mxu0 0
    %7244 = vmatprep.mubr.bf16.mxu0 0
    %7245 = vmatmul.mubr.bf16.gmra.mxu0 %v6956
    %v7246 = vpop.f32.mrf.mxu0
    %v7247 = vadd.f32 %v7162, %v7246
    %v7248 = vpop.f32.mrf.mxu0
    %v7249 = vadd.f32 %v7166, %v7248
    %v7250 = vpop.f32.mrf.mxu0
    %v7251 = vpop.f32.mrf.mxu0
    %7252 = vdwg.mxu0
    %v7253 = vxor.u32 %v7206, 2147483648
    %v7254 = vmul.f32 %v7253, 1.442695
    %v7255 = vpow.pop %v7254
    %v7256 = vadd.f32 %v7255, 1.0
    %v7257 = vrcp.pop %v7256
    %v7258 = vmul.f32 1.0, %v7257
    %v7259 = vxor.u32 %v7208, 2147483648
    %v7260 = vmul.f32 %v7259, 1.442695
    %v7261 = vpow.pop %v7260
    %v7262 = vadd.f32 %v7261, 1.0
    %v7263 = vrcp.pop %v7262
    %v7264 = vmul.f32 1.0, %v7263
    %v7265 = vtanh.pop %v7247
    %v7266 = vxor.u32 %v7249, 2147483648
    %v7267 = vmul.f32 %v7266, 1.442695
    %v7268 = vpow.pop %v7267
    %v7269 = vadd.f32 %v7268, 1.0
    %v7270 = vrcp.pop %v7269
    %v7271 = vmul.f32 1.0, %v7270
    %v7272 = vmul.f32 %v7264, %v6955
    %v7273 = vmul.f32 %v7258, %v7265
    %v7274 = vadd.f32 %v7272, %v7273
    %v7275 = vtanh.pop %v7274
    %v7276 = vmul.f32 %v7271, %v7275
    %7277 = vst [vmem:[#allocation2] sm:$0x1] %v7276
    %7278 = vst [vmem:[#allocation3] sm:$0x1] %v7274
    %v7279 = vld [vmem:[#allocation4] sm:$0x1]
    %v7280 = vadd.f32 %v7276, %v7279
    %v7281 = vld [vmem:[#allocation5] sm:$0x1]
    %v7282 = vpack.c.bf16 %v7280, %v7280
    %v7283 = vld [vmem:[#allocation12] sm:$0xff]
    %v7284 = vld [vmem:[#allocation12 + $0x8] sm:$0xff]
    %v7285 = vld [vmem:[#allocation12 + $0x10] sm:$0xff]
    %v7286 = vld [vmem:[#allocation12 + $0x18] sm:$0xff]
    %v7287 = vld [vmem:[#allocation12 + $0x20] sm:$0xff]
    %v7288 = vld [vmem:[#allocation12 + $0x28] sm:$0xff]
    %v7289 = vld [vmem:[#allocation12 + $0x30] sm:$0xff]
    %v7290 = vld [vmem:[#allocation12 + $0x38] sm:$0xff]
    %v7291 = vld [vmem:[#allocation12 + $0x40] sm:$0xff]
    %v7292 = vld [vmem:[#allocation12 + $0x48] sm:$0xff]
    %v7293 = vld [vmem:[#allocation12 + $0x50] sm:$0xff]
    %v7294 = vld [vmem:[#allocation12 + $0x58] sm:$0xff]
    %v7295 = vld [vmem:[#allocation12 + $0x60] sm:$0xff]
    %v7296 = vld [vmem:[#allocation12 + $0x68] sm:$0xff]
    %v7297 = vld [vmem:[#allocation12 + $0x70] sm:$0xff]
    %v7298 = vld [vmem:[#allocation12 + $0x78] sm:$0xff]
    %v7299 = vld [vmem:[#allocation12 + $0x80] sm:$0xff]
    %v7300 = vld [vmem:[#allocation12 + $0x88] sm:$0xff]
    %v7301 = vld [vmem:[#allocation12 + $0x90] sm:$0xff]
    %v7302 = vld [vmem:[#allocation12 + $0x98] sm:$0xff]
    %v7303 = vld [vmem:[#allocation12 + $0xa0] sm:$0xff]
    %v7304 = vld [vmem:[#allocation12 + $0xa8] sm:$0xff]
    %v7305 = vld [vmem:[#allocation12 + $0xb0] sm:$0xff]
    %v7306 = vld [vmem:[#allocation12 + $0xb8] sm:$0xff]
    %v7307 = vld [vmem:[#allocation12 + $0xc0] sm:$0xff]
    %v7308 = vld [vmem:[#allocation12 + $0xc8] sm:$0xff]
    %v7309 = vld [vmem:[#allocation12 + $0xd0] sm:$0xff]
    %v7310 = vld [vmem:[#allocation12 + $0xd8] sm:$0xff]
    %v7311 = vld [vmem:[#allocation12 + $0xe0] sm:$0xff]
    %v7312 = vld [vmem:[#allocation12 + $0xe8] sm:$0xff]
    %v7313 = vld [vmem:[#allocation12 + $0xf0] sm:$0xff]
    %v7314 = vld [vmem:[#allocation12 + $0xf8] sm:$0xff]
    %v7315 = vld [vmem:[%s4] sm:$0xf]
    %v7348 = vunpack.c.l.b16 %v7283
    %v7349 = vunpack.c.h.b16 %v7283
    %v7350 = vunpack.c.l.b16 %v7284
    %v7351 = vunpack.c.h.b16 %v7284
    %v7352 = vunpack.c.l.b16 %v7285
    %v7353 = vunpack.c.h.b16 %v7285
    %v7354 = vunpack.c.l.b16 %v7286
    %v7355 = vunpack.c.h.b16 %v7286
    %v7356 = vunpack.c.l.b16 %v7287
    %v7357 = vunpack.c.h.b16 %v7287
    %v7358 = vunpack.c.l.b16 %v7288
    %v7359 = vunpack.c.h.b16 %v7288
    %v7360 = vunpack.c.l.b16 %v7289
    %v7361 = vunpack.c.h.b16 %v7289
    %v7362 = vunpack.c.l.b16 %v7290
    %v7363 = vunpack.c.h.b16 %v7290
    %v7364 = vunpack.c.l.b16 %v7291
    %v7365 = vunpack.c.h.b16 %v7291
    %v7366 = vunpack.c.l.b16 %v7292
    %v7367 = vunpack.c.h.b16 %v7292
    %v7368 = vunpack.c.l.b16 %v7293
    %v7369 = vunpack.c.h.b16 %v7293
    %v7370 = vunpack.c.l.b16 %v7294
    %v7371 = vunpack.c.h.b16 %v7294
    %v7372 = vunpack.c.l.b16 %v7295
    %v7373 = vunpack.c.h.b16 %v7295
    %v7374 = vunpack.c.l.b16 %v7296
    %v7375 = vunpack.c.h.b16 %v7296
    %v7376 = vunpack.c.l.b16 %v7297
    %v7377 = vunpack.c.h.b16 %v7297
    %v7378 = vunpack.c.l.b16 %v7298
    %v7379 = vunpack.c.h.b16 %v7298
    %v7380 = vunpack.c.l.b16 %v7299
    %v7381 = vunpack.c.h.b16 %v7299
    %v7382 = vunpack.c.l.b16 %v7300
    %v7383 = vunpack.c.h.b16 %v7300
    %v7384 = vunpack.c.l.b16 %v7301
    %v7385 = vunpack.c.h.b16 %v7301
    %v7386 = vunpack.c.l.b16 %v7302
    %v7387 = vunpack.c.h.b16 %v7302
    %v7388 = vunpack.c.l.b16 %v7303
    %v7389 = vunpack.c.h.b16 %v7303
    %v7390 = vunpack.c.l.b16 %v7304
    %v7391 = vunpack.c.h.b16 %v7304
    %v7392 = vunpack.c.l.b16 %v7305
    %v7393 = vunpack.c.h.b16 %v7305
    %v7394 = vunpack.c.l.b16 %v7306
    %v7395 = vunpack.c.h.b16 %v7306
    %v7396 = vunpack.c.l.b16 %v7307
    %v7397 = vunpack.c.h.b16 %v7307
    %v7398 = vunpack.c.l.b16 %v7308
    %v7399 = vunpack.c.h.b16 %v7308
    %v7400 = vunpack.c.l.b16 %v7309
    %v7401 = vunpack.c.h.b16 %v7309
    %v7402 = vunpack.c.l.b16 %v7310
    %v7403 = vunpack.c.h.b16 %v7310
    %v7404 = vunpack.c.l.b16 %v7311
    %v7405 = vunpack.c.h.b16 %v7311
    %v7406 = vunpack.c.l.b16 %v7312
    %v7407 = vunpack.c.h.b16 %v7312
    %v7408 = vunpack.c.l.b16 %v7313
    %v7409 = vunpack.c.h.b16 %v7313
    %v7410 = vunpack.c.l.b16 %v7314
    %v7411 = vunpack.c.h.b16 %v7314
    %v7412 = vpack.c.b16 %v7352, %v7348
    %v7413 = vpack.c.b16 %v7353, %v7349
    %v7414 = vpack.c.b16 %v7354, %v7350
    %v7415 = vpack.c.b16 %v7355, %v7351
    %v7416 = vpack.c.b16 %v7360, %v7356
    %v7417 = vpack.c.b16 %v7361, %v7357
    %v7418 = vpack.c.b16 %v7362, %v7358
    %v7419 = vpack.c.b16 %v7363, %v7359
    %v7420 = vpack.c.b16 %v7368, %v7364
    %v7421 = vpack.c.b16 %v7369, %v7365
    %v7422 = vpack.c.b16 %v7370, %v7366
    %v7423 = vpack.c.b16 %v7371, %v7367
    %v7424 = vpack.c.b16 %v7376, %v7372
    %v7425 = vpack.c.b16 %v7377, %v7373
    %v7426 = vpack.c.b16 %v7378, %v7374
    %v7427 = vpack.c.b16 %v7379, %v7375
    %v7428 = vpack.c.b16 %v7384, %v7380
    %v7429 = vpack.c.b16 %v7385, %v7381
    %v7430 = vpack.c.b16 %v7386, %v7382
    %v7431 = vpack.c.b16 %v7387, %v7383
    %v7432 = vpack.c.b16 %v7392, %v7388
    %v7433 = vpack.c.b16 %v7393, %v7389
    %v7434 = vpack.c.b16 %v7394, %v7390
    %v7435 = vpack.c.b16 %v7395, %v7391
    %v7436 = vpack.c.b16 %v7400, %v7396
    %v7437 = vpack.c.b16 %v7401, %v7397
    %v7438 = vpack.c.b16 %v7402, %v7398
    %v7439 = vpack.c.b16 %v7403, %v7399
    %v7440 = vpack.c.b16 %v7408, %v7404
    %v7441 = vpack.c.b16 %v7409, %v7405
    %v7442 = vpack.c.b16 %v7410, %v7406
    %v7443 = vpack.c.b16 %v7411, %v7407
    %v7477 = vlaneseq
    %v7478 = vshrl.u32 %v7477, 7
    %v7479 = vsub.s32 0, %v7478
    %v7480 = vrot.slane %v7315, %v7479
    %v7481 = vlaneseq
    %v7482 = vshrl.u32 %v7481, 7
    %v7483 = vsub.s32 1, %v7482
    %v7484 = vrot.slane %v7315, %v7483
    %v7485 = vlaneseq
    %v7486 = vshrl.u32 %v7485, 7
    %v7487 = vsub.s32 2, %v7486
    %v7488 = vrot.slane %v7315, %v7487
    %v7489 = vlaneseq
    %v7490 = vshrl.u32 %v7489, 7
    %v7491 = vsub.s32 3, %v7490
    %v7492 = vrot.slane %v7315, %v7491
    %7497 = vmatprep.subr.bf16.mxu0 %v7441
    %7498 = vmatpush1.bf16.msra.mxu0 %v7440
    %7499 = vmatprep.subr.bf16.mxu0 %v7437
    %7500 = vmatpush1.bf16.msra.mxu0 %v7436
    %7501 = vmatprep.subr.bf16.mxu0 %v7433
    %7502 = vmatpush1.bf16.msra.mxu0 %v7432
    %7503 = vmatprep.subr.bf16.mxu0 %v7429
    %7504 = vmatpush1.bf16.msra.mxu0 %v7428
    %7505 = vmatprep.subr.bf16.mxu0 %v7425
    %7506 = vmatpush1.bf16.msra.mxu0 %v7424
    %7507 = vmatprep.subr.bf16.mxu0 %v7421
    %7508 = vmatpush1.bf16.msra.mxu0 %v7420
    %7509 = vmatprep.subr.bf16.mxu0 %v7417
    %7510 = vmatpush1.bf16.msra.mxu0 %v7416
    %7511 = vmatprep.subr.bf16.mxu0 %v7413
    %7512 = vmatpush1.bf16.msra.mxu0 %v7412
    %7513 = vmatprep.subr.bf16.mxu0 0
    %7514 = vmatpush2.bf16.msra.mxu0 0
    %7515 = vmatprep.subr.bf16.mxu0 0
    %7516 = vmatpush2.bf16.msra.mxu0 0
    %7517 = vmatprep.subr.bf16.mxu0 0
    %7518 = vmatpush2.bf16.msra.mxu0 0
    %7519 = vmatprep.subr.bf16.mxu0 0
    %7520 = vmatpush2.bf16.msra.mxu0 0
    %7521 = vmatprep.subr.bf16.mxu0 0
    %7522 = vmatpush2.bf16.msra.mxu0 0
    %7523 = vmatprep.subr.bf16.mxu0 0
    %7524 = vmatpush2.bf16.msra.mxu0 0
    %7525 = vmatprep.subr.bf16.mxu0 0
    %7526 = vmatpush2.bf16.msra.mxu0 0
    %7527 = vmatprep.subr.bf16.mxu0 0
    %7528 = vmatpush2.bf16.msra.mxu0 0
    %7529 = vmatprep.mubr.bf16.mxu0 0
    %7530 = vmatmul.mubr.bf16.gmra.mxu0 %v7282
    %v7531 = vpop.f32.mrf.mxu0
    %v7532 = vadd.f32 %v7480, %v7531
    %v7533 = vpop.f32.mrf.mxu0
    %v7534 = vadd.f32 %v7484, %v7533
    %v7535 = vpop.f32.mrf.mxu0
    %v7536 = vpop.f32.mrf.mxu0
    %7537 = vdwg.mxu0
    %7538 = vmatprep.subr.bf16.mxu0 %v7443
    %7539 = vmatpush1.bf16.msra.mxu0 %v7442
    %7540 = vmatprep.subr.bf16.mxu0 %v7439
    %7541 = vmatpush1.bf16.msra.mxu0 %v7438
    %7542 = vmatprep.subr.bf16.mxu0 %v7435
    %7543 = vmatpush1.bf16.msra.mxu0 %v7434
    %7544 = vmatprep.subr.bf16.mxu0 %v7431
    %7545 = vmatpush1.bf16.msra.mxu0 %v7430
    %7546 = vmatprep.subr.bf16.mxu0 %v7427
    %7547 = vmatpush1.bf16.msra.mxu0 %v7426
    %7548 = vmatprep.subr.bf16.mxu0 %v7423
    %7549 = vmatpush1.bf16.msra.mxu0 %v7422
    %7550 = vmatprep.subr.bf16.mxu0 %v7419
    %7551 = vmatpush1.bf16.msra.mxu0 %v7418
    %7552 = vmatprep.subr.bf16.mxu0 %v7415
    %7553 = vmatpush1.bf16.msra.mxu0 %v7414
    %7554 = vmatprep.subr.bf16.mxu0 0
    %7555 = vmatpush2.bf16.msra.mxu0 0
    %7556 = vmatprep.subr.bf16.mxu0 0
    %7557 = vmatpush2.bf16.msra.mxu0 0
    %7558 = vmatprep.subr.bf16.mxu0 0
    %7559 = vmatpush2.bf16.msra.mxu0 0
    %7560 = vmatprep.subr.bf16.mxu0 0
    %7561 = vmatpush2.bf16.msra.mxu0 0
    %7562 = vmatprep.subr.bf16.mxu0 0
    %7563 = vmatpush2.bf16.msra.mxu0 0
    %7564 = vmatprep.subr.bf16.mxu0 0
    %7565 = vmatpush2.bf16.msra.mxu0 0
    %7566 = vmatprep.subr.bf16.mxu0 0
    %7567 = vmatpush2.bf16.msra.mxu0 0
    %7568 = vmatprep.subr.bf16.mxu0 0
    %7569 = vmatpush2.bf16.msra.mxu0 0
    %7570 = vmatprep.mubr.bf16.mxu0 0
    %7571 = vmatmul.mubr.bf16.gmra.mxu0 %v7282
    %v7572 = vpop.f32.mrf.mxu0
    %v7573 = vadd.f32 %v7488, %v7572
    %v7574 = vpop.f32.mrf.mxu0
    %v7575 = vadd.f32 %v7492, %v7574
    %v7576 = vpop.f32.mrf.mxu0
    %v7577 = vpop.f32.mrf.mxu0
    %7578 = vdwg.mxu0
    %v7579 = vxor.u32 %v7532, 2147483648
    %v7580 = vmul.f32 %v7579, 1.442695
    %v7581 = vpow.pop %v7580
    %v7582 = vadd.f32 %v7581, 1.0
    %v7583 = vrcp.pop %v7582
    %v7584 = vmul.f32 1.0, %v7583
    %v7585 = vxor.u32 %v7534, 2147483648
    %v7586 = vmul.f32 %v7585, 1.442695
    %v7587 = vpow.pop %v7586
    %v7588 = vadd.f32 %v7587, 1.0
    %v7589 = vrcp.pop %v7588
    %v7590 = vmul.f32 1.0, %v7589
    %v7591 = vtanh.pop %v7573
    %v7592 = vxor.u32 %v7575, 2147483648
    %v7593 = vmul.f32 %v7592, 1.442695
    %v7594 = vpow.pop %v7593
    %v7595 = vadd.f32 %v7594, 1.0
    %v7596 = vrcp.pop %v7595
    %v7597 = vmul.f32 1.0, %v7596
    %v7598 = vmul.f32 %v7590, %v7281
    %v7599 = vmul.f32 %v7584, %v7591
    %v7600 = vadd.f32 %v7598, %v7599
    %v7601 = vtanh.pop %v7600
    %v7602 = vmul.f32 %v7597, %v7601
    %7603 = vst [vmem:[#allocation4] sm:$0x1] %v7602
    %7604 = vst [vmem:[#allocation5] sm:$0x1] %v7600
    %v7605 = vpack.c.bf16 %v7602, %v7602
    %v7606 = vld [vmem:[#allocation14] sm:$0xf]
    %v7607 = vld [vmem:[#allocation14 + $0x4] sm:$0xf]
    %v7608 = vld [vmem:[#allocation14 + $0x8] sm:$0xf]
    %v7609 = vld [vmem:[#allocation14 + $0xc] sm:$0xf]
    %v7610 = vld [vmem:[#allocation14 + $0x10] sm:$0xf]
    %v7611 = vld [vmem:[#allocation14 + $0x14] sm:$0xf]
    %v7612 = vld [vmem:[#allocation14 + $0x18] sm:$0xf]
    %v7613 = vld [vmem:[#allocation14 + $0x1c] sm:$0xf]
    %v7614 = vld [vmem:[#allocation14 + $0x20] sm:$0xf]
    %v7615 = vld [vmem:[#allocation14 + $0x24] sm:$0xf]
    %v7616 = vld [vmem:[#allocation14 + $0x28] sm:$0xf]
    %v7617 = vld [vmem:[#allocation14 + $0x2c] sm:$0xf]
    %v7618 = vld [vmem:[#allocation14 + $0x30] sm:$0xf]
    %v7619 = vld [vmem:[#allocation14 + $0x34] sm:$0xf]
    %v7620 = vld [vmem:[#allocation14 + $0x38] sm:$0xf]
    %v7621 = vld [vmem:[#allocation14 + $0x3c] sm:$0xf]
    %v7622 = vld [vmem:[%s6] sm:$0x1]
    %v7639 = vunpack.c.l.b16 %v7606
    %v7640 = vunpack.c.l.b16 %v7607
    %v7641 = vunpack.c.l.b16 %v7608
    %v7642 = vunpack.c.l.b16 %v7609
    %v7643 = vunpack.c.l.b16 %v7610
    %v7644 = vunpack.c.l.b16 %v7611
    %v7645 = vunpack.c.l.b16 %v7612
    %v7646 = vunpack.c.l.b16 %v7613
    %v7647 = vunpack.c.l.b16 %v7614
    %v7648 = vunpack.c.l.b16 %v7615
    %v7649 = vunpack.c.l.b16 %v7616
    %v7650 = vunpack.c.l.b16 %v7617
    %v7651 = vunpack.c.l.b16 %v7618
    %v7652 = vunpack.c.l.b16 %v7619
    %v7653 = vunpack.c.l.b16 %v7620
    %v7654 = vunpack.c.l.b16 %v7621
    %v7655 = vpack.c.b16 %v7640, %v7639
    %v7656 = vpack.c.b16 %v7642, %v7641
    %v7657 = vpack.c.b16 %v7644, %v7643
    %v7658 = vpack.c.b16 %v7646, %v7645
    %v7659 = vpack.c.b16 %v7648, %v7647
    %v7660 = vpack.c.b16 %v7650, %v7649
    %v7661 = vpack.c.b16 %v7652, %v7651
    %v7662 = vpack.c.b16 %v7654, %v7653
    %7671 = vmatprep.subr.bf16.mxu0 0
    %7672 = vmatpush1.bf16.msra.mxu0 %v7662
    %7673 = vmatprep.subr.bf16.mxu0 0
    %7674 = vmatpush1.bf16.msra.mxu0 %v7661
    %7675 = vmatprep.subr.bf16.mxu0 0
    %7676 = vmatpush1.bf16.msra.mxu0 %v7660
    %7677 = vmatprep.subr.bf16.mxu0 0
    %7678 = vmatpush1.bf16.msra.mxu0 %v7659
    %7679 = vmatprep.subr.bf16.mxu0 0
    %7680 = vmatpush1.bf16.msra.mxu0 %v7658
    %7681 = vmatprep.subr.bf16.mxu0 0
    %7682 = vmatpush1.bf16.msra.mxu0 %v7657
    %7683 = vmatprep.subr.bf16.mxu0 0
    %7684 = vmatpush1.bf16.msra.mxu0 %v7656
    %7685 = vmatprep.subr.bf16.mxu0 0
    %7686 = vmatpush1.bf16.msra.mxu0 %v7655
    %7687 = vmatprep.subr.bf16.mxu0 0
    %7688 = vmatpush2.bf16.msra.mxu0 0
    %7689 = vmatprep.subr.bf16.mxu0 0
    %7690 = vmatpush2.bf16.msra.mxu0 0
    %7691 = vmatprep.subr.bf16.mxu0 0
    %7692 = vmatpush2.bf16.msra.mxu0 0
    %7693 = vmatprep.subr.bf16.mxu0 0
    %7694 = vmatpush2.bf16.msra.mxu0 0
    %7695 = vmatprep.subr.bf16.mxu0 0
    %7696 = vmatpush2.bf16.msra.mxu0 0
    %7697 = vmatprep.subr.bf16.mxu0 0
    %7698 = vmatpush2.bf16.msra.mxu0 0
    %7699 = vmatprep.subr.bf16.mxu0 0
    %7700 = vmatpush2.bf16.msra.mxu0 0
    %7701 = vmatprep.subr.bf16.mxu0 0
    %7702 = vmatpush2.bf16.msra.mxu0 0
    %7703 = vmatprep.mubr.bf16.mxu0 0
    %7704 = vmatmul.mubr.bf16.gmra.mxu0 %v7605
    %v7705 = vpop.f32.mrf.mxu0
    %v7706 = vadd.f32 %v7622, %v7705
    %v7707 = vpop.f32.mrf.mxu0
    %v7708 = vpop.f32.mrf.mxu0
    %v7709 = vpop.f32.mrf.mxu0
    %7710 = vdwg.mxu0
    %s7711 = scalar_lea.vmem [#allocation15], 9
    %7712 = vst [vmem:[%s7711] sm:$0x1] %v7706
    %v7713 = vld [vmem:[#allocation2] sm:$0x1]
    %v7714 = vadd.f32 %v7713, %v7706
    %v7715 = vld [vmem:[#allocation3] sm:$0x1]
    %v7716 = vpack.c.bf16 %v7714, %v7714
    %v7717 = vld [vmem:[#allocation9] sm:$0xff]
    %v7718 = vld [vmem:[#allocation9 + $0x8] sm:$0xff]
    %v7719 = vld [vmem:[#allocation9 + $0x10] sm:$0xff]
    %v7720 = vld [vmem:[#allocation9 + $0x18] sm:$0xff]
    %v7721 = vld [vmem:[#allocation9 + $0x20] sm:$0xff]
    %v7722 = vld [vmem:[#allocation9 + $0x28] sm:$0xff]
    %v7723 = vld [vmem:[#allocation9 + $0x30] sm:$0xff]
    %v7724 = vld [vmem:[#allocation9 + $0x38] sm:$0xff]
    %v7725 = vld [vmem:[#allocation9 + $0x40] sm:$0xff]
    %v7726 = vld [vmem:[#allocation9 + $0x48] sm:$0xff]
    %v7727 = vld [vmem:[#allocation9 + $0x50] sm:$0xff]
    %v7728 = vld [vmem:[#allocation9 + $0x58] sm:$0xff]
    %v7729 = vld [vmem:[#allocation9 + $0x60] sm:$0xff]
    %v7730 = vld [vmem:[#allocation9 + $0x68] sm:$0xff]
    %v7731 = vld [vmem:[#allocation9 + $0x70] sm:$0xff]
    %v7732 = vld [vmem:[#allocation9 + $0x78] sm:$0xff]
    %v7733 = vld [vmem:[#allocation9 + $0x80] sm:$0xff]
    %v7734 = vld [vmem:[#allocation9 + $0x88] sm:$0xff]
    %v7735 = vld [vmem:[#allocation9 + $0x90] sm:$0xff]
    %v7736 = vld [vmem:[#allocation9 + $0x98] sm:$0xff]
    %v7737 = vld [vmem:[#allocation9 + $0xa0] sm:$0xff]
    %v7738 = vld [vmem:[#allocation9 + $0xa8] sm:$0xff]
    %v7739 = vld [vmem:[#allocation9 + $0xb0] sm:$0xff]
    %v7740 = vld [vmem:[#allocation9 + $0xb8] sm:$0xff]
    %v7741 = vld [vmem:[#allocation9 + $0xc0] sm:$0xff]
    %v7742 = vld [vmem:[#allocation9 + $0xc8] sm:$0xff]
    %v7743 = vld [vmem:[#allocation9 + $0xd0] sm:$0xff]
    %v7744 = vld [vmem:[#allocation9 + $0xd8] sm:$0xff]
    %v7745 = vld [vmem:[#allocation9 + $0xe0] sm:$0xff]
    %v7746 = vld [vmem:[#allocation9 + $0xe8] sm:$0xff]
    %v7747 = vld [vmem:[#allocation9 + $0xf0] sm:$0xff]
    %v7748 = vld [vmem:[#allocation9 + $0xf8] sm:$0xff]
    %v7749 = vld [vmem:[#allocation11] sm:$0xf]
    %v7782 = vunpack.c.l.b16 %v7717
    %v7783 = vunpack.c.h.b16 %v7717
    %v7784 = vunpack.c.l.b16 %v7718
    %v7785 = vunpack.c.h.b16 %v7718
    %v7786 = vunpack.c.l.b16 %v7719
    %v7787 = vunpack.c.h.b16 %v7719
    %v7788 = vunpack.c.l.b16 %v7720
    %v7789 = vunpack.c.h.b16 %v7720
    %v7790 = vunpack.c.l.b16 %v7721
    %v7791 = vunpack.c.h.b16 %v7721
    %v7792 = vunpack.c.l.b16 %v7722
    %v7793 = vunpack.c.h.b16 %v7722
    %v7794 = vunpack.c.l.b16 %v7723
    %v7795 = vunpack.c.h.b16 %v7723
    %v7796 = vunpack.c.l.b16 %v7724
    %v7797 = vunpack.c.h.b16 %v7724
    %v7798 = vunpack.c.l.b16 %v7725
    %v7799 = vunpack.c.h.b16 %v7725
    %v7800 = vunpack.c.l.b16 %v7726
    %v7801 = vunpack.c.h.b16 %v7726
    %v7802 = vunpack.c.l.b16 %v7727
    %v7803 = vunpack.c.h.b16 %v7727
    %v7804 = vunpack.c.l.b16 %v7728
    %v7805 = vunpack.c.h.b16 %v7728
    %v7806 = vunpack.c.l.b16 %v7729
    %v7807 = vunpack.c.h.b16 %v7729
    %v7808 = vunpack.c.l.b16 %v7730
    %v7809 = vunpack.c.h.b16 %v7730
    %v7810 = vunpack.c.l.b16 %v7731
    %v7811 = vunpack.c.h.b16 %v7731
    %v7812 = vunpack.c.l.b16 %v7732
    %v7813 = vunpack.c.h.b16 %v7732
    %v7814 = vunpack.c.l.b16 %v7733
    %v7815 = vunpack.c.h.b16 %v7733
    %v7816 = vunpack.c.l.b16 %v7734
    %v7817 = vunpack.c.h.b16 %v7734
    %v7818 = vunpack.c.l.b16 %v7735
    %v7819 = vunpack.c.h.b16 %v7735
    %v7820 = vunpack.c.l.b16 %v7736
    %v7821 = vunpack.c.h.b16 %v7736
    %v7822 = vunpack.c.l.b16 %v7737
    %v7823 = vunpack.c.h.b16 %v7737
    %v7824 = vunpack.c.l.b16 %v7738
    %v7825 = vunpack.c.h.b16 %v7738
    %v7826 = vunpack.c.l.b16 %v7739
    %v7827 = vunpack.c.h.b16 %v7739
    %v7828 = vunpack.c.l.b16 %v7740
    %v7829 = vunpack.c.h.b16 %v7740
    %v7830 = vunpack.c.l.b16 %v7741
    %v7831 = vunpack.c.h.b16 %v7741
    %v7832 = vunpack.c.l.b16 %v7742
    %v7833 = vunpack.c.h.b16 %v7742
    %v7834 = vunpack.c.l.b16 %v7743
    %v7835 = vunpack.c.h.b16 %v7743
    %v7836 = vunpack.c.l.b16 %v7744
    %v7837 = vunpack.c.h.b16 %v7744
    %v7838 = vunpack.c.l.b16 %v7745
    %v7839 = vunpack.c.h.b16 %v7745
    %v7840 = vunpack.c.l.b16 %v7746
    %v7841 = vunpack.c.h.b16 %v7746
    %v7842 = vunpack.c.l.b16 %v7747
    %v7843 = vunpack.c.h.b16 %v7747
    %v7844 = vunpack.c.l.b16 %v7748
    %v7845 = vunpack.c.h.b16 %v7748
    %v7846 = vpack.c.b16 %v7786, %v7782
    %v7847 = vpack.c.b16 %v7787, %v7783
    %v7848 = vpack.c.b16 %v7788, %v7784
    %v7849 = vpack.c.b16 %v7789, %v7785
    %v7850 = vpack.c.b16 %v7794, %v7790
    %v7851 = vpack.c.b16 %v7795, %v7791
    %v7852 = vpack.c.b16 %v7796, %v7792
    %v7853 = vpack.c.b16 %v7797, %v7793
    %v7854 = vpack.c.b16 %v7802, %v7798
    %v7855 = vpack.c.b16 %v7803, %v7799
    %v7856 = vpack.c.b16 %v7804, %v7800
    %v7857 = vpack.c.b16 %v7805, %v7801
    %v7858 = vpack.c.b16 %v7810, %v7806
    %v7859 = vpack.c.b16 %v7811, %v7807
    %v7860 = vpack.c.b16 %v7812, %v7808
    %v7861 = vpack.c.b16 %v7813, %v7809
    %v7862 = vpack.c.b16 %v7818, %v7814
    %v7863 = vpack.c.b16 %v7819, %v7815
    %v7864 = vpack.c.b16 %v7820, %v7816
    %v7865 = vpack.c.b16 %v7821, %v7817
    %v7866 = vpack.c.b16 %v7826, %v7822
    %v7867 = vpack.c.b16 %v7827, %v7823
    %v7868 = vpack.c.b16 %v7828, %v7824
    %v7869 = vpack.c.b16 %v7829, %v7825
    %v7870 = vpack.c.b16 %v7834, %v7830
    %v7871 = vpack.c.b16 %v7835, %v7831
    %v7872 = vpack.c.b16 %v7836, %v7832
    %v7873 = vpack.c.b16 %v7837, %v7833
    %v7874 = vpack.c.b16 %v7842, %v7838
    %v7875 = vpack.c.b16 %v7843, %v7839
    %v7876 = vpack.c.b16 %v7844, %v7840
    %v7877 = vpack.c.b16 %v7845, %v7841
    %v7911 = vlaneseq
    %v7912 = vshrl.u32 %v7911, 7
    %v7913 = vsub.s32 0, %v7912
    %v7914 = vrot.slane %v7749, %v7913
    %v7915 = vlaneseq
    %v7916 = vshrl.u32 %v7915, 7
    %v7917 = vsub.s32 1, %v7916
    %v7918 = vrot.slane %v7749, %v7917
    %v7919 = vlaneseq
    %v7920 = vshrl.u32 %v7919, 7
    %v7921 = vsub.s32 2, %v7920
    %v7922 = vrot.slane %v7749, %v7921
    %v7923 = vlaneseq
    %v7924 = vshrl.u32 %v7923, 7
    %v7925 = vsub.s32 3, %v7924
    %v7926 = vrot.slane %v7749, %v7925
    %7931 = vmatprep.subr.bf16.mxu0 %v7875
    %7932 = vmatpush1.bf16.msra.mxu0 %v7874
    %7933 = vmatprep.subr.bf16.mxu0 %v7871
    %7934 = vmatpush1.bf16.msra.mxu0 %v7870
    %7935 = vmatprep.subr.bf16.mxu0 %v7867
    %7936 = vmatpush1.bf16.msra.mxu0 %v7866
    %7937 = vmatprep.subr.bf16.mxu0 %v7863
    %7938 = vmatpush1.bf16.msra.mxu0 %v7862
    %7939 = vmatprep.subr.bf16.mxu0 %v7859
    %7940 = vmatpush1.bf16.msra.mxu0 %v7858
    %7941 = vmatprep.subr.bf16.mxu0 %v7855
    %7942 = vmatpush1.bf16.msra.mxu0 %v7854
    %7943 = vmatprep.subr.bf16.mxu0 %v7851
    %7944 = vmatpush1.bf16.msra.mxu0 %v7850
    %7945 = vmatprep.subr.bf16.mxu0 %v7847
    %7946 = vmatpush1.bf16.msra.mxu0 %v7846
    %7947 = vmatprep.subr.bf16.mxu0 0
    %7948 = vmatpush2.bf16.msra.mxu0 0
    %7949 = vmatprep.subr.bf16.mxu0 0
    %7950 = vmatpush2.bf16.msra.mxu0 0
    %7951 = vmatprep.subr.bf16.mxu0 0
    %7952 = vmatpush2.bf16.msra.mxu0 0
    %7953 = vmatprep.subr.bf16.mxu0 0
    %7954 = vmatpush2.bf16.msra.mxu0 0
    %7955 = vmatprep.subr.bf16.mxu0 0
    %7956 = vmatpush2.bf16.msra.mxu0 0
    %7957 = vmatprep.subr.bf16.mxu0 0
    %7958 = vmatpush2.bf16.msra.mxu0 0
    %7959 = vmatprep.subr.bf16.mxu0 0
    %7960 = vmatpush2.bf16.msra.mxu0 0
    %7961 = vmatprep.subr.bf16.mxu0 0
    %7962 = vmatpush2.bf16.msra.mxu0 0
    %7963 = vmatprep.mubr.bf16.mxu0 0
    %7964 = vmatmul.mubr.bf16.gmra.mxu0 %v7716
    %v7965 = vpop.f32.mrf.mxu0
    %v7966 = vadd.f32 %v7914, %v7965
    %v7967 = vpop.f32.mrf.mxu0
    %v7968 = vadd.f32 %v7918, %v7967
    %v7969 = vpop.f32.mrf.mxu0
    %v7970 = vpop.f32.mrf.mxu0
    %7971 = vdwg.mxu0
    %7972 = vmatprep.subr.bf16.mxu0 %v7877
    %7973 = vmatpush1.bf16.msra.mxu0 %v7876
    %7974 = vmatprep.subr.bf16.mxu0 %v7873
    %7975 = vmatpush1.bf16.msra.mxu0 %v7872
    %7976 = vmatprep.subr.bf16.mxu0 %v7869
    %7977 = vmatpush1.bf16.msra.mxu0 %v7868
    %7978 = vmatprep.subr.bf16.mxu0 %v7865
    %7979 = vmatpush1.bf16.msra.mxu0 %v7864
    %7980 = vmatprep.subr.bf16.mxu0 %v7861
    %7981 = vmatpush1.bf16.msra.mxu0 %v7860
    %7982 = vmatprep.subr.bf16.mxu0 %v7857
    %7983 = vmatpush1.bf16.msra.mxu0 %v7856
    %7984 = vmatprep.subr.bf16.mxu0 %v7853
    %7985 = vmatpush1.bf16.msra.mxu0 %v7852
    %7986 = vmatprep.subr.bf16.mxu0 %v7849
    %7987 = vmatpush1.bf16.msra.mxu0 %v7848
    %7988 = vmatprep.subr.bf16.mxu0 0
    %7989 = vmatpush2.bf16.msra.mxu0 0
    %7990 = vmatprep.subr.bf16.mxu0 0
    %7991 = vmatpush2.bf16.msra.mxu0 0
    %7992 = vmatprep.subr.bf16.mxu0 0
    %7993 = vmatpush2.bf16.msra.mxu0 0
    %7994 = vmatprep.subr.bf16.mxu0 0
    %7995 = vmatpush2.bf16.msra.mxu0 0
    %7996 = vmatprep.subr.bf16.mxu0 0
    %7997 = vmatpush2.bf16.msra.mxu0 0
    %7998 = vmatprep.subr.bf16.mxu0 0
    %7999 = vmatpush2.bf16.msra.mxu0 0
    %8000 = vmatprep.subr.bf16.mxu0 0
    %8001 = vmatpush2.bf16.msra.mxu0 0
    %8002 = vmatprep.subr.bf16.mxu0 0
    %8003 = vmatpush2.bf16.msra.mxu0 0
    %8004 = vmatprep.mubr.bf16.mxu0 0
    %8005 = vmatmul.mubr.bf16.gmra.mxu0 %v7716
    %v8006 = vpop.f32.mrf.mxu0
    %v8007 = vadd.f32 %v7922, %v8006
    %v8008 = vpop.f32.mrf.mxu0
    %v8009 = vadd.f32 %v7926, %v8008
    %v8010 = vpop.f32.mrf.mxu0
    %v8011 = vpop.f32.mrf.mxu0
    %8012 = vdwg.mxu0
    %v8013 = vxor.u32 %v7966, 2147483648
    %v8014 = vmul.f32 %v8013, 1.442695
    %v8015 = vpow.pop %v8014
    %v8016 = vadd.f32 %v8015, 1.0
    %v8017 = vrcp.pop %v8016
    %v8018 = vmul.f32 1.0, %v8017
    %v8019 = vxor.u32 %v7968, 2147483648
    %v8020 = vmul.f32 %v8019, 1.442695
    %v8021 = vpow.pop %v8020
    %v8022 = vadd.f32 %v8021, 1.0
    %v8023 = vrcp.pop %v8022
    %v8024 = vmul.f32 1.0, %v8023
    %v8025 = vtanh.pop %v8007
    %v8026 = vxor.u32 %v8009, 2147483648
    %v8027 = vmul.f32 %v8026, 1.442695
    %v8028 = vpow.pop %v8027
    %v8029 = vadd.f32 %v8028, 1.0
    %v8030 = vrcp.pop %v8029
    %v8031 = vmul.f32 1.0, %v8030
    %v8032 = vmul.f32 %v8024, %v7715
    %v8033 = vmul.f32 %v8018, %v8025
    %v8034 = vadd.f32 %v8032, %v8033
    %v8035 = vtanh.pop %v8034
    %v8036 = vmul.f32 %v8031, %v8035
    %8037 = vst [vmem:[#allocation2] sm:$0x1] %v8036
    %8038 = vst [vmem:[#allocation3] sm:$0x1] %v8034
    %v8039 = vld [vmem:[#allocation4] sm:$0x1]
    %v8040 = vadd.f32 %v8036, %v8039
    %v8041 = vld [vmem:[#allocation5] sm:$0x1]
    %v8042 = vpack.c.bf16 %v8040, %v8040
    %v8043 = vld [vmem:[#allocation12] sm:$0xff]
    %v8044 = vld [vmem:[#allocation12 + $0x8] sm:$0xff]
    %v8045 = vld [vmem:[#allocation12 + $0x10] sm:$0xff]
    %v8046 = vld [vmem:[#allocation12 + $0x18] sm:$0xff]
    %v8047 = vld [vmem:[#allocation12 + $0x20] sm:$0xff]
    %v8048 = vld [vmem:[#allocation12 + $0x28] sm:$0xff]
    %v8049 = vld [vmem:[#allocation12 + $0x30] sm:$0xff]
    %v8050 = vld [vmem:[#allocation12 + $0x38] sm:$0xff]
    %v8051 = vld [vmem:[#allocation12 + $0x40] sm:$0xff]
    %v8052 = vld [vmem:[#allocation12 + $0x48] sm:$0xff]
    %v8053 = vld [vmem:[#allocation12 + $0x50] sm:$0xff]
    %v8054 = vld [vmem:[#allocation12 + $0x58] sm:$0xff]
    %v8055 = vld [vmem:[#allocation12 + $0x60] sm:$0xff]
    %v8056 = vld [vmem:[#allocation12 + $0x68] sm:$0xff]
    %v8057 = vld [vmem:[#allocation12 + $0x70] sm:$0xff]
    %v8058 = vld [vmem:[#allocation12 + $0x78] sm:$0xff]
    %v8059 = vld [vmem:[#allocation12 + $0x80] sm:$0xff]
    %v8060 = vld [vmem:[#allocation12 + $0x88] sm:$0xff]
    %v8061 = vld [vmem:[#allocation12 + $0x90] sm:$0xff]
    %v8062 = vld [vmem:[#allocation12 + $0x98] sm:$0xff]
    %v8063 = vld [vmem:[#allocation12 + $0xa0] sm:$0xff]
    %v8064 = vld [vmem:[#allocation12 + $0xa8] sm:$0xff]
    %v8065 = vld [vmem:[#allocation12 + $0xb0] sm:$0xff]
    %v8066 = vld [vmem:[#allocation12 + $0xb8] sm:$0xff]
    %v8067 = vld [vmem:[#allocation12 + $0xc0] sm:$0xff]
    %v8068 = vld [vmem:[#allocation12 + $0xc8] sm:$0xff]
    %v8069 = vld [vmem:[#allocation12 + $0xd0] sm:$0xff]
    %v8070 = vld [vmem:[#allocation12 + $0xd8] sm:$0xff]
    %v8071 = vld [vmem:[#allocation12 + $0xe0] sm:$0xff]
    %v8072 = vld [vmem:[#allocation12 + $0xe8] sm:$0xff]
    %v8073 = vld [vmem:[#allocation12 + $0xf0] sm:$0xff]
    %v8074 = vld [vmem:[#allocation12 + $0xf8] sm:$0xff]
    %v8075 = vld [vmem:[%s4] sm:$0xf]
    %v8108 = vunpack.c.l.b16 %v8043
    %v8109 = vunpack.c.h.b16 %v8043
    %v8110 = vunpack.c.l.b16 %v8044
    %v8111 = vunpack.c.h.b16 %v8044
    %v8112 = vunpack.c.l.b16 %v8045
    %v8113 = vunpack.c.h.b16 %v8045
    %v8114 = vunpack.c.l.b16 %v8046
    %v8115 = vunpack.c.h.b16 %v8046
    %v8116 = vunpack.c.l.b16 %v8047
    %v8117 = vunpack.c.h.b16 %v8047
    %v8118 = vunpack.c.l.b16 %v8048
    %v8119 = vunpack.c.h.b16 %v8048
    %v8120 = vunpack.c.l.b16 %v8049
    %v8121 = vunpack.c.h.b16 %v8049
    %v8122 = vunpack.c.l.b16 %v8050
    %v8123 = vunpack.c.h.b16 %v8050
    %v8124 = vunpack.c.l.b16 %v8051
    %v8125 = vunpack.c.h.b16 %v8051
    %v8126 = vunpack.c.l.b16 %v8052
    %v8127 = vunpack.c.h.b16 %v8052
    %v8128 = vunpack.c.l.b16 %v8053
    %v8129 = vunpack.c.h.b16 %v8053
    %v8130 = vunpack.c.l.b16 %v8054
    %v8131 = vunpack.c.h.b16 %v8054
    %v8132 = vunpack.c.l.b16 %v8055
    %v8133 = vunpack.c.h.b16 %v8055
    %v8134 = vunpack.c.l.b16 %v8056
    %v8135 = vunpack.c.h.b16 %v8056
    %v8136 = vunpack.c.l.b16 %v8057
    %v8137 = vunpack.c.h.b16 %v8057
    %v8138 = vunpack.c.l.b16 %v8058
    %v8139 = vunpack.c.h.b16 %v8058
    %v8140 = vunpack.c.l.b16 %v8059
    %v8141 = vunpack.c.h.b16 %v8059
    %v8142 = vunpack.c.l.b16 %v8060
    %v8143 = vunpack.c.h.b16 %v8060
    %v8144 = vunpack.c.l.b16 %v8061
    %v8145 = vunpack.c.h.b16 %v8061
    %v8146 = vunpack.c.l.b16 %v8062
    %v8147 = vunpack.c.h.b16 %v8062
    %v8148 = vunpack.c.l.b16 %v8063
    %v8149 = vunpack.c.h.b16 %v8063
    %v8150 = vunpack.c.l.b16 %v8064
    %v8151 = vunpack.c.h.b16 %v8064
    %v8152 = vunpack.c.l.b16 %v8065
    %v8153 = vunpack.c.h.b16 %v8065
    %v8154 = vunpack.c.l.b16 %v8066
    %v8155 = vunpack.c.h.b16 %v8066
    %v8156 = vunpack.c.l.b16 %v8067
    %v8157 = vunpack.c.h.b16 %v8067
    %v8158 = vunpack.c.l.b16 %v8068
    %v8159 = vunpack.c.h.b16 %v8068
    %v8160 = vunpack.c.l.b16 %v8069
    %v8161 = vunpack.c.h.b16 %v8069
    %v8162 = vunpack.c.l.b16 %v8070
    %v8163 = vunpack.c.h.b16 %v8070
    %v8164 = vunpack.c.l.b16 %v8071
    %v8165 = vunpack.c.h.b16 %v8071
    %v8166 = vunpack.c.l.b16 %v8072
    %v8167 = vunpack.c.h.b16 %v8072
    %v8168 = vunpack.c.l.b16 %v8073
    %v8169 = vunpack.c.h.b16 %v8073
    %v8170 = vunpack.c.l.b16 %v8074
    %v8171 = vunpack.c.h.b16 %v8074
    %v8172 = vpack.c.b16 %v8112, %v8108
    %v8173 = vpack.c.b16 %v8113, %v8109
    %v8174 = vpack.c.b16 %v8114, %v8110
    %v8175 = vpack.c.b16 %v8115, %v8111
    %v8176 = vpack.c.b16 %v8120, %v8116
    %v8177 = vpack.c.b16 %v8121, %v8117
    %v8178 = vpack.c.b16 %v8122, %v8118
    %v8179 = vpack.c.b16 %v8123, %v8119
    %v8180 = vpack.c.b16 %v8128, %v8124
    %v8181 = vpack.c.b16 %v8129, %v8125
    %v8182 = vpack.c.b16 %v8130, %v8126
    %v8183 = vpack.c.b16 %v8131, %v8127
    %v8184 = vpack.c.b16 %v8136, %v8132
    %v8185 = vpack.c.b16 %v8137, %v8133
    %v8186 = vpack.c.b16 %v8138, %v8134
    %v8187 = vpack.c.b16 %v8139, %v8135
    %v8188 = vpack.c.b16 %v8144, %v8140
    %v8189 = vpack.c.b16 %v8145, %v8141
    %v8190 = vpack.c.b16 %v8146, %v8142
    %v8191 = vpack.c.b16 %v8147, %v8143
    %v8192 = vpack.c.b16 %v8152, %v8148
    %v8193 = vpack.c.b16 %v8153, %v8149
    %v8194 = vpack.c.b16 %v8154, %v8150
    %v8195 = vpack.c.b16 %v8155, %v8151
    %v8196 = vpack.c.b16 %v8160, %v8156
    %v8197 = vpack.c.b16 %v8161, %v8157
    %v8198 = vpack.c.b16 %v8162, %v8158
    %v8199 = vpack.c.b16 %v8163, %v8159
    %v8200 = vpack.c.b16 %v8168, %v8164
    %v8201 = vpack.c.b16 %v8169, %v8165
    %v8202 = vpack.c.b16 %v8170, %v8166
    %v8203 = vpack.c.b16 %v8171, %v8167
    %v8237 = vlaneseq
    %v8238 = vshrl.u32 %v8237, 7
    %v8239 = vsub.s32 0, %v8238
    %v8240 = vrot.slane %v8075, %v8239
    %v8241 = vlaneseq
    %v8242 = vshrl.u32 %v8241, 7
    %v8243 = vsub.s32 1, %v8242
    %v8244 = vrot.slane %v8075, %v8243
    %v8245 = vlaneseq
    %v8246 = vshrl.u32 %v8245, 7
    %v8247 = vsub.s32 2, %v8246
    %v8248 = vrot.slane %v8075, %v8247
    %v8249 = vlaneseq
    %v8250 = vshrl.u32 %v8249, 7
    %v8251 = vsub.s32 3, %v8250
    %v8252 = vrot.slane %v8075, %v8251
    %8257 = vmatprep.subr.bf16.mxu0 %v8201
    %8258 = vmatpush1.bf16.msra.mxu0 %v8200
    %8259 = vmatprep.subr.bf16.mxu0 %v8197
    %8260 = vmatpush1.bf16.msra.mxu0 %v8196
    %8261 = vmatprep.subr.bf16.mxu0 %v8193
    %8262 = vmatpush1.bf16.msra.mxu0 %v8192
    %8263 = vmatprep.subr.bf16.mxu0 %v8189
    %8264 = vmatpush1.bf16.msra.mxu0 %v8188
    %8265 = vmatprep.subr.bf16.mxu0 %v8185
    %8266 = vmatpush1.bf16.msra.mxu0 %v8184
    %8267 = vmatprep.subr.bf16.mxu0 %v8181
    %8268 = vmatpush1.bf16.msra.mxu0 %v8180
    %8269 = vmatprep.subr.bf16.mxu0 %v8177
    %8270 = vmatpush1.bf16.msra.mxu0 %v8176
    %8271 = vmatprep.subr.bf16.mxu0 %v8173
    %8272 = vmatpush1.bf16.msra.mxu0 %v8172
    %8273 = vmatprep.subr.bf16.mxu0 0
    %8274 = vmatpush2.bf16.msra.mxu0 0
    %8275 = vmatprep.subr.bf16.mxu0 0
    %8276 = vmatpush2.bf16.msra.mxu0 0
    %8277 = vmatprep.subr.bf16.mxu0 0
    %8278 = vmatpush2.bf16.msra.mxu0 0
    %8279 = vmatprep.subr.bf16.mxu0 0
    %8280 = vmatpush2.bf16.msra.mxu0 0
    %8281 = vmatprep.subr.bf16.mxu0 0
    %8282 = vmatpush2.bf16.msra.mxu0 0
    %8283 = vmatprep.subr.bf16.mxu0 0
    %8284 = vmatpush2.bf16.msra.mxu0 0
    %8285 = vmatprep.subr.bf16.mxu0 0
    %8286 = vmatpush2.bf16.msra.mxu0 0
    %8287 = vmatprep.subr.bf16.mxu0 0
    %8288 = vmatpush2.bf16.msra.mxu0 0
    %8289 = vmatprep.mubr.bf16.mxu0 0
    %8290 = vmatmul.mubr.bf16.gmra.mxu0 %v8042
    %v8291 = vpop.f32.mrf.mxu0
    %v8292 = vadd.f32 %v8240, %v8291
    %v8293 = vpop.f32.mrf.mxu0
    %v8294 = vadd.f32 %v8244, %v8293
    %v8295 = vpop.f32.mrf.mxu0
    %v8296 = vpop.f32.mrf.mxu0
    %8297 = vdwg.mxu0
    %8298 = vmatprep.subr.bf16.mxu0 %v8203
    %8299 = vmatpush1.bf16.msra.mxu0 %v8202
    %8300 = vmatprep.subr.bf16.mxu0 %v8199
    %8301 = vmatpush1.bf16.msra.mxu0 %v8198
    %8302 = vmatprep.subr.bf16.mxu0 %v8195
    %8303 = vmatpush1.bf16.msra.mxu0 %v8194
    %8304 = vmatprep.subr.bf16.mxu0 %v8191
    %8305 = vmatpush1.bf16.msra.mxu0 %v8190
    %8306 = vmatprep.subr.bf16.mxu0 %v8187
    %8307 = vmatpush1.bf16.msra.mxu0 %v8186
    %8308 = vmatprep.subr.bf16.mxu0 %v8183
    %8309 = vmatpush1.bf16.msra.mxu0 %v8182
    %8310 = vmatprep.subr.bf16.mxu0 %v8179
    %8311 = vmatpush1.bf16.msra.mxu0 %v8178
    %8312 = vmatprep.subr.bf16.mxu0 %v8175
    %8313 = vmatpush1.bf16.msra.mxu0 %v8174
    %8314 = vmatprep.subr.bf16.mxu0 0
    %8315 = vmatpush2.bf16.msra.mxu0 0
    %8316 = vmatprep.subr.bf16.mxu0 0
    %8317 = vmatpush2.bf16.msra.mxu0 0
    %8318 = vmatprep.subr.bf16.mxu0 0
    %8319 = vmatpush2.bf16.msra.mxu0 0
    %8320 = vmatprep.subr.bf16.mxu0 0
    %8321 = vmatpush2.bf16.msra.mxu0 0
    %8322 = vmatprep.subr.bf16.mxu0 0
    %8323 = vmatpush2.bf16.msra.mxu0 0
    %8324 = vmatprep.subr.bf16.mxu0 0
    %8325 = vmatpush2.bf16.msra.mxu0 0
    %8326 = vmatprep.subr.bf16.mxu0 0
    %8327 = vmatpush2.bf16.msra.mxu0 0
    %8328 = vmatprep.subr.bf16.mxu0 0
    %8329 = vmatpush2.bf16.msra.mxu0 0
    %8330 = vmatprep.mubr.bf16.mxu0 0
    %8331 = vmatmul.mubr.bf16.gmra.mxu0 %v8042
    %v8332 = vpop.f32.mrf.mxu0
    %v8333 = vadd.f32 %v8248, %v8332
    %v8334 = vpop.f32.mrf.mxu0
    %v8335 = vadd.f32 %v8252, %v8334
    %v8336 = vpop.f32.mrf.mxu0
    %v8337 = vpop.f32.mrf.mxu0
    %8338 = vdwg.mxu0
    %v8339 = vxor.u32 %v8292, 2147483648
    %v8340 = vmul.f32 %v8339, 1.442695
    %v8341 = vpow.pop %v8340
    %v8342 = vadd.f32 %v8341, 1.0
    %v8343 = vrcp.pop %v8342
    %v8344 = vmul.f32 1.0, %v8343
    %v8345 = vxor.u32 %v8294, 2147483648
    %v8346 = vmul.f32 %v8345, 1.442695
    %v8347 = vpow.pop %v8346
    %v8348 = vadd.f32 %v8347, 1.0
    %v8349 = vrcp.pop %v8348
    %v8350 = vmul.f32 1.0, %v8349
    %v8351 = vtanh.pop %v8333
    %v8352 = vxor.u32 %v8335, 2147483648
    %v8353 = vmul.f32 %v8352, 1.442695
    %v8354 = vpow.pop %v8353
    %v8355 = vadd.f32 %v8354, 1.0
    %v8356 = vrcp.pop %v8355
    %v8357 = vmul.f32 1.0, %v8356
    %v8358 = vmul.f32 %v8350, %v8041
    %v8359 = vmul.f32 %v8344, %v8351
    %v8360 = vadd.f32 %v8358, %v8359
    %v8361 = vtanh.pop %v8360
    %v8362 = vmul.f32 %v8357, %v8361
    %8363 = vst [vmem:[#allocation4] sm:$0x1] %v8362
    %8364 = vst [vmem:[#allocation5] sm:$0x1] %v8360
    %v8365 = vpack.c.bf16 %v8362, %v8362
    %v8366 = vld [vmem:[#allocation14] sm:$0xf]
    %v8367 = vld [vmem:[#allocation14 + $0x4] sm:$0xf]
    %v8368 = vld [vmem:[#allocation14 + $0x8] sm:$0xf]
    %v8369 = vld [vmem:[#allocation14 + $0xc] sm:$0xf]
    %v8370 = vld [vmem:[#allocation14 + $0x10] sm:$0xf]
    %v8371 = vld [vmem:[#allocation14 + $0x14] sm:$0xf]
    %v8372 = vld [vmem:[#allocation14 + $0x18] sm:$0xf]
    %v8373 = vld [vmem:[#allocation14 + $0x1c] sm:$0xf]
    %v8374 = vld [vmem:[#allocation14 + $0x20] sm:$0xf]
    %v8375 = vld [vmem:[#allocation14 + $0x24] sm:$0xf]
    %v8376 = vld [vmem:[#allocation14 + $0x28] sm:$0xf]
    %v8377 = vld [vmem:[#allocation14 + $0x2c] sm:$0xf]
    %v8378 = vld [vmem:[#allocation14 + $0x30] sm:$0xf]
    %v8379 = vld [vmem:[#allocation14 + $0x34] sm:$0xf]
    %v8380 = vld [vmem:[#allocation14 + $0x38] sm:$0xf]
    %v8381 = vld [vmem:[#allocation14 + $0x3c] sm:$0xf]
    %v8382 = vld [vmem:[%s6] sm:$0x1]
    %v8399 = vunpack.c.l.b16 %v8366
    %v8400 = vunpack.c.l.b16 %v8367
    %v8401 = vunpack.c.l.b16 %v8368
    %v8402 = vunpack.c.l.b16 %v8369
    %v8403 = vunpack.c.l.b16 %v8370
    %v8404 = vunpack.c.l.b16 %v8371
    %v8405 = vunpack.c.l.b16 %v8372
    %v8406 = vunpack.c.l.b16 %v8373
    %v8407 = vunpack.c.l.b16 %v8374
    %v8408 = vunpack.c.l.b16 %v8375
    %v8409 = vunpack.c.l.b16 %v8376
    %v8410 = vunpack.c.l.b16 %v8377
    %v8411 = vunpack.c.l.b16 %v8378
    %v8412 = vunpack.c.l.b16 %v8379
    %v8413 = vunpack.c.l.b16 %v8380
    %v8414 = vunpack.c.l.b16 %v8381
    %v8415 = vpack.c.b16 %v8400, %v8399
    %v8416 = vpack.c.b16 %v8402, %v8401
    %v8417 = vpack.c.b16 %v8404, %v8403
    %v8418 = vpack.c.b16 %v8406, %v8405
    %v8419 = vpack.c.b16 %v8408, %v8407
    %v8420 = vpack.c.b16 %v8410, %v8409
    %v8421 = vpack.c.b16 %v8412, %v8411
    %v8422 = vpack.c.b16 %v8414, %v8413
    %8431 = vmatprep.subr.bf16.mxu0 0
    %8432 = vmatpush1.bf16.msra.mxu0 %v8422
    %8433 = vmatprep.subr.bf16.mxu0 0
    %8434 = vmatpush1.bf16.msra.mxu0 %v8421
    %8435 = vmatprep.subr.bf16.mxu0 0
    %8436 = vmatpush1.bf16.msra.mxu0 %v8420
    %8437 = vmatprep.subr.bf16.mxu0 0
    %8438 = vmatpush1.bf16.msra.mxu0 %v8419
    %8439 = vmatprep.subr.bf16.mxu0 0
    %8440 = vmatpush1.bf16.msra.mxu0 %v8418
    %8441 = vmatprep.subr.bf16.mxu0 0
    %8442 = vmatpush1.bf16.msra.mxu0 %v8417
    %8443 = vmatprep.subr.bf16.mxu0 0
    %8444 = vmatpush1.bf16.msra.mxu0 %v8416
    %8445 = vmatprep.subr.bf16.mxu0 0
    %8446 = vmatpush1.bf16.msra.mxu0 %v8415
    %8447 = vmatprep.subr.bf16.mxu0 0
    %8448 = vmatpush2.bf16.msra.mxu0 0
    %8449 = vmatprep.subr.bf16.mxu0 0
    %8450 = vmatpush2.bf16.msra.mxu0 0
    %8451 = vmatprep.subr.bf16.mxu0 0
    %8452 = vmatpush2.bf16.msra.mxu0 0
    %8453 = vmatprep.subr.bf16.mxu0 0
    %8454 = vmatpush2.bf16.msra.mxu0 0
    %8455 = vmatprep.subr.bf16.mxu0 0
    %8456 = vmatpush2.bf16.msra.mxu0 0
    %8457 = vmatprep.subr.bf16.mxu0 0
    %8458 = vmatpush2.bf16.msra.mxu0 0
    %8459 = vmatprep.subr.bf16.mxu0 0
    %8460 = vmatpush2.bf16.msra.mxu0 0
    %8461 = vmatprep.subr.bf16.mxu0 0
    %8462 = vmatpush2.bf16.msra.mxu0 0
    %8463 = vmatprep.mubr.bf16.mxu0 0
    %8464 = vmatmul.mubr.bf16.gmra.mxu0 %v8365
    %v8465 = vpop.f32.mrf.mxu0
    %v8466 = vadd.f32 %v8382, %v8465
    %v8467 = vpop.f32.mrf.mxu0
    %v8468 = vpop.f32.mrf.mxu0
    %v8469 = vpop.f32.mrf.mxu0
    %8470 = vdwg.mxu0
    %s8471 = scalar_lea.vmem [#allocation15], 10
    %8472 = vst [vmem:[%s8471] sm:$0x1] %v8466
    %v8473 = vld [vmem:[#allocation2] sm:$0x1]
    %v8474 = vadd.f32 %v8473, %v8466
    %v8475 = vld [vmem:[#allocation3] sm:$0x1]
    %v8476 = vpack.c.bf16 %v8474, %v8474
    %v8477 = vld [vmem:[#allocation9] sm:$0xff]
    %v8478 = vld [vmem:[#allocation9 + $0x8] sm:$0xff]
    %v8479 = vld [vmem:[#allocation9 + $0x10] sm:$0xff]
    %v8480 = vld [vmem:[#allocation9 + $0x18] sm:$0xff]
    %v8481 = vld [vmem:[#allocation9 + $0x20] sm:$0xff]
    %v8482 = vld [vmem:[#allocation9 + $0x28] sm:$0xff]
    %v8483 = vld [vmem:[#allocation9 + $0x30] sm:$0xff]
    %v8484 = vld [vmem:[#allocation9 + $0x38] sm:$0xff]
    %v8485 = vld [vmem:[#allocation9 + $0x40] sm:$0xff]
    %v8486 = vld [vmem:[#allocation9 + $0x48] sm:$0xff]
    %v8487 = vld [vmem:[#allocation9 + $0x50] sm:$0xff]
    %v8488 = vld [vmem:[#allocation9 + $0x58] sm:$0xff]
    %v8489 = vld [vmem:[#allocation9 + $0x60] sm:$0xff]
    %v8490 = vld [vmem:[#allocation9 + $0x68] sm:$0xff]
    %v8491 = vld [vmem:[#allocation9 + $0x70] sm:$0xff]
    %v8492 = vld [vmem:[#allocation9 + $0x78] sm:$0xff]
    %v8493 = vld [vmem:[#allocation9 + $0x80] sm:$0xff]
    %v8494 = vld [vmem:[#allocation9 + $0x88] sm:$0xff]
    %v8495 = vld [vmem:[#allocation9 + $0x90] sm:$0xff]
    %v8496 = vld [vmem:[#allocation9 + $0x98] sm:$0xff]
    %v8497 = vld [vmem:[#allocation9 + $0xa0] sm:$0xff]
    %v8498 = vld [vmem:[#allocation9 + $0xa8] sm:$0xff]
    %v8499 = vld [vmem:[#allocation9 + $0xb0] sm:$0xff]
    %v8500 = vld [vmem:[#allocation9 + $0xb8] sm:$0xff]
    %v8501 = vld [vmem:[#allocation9 + $0xc0] sm:$0xff]
    %v8502 = vld [vmem:[#allocation9 + $0xc8] sm:$0xff]
    %v8503 = vld [vmem:[#allocation9 + $0xd0] sm:$0xff]
    %v8504 = vld [vmem:[#allocation9 + $0xd8] sm:$0xff]
    %v8505 = vld [vmem:[#allocation9 + $0xe0] sm:$0xff]
    %v8506 = vld [vmem:[#allocation9 + $0xe8] sm:$0xff]
    %v8507 = vld [vmem:[#allocation9 + $0xf0] sm:$0xff]
    %v8508 = vld [vmem:[#allocation9 + $0xf8] sm:$0xff]
    %v8509 = vld [vmem:[#allocation11] sm:$0xf]
    %v8542 = vunpack.c.l.b16 %v8477
    %v8543 = vunpack.c.h.b16 %v8477
    %v8544 = vunpack.c.l.b16 %v8478
    %v8545 = vunpack.c.h.b16 %v8478
    %v8546 = vunpack.c.l.b16 %v8479
    %v8547 = vunpack.c.h.b16 %v8479
    %v8548 = vunpack.c.l.b16 %v8480
    %v8549 = vunpack.c.h.b16 %v8480
    %v8550 = vunpack.c.l.b16 %v8481
    %v8551 = vunpack.c.h.b16 %v8481
    %v8552 = vunpack.c.l.b16 %v8482
    %v8553 = vunpack.c.h.b16 %v8482
    %v8554 = vunpack.c.l.b16 %v8483
    %v8555 = vunpack.c.h.b16 %v8483
    %v8556 = vunpack.c.l.b16 %v8484
    %v8557 = vunpack.c.h.b16 %v8484
    %v8558 = vunpack.c.l.b16 %v8485
    %v8559 = vunpack.c.h.b16 %v8485
    %v8560 = vunpack.c.l.b16 %v8486
    %v8561 = vunpack.c.h.b16 %v8486
    %v8562 = vunpack.c.l.b16 %v8487
    %v8563 = vunpack.c.h.b16 %v8487
    %v8564 = vunpack.c.l.b16 %v8488
    %v8565 = vunpack.c.h.b16 %v8488
    %v8566 = vunpack.c.l.b16 %v8489
    %v8567 = vunpack.c.h.b16 %v8489
    %v8568 = vunpack.c.l.b16 %v8490
    %v8569 = vunpack.c.h.b16 %v8490
    %v8570 = vunpack.c.l.b16 %v8491
    %v8571 = vunpack.c.h.b16 %v8491
    %v8572 = vunpack.c.l.b16 %v8492
    %v8573 = vunpack.c.h.b16 %v8492
    %v8574 = vunpack.c.l.b16 %v8493
    %v8575 = vunpack.c.h.b16 %v8493
    %v8576 = vunpack.c.l.b16 %v8494
    %v8577 = vunpack.c.h.b16 %v8494
    %v8578 = vunpack.c.l.b16 %v8495
    %v8579 = vunpack.c.h.b16 %v8495
    %v8580 = vunpack.c.l.b16 %v8496
    %v8581 = vunpack.c.h.b16 %v8496
    %v8582 = vunpack.c.l.b16 %v8497
    %v8583 = vunpack.c.h.b16 %v8497
    %v8584 = vunpack.c.l.b16 %v8498
    %v8585 = vunpack.c.h.b16 %v8498
    %v8586 = vunpack.c.l.b16 %v8499
    %v8587 = vunpack.c.h.b16 %v8499
    %v8588 = vunpack.c.l.b16 %v8500
    %v8589 = vunpack.c.h.b16 %v8500
    %v8590 = vunpack.c.l.b16 %v8501
    %v8591 = vunpack.c.h.b16 %v8501
    %v8592 = vunpack.c.l.b16 %v8502
    %v8593 = vunpack.c.h.b16 %v8502
    %v8594 = vunpack.c.l.b16 %v8503
    %v8595 = vunpack.c.h.b16 %v8503
    %v8596 = vunpack.c.l.b16 %v8504
    %v8597 = vunpack.c.h.b16 %v8504
    %v8598 = vunpack.c.l.b16 %v8505
    %v8599 = vunpack.c.h.b16 %v8505
    %v8600 = vunpack.c.l.b16 %v8506
    %v8601 = vunpack.c.h.b16 %v8506
    %v8602 = vunpack.c.l.b16 %v8507
    %v8603 = vunpack.c.h.b16 %v8507
    %v8604 = vunpack.c.l.b16 %v8508
    %v8605 = vunpack.c.h.b16 %v8508
    %v8606 = vpack.c.b16 %v8546, %v8542
    %v8607 = vpack.c.b16 %v8547, %v8543
    %v8608 = vpack.c.b16 %v8548, %v8544
    %v8609 = vpack.c.b16 %v8549, %v8545
    %v8610 = vpack.c.b16 %v8554, %v8550
    %v8611 = vpack.c.b16 %v8555, %v8551
    %v8612 = vpack.c.b16 %v8556, %v8552
    %v8613 = vpack.c.b16 %v8557, %v8553
    %v8614 = vpack.c.b16 %v8562, %v8558
    %v8615 = vpack.c.b16 %v8563, %v8559
    %v8616 = vpack.c.b16 %v8564, %v8560
    %v8617 = vpack.c.b16 %v8565, %v8561
    %v8618 = vpack.c.b16 %v8570, %v8566
    %v8619 = vpack.c.b16 %v8571, %v8567
    %v8620 = vpack.c.b16 %v8572, %v8568
    %v8621 = vpack.c.b16 %v8573, %v8569
    %v8622 = vpack.c.b16 %v8578, %v8574
    %v8623 = vpack.c.b16 %v8579, %v8575
    %v8624 = vpack.c.b16 %v8580, %v8576
    %v8625 = vpack.c.b16 %v8581, %v8577
    %v8626 = vpack.c.b16 %v8586, %v8582
    %v8627 = vpack.c.b16 %v8587, %v8583
    %v8628 = vpack.c.b16 %v8588, %v8584
    %v8629 = vpack.c.b16 %v8589, %v8585
    %v8630 = vpack.c.b16 %v8594, %v8590
    %v8631 = vpack.c.b16 %v8595, %v8591
    %v8632 = vpack.c.b16 %v8596, %v8592
    %v8633 = vpack.c.b16 %v8597, %v8593
    %v8634 = vpack.c.b16 %v8602, %v8598
    %v8635 = vpack.c.b16 %v8603, %v8599
    %v8636 = vpack.c.b16 %v8604, %v8600
    %v8637 = vpack.c.b16 %v8605, %v8601
    %v8671 = vlaneseq
    %v8672 = vshrl.u32 %v8671, 7
    %v8673 = vsub.s32 0, %v8672
    %v8674 = vrot.slane %v8509, %v8673
    %v8675 = vlaneseq
    %v8676 = vshrl.u32 %v8675, 7
    %v8677 = vsub.s32 1, %v8676
    %v8678 = vrot.slane %v8509, %v8677
    %v8679 = vlaneseq
    %v8680 = vshrl.u32 %v8679, 7
    %v8681 = vsub.s32 2, %v8680
    %v8682 = vrot.slane %v8509, %v8681
    %v8683 = vlaneseq
    %v8684 = vshrl.u32 %v8683, 7
    %v8685 = vsub.s32 3, %v8684
    %v8686 = vrot.slane %v8509, %v8685
    %8691 = vmatprep.subr.bf16.mxu0 %v8635
    %8692 = vmatpush1.bf16.msra.mxu0 %v8634
    %8693 = vmatprep.subr.bf16.mxu0 %v8631
    %8694 = vmatpush1.bf16.msra.mxu0 %v8630
    %8695 = vmatprep.subr.bf16.mxu0 %v8627
    %8696 = vmatpush1.bf16.msra.mxu0 %v8626
    %8697 = vmatprep.subr.bf16.mxu0 %v8623
    %8698 = vmatpush1.bf16.msra.mxu0 %v8622
    %8699 = vmatprep.subr.bf16.mxu0 %v8619
    %8700 = vmatpush1.bf16.msra.mxu0 %v8618
    %8701 = vmatprep.subr.bf16.mxu0 %v8615
    %8702 = vmatpush1.bf16.msra.mxu0 %v8614
    %8703 = vmatprep.subr.bf16.mxu0 %v8611
    %8704 = vmatpush1.bf16.msra.mxu0 %v8610
    %8705 = vmatprep.subr.bf16.mxu0 %v8607
    %8706 = vmatpush1.bf16.msra.mxu0 %v8606
    %8707 = vmatprep.subr.bf16.mxu0 0
    %8708 = vmatpush2.bf16.msra.mxu0 0
    %8709 = vmatprep.subr.bf16.mxu0 0
    %8710 = vmatpush2.bf16.msra.mxu0 0
    %8711 = vmatprep.subr.bf16.mxu0 0
    %8712 = vmatpush2.bf16.msra.mxu0 0
    %8713 = vmatprep.subr.bf16.mxu0 0
    %8714 = vmatpush2.bf16.msra.mxu0 0
    %8715 = vmatprep.subr.bf16.mxu0 0
    %8716 = vmatpush2.bf16.msra.mxu0 0
    %8717 = vmatprep.subr.bf16.mxu0 0
    %8718 = vmatpush2.bf16.msra.mxu0 0
    %8719 = vmatprep.subr.bf16.mxu0 0
    %8720 = vmatpush2.bf16.msra.mxu0 0
    %8721 = vmatprep.subr.bf16.mxu0 0
    %8722 = vmatpush2.bf16.msra.mxu0 0
    %8723 = vmatprep.mubr.bf16.mxu0 0
    %8724 = vmatmul.mubr.bf16.gmra.mxu0 %v8476
    %v8725 = vpop.f32.mrf.mxu0
    %v8726 = vadd.f32 %v8674, %v8725
    %v8727 = vpop.f32.mrf.mxu0
    %v8728 = vadd.f32 %v8678, %v8727
    %v8729 = vpop.f32.mrf.mxu0
    %v8730 = vpop.f32.mrf.mxu0
    %8731 = vdwg.mxu0
    %8732 = vmatprep.subr.bf16.mxu0 %v8637
    %8733 = vmatpush1.bf16.msra.mxu0 %v8636
    %8734 = vmatprep.subr.bf16.mxu0 %v8633
    %8735 = vmatpush1.bf16.msra.mxu0 %v8632
    %8736 = vmatprep.subr.bf16.mxu0 %v8629
    %8737 = vmatpush1.bf16.msra.mxu0 %v8628
    %8738 = vmatprep.subr.bf16.mxu0 %v8625
    %8739 = vmatpush1.bf16.msra.mxu0 %v8624
    %8740 = vmatprep.subr.bf16.mxu0 %v8621
    %8741 = vmatpush1.bf16.msra.mxu0 %v8620
    %8742 = vmatprep.subr.bf16.mxu0 %v8617
    %8743 = vmatpush1.bf16.msra.mxu0 %v8616
    %8744 = vmatprep.subr.bf16.mxu0 %v8613
    %8745 = vmatpush1.bf16.msra.mxu0 %v8612
    %8746 = vmatprep.subr.bf16.mxu0 %v8609
    %8747 = vmatpush1.bf16.msra.mxu0 %v8608
    %8748 = vmatprep.subr.bf16.mxu0 0
    %8749 = vmatpush2.bf16.msra.mxu0 0
    %8750 = vmatprep.subr.bf16.mxu0 0
    %8751 = vmatpush2.bf16.msra.mxu0 0
    %8752 = vmatprep.subr.bf16.mxu0 0
    %8753 = vmatpush2.bf16.msra.mxu0 0
    %8754 = vmatprep.subr.bf16.mxu0 0
    %8755 = vmatpush2.bf16.msra.mxu0 0
    %8756 = vmatprep.subr.bf16.mxu0 0
    %8757 = vmatpush2.bf16.msra.mxu0 0
    %8758 = vmatprep.subr.bf16.mxu0 0
    %8759 = vmatpush2.bf16.msra.mxu0 0
    %8760 = vmatprep.subr.bf16.mxu0 0
    %8761 = vmatpush2.bf16.msra.mxu0 0
    %8762 = vmatprep.subr.bf16.mxu0 0
    %8763 = vmatpush2.bf16.msra.mxu0 0
    %8764 = vmatprep.mubr.bf16.mxu0 0
    %8765 = vmatmul.mubr.bf16.gmra.mxu0 %v8476
    %v8766 = vpop.f32.mrf.mxu0
    %v8767 = vadd.f32 %v8682, %v8766
    %v8768 = vpop.f32.mrf.mxu0
    %v8769 = vadd.f32 %v8686, %v8768
    %v8770 = vpop.f32.mrf.mxu0
    %v8771 = vpop.f32.mrf.mxu0
    %8772 = vdwg.mxu0
    %v8773 = vxor.u32 %v8726, 2147483648
    %v8774 = vmul.f32 %v8773, 1.442695
    %v8775 = vpow.pop %v8774
    %v8776 = vadd.f32 %v8775, 1.0
    %v8777 = vrcp.pop %v8776
    %v8778 = vmul.f32 1.0, %v8777
    %v8779 = vxor.u32 %v8728, 2147483648
    %v8780 = vmul.f32 %v8779, 1.442695
    %v8781 = vpow.pop %v8780
    %v8782 = vadd.f32 %v8781, 1.0
    %v8783 = vrcp.pop %v8782
    %v8784 = vmul.f32 1.0, %v8783
    %v8785 = vtanh.pop %v8767
    %v8786 = vxor.u32 %v8769, 2147483648
    %v8787 = vmul.f32 %v8786, 1.442695
    %v8788 = vpow.pop %v8787
    %v8789 = vadd.f32 %v8788, 1.0
    %v8790 = vrcp.pop %v8789
    %v8791 = vmul.f32 1.0, %v8790
    %v8792 = vmul.f32 %v8784, %v8475
    %v8793 = vmul.f32 %v8778, %v8785
    %v8794 = vadd.f32 %v8792, %v8793
    %v8795 = vtanh.pop %v8794
    %v8796 = vmul.f32 %v8791, %v8795
    %8797 = vst [vmem:[#allocation2] sm:$0x1] %v8796
    %8798 = vst [vmem:[#allocation3] sm:$0x1] %v8794
    %v8799 = vld [vmem:[#allocation4] sm:$0x1]
    %v8800 = vadd.f32 %v8796, %v8799
    %v8801 = vld [vmem:[#allocation5] sm:$0x1]
    %v8802 = vpack.c.bf16 %v8800, %v8800
    %v8803 = vld [vmem:[#allocation12] sm:$0xff]
    %v8804 = vld [vmem:[#allocation12 + $0x8] sm:$0xff]
    %v8805 = vld [vmem:[#allocation12 + $0x10] sm:$0xff]
    %v8806 = vld [vmem:[#allocation12 + $0x18] sm:$0xff]
    %v8807 = vld [vmem:[#allocation12 + $0x20] sm:$0xff]
    %v8808 = vld [vmem:[#allocation12 + $0x28] sm:$0xff]
    %v8809 = vld [vmem:[#allocation12 + $0x30] sm:$0xff]
    %v8810 = vld [vmem:[#allocation12 + $0x38] sm:$0xff]
    %v8811 = vld [vmem:[#allocation12 + $0x40] sm:$0xff]
    %v8812 = vld [vmem:[#allocation12 + $0x48] sm:$0xff]
    %v8813 = vld [vmem:[#allocation12 + $0x50] sm:$0xff]
    %v8814 = vld [vmem:[#allocation12 + $0x58] sm:$0xff]
    %v8815 = vld [vmem:[#allocation12 + $0x60] sm:$0xff]
    %v8816 = vld [vmem:[#allocation12 + $0x68] sm:$0xff]
    %v8817 = vld [vmem:[#allocation12 + $0x70] sm:$0xff]
    %v8818 = vld [vmem:[#allocation12 + $0x78] sm:$0xff]
    %v8819 = vld [vmem:[#allocation12 + $0x80] sm:$0xff]
    %v8820 = vld [vmem:[#allocation12 + $0x88] sm:$0xff]
    %v8821 = vld [vmem:[#allocation12 + $0x90] sm:$0xff]
    %v8822 = vld [vmem:[#allocation12 + $0x98] sm:$0xff]
    %v8823 = vld [vmem:[#allocation12 + $0xa0] sm:$0xff]
    %v8824 = vld [vmem:[#allocation12 + $0xa8] sm:$0xff]
    %v8825 = vld [vmem:[#allocation12 + $0xb0] sm:$0xff]
    %v8826 = vld [vmem:[#allocation12 + $0xb8] sm:$0xff]
    %v8827 = vld [vmem:[#allocation12 + $0xc0] sm:$0xff]
    %v8828 = vld [vmem:[#allocation12 + $0xc8] sm:$0xff]
    %v8829 = vld [vmem:[#allocation12 + $0xd0] sm:$0xff]
    %v8830 = vld [vmem:[#allocation12 + $0xd8] sm:$0xff]
    %v8831 = vld [vmem:[#allocation12 + $0xe0] sm:$0xff]
    %v8832 = vld [vmem:[#allocation12 + $0xe8] sm:$0xff]
    %v8833 = vld [vmem:[#allocation12 + $0xf0] sm:$0xff]
    %v8834 = vld [vmem:[#allocation12 + $0xf8] sm:$0xff]
    %v8835 = vld [vmem:[%s4] sm:$0xf]
    %v8868 = vunpack.c.l.b16 %v8803
    %v8869 = vunpack.c.h.b16 %v8803
    %v8870 = vunpack.c.l.b16 %v8804
    %v8871 = vunpack.c.h.b16 %v8804
    %v8872 = vunpack.c.l.b16 %v8805
    %v8873 = vunpack.c.h.b16 %v8805
    %v8874 = vunpack.c.l.b16 %v8806
    %v8875 = vunpack.c.h.b16 %v8806
    %v8876 = vunpack.c.l.b16 %v8807
    %v8877 = vunpack.c.h.b16 %v8807
    %v8878 = vunpack.c.l.b16 %v8808
    %v8879 = vunpack.c.h.b16 %v8808
    %v8880 = vunpack.c.l.b16 %v8809
    %v8881 = vunpack.c.h.b16 %v8809
    %v8882 = vunpack.c.l.b16 %v8810
    %v8883 = vunpack.c.h.b16 %v8810
    %v8884 = vunpack.c.l.b16 %v8811
    %v8885 = vunpack.c.h.b16 %v8811
    %v8886 = vunpack.c.l.b16 %v8812
    %v8887 = vunpack.c.h.b16 %v8812
    %v8888 = vunpack.c.l.b16 %v8813
    %v8889 = vunpack.c.h.b16 %v8813
    %v8890 = vunpack.c.l.b16 %v8814
    %v8891 = vunpack.c.h.b16 %v8814
    %v8892 = vunpack.c.l.b16 %v8815
    %v8893 = vunpack.c.h.b16 %v8815
    %v8894 = vunpack.c.l.b16 %v8816
    %v8895 = vunpack.c.h.b16 %v8816
    %v8896 = vunpack.c.l.b16 %v8817
    %v8897 = vunpack.c.h.b16 %v8817
    %v8898 = vunpack.c.l.b16 %v8818
    %v8899 = vunpack.c.h.b16 %v8818
    %v8900 = vunpack.c.l.b16 %v8819
    %v8901 = vunpack.c.h.b16 %v8819
    %v8902 = vunpack.c.l.b16 %v8820
    %v8903 = vunpack.c.h.b16 %v8820
    %v8904 = vunpack.c.l.b16 %v8821
    %v8905 = vunpack.c.h.b16 %v8821
    %v8906 = vunpack.c.l.b16 %v8822
    %v8907 = vunpack.c.h.b16 %v8822
    %v8908 = vunpack.c.l.b16 %v8823
    %v8909 = vunpack.c.h.b16 %v8823
    %v8910 = vunpack.c.l.b16 %v8824
    %v8911 = vunpack.c.h.b16 %v8824
    %v8912 = vunpack.c.l.b16 %v8825
    %v8913 = vunpack.c.h.b16 %v8825
    %v8914 = vunpack.c.l.b16 %v8826
    %v8915 = vunpack.c.h.b16 %v8826
    %v8916 = vunpack.c.l.b16 %v8827
    %v8917 = vunpack.c.h.b16 %v8827
    %v8918 = vunpack.c.l.b16 %v8828
    %v8919 = vunpack.c.h.b16 %v8828
    %v8920 = vunpack.c.l.b16 %v8829
    %v8921 = vunpack.c.h.b16 %v8829
    %v8922 = vunpack.c.l.b16 %v8830
    %v8923 = vunpack.c.h.b16 %v8830
    %v8924 = vunpack.c.l.b16 %v8831
    %v8925 = vunpack.c.h.b16 %v8831
    %v8926 = vunpack.c.l.b16 %v8832
    %v8927 = vunpack.c.h.b16 %v8832
    %v8928 = vunpack.c.l.b16 %v8833
    %v8929 = vunpack.c.h.b16 %v8833
    %v8930 = vunpack.c.l.b16 %v8834
    %v8931 = vunpack.c.h.b16 %v8834
    %v8932 = vpack.c.b16 %v8872, %v8868
    %v8933 = vpack.c.b16 %v8873, %v8869
    %v8934 = vpack.c.b16 %v8874, %v8870
    %v8935 = vpack.c.b16 %v8875, %v8871
    %v8936 = vpack.c.b16 %v8880, %v8876
    %v8937 = vpack.c.b16 %v8881, %v8877
    %v8938 = vpack.c.b16 %v8882, %v8878
    %v8939 = vpack.c.b16 %v8883, %v8879
    %v8940 = vpack.c.b16 %v8888, %v8884
    %v8941 = vpack.c.b16 %v8889, %v8885
    %v8942 = vpack.c.b16 %v8890, %v8886
    %v8943 = vpack.c.b16 %v8891, %v8887
    %v8944 = vpack.c.b16 %v8896, %v8892
    %v8945 = vpack.c.b16 %v8897, %v8893
    %v8946 = vpack.c.b16 %v8898, %v8894
    %v8947 = vpack.c.b16 %v8899, %v8895
    %v8948 = vpack.c.b16 %v8904, %v8900
    %v8949 = vpack.c.b16 %v8905, %v8901
    %v8950 = vpack.c.b16 %v8906, %v8902
    %v8951 = vpack.c.b16 %v8907, %v8903
    %v8952 = vpack.c.b16 %v8912, %v8908
    %v8953 = vpack.c.b16 %v8913, %v8909
    %v8954 = vpack.c.b16 %v8914, %v8910
    %v8955 = vpack.c.b16 %v8915, %v8911
    %v8956 = vpack.c.b16 %v8920, %v8916
    %v8957 = vpack.c.b16 %v8921, %v8917
    %v8958 = vpack.c.b16 %v8922, %v8918
    %v8959 = vpack.c.b16 %v8923, %v8919
    %v8960 = vpack.c.b16 %v8928, %v8924
    %v8961 = vpack.c.b16 %v8929, %v8925
    %v8962 = vpack.c.b16 %v8930, %v8926
    %v8963 = vpack.c.b16 %v8931, %v8927
    %v8997 = vlaneseq
    %v8998 = vshrl.u32 %v8997, 7
    %v8999 = vsub.s32 0, %v8998
    %v9000 = vrot.slane %v8835, %v8999
    %v9001 = vlaneseq
    %v9002 = vshrl.u32 %v9001, 7
    %v9003 = vsub.s32 1, %v9002
    %v9004 = vrot.slane %v8835, %v9003
    %v9005 = vlaneseq
    %v9006 = vshrl.u32 %v9005, 7
    %v9007 = vsub.s32 2, %v9006
    %v9008 = vrot.slane %v8835, %v9007
    %v9009 = vlaneseq
    %v9010 = vshrl.u32 %v9009, 7
    %v9011 = vsub.s32 3, %v9010
    %v9012 = vrot.slane %v8835, %v9011
    %9017 = vmatprep.subr.bf16.mxu0 %v8961
    %9018 = vmatpush1.bf16.msra.mxu0 %v8960
    %9019 = vmatprep.subr.bf16.mxu0 %v8957
    %9020 = vmatpush1.bf16.msra.mxu0 %v8956
    %9021 = vmatprep.subr.bf16.mxu0 %v8953
    %9022 = vmatpush1.bf16.msra.mxu0 %v8952
    %9023 = vmatprep.subr.bf16.mxu0 %v8949
    %9024 = vmatpush1.bf16.msra.mxu0 %v8948
    %9025 = vmatprep.subr.bf16.mxu0 %v8945
    %9026 = vmatpush1.bf16.msra.mxu0 %v8944
    %9027 = vmatprep.subr.bf16.mxu0 %v8941
    %9028 = vmatpush1.bf16.msra.mxu0 %v8940
    %9029 = vmatprep.subr.bf16.mxu0 %v8937
    %9030 = vmatpush1.bf16.msra.mxu0 %v8936
    %9031 = vmatprep.subr.bf16.mxu0 %v8933
    %9032 = vmatpush1.bf16.msra.mxu0 %v8932
    %9033 = vmatprep.subr.bf16.mxu0 0
    %9034 = vmatpush2.bf16.msra.mxu0 0
    %9035 = vmatprep.subr.bf16.mxu0 0
    %9036 = vmatpush2.bf16.msra.mxu0 0
    %9037 = vmatprep.subr.bf16.mxu0 0
    %9038 = vmatpush2.bf16.msra.mxu0 0
    %9039 = vmatprep.subr.bf16.mxu0 0
    %9040 = vmatpush2.bf16.msra.mxu0 0
    %9041 = vmatprep.subr.bf16.mxu0 0
    %9042 = vmatpush2.bf16.msra.mxu0 0
    %9043 = vmatprep.subr.bf16.mxu0 0
    %9044 = vmatpush2.bf16.msra.mxu0 0
    %9045 = vmatprep.subr.bf16.mxu0 0
    %9046 = vmatpush2.bf16.msra.mxu0 0
    %9047 = vmatprep.subr.bf16.mxu0 0
    %9048 = vmatpush2.bf16.msra.mxu0 0
    %9049 = vmatprep.mubr.bf16.mxu0 0
    %9050 = vmatmul.mubr.bf16.gmra.mxu0 %v8802
    %v9051 = vpop.f32.mrf.mxu0
    %v9052 = vadd.f32 %v9000, %v9051
    %v9053 = vpop.f32.mrf.mxu0
    %v9054 = vadd.f32 %v9004, %v9053
    %v9055 = vpop.f32.mrf.mxu0
    %v9056 = vpop.f32.mrf.mxu0
    %9057 = vdwg.mxu0
    %9058 = vmatprep.subr.bf16.mxu0 %v8963
    %9059 = vmatpush1.bf16.msra.mxu0 %v8962
    %9060 = vmatprep.subr.bf16.mxu0 %v8959
    %9061 = vmatpush1.bf16.msra.mxu0 %v8958
    %9062 = vmatprep.subr.bf16.mxu0 %v8955
    %9063 = vmatpush1.bf16.msra.mxu0 %v8954
    %9064 = vmatprep.subr.bf16.mxu0 %v8951
    %9065 = vmatpush1.bf16.msra.mxu0 %v8950
    %9066 = vmatprep.subr.bf16.mxu0 %v8947
    %9067 = vmatpush1.bf16.msra.mxu0 %v8946
    %9068 = vmatprep.subr.bf16.mxu0 %v8943
    %9069 = vmatpush1.bf16.msra.mxu0 %v8942
    %9070 = vmatprep.subr.bf16.mxu0 %v8939
    %9071 = vmatpush1.bf16.msra.mxu0 %v8938
    %9072 = vmatprep.subr.bf16.mxu0 %v8935
    %9073 = vmatpush1.bf16.msra.mxu0 %v8934
    %9074 = vmatprep.subr.bf16.mxu0 0
    %9075 = vmatpush2.bf16.msra.mxu0 0
    %9076 = vmatprep.subr.bf16.mxu0 0
    %9077 = vmatpush2.bf16.msra.mxu0 0
    %9078 = vmatprep.subr.bf16.mxu0 0
    %9079 = vmatpush2.bf16.msra.mxu0 0
    %9080 = vmatprep.subr.bf16.mxu0 0
    %9081 = vmatpush2.bf16.msra.mxu0 0
    %9082 = vmatprep.subr.bf16.mxu0 0
    %9083 = vmatpush2.bf16.msra.mxu0 0
    %9084 = vmatprep.subr.bf16.mxu0 0
    %9085 = vmatpush2.bf16.msra.mxu0 0
    %9086 = vmatprep.subr.bf16.mxu0 0
    %9087 = vmatpush2.bf16.msra.mxu0 0
    %9088 = vmatprep.subr.bf16.mxu0 0
    %9089 = vmatpush2.bf16.msra.mxu0 0
    %9090 = vmatprep.mubr.bf16.mxu0 0
    %9091 = vmatmul.mubr.bf16.gmra.mxu0 %v8802
    %v9092 = vpop.f32.mrf.mxu0
    %v9093 = vadd.f32 %v9008, %v9092
    %v9094 = vpop.f32.mrf.mxu0
    %v9095 = vadd.f32 %v9012, %v9094
    %v9096 = vpop.f32.mrf.mxu0
    %v9097 = vpop.f32.mrf.mxu0
    %9098 = vdwg.mxu0
    %v9099 = vxor.u32 %v9052, 2147483648
    %v9100 = vmul.f32 %v9099, 1.442695
    %v9101 = vpow.pop %v9100
    %v9102 = vadd.f32 %v9101, 1.0
    %v9103 = vrcp.pop %v9102
    %v9104 = vmul.f32 1.0, %v9103
    %v9105 = vxor.u32 %v9054, 2147483648
    %v9106 = vmul.f32 %v9105, 1.442695
    %v9107 = vpow.pop %v9106
    %v9108 = vadd.f32 %v9107, 1.0
    %v9109 = vrcp.pop %v9108
    %v9110 = vmul.f32 1.0, %v9109
    %v9111 = vtanh.pop %v9093
    %v9112 = vxor.u32 %v9095, 2147483648
    %v9113 = vmul.f32 %v9112, 1.442695
    %v9114 = vpow.pop %v9113
    %v9115 = vadd.f32 %v9114, 1.0
    %v9116 = vrcp.pop %v9115
    %v9117 = vmul.f32 1.0, %v9116
    %v9118 = vmul.f32 %v9110, %v8801
    %v9119 = vmul.f32 %v9104, %v9111
    %v9120 = vadd.f32 %v9118, %v9119
    %v9121 = vtanh.pop %v9120
    %v9122 = vmul.f32 %v9117, %v9121
    %9123 = vst [vmem:[#allocation4] sm:$0x1] %v9122
    %9124 = vst [vmem:[#allocation5] sm:$0x1] %v9120
    %v9125 = vpack.c.bf16 %v9122, %v9122
    %v9126 = vld [vmem:[#allocation14] sm:$0xf]
    %v9127 = vld [vmem:[#allocation14 + $0x4] sm:$0xf]
    %v9128 = vld [vmem:[#allocation14 + $0x8] sm:$0xf]
    %v9129 = vld [vmem:[#allocation14 + $0xc] sm:$0xf]
    %v9130 = vld [vmem:[#allocation14 + $0x10] sm:$0xf]
    %v9131 = vld [vmem:[#allocation14 + $0x14] sm:$0xf]
    %v9132 = vld [vmem:[#allocation14 + $0x18] sm:$0xf]
    %v9133 = vld [vmem:[#allocation14 + $0x1c] sm:$0xf]
    %v9134 = vld [vmem:[#allocation14 + $0x20] sm:$0xf]
    %v9135 = vld [vmem:[#allocation14 + $0x24] sm:$0xf]
    %v9136 = vld [vmem:[#allocation14 + $0x28] sm:$0xf]
    %v9137 = vld [vmem:[#allocation14 + $0x2c] sm:$0xf]
    %v9138 = vld [vmem:[#allocation14 + $0x30] sm:$0xf]
    %v9139 = vld [vmem:[#allocation14 + $0x34] sm:$0xf]
    %v9140 = vld [vmem:[#allocation14 + $0x38] sm:$0xf]
    %v9141 = vld [vmem:[#allocation14 + $0x3c] sm:$0xf]
    %v9142 = vld [vmem:[%s6] sm:$0x1]
    %v9159 = vunpack.c.l.b16 %v9126
    %v9160 = vunpack.c.l.b16 %v9127
    %v9161 = vunpack.c.l.b16 %v9128
    %v9162 = vunpack.c.l.b16 %v9129
    %v9163 = vunpack.c.l.b16 %v9130
    %v9164 = vunpack.c.l.b16 %v9131
    %v9165 = vunpack.c.l.b16 %v9132
    %v9166 = vunpack.c.l.b16 %v9133
    %v9167 = vunpack.c.l.b16 %v9134
    %v9168 = vunpack.c.l.b16 %v9135
    %v9169 = vunpack.c.l.b16 %v9136
    %v9170 = vunpack.c.l.b16 %v9137
    %v9171 = vunpack.c.l.b16 %v9138
    %v9172 = vunpack.c.l.b16 %v9139
    %v9173 = vunpack.c.l.b16 %v9140
    %v9174 = vunpack.c.l.b16 %v9141
    %v9175 = vpack.c.b16 %v9160, %v9159
    %v9176 = vpack.c.b16 %v9162, %v9161
    %v9177 = vpack.c.b16 %v9164, %v9163
    %v9178 = vpack.c.b16 %v9166, %v9165
    %v9179 = vpack.c.b16 %v9168, %v9167
    %v9180 = vpack.c.b16 %v9170, %v9169
    %v9181 = vpack.c.b16 %v9172, %v9171
    %v9182 = vpack.c.b16 %v9174, %v9173
    %9191 = vmatprep.subr.bf16.mxu0 0
    %9192 = vmatpush1.bf16.msra.mxu0 %v9182
    %9193 = vmatprep.subr.bf16.mxu0 0
    %9194 = vmatpush1.bf16.msra.mxu0 %v9181
    %9195 = vmatprep.subr.bf16.mxu0 0
    %9196 = vmatpush1.bf16.msra.mxu0 %v9180
    %9197 = vmatprep.subr.bf16.mxu0 0
    %9198 = vmatpush1.bf16.msra.mxu0 %v9179
    %9199 = vmatprep.subr.bf16.mxu0 0
    %9200 = vmatpush1.bf16.msra.mxu0 %v9178
    %9201 = vmatprep.subr.bf16.mxu0 0
    %9202 = vmatpush1.bf16.msra.mxu0 %v9177
    %9203 = vmatprep.subr.bf16.mxu0 0
    %9204 = vmatpush1.bf16.msra.mxu0 %v9176
    %9205 = vmatprep.subr.bf16.mxu0 0
    %9206 = vmatpush1.bf16.msra.mxu0 %v9175
    %9207 = vmatprep.subr.bf16.mxu0 0
    %9208 = vmatpush2.bf16.msra.mxu0 0
    %9209 = vmatprep.subr.bf16.mxu0 0
    %9210 = vmatpush2.bf16.msra.mxu0 0
    %9211 = vmatprep.subr.bf16.mxu0 0
    %9212 = vmatpush2.bf16.msra.mxu0 0
    %9213 = vmatprep.subr.bf16.mxu0 0
    %9214 = vmatpush2.bf16.msra.mxu0 0
    %9215 = vmatprep.subr.bf16.mxu0 0
    %9216 = vmatpush2.bf16.msra.mxu0 0
    %9217 = vmatprep.subr.bf16.mxu0 0
    %9218 = vmatpush2.bf16.msra.mxu0 0
    %9219 = vmatprep.subr.bf16.mxu0 0
    %9220 = vmatpush2.bf16.msra.mxu0 0
    %9221 = vmatprep.subr.bf16.mxu0 0
    %9222 = vmatpush2.bf16.msra.mxu0 0
    %9223 = vmatprep.mubr.bf16.mxu0 0
    %9224 = vmatmul.mubr.bf16.gmra.mxu0 %v9125
    %v9225 = vpop.f32.mrf.mxu0
    %v9226 = vadd.f32 %v9142, %v9225
    %v9227 = vpop.f32.mrf.mxu0
    %v9228 = vpop.f32.mrf.mxu0
    %v9229 = vpop.f32.mrf.mxu0
    %9230 = vdwg.mxu0
    %s9231 = scalar_lea.vmem [#allocation15], 11
    %9232 = vst [vmem:[%s9231] sm:$0x1] %v9226
    // Predicated region
    $region50: #{tpu_custom_call.1} parent=1 // pred_check
      _
    $region51: #{tpu_custom_call.1} parent=1 // pred_check_branch
      %9234 = sbr.rel (0) target = $region53
    $region52: #{tpu_custom_call.1} parent=1 // pred_region
      %s9236 = ssub.s32 192, 192
      %9237 = vsyncadd [#allocation8], %s9236
      %s9238 = sshll.u32 [#allocation15], 4
      %s9239 = int_to_ptr.vmem [resolvable:$true] %s9238
      %9244 = dma.vmem_to_hbm [thread:$0]  %s9239, 192, %s7, [#allocation8], 16, 16, 1
    $region53: #{tpu_custom_call.1} parent=1 // pred_fallthru
      _
    // Predicated region
    $region54: #{tpu_custom_call.1} parent=1 // pred_check
      _
    $region55: #{tpu_custom_call.1} parent=1 // pred_check_branch
      %9246 = sbr.rel (0) target = $region57
    $region56: #{tpu_custom_call.1} parent=1 // pred_region
      %9247 = dma.done [#allocation8], 192
    $region57: #{tpu_custom_call.1} parent=1 // pred_fallthru
      _
    %9248 = vsyncpa [#allocation7], 1
    %9249 = vsyncpa [#allocation10], 1
    %9250 = vsyncpa [#allocation13], 1
    %9251 = vsyncpa [#allocation8], 1

</llo_original>
